<compile_context>
chip_gen: v7x
topology: tpu7x:2x2x1
jax: 0.10.0
libtpu: 0.0.40
codegen_flags: <defaults>
</compile_context>

<pallas_src>
import functools

import jax
import jax.numpy as jnp
from jax.experimental import pallas as pl
from jax.experimental.pallas import tpu as pltpu

BN_EPS = 1e-5


def _bn_scale_bias(h, gamma, beta):
    """Training-mode BN over an (M, C) slab folded into per-channel scale/bias.

    Two-pass (centered) variance: matches the reference and avoids the
    catastrophic cancellation of E[x^2] - E[x]^2.
    """
    mean = jnp.mean(h, axis=0, keepdims=True)
    diff = h - mean
    var = jnp.mean(diff * diff, axis=0, keepdims=True)
    scale = gamma * jax.lax.rsqrt(var + BN_EPS)        # rsqrt -> EUP slot
    bias = beta - mean * scale
    return scale, bias


def _bottleneck_kernel(N, H, W, Cin, width, Cout, use_se, *refs):
    if use_se:
        (x_ref, w1_ref, w2_ref, w3_ref,
         g1_ref, b1_ref, g2_ref, b2_ref, g3_ref, b3_ref,
         f1w_ref, f1b_ref, f2w_ref, f2b_ref,
         o_ref, pad_ref, col_ref) = refs
    else:
        (x_ref, w1_ref, w2_ref, w3_ref,
         g1_ref, b1_ref, g2_ref, b2_ref, g3_ref, b3_ref,
         o_ref, pad_ref, col_ref) = refs

    NHW = N * H * W
    f32 = jnp.float32
    bf16 = jnp.bfloat16

    x = x_ref[...]                                     # (N, H, W, Cin) f32
    xf = x.reshape(NHW, Cin)

    # ---- conv1 (1x1, no bias) + bn1 + relu (bf16 MXU operands, f32 acc) ----
    h = jnp.dot(xf.astype(bf16), w1_ref[...],
                preferred_element_type=f32)            # (NHW, width)
    sc1, bi1 = _bn_scale_bias(h, g1_ref[...], b1_ref[...])
    h = jnp.maximum(h * sc1 + bi1, 0.0)

    # ---- conv2 (3x3, stride=1, pad=1, no bias) as ONE im2col matmul --------
    pad_ref[...] = jnp.zeros_like(pad_ref)             # dense memset (tiny)
    pad_ref[:, 1:H + 1, 1:W + 1, :] = h.reshape(N, H, W, width)

    # Write the 9 shifted windows straight into the bf16 col scratch; each
    # store is lane-aligned (offsets are multiples of width=128).
    idx = 0
    for dy in range(3):
        for dx in range(3):
            col_ref[:, idx * width:(idx + 1) * width] = (
                pad_ref[:, dy:dy + H, dx:dx + W, :]
                .reshape(NHW, width).astype(bf16))
            idx += 1

    h = jnp.dot(col_ref[...], w2_ref[...],
                preferred_element_type=f32)            # (NHW, width), K=9*width
    sc2, bi2 = _bn_scale_bias(h, g2_ref[...], b2_ref[...])
    h = jnp.maximum(h * sc2 + bi2, 0.0)

    # ---- conv3 (1x1, no bias) + bn3 ----------------------------------------
    h = jnp.dot(h.astype(bf16), w3_ref[...],
                preferred_element_type=f32)            # (NHW, Cout)
    sc3, bi3 = _bn_scale_bias(h, g3_ref[...], b3_ref[...])
    h = h * sc3 + bi3

    # ---- optional Squeeze-and-Excitation ------------------------------------
    if use_se:
        h3 = h.reshape(N, H * W, Cout)
        pooled = jnp.mean(h3, axis=1)                  # (N, Cout) f32
        s = jnp.dot(pooled.astype(bf16), f1w_ref[...],
                    preferred_element_type=f32) + f1b_ref[...]
        s = jnp.maximum(s, 0.0)
        s = jnp.dot(s.astype(bf16), f2w_ref[...],
                    preferred_element_type=f32) + f2b_ref[...]
        s = 1.0 / (1.0 + jnp.exp(-s))                  # exact sigmoid (tiny)
        h = (h3 * s[:, None, :]).reshape(NHW, Cout)

    # ---- residual add (stride=1, downsample=None -> identity) + relu --------
    o_ref[...] = jnp.maximum(h + xf, 0.0).reshape(N, H, W, Cout)


def bottleneck_forward(x_nhwc, params, use_se):
    """x_nhwc: (N, H, W, Cin) float32.  Returns (N, H, W, Cout) float32."""
    N, H, W, Cin = x_nhwc.shape
    width = params["w1"].shape[1]
    Cout = params["w3"].shape[1]
    assert Cin == Cout, "identity residual requires inplanes == planes * expansion"

    bf16 = jnp.bfloat16
    w1 = params["w1"].astype(bf16)                              # (Cin, width)
    w2col = params["w2"].reshape(9 * width, width).astype(bf16)  # (9*width, width)
    w3 = params["w3"].astype(bf16)                              # (width, Cout)

    inputs = [x_nhwc, w1, w2col, w3,
              params["g1"], params["b1"], params["g2"], params["b2"],
              params["g3"], params["b3"]]
    if use_se:
        inputs += [params["f1w"].astype(bf16), params["f1b"],
                   params["f2w"].astype(bf16), params["f2b"]]

    NHW = N * H * W
    flops = 2 * NHW * (Cin * width + 9 * width * width + width * Cout)
    transcendentals = 3 * max(width, Cout)
    bytes_accessed = 4 * NHW * (Cin + Cout) + 2 * (
        Cin * width + 9 * width * width + width * Cout)
    if use_se:
        cred = params["f1w"].shape[1]
        flops += 4 * N * Cout * cred
        transcendentals += N * Cout

    vmem = pltpu.MemorySpace.VMEM
    kernel = functools.partial(_bottleneck_kernel, N, H, W, Cin, width, Cout, use_se)

    return pl.pallas_call(
        kernel,
        out_shape=jax.ShapeDtypeStruct((N, H, W, Cout), jnp.float32),
        in_specs=[pl.BlockSpec(memory_space=vmem) for _ in inputs],
        out_specs=pl.BlockSpec(memory_space=vmem),
        scratch_shapes=[
            # padded halo buffer (f32: its interior store sits at a sublane
            # offset; see header TODO about flipping it to bf16)
            pltpu.VMEM((N, H + 2, W + 2, width), jnp.float32),
            # im2col slab, built and consumed in bf16
            pltpu.VMEM((NHW, 9 * width), jnp.bfloat16),
        ],
        compiler_params=pltpu.CompilerParams(vmem_limit_bytes=32 * 1024 * 1024),
        cost_estimate=pl.CostEstimate(flops=flops,
                                      transcendentals=transcendentals,
                                      bytes_accessed=bytes_accessed),
    )(*inputs)


# ---------------------------- pure-JAX reference ----------------------------
def bottleneck_ref(x_nhwc, params, use_se, operand_dtype=jnp.float32):
    """Pure-JAX reference in NHWC.

    operand_dtype=bfloat16 reproduces the kernel's MXU-operand rounding exactly
    (tight structural check); float32 (+HIGHEST precision) is the ground truth.
    """
    od = operand_dtype
    f32 = jnp.float32
    hp = jax.lax.Precision.HIGHEST
    dn = ("NHWC", "HWIO", "NHWC")

    def conv(h, w, padding):
        return jax.lax.conv_general_dilated(
            h.astype(od), w.astype(od), (1, 1), padding, dimension_numbers=dn,
            precision=hp, preferred_element_type=f32)

    def bn(h, g, b):
        mean = h.mean(axis=(0, 1, 2), keepdims=True)
        var = ((h - mean) ** 2).mean(axis=(0, 1, 2), keepdims=True)
        return (h - mean) / jnp.sqrt(var + BN_EPS) * g.reshape(1, 1, 1, -1) \
               + b.reshape(1, 1, 1, -1)

    x = x_nhwc
    h = jax.nn.relu(bn(conv(x, params["w1"][None, None], "VALID"),
                       params["g1"], params["b1"]))
    h = jax.nn.relu(bn(conv(h, params["w2"], "SAME"),
                       params["g2"], params["b2"]))
    h = bn(conv(h, params["w3"][None, None], "VALID"),
           params["g3"], params["b3"])
    if use_se:
        pooled = h.mean(axis=(1, 2))
        s = jnp.dot(pooled.astype(od), params["f1w"].astype(od),
                    precision=hp, preferred_element_type=f32) + params["f1b"]
        s = jax.nn.relu(s)
        s = jnp.dot(s.astype(od), params["f2w"].astype(od),
                    precision=hp, preferred_element_type=f32) + params["f2b"]
        s = jax.nn.sigmoid(s)
        h = h * s[:, None, None, :]
    return jax.nn.relu(h + x)


# ------------------------------- parameters ---------------------------------
def init_params(key, inplanes, planes, use_se, se_reduction):
    width = planes
    Cout = planes * 4          # Bottleneck.expansion = 4
    Cred = Cout // se_reduction
    ks = jax.random.split(key, 12)
    p = {
        # conv weights stored ready for NHWC matmuls:
        #   conv1x1 (out,in,1,1) -> (in,out); conv3x3 (out,in,3,3) -> HWIO
        "w1": jax.random.normal(ks[0], (inplanes, width), jnp.float32) * 0.1,
        "w2": jax.random.normal(ks[1], (3, 3, width, width), jnp.float32) * 0.1,
        "w3": jax.random.normal(ks[2], (width, Cout), jnp.float32) * 0.1,
        "g1": 1.0 + 0.1 * jax.random.normal(ks[3], (1, width), jnp.float32),
        "b1": 0.1 * jax.random.normal(ks[4], (1, width), jnp.float32),
        "g2": 1.0 + 0.1 * jax.random.normal(ks[5], (1, width), jnp.float32),
        "b2": 0.1 * jax.random.normal(ks[6], (1, width), jnp.float32),
        "g3": 1.0 + 0.1 * jax.random.normal(ks[7], (1, Cout), jnp.float32),
        "b3": 0.1 * jax.random.normal(ks[8], (1, Cout), jnp.float32),
    }
    if use_se:
        p["f1w"] = jax.random.normal(ks[9], (Cout, Cred), jnp.float32) * 0.1
        p["f1b"] = 0.1 * jax.random.normal(ks[10], (1, Cred), jnp.float32)
        p["f2w"] = jax.random.normal(ks[11], (Cred, Cout), jnp.float32) * 0.1
        p["f2b"] = jnp.zeros((1, Cout), jnp.float32)
    return p


if __name__ == "__main__":
    key = jax.random.PRNGKey(0)
    k_x, k_p = jax.random.split(key)

    # Lane-dense shapes: width = planes = 128 fills full 128-lane vregs in every
    # intermediate; inplanes = planes*4 = 512 keeps the identity shortcut valid
    # (stride=1, downsample=None, the module defaults).  Everything fits in VMEM.
    N, planes, H, W = 2, 128, 16, 16
    inplanes = planes * 4      # 512
    se_reduction = 8

    # Kernel works natively in NHWC; converting from PyTorch NCHW would be a
    # one-time model-boundary cost, not a per-block wrapper transpose.
    x = jax.random.normal(k_x, (N, H, W, inplanes), jnp.float32)

    for use_se in (False, True):
        params = init_params(k_p, inplanes, planes, use_se, se_reduction)
        out = jax.block_until_ready(bottleneck_forward(x, params, use_se))
        assert out.shape == (N, H, W, planes * 4)

        # Tight check: reference with the SAME bf16 MXU-operand rounding
        # (validates im2col indexing, BN, SE, residual to ~1e-4).
        ref_mx = bottleneck_ref(x, params, use_se, operand_dtype=jnp.bfloat16)
        err_mx = float(jnp.max(jnp.abs(out - ref_mx)))
        assert jnp.allclose(out, ref_mx, atol=5e-3, rtol=5e-3), (
            f"mixed-precision mismatch (use_se={use_se}): max abs err {err_mx}")

        # End-to-end check vs the full-f32 (HIGHEST precision) ground truth;
        # tolerance = bf16 operand-rounding budget through 3 convs + BN rescale.
        ref_f32 = bottleneck_ref(x, params, use_se, operand_dtype=jnp.float32)
        err_f32 = float(jnp.max(jnp.abs(out - ref_f32)))
        assert jnp.allclose(out, ref_f32, atol=1e-1, rtol=1e-1), (
            f"f32 mismatch (use_se={use_se}): max abs err {err_f32}")

    print("KERNEL_OK")
</pallas_src>

<mosaic_0001>
module attributes {stable_mosaic.version = 11 : i64} {
  func.func @_bottleneck_kernel(%arg0: memref<2x16x16x512xf32, #tpu.memory_space<vmem>>, %arg1: memref<512x128xbf16, #tpu.memory_space<vmem>>, %arg2: memref<1152x128xbf16, #tpu.memory_space<vmem>>, %arg3: memref<128x512xbf16, #tpu.memory_space<vmem>>, %arg4: memref<1x128xf32, #tpu.memory_space<vmem>>, %arg5: memref<1x128xf32, #tpu.memory_space<vmem>>, %arg6: memref<1x128xf32, #tpu.memory_space<vmem>>, %arg7: memref<1x128xf32, #tpu.memory_space<vmem>>, %arg8: memref<1x512xf32, #tpu.memory_space<vmem>>, %arg9: memref<1x512xf32, #tpu.memory_space<vmem>>, %arg10: memref<2x16x16x512xf32, #tpu.memory_space<vmem>>, %arg11: memref<2x18x18x128xf32, #tpu.memory_space<vmem>>, %arg12: memref<512x1152xbf16, #tpu.memory_space<vmem>>) attributes {dimension_semantics = [], scalar_prefetch = 0 : i64, scratch_operands = 2 : i64, tpu.core_type = #tpu.core_type<tc>} {
    %c0 = arith.constant 0 : index
    %c0_0 = arith.constant 0 : index
    %c0_1 = arith.constant 0 : index
    %c0_2 = arith.constant 0 : index
    %0 = vector.load %arg0[%c0, %c0_0, %c0_1, %c0_2] : memref<2x16x16x512xf32, #tpu.memory_space<vmem>>, vector<2x16x16x512xf32>
    %1 = vector.shape_cast %0 : vector<2x16x16x512xf32> to vector<512x512xf32>
    %2 = arith.truncf %1 : vector<512x512xf32> to vector<512x512xbf16>
    %c0_3 = arith.constant 0 : index
    %c0_4 = arith.constant 0 : index
    %3 = vector.load %arg1[%c0_3, %c0_4] : memref<512x128xbf16, #tpu.memory_space<vmem>>, vector<512x128xbf16>
    %cst = arith.constant dense<0.000000e+00> : vector<512x128xf32>
    %4 = tpu.matmul %2, %3, %cst {dimension_numbers = #tpu.dot_dimension_numbers<[1], [0], [0], [1], [0, 0, 1, 1], [], []>} : vector<512x512xbf16>, vector<512x128xbf16>, vector<512x128xf32> -> vector<512x128xf32>
    %c0_5 = arith.constant 0 : index
    %c0_6 = arith.constant 0 : index
    %5 = vector.load %arg4[%c0_5, %c0_6] : memref<1x128xf32, #tpu.memory_space<vmem>>, vector<1x128xf32>
    %c0_7 = arith.constant 0 : index
    %c0_8 = arith.constant 0 : index
    %6 = vector.load %arg5[%c0_7, %c0_8] : memref<1x128xf32, #tpu.memory_space<vmem>>, vector<1x128xf32>
    %cst_9 = arith.constant dense<0.000000e+00> : vector<128xf32>
    %7 = vector.multi_reduction <add>, %4, %cst_9 [0] : vector<512x128xf32> to vector<128xf32>
    %8 = vector.shape_cast %7 : vector<128xf32> to vector<1x128xf32>
    %cst_10 = arith.constant 5.120000e+02 : f32
    %9 = vector.broadcast %cst_10 : f32 to vector<1x128xf32>
    %10 = arith.divf %8, %9 : vector<1x128xf32>
    %11 = vector.broadcast %10 : vector<1x128xf32> to vector<512x128xf32>
    %12 = arith.subf %4, %11 : vector<512x128xf32>
    %13 = arith.mulf %12, %12 : vector<512x128xf32>
    %cst_11 = arith.constant dense<0.000000e+00> : vector<128xf32>
    %14 = vector.multi_reduction <add>, %13, %cst_11 [0] : vector<512x128xf32> to vector<128xf32>
    %15 = vector.shape_cast %14 : vector<128xf32> to vector<1x128xf32>
    %cst_12 = arith.constant 5.120000e+02 : f32
    %16 = vector.broadcast %cst_12 : f32 to vector<1x128xf32>
    %17 = arith.divf %15, %16 : vector<1x128xf32>
    %cst_13 = arith.constant 9.99999974E-6 : f32
    %18 = vector.broadcast %cst_13 : f32 to vector<1x128xf32>
    %19 = arith.addf %17, %18 : vector<1x128xf32>
    %20 = math.rsqrt %19 : vector<1x128xf32>
    %21 = arith.mulf %5, %20 : vector<1x128xf32>
    %22 = arith.mulf %10, %21 : vector<1x128xf32>
    %23 = arith.subf %6, %22 : vector<1x128xf32>
    %24 = vector.broadcast %21 : vector<1x128xf32> to vector<512x128xf32>
    %25 = arith.mulf %4, %24 : vector<512x128xf32>
    %26 = vector.broadcast %23 : vector<1x128xf32> to vector<512x128xf32>
    %27 = arith.addf %25, %26 : vector<512x128xf32>
    %cst_14 = arith.constant 0.000000e+00 : f32
    %28 = vector.broadcast %cst_14 : f32 to vector<512x128xf32>
    %29 = arith.maximumf %27, %28 : vector<512x128xf32>
    %cst_15 = arith.constant 0.000000e+00 : f32
    %30 = vector.broadcast %cst_15 : f32 to vector<2x18x18x128xf32>
    %c0_16 = arith.constant 0 : index
    %c0_17 = arith.constant 0 : index
    %c0_18 = arith.constant 0 : index
    %c0_19 = arith.constant 0 : index
    %31 = vector.load %arg11[%c0_16, %c0_17, %c0_18, %c0_19] : memref<2x18x18x128xf32, #tpu.memory_space<vmem>>, vector<2x18x18x128xf32>
    tpu.vector_store %arg11[%c0_16, %c0_17, %c0_18, %c0_19], %30 {strides = array<i32>} : memref<2x18x18x128xf32, #tpu.memory_space<vmem>>, vector<2x18x18x128xf32>,
    %32 = vector.shape_cast %29 : vector<512x128xf32> to vector<2x16x16x128xf32>
    %c0_20 = arith.constant 0 : index
    %c1 = arith.constant 1 : index
    %c1_21 = arith.constant 1 : index
    %c0_22 = arith.constant 0 : index
    %33 = vector.load %arg11[%c0_20, %c1, %c1_21, %c0_22] : memref<2x18x18x128xf32, #tpu.memory_space<vmem>>, vector<2x16x16x128xf32>
    tpu.vector_store %arg11[%c0_20, %c1, %c1_21, %c0_22], %32 {strides = array<i32>} : memref<2x18x18x128xf32, #tpu.memory_space<vmem>>, vector<2x16x16x128xf32>,
    %c0_23 = arith.constant 0 : index
    %c0_24 = arith.constant 0 : index
    %c0_25 = arith.constant 0 : index
    %c0_26 = arith.constant 0 : index
    %34 = vector.load %arg11[%c0_23, %c0_24, %c0_25, %c0_26] : memref<2x18x18x128xf32, #tpu.memory_space<vmem>>, vector<2x16x16x128xf32>
    %35 = vector.shape_cast %34 : vector<2x16x16x128xf32> to vector<512x128xf32>
    %36 = arith.truncf %35 : vector<512x128xf32> to vector<512x128xbf16>
    %c0_27 = arith.constant 0 : index
    %c0_28 = arith.constant 0 : index
    %37 = vector.load %arg12[%c0_27, %c0_28] : memref<512x1152xbf16, #tpu.memory_space<vmem>>, vector<512x128xbf16>
    tpu.vector_store %arg12[%c0_27, %c0_28], %36 {strides = array<i32>} : memref<512x1152xbf16, #tpu.memory_space<vmem>>, vector<512x128xbf16>,
    %c0_29 = arith.constant 0 : index
    %c0_30 = arith.constant 0 : index
    %c1_31 = arith.constant 1 : index
    %c0_32 = arith.constant 0 : index
    %38 = vector.load %arg11[%c0_29, %c0_30, %c1_31, %c0_32] : memref<2x18x18x128xf32, #tpu.memory_space<vmem>>, vector<2x16x16x128xf32>
    %39 = vector.shape_cast %38 : vector<2x16x16x128xf32> to vector<512x128xf32>
    %40 = arith.truncf %39 : vector<512x128xf32> to vector<512x128xbf16>
    %c0_33 = arith.constant 0 : index
    %c128 = arith.constant 128 : index
    %41 = vector.load %arg12[%c0_33, %c128] : memref<512x1152xbf16, #tpu.memory_space<vmem>>, vector<512x128xbf16>
    tpu.vector_store %arg12[%c0_33, %c128], %40 {strides = array<i32>} : memref<512x1152xbf16, #tpu.memory_space<vmem>>, vector<512x128xbf16>,
    %c0_34 = arith.constant 0 : index
    %c0_35 = arith.constant 0 : index
    %c2 = arith.constant 2 : index
    %c0_36 = arith.constant 0 : index
    %42 = vector.load %arg11[%c0_34, %c0_35, %c2, %c0_36] : memref<2x18x18x128xf32, #tpu.memory_space<vmem>>, vector<2x16x16x128xf32>
    %43 = vector.shape_cast %42 : vector<2x16x16x128xf32> to vector<512x128xf32>
    %44 = arith.truncf %43 : vector<512x128xf32> to vector<512x128xbf16>
    %c0_37 = arith.constant 0 : index
    %c256 = arith.constant 256 : index
    %45 = vector.load %arg12[%c0_37, %c256] : memref<512x1152xbf16, #tpu.memory_space<vmem>>, vector<512x128xbf16>
    tpu.vector_store %arg12[%c0_37, %c256], %44 {strides = array<i32>} : memref<512x1152xbf16, #tpu.memory_space<vmem>>, vector<512x128xbf16>,
    %c0_38 = arith.constant 0 : index
    %c1_39 = arith.constant 1 : index
    %c0_40 = arith.constant 0 : index
    %c0_41 = arith.constant 0 : index
    %46 = vector.load %arg11[%c0_38, %c1_39, %c0_40, %c0_41] : memref<2x18x18x128xf32, #tpu.memory_space<vmem>>, vector<2x16x16x128xf32>
    %47 = vector.shape_cast %46 : vector<2x16x16x128xf32> to vector<512x128xf32>
    %48 = arith.truncf %47 : vector<512x128xf32> to vector<512x128xbf16>
    %c0_42 = arith.constant 0 : index
    %c384 = arith.constant 384 : index
    %49 = vector.load %arg12[%c0_42, %c384] : memref<512x1152xbf16, #tpu.memory_space<vmem>>, vector<512x128xbf16>
    tpu.vector_store %arg12[%c0_42, %c384], %48 {strides = array<i32>} : memref<512x1152xbf16, #tpu.memory_space<vmem>>, vector<512x128xbf16>,
    %c0_43 = arith.constant 0 : index
    %c1_44 = arith.constant 1 : index
    %c1_45 = arith.constant 1 : index
    %c0_46 = arith.constant 0 : index
    %50 = vector.load %arg11[%c0_43, %c1_44, %c1_45, %c0_46] : memref<2x18x18x128xf32, #tpu.memory_space<vmem>>, vector<2x16x16x128xf32>
    %51 = vector.shape_cast %50 : vector<2x16x16x128xf32> to vector<512x128xf32>
    %52 = arith.truncf %51 : vector<512x128xf32> to vector<512x128xbf16>
    %c0_47 = arith.constant 0 : index
    %c512 = arith.constant 512 : index
    %53 = vector.load %arg12[%c0_47, %c512] : memref<512x1152xbf16, #tpu.memory_space<vmem>>, vector<512x128xbf16>
    tpu.vector_store %arg12[%c0_47, %c512], %52 {strides = array<i32>} : memref<512x1152xbf16, #tpu.memory_space<vmem>>, vector<512x128xbf16>,
    %c0_48 = arith.constant 0 : index
    %c1_49 = arith.constant 1 : index
    %c2_50 = arith.constant 2 : index
    %c0_51 = arith.constant 0 : index
    %54 = vector.load %arg11[%c0_48, %c1_49, %c2_50, %c0_51] : memref<2x18x18x128xf32, #tpu.memory_space<vmem>>, vector<2x16x16x128xf32>
    %55 = vector.shape_cast %54 : vector<2x16x16x128xf32> to vector<512x128xf32>
    %56 = arith.truncf %55 : vector<512x128xf32> to vector<512x128xbf16>
    %c0_52 = arith.constant 0 : index
    %c640 = arith.constant 640 : index
    %57 = vector.load %arg12[%c0_52, %c640] : memref<512x1152xbf16, #tpu.memory_space<vmem>>, vector<512x128xbf16>
    tpu.vector_store %arg12[%c0_52, %c640], %56 {strides = array<i32>} : memref<512x1152xbf16, #tpu.memory_space<vmem>>, vector<512x128xbf16>,
    %c0_53 = arith.constant 0 : index
    %c2_54 = arith.constant 2 : index
    %c0_55 = arith.constant 0 : index
    %c0_56 = arith.constant 0 : index
    %58 = vector.load %arg11[%c0_53, %c2_54, %c0_55, %c0_56] : memref<2x18x18x128xf32, #tpu.memory_space<vmem>>, vector<2x16x16x128xf32>
    %59 = vector.shape_cast %58 : vector<2x16x16x128xf32> to vector<512x128xf32>
    %60 = arith.truncf %59 : vector<512x128xf32> to vector<512x128xbf16>
    %c0_57 = arith.constant 0 : index
    %c768 = arith.constant 768 : index
    %61 = vector.load %arg12[%c0_57, %c768] : memref<512x1152xbf16, #tpu.memory_space<vmem>>, vector<512x128xbf16>
    tpu.vector_store %arg12[%c0_57, %c768], %60 {strides = array<i32>} : memref<512x1152xbf16, #tpu.memory_space<vmem>>, vector<512x128xbf16>,
    %c0_58 = arith.constant 0 : index
    %c2_59 = arith.constant 2 : index
    %c1_60 = arith.constant 1 : index
    %c0_61 = arith.constant 0 : index
    %62 = vector.load %arg11[%c0_58, %c2_59, %c1_60, %c0_61] : memref<2x18x18x128xf32, #tpu.memory_space<vmem>>, vector<2x16x16x128xf32>
    %63 = vector.shape_cast %62 : vector<2x16x16x128xf32> to vector<512x128xf32>
    %64 = arith.truncf %63 : vector<512x128xf32> to vector<512x128xbf16>
    %c0_62 = arith.constant 0 : index
    %c896 = arith.constant 896 : index
    %65 = vector.load %arg12[%c0_62, %c896] : memref<512x1152xbf16, #tpu.memory_space<vmem>>, vector<512x128xbf16>
    tpu.vector_store %arg12[%c0_62, %c896], %64 {strides = array<i32>} : memref<512x1152xbf16, #tpu.memory_space<vmem>>, vector<512x128xbf16>,
    %c0_63 = arith.constant 0 : index
    %c2_64 = arith.constant 2 : index
    %c2_65 = arith.constant 2 : index
    %c0_66 = arith.constant 0 : index
    %66 = vector.load %arg11[%c0_63, %c2_64, %c2_65, %c0_66] : memref<2x18x18x128xf32, #tpu.memory_space<vmem>>, vector<2x16x16x128xf32>
    %67 = vector.shape_cast %66 : vector<2x16x16x128xf32> to vector<512x128xf32>
    %68 = arith.truncf %67 : vector<512x128xf32> to vector<512x128xbf16>
    %c0_67 = arith.constant 0 : index
    %c1024 = arith.constant 1024 : index
    %69 = vector.load %arg12[%c0_67, %c1024] : memref<512x1152xbf16, #tpu.memory_space<vmem>>, vector<512x128xbf16>
    tpu.vector_store %arg12[%c0_67, %c1024], %68 {strides = array<i32>} : memref<512x1152xbf16, #tpu.memory_space<vmem>>, vector<512x128xbf16>,
    %c0_68 = arith.constant 0 : index
    %c0_69 = arith.constant 0 : index
    %70 = vector.load %arg12[%c0_68, %c0_69] : memref<512x1152xbf16, #tpu.memory_space<vmem>>, vector<512x1152xbf16>
    %c0_70 = arith.constant 0 : index
    %c0_71 = arith.constant 0 : index
    %71 = vector.load %arg2[%c0_70, %c0_71] : memref<1152x128xbf16, #tpu.memory_space<vmem>>, vector<1152x128xbf16>
    %cst_72 = arith.constant dense<0.000000e+00> : vector<512x128xf32>
    %72 = tpu.matmul %70, %71, %cst_72 {dimension_numbers = #tpu.dot_dimension_numbers<[1], [0], [0], [1], [0, 0, 1, 1], [], []>} : vector<512x1152xbf16>, vector<1152x128xbf16>, vector<512x128xf32> -> vector<512x128xf32>
    %c0_73 = arith.constant 0 : index
    %c0_74 = arith.constant 0 : index
    %73 = vector.load %arg6[%c0_73, %c0_74] : memref<1x128xf32, #tpu.memory_space<vmem>>, vector<1x128xf32>
    %c0_75 = arith.constant 0 : index
    %c0_76 = arith.constant 0 : index
    %74 = vector.load %arg7[%c0_75, %c0_76] : memref<1x128xf32, #tpu.memory_space<vmem>>, vector<1x128xf32>
    %cst_77 = arith.constant dense<0.000000e+00> : vector<128xf32>
    %75 = vector.multi_reduction <add>, %72, %cst_77 [0] : vector<512x128xf32> to vector<128xf32>
    %76 = vector.shape_cast %75 : vector<128xf32> to vector<1x128xf32>
    %cst_78 = arith.constant 5.120000e+02 : f32
    %77 = vector.broadcast %cst_78 : f32 to vector<1x128xf32>
    %78 = arith.divf %76, %77 : vector<1x128xf32>
    %79 = vector.broadcast %78 : vector<1x128xf32> to vector<512x128xf32>
    %80 = arith.subf %72, %79 : vector<512x128xf32>
    %81 = arith.mulf %80, %80 : vector<512x128xf32>
    %cst_79 = arith.constant dense<0.000000e+00> : vector<128xf32>
    %82 = vector.multi_reduction <add>, %81, %cst_79 [0] : vector<512x128xf32> to vector<128xf32>
    %83 = vector.shape_cast %82 : vector<128xf32> to vector<1x128xf32>
    %cst_80 = arith.constant 5.120000e+02 : f32
    %84 = vector.broadcast %cst_80 : f32 to vector<1x128xf32>
    %85 = arith.divf %83, %84 : vector<1x128xf32>
    %cst_81 = arith.constant 9.99999974E-6 : f32
    %86 = vector.broadcast %cst_81 : f32 to vector<1x128xf32>
    %87 = arith.addf %85, %86 : vector<1x128xf32>
    %88 = math.rsqrt %87 : vector<1x128xf32>
    %89 = arith.mulf %73, %88 : vector<1x128xf32>
    %90 = arith.mulf %78, %89 : vector<1x128xf32>
    %91 = arith.subf %74, %90 : vector<1x128xf32>
    %92 = vector.broadcast %89 : vector<1x128xf32> to vector<512x128xf32>
    %93 = arith.mulf %72, %92 : vector<512x128xf32>
    %94 = vector.broadcast %91 : vector<1x128xf32> to vector<512x128xf32>
    %95 = arith.addf %93, %94 : vector<512x128xf32>
    %cst_82 = arith.constant 0.000000e+00 : f32
    %96 = vector.broadcast %cst_82 : f32 to vector<512x128xf32>
    %97 = arith.maximumf %95, %96 : vector<512x128xf32>
    %98 = arith.truncf %97 : vector<512x128xf32> to vector<512x128xbf16>
    %c0_83 = arith.constant 0 : index
    %c0_84 = arith.constant 0 : index
    %99 = vector.load %arg3[%c0_83, %c0_84] : memref<128x512xbf16, #tpu.memory_space<vmem>>, vector<128x512xbf16>
    %cst_85 = arith.constant dense<0.000000e+00> : vector<512x512xf32>
    %100 = tpu.matmul %98, %99, %cst_85 {dimension_numbers = #tpu.dot_dimension_numbers<[1], [0], [0], [1], [0, 0, 1, 1], [], []>} : vector<512x128xbf16>, vector<128x512xbf16>, vector<512x512xf32> -> vector<512x512xf32>
    %c0_86 = arith.constant 0 : index
    %c0_87 = arith.constant 0 : index
    %101 = vector.load %arg8[%c0_86, %c0_87] : memref<1x512xf32, #tpu.memory_space<vmem>>, vector<1x512xf32>
    %c0_88 = arith.constant 0 : index
    %c0_89 = arith.constant 0 : index
    %102 = vector.load %arg9[%c0_88, %c0_89] : memref<1x512xf32, #tpu.memory_space<vmem>>, vector<1x512xf32>
    %cst_90 = arith.constant dense<0.000000e+00> : vector<512xf32>
    %103 = vector.multi_reduction <add>, %100, %cst_90 [0] : vector<512x512xf32> to vector<512xf32>
    %104 = vector.shape_cast %103 : vector<512xf32> to vector<1x512xf32>
    %cst_91 = arith.constant 5.120000e+02 : f32
    %105 = vector.broadcast %cst_91 : f32 to vector<1x512xf32>
    %106 = arith.divf %104, %105 : vector<1x512xf32>
    %107 = vector.broadcast %106 : vector<1x512xf32> to vector<512x512xf32>
    %108 = arith.subf %100, %107 : vector<512x512xf32>
    %109 = arith.mulf %108, %108 : vector<512x512xf32>
    %cst_92 = arith.constant dense<0.000000e+00> : vector<512xf32>
    %110 = vector.multi_reduction <add>, %109, %cst_92 [0] : vector<512x512xf32> to vector<512xf32>
    %111 = vector.shape_cast %110 : vector<512xf32> to vector<1x512xf32>
    %cst_93 = arith.constant 5.120000e+02 : f32
    %112 = vector.broadcast %cst_93 : f32 to vector<1x512xf32>
    %113 = arith.divf %111, %112 : vector<1x512xf32>
    %cst_94 = arith.constant 9.99999974E-6 : f32
    %114 = vector.broadcast %cst_94 : f32 to vector<1x512xf32>
    %115 = arith.addf %113, %114 : vector<1x512xf32>
    %116 = math.rsqrt %115 : vector<1x512xf32>
    %117 = arith.mulf %101, %116 : vector<1x512xf32>
    %118 = arith.mulf %106, %117 : vector<1x512xf32>
    %119 = arith.subf %102, %118 : vector<1x512xf32>
    %120 = vector.broadcast %117 : vector<1x512xf32> to vector<512x512xf32>
    %121 = arith.mulf %100, %120 : vector<512x512xf32>
    %122 = vector.broadcast %119 : vector<1x512xf32> to vector<512x512xf32>
    %123 = arith.addf %121, %122 : vector<512x512xf32>
    %124 = arith.addf %123, %1 : vector<512x512xf32>
    %cst_95 = arith.constant 0.000000e+00 : f32
    %125 = vector.broadcast %cst_95 : f32 to vector<512x512xf32>
    %126 = arith.maximumf %124, %125 : vector<512x512xf32>
    %127 = vector.shape_cast %126 : vector<512x512xf32> to vector<2x16x16x512xf32>
    %c0_96 = arith.constant 0 : index
    %c0_97 = arith.constant 0 : index
    %c0_98 = arith.constant 0 : index
    %c0_99 = arith.constant 0 : index
    %128 = vector.load %arg10[%c0_96, %c0_97, %c0_98, %c0_99] : memref<2x16x16x512xf32, #tpu.memory_space<vmem>>, vector<2x16x16x512xf32>
    tpu.vector_store %arg10[%c0_96, %c0_97, %c0_98, %c0_99], %127 {strides = array<i32>} : memref<2x16x16x512xf32, #tpu.memory_space<vmem>>, vector<2x16x16x512xf32>,
    return
  }
}

</mosaic_0001>

<llo_original>
// kernel: tpu_custom_call.1
$region0: #{tpu_custom_call.1}
  #allocation0 [shape = 'u32[]', space=smem, size = 0x4, offset = 0x4, fixed_abs, tag = 'smem constant byte address 0x4 - core index']
  #allocation1 [shape = 'u32[144,128]{1,0:T(1,128)}', space=vmem, size = 0x12000, scoped, tag = 'internal scratch']
  #allocation2 [shape = 'f32[2,18,18,128]{3,2,1,0:T(8,128)}', space=vmem, size = 0x6c000, scoped, tag = 'scratch operand']
  #allocation3 [shape = 'bf16[512,1152]{1,0:T(16,128)(2,1)}', space=vmem, size = 0x120000, scoped, tag = 'scratch operand']
  %s0 = inlined_call_operand.hbm [shape: f32[2,16,16,512], index: 0, kind: input, shape index: {}]
  %s1 = inlined_call_operand.hbm [shape: bf16[512,128], index: 1, kind: input, shape index: {}]
  %s2 = inlined_call_operand.hbm [shape: bf16[1152,128], index: 2, kind: input, shape index: {}]
  %s3 = inlined_call_operand.hbm [shape: bf16[128,512], index: 3, kind: input, shape index: {}]
  %s4 = inlined_call_operand.vmem [shape: f32[1,128], index: 4, kind: input, shape index: {}]
  %s5 = inlined_call_operand.vmem [shape: f32[1,128], index: 5, kind: input, shape index: {}]
  %s6 = inlined_call_operand.vmem [shape: f32[1,128], index: 6, kind: input, shape index: {}]
  %s7 = inlined_call_operand.vmem [shape: f32[1,128], index: 7, kind: input, shape index: {}]
  %s8 = inlined_call_operand.vmem [shape: f32[1,512], index: 8, kind: input, shape index: {}]
  %s9 = inlined_call_operand.vmem [shape: f32[1,512], index: 9, kind: input, shape index: {}]
  %s10 = inlined_call_operand.hbm [shape: f32[2,16,16,512], index: 10, kind: output, shape index: {}]
  %s11 = sld [smem:[#allocation0]]
  $region66: #{tpu_custom_call.1} parent=0
    _
  %s13 = ssub.s32 1, %s11
  %s14 = scalar_select 0, %s13, %s11
  $region1: #{tpu_custom_call.1} parent=0
    #allocation4 [shape = 'u8[1048576]{0}', space=vmem, size = 0x100000, scoped, tag = 'input window, operand 0, single buffered']
    #allocation5 [shape = 's32[1]{0}', space=sflag, size = 0x4, scoped, tag = 'scoped memory for tpu_custom_call.1']
    #allocation6 [shape = 's32[1]{0}', space=sflag, size = 0x4, scoped, tag = 'scoped memory for tpu_custom_call.1']
    #allocation7 [shape = 'u8[131072]{0}', space=vmem, size = 0x20000, scoped, tag = 'input window, operand 1, single buffered']
    #allocation8 [shape = 's32[1]{0}', space=sflag, size = 0x4, scoped, tag = 'scoped memory for tpu_custom_call.1']
    #allocation9 [shape = 'u8[294912]{0}', space=vmem, size = 0x48000, scoped, tag = 'input window, operand 2, single buffered']
    #allocation10 [shape = 'u8[131072]{0}', space=vmem, size = 0x20000, scoped, tag = 'input window, operand 3, single buffered']
    #allocation11 [shape = 's32[1]{0}', space=sflag, size = 0x4, scoped, tag = 'scoped memory for tpu_custom_call.1']
    #allocation12 [shape = 'u8[1048576]{0}', space=vmem, size = 0x100000, scoped, tag = 'output window, operand 0, single buffered']
    %15 = vsyncpa [#allocation5], 0
    %16 = vsyncpa [#allocation8], 0
    %17 = vsyncpa [#allocation11], 0
    %18 = vsyncpa [#allocation6], 0
    // Predicated region
    $region2: #{tpu_custom_call.1} parent=1 // pred_check
      _
    $region3: #{tpu_custom_call.1} parent=1 // pred_check_branch
      %20 = sbr.rel (0) target = $region5
    $region4: #{tpu_custom_call.1} parent=1 // pred_region
      %s22 = ssub.s32 32768, 32768
      %23 = vsyncadd [#allocation5], %s22
      %s24 = sshll.u32 [#allocation4], 4
      %s25 = int_to_ptr.vmem [resolvable:$true] %s24
      %30 = dma.hbm_to_vmem [thread:$0]  %s0, 32768, %s25, [#allocation5], 512, 512, 32
    $region5: #{tpu_custom_call.1} parent=1 // pred_fallthru
      _
    // Predicated region
    $region6: #{tpu_custom_call.1} parent=1 // pred_check
      _
    $region7: #{tpu_custom_call.1} parent=1 // pred_check_branch
      %32 = sbr.rel (0) target = $region9
    $region8: #{tpu_custom_call.1} parent=1 // pred_region
      %s34 = ssub.s32 4096, 4096
      %35 = vsyncadd [#allocation8], %s34
      %s36 = sshll.u32 [#allocation7], 4
      %s37 = int_to_ptr.vmem [resolvable:$true] %s36
      %42 = dma.hbm_to_vmem [thread:$0]  %s1, 4096, %s37, [#allocation8], 64, 64, 4
    $region9: #{tpu_custom_call.1} parent=1 // pred_fallthru
      _
    // Predicated region
    $region10: #{tpu_custom_call.1} parent=1 // pred_check
      _
    $region11: #{tpu_custom_call.1} parent=1 // pred_check_branch
      %44 = sbr.rel (0) target = $region13
    $region12: #{tpu_custom_call.1} parent=1 // pred_region
      %s46 = ssub.s32 9216, 9216
      %47 = vsyncadd [#allocation8], %s46
      %s48 = sshll.u32 [#allocation9], 4
      %s49 = int_to_ptr.vmem [resolvable:$true] %s48
      %54 = dma.hbm_to_vmem [thread:$0]  %s2, 9216, %s49, [#allocation8], 64, 64, 4
    $region13: #{tpu_custom_call.1} parent=1 // pred_fallthru
      _
    // Predicated region
    $region14: #{tpu_custom_call.1} parent=1 // pred_check
      _
    $region15: #{tpu_custom_call.1} parent=1 // pred_check_branch
      %56 = sbr.rel (0) target = $region17
    $region16: #{tpu_custom_call.1} parent=1 // pred_region
      %s58 = ssub.s32 4096, 4096
      %59 = vsyncadd [#allocation11], %s58
      %s60 = sshll.u32 [#allocation10], 4
      %s61 = int_to_ptr.vmem [resolvable:$true] %s60
      %66 = dma.hbm_to_vmem [thread:$0]  %s3, 4096, %s61, [#allocation11], 256, 256, 16
    $region17: #{tpu_custom_call.1} parent=1 // pred_fallthru
      _
    // Predicated region
    $region18: #{tpu_custom_call.1} parent=1 // pred_check
      _
    $region19: #{tpu_custom_call.1} parent=1 // pred_check_branch
      %68 = sbr.rel (0) target = $region21
    $region20: #{tpu_custom_call.1} parent=1 // pred_region
      _
    $region21: #{tpu_custom_call.1} parent=1 // pred_fallthru
      _
    // Predicated region
    $region22: #{tpu_custom_call.1} parent=1 // pred_check
      _
    $region23: #{tpu_custom_call.1} parent=1 // pred_check_branch
      %70 = sbr.rel (0) target = $region25
    $region24: #{tpu_custom_call.1} parent=1 // pred_region
      _
    $region25: #{tpu_custom_call.1} parent=1 // pred_fallthru
      _
    // Predicated region
    $region26: #{tpu_custom_call.1} parent=1 // pred_check
      _
    $region27: #{tpu_custom_call.1} parent=1 // pred_check_branch
      %72 = sbr.rel (0) target = $region29
    $region28: #{tpu_custom_call.1} parent=1 // pred_region
      _
    $region29: #{tpu_custom_call.1} parent=1 // pred_fallthru
      _
    // Predicated region
    $region30: #{tpu_custom_call.1} parent=1 // pred_check
      _
    $region31: #{tpu_custom_call.1} parent=1 // pred_check_branch
      %74 = sbr.rel (0) target = $region33
    $region32: #{tpu_custom_call.1} parent=1 // pred_region
      _
    $region33: #{tpu_custom_call.1} parent=1 // pred_fallthru
      _
    // Predicated region
    $region34: #{tpu_custom_call.1} parent=1 // pred_check
      _
    $region35: #{tpu_custom_call.1} parent=1 // pred_check_branch
      %76 = sbr.rel (0) target = $region37
    $region36: #{tpu_custom_call.1} parent=1 // pred_region
      _
    $region37: #{tpu_custom_call.1} parent=1 // pred_fallthru
      _
    // Predicated region
    $region38: #{tpu_custom_call.1} parent=1 // pred_check
      _
    $region39: #{tpu_custom_call.1} parent=1 // pred_check_branch
      %78 = sbr.rel (0) target = $region41
    $region40: #{tpu_custom_call.1} parent=1 // pred_region
      _
    $region41: #{tpu_custom_call.1} parent=1 // pred_fallthru
      _
    // Predicated region
    $region42: #{tpu_custom_call.1} parent=1 // pred_check
      _
    $region43: #{tpu_custom_call.1} parent=1 // pred_check_branch
      %80 = sbr.rel (0) target = $region45
    $region44: #{tpu_custom_call.1} parent=1 // pred_region
      %81 = dma.done [#allocation5], 32768
    $region45: #{tpu_custom_call.1} parent=1 // pred_fallthru
      _
    // Predicated region
    $region46: #{tpu_custom_call.1} parent=1 // pred_check
      _
    $region47: #{tpu_custom_call.1} parent=1 // pred_check_branch
      %83 = sbr.rel (0) target = $region49
    $region48: #{tpu_custom_call.1} parent=1 // pred_region
      %84 = dma.done [#allocation8], 4096
    $region49: #{tpu_custom_call.1} parent=1 // pred_fallthru
      _
    // Predicated region
    $region50: #{tpu_custom_call.1} parent=1 // pred_check
      _
    $region51: #{tpu_custom_call.1} parent=1 // pred_check_branch
      %86 = sbr.rel (0) target = $region53
    $region52: #{tpu_custom_call.1} parent=1 // pred_region
      %87 = dma.done [#allocation8], 9216
    $region53: #{tpu_custom_call.1} parent=1 // pred_fallthru
      _
    // Predicated region
    $region54: #{tpu_custom_call.1} parent=1 // pred_check
      _
    $region55: #{tpu_custom_call.1} parent=1 // pred_check_branch
      %89 = sbr.rel (0) target = $region57
    $region56: #{tpu_custom_call.1} parent=1 // pred_region
      %90 = dma.done [#allocation11], 4096
    $region57: #{tpu_custom_call.1} parent=1 // pred_fallthru
      _
    %v92 = vld [vmem:[#allocation4] sm:$0xff]
    %v93 = vld [vmem:[#allocation4 + $0x8] sm:$0xff]
    %v94 = vld [vmem:[#allocation4 + $0x10] sm:$0xff]
    %v95 = vld [vmem:[#allocation4 + $0x18] sm:$0xff]
    %v96 = vld [vmem:[#allocation4 + $0x20] sm:$0xff]
    %v97 = vld [vmem:[#allocation4 + $0x28] sm:$0xff]
    %v98 = vld [vmem:[#allocation4 + $0x30] sm:$0xff]
    %v99 = vld [vmem:[#allocation4 + $0x38] sm:$0xff]
    %v100 = vld [vmem:[#allocation4 + $0x40] sm:$0xff]
    %v101 = vld [vmem:[#allocation4 + $0x48] sm:$0xff]
    %v102 = vld [vmem:[#allocation4 + $0x50] sm:$0xff]
    %v103 = vld [vmem:[#allocation4 + $0x58] sm:$0xff]
    %v104 = vld [vmem:[#allocation4 + $0x60] sm:$0xff]
    %v105 = vld [vmem:[#allocation4 + $0x68] sm:$0xff]
    %v106 = vld [vmem:[#allocation4 + $0x70] sm:$0xff]
    %v107 = vld [vmem:[#allocation4 + $0x78] sm:$0xff]
    %v108 = vld [vmem:[#allocation4 + $0x80] sm:$0xff]
    %v109 = vld [vmem:[#allocation4 + $0x88] sm:$0xff]
    %v110 = vld [vmem:[#allocation4 + $0x90] sm:$0xff]
    %v111 = vld [vmem:[#allocation4 + $0x98] sm:$0xff]
    %v112 = vld [vmem:[#allocation4 + $0xa0] sm:$0xff]
    %v113 = vld [vmem:[#allocation4 + $0xa8] sm:$0xff]
    %v114 = vld [vmem:[#allocation4 + $0xb0] sm:$0xff]
    %v115 = vld [vmem:[#allocation4 + $0xb8] sm:$0xff]
    %v116 = vld [vmem:[#allocation4 + $0xc0] sm:$0xff]
    %v117 = vld [vmem:[#allocation4 + $0xc8] sm:$0xff]
    %v118 = vld [vmem:[#allocation4 + $0xd0] sm:$0xff]
    %v119 = vld [vmem:[#allocation4 + $0xd8] sm:$0xff]
    %v120 = vld [vmem:[#allocation4 + $0xe0] sm:$0xff]
    %v121 = vld [vmem:[#allocation4 + $0xe8] sm:$0xff]
    %v122 = vld [vmem:[#allocation4 + $0xf0] sm:$0xff]
    %v123 = vld [vmem:[#allocation4 + $0xf8] sm:$0xff]
    %v124 = vld [vmem:[#allocation4 + $0x100] sm:$0xff]
    %v125 = vld [vmem:[#allocation4 + $0x108] sm:$0xff]
    %v126 = vld [vmem:[#allocation4 + $0x110] sm:$0xff]
    %v127 = vld [vmem:[#allocation4 + $0x118] sm:$0xff]
    %v128 = vld [vmem:[#allocation4 + $0x120] sm:$0xff]
    %v129 = vld [vmem:[#allocation4 + $0x128] sm:$0xff]
    %v130 = vld [vmem:[#allocation4 + $0x130] sm:$0xff]
    %v131 = vld [vmem:[#allocation4 + $0x138] sm:$0xff]
    %v132 = vld [vmem:[#allocation4 + $0x140] sm:$0xff]
    %v133 = vld [vmem:[#allocation4 + $0x148] sm:$0xff]
    %v134 = vld [vmem:[#allocation4 + $0x150] sm:$0xff]
    %v135 = vld [vmem:[#allocation4 + $0x158] sm:$0xff]
    %v136 = vld [vmem:[#allocation4 + $0x160] sm:$0xff]
    %v137 = vld [vmem:[#allocation4 + $0x168] sm:$0xff]
    %v138 = vld [vmem:[#allocation4 + $0x170] sm:$0xff]
    %v139 = vld [vmem:[#allocation4 + $0x178] sm:$0xff]
    %v140 = vld [vmem:[#allocation4 + $0x180] sm:$0xff]
    %v141 = vld [vmem:[#allocation4 + $0x188] sm:$0xff]
    %v142 = vld [vmem:[#allocation4 + $0x190] sm:$0xff]
    %v143 = vld [vmem:[#allocation4 + $0x198] sm:$0xff]
    %v144 = vld [vmem:[#allocation4 + $0x1a0] sm:$0xff]
    %v145 = vld [vmem:[#allocation4 + $0x1a8] sm:$0xff]
    %v146 = vld [vmem:[#allocation4 + $0x1b0] sm:$0xff]
    %v147 = vld [vmem:[#allocation4 + $0x1b8] sm:$0xff]
    %v148 = vld [vmem:[#allocation4 + $0x1c0] sm:$0xff]
    %v149 = vld [vmem:[#allocation4 + $0x1c8] sm:$0xff]
    %v150 = vld [vmem:[#allocation4 + $0x1d0] sm:$0xff]
    %v151 = vld [vmem:[#allocation4 + $0x1d8] sm:$0xff]
    %v152 = vld [vmem:[#allocation4 + $0x1e0] sm:$0xff]
    %v153 = vld [vmem:[#allocation4 + $0x1e8] sm:$0xff]
    %v154 = vld [vmem:[#allocation4 + $0x1f0] sm:$0xff]
    %v155 = vld [vmem:[#allocation4 + $0x1f8] sm:$0xff]
    %v156 = vld [vmem:[#allocation4 + $0x200] sm:$0xff]
    %v157 = vld [vmem:[#allocation4 + $0x208] sm:$0xff]
    %v158 = vld [vmem:[#allocation4 + $0x210] sm:$0xff]
    %v159 = vld [vmem:[#allocation4 + $0x218] sm:$0xff]
    %v160 = vld [vmem:[#allocation4 + $0x220] sm:$0xff]
    %v161 = vld [vmem:[#allocation4 + $0x228] sm:$0xff]
    %v162 = vld [vmem:[#allocation4 + $0x230] sm:$0xff]
    %v163 = vld [vmem:[#allocation4 + $0x238] sm:$0xff]
    %v164 = vld [vmem:[#allocation4 + $0x240] sm:$0xff]
    %v165 = vld [vmem:[#allocation4 + $0x248] sm:$0xff]
    %v166 = vld [vmem:[#allocation4 + $0x250] sm:$0xff]
    %v167 = vld [vmem:[#allocation4 + $0x258] sm:$0xff]
    %v168 = vld [vmem:[#allocation4 + $0x260] sm:$0xff]
    %v169 = vld [vmem:[#allocation4 + $0x268] sm:$0xff]
    %v170 = vld [vmem:[#allocation4 + $0x270] sm:$0xff]
    %v171 = vld [vmem:[#allocation4 + $0x278] sm:$0xff]
    %v172 = vld [vmem:[#allocation4 + $0x280] sm:$0xff]
    %v173 = vld [vmem:[#allocation4 + $0x288] sm:$0xff]
    %v174 = vld [vmem:[#allocation4 + $0x290] sm:$0xff]
    %v175 = vld [vmem:[#allocation4 + $0x298] sm:$0xff]
    %v176 = vld [vmem:[#allocation4 + $0x2a0] sm:$0xff]
    %v177 = vld [vmem:[#allocation4 + $0x2a8] sm:$0xff]
    %v178 = vld [vmem:[#allocation4 + $0x2b0] sm:$0xff]
    %v179 = vld [vmem:[#allocation4 + $0x2b8] sm:$0xff]
    %v180 = vld [vmem:[#allocation4 + $0x2c0] sm:$0xff]
    %v181 = vld [vmem:[#allocation4 + $0x2c8] sm:$0xff]
    %v182 = vld [vmem:[#allocation4 + $0x2d0] sm:$0xff]
    %v183 = vld [vmem:[#allocation4 + $0x2d8] sm:$0xff]
    %v184 = vld [vmem:[#allocation4 + $0x2e0] sm:$0xff]
    %v185 = vld [vmem:[#allocation4 + $0x2e8] sm:$0xff]
    %v186 = vld [vmem:[#allocation4 + $0x2f0] sm:$0xff]
    %v187 = vld [vmem:[#allocation4 + $0x2f8] sm:$0xff]
    %v188 = vld [vmem:[#allocation4 + $0x300] sm:$0xff]
    %v189 = vld [vmem:[#allocation4 + $0x308] sm:$0xff]
    %v190 = vld [vmem:[#allocation4 + $0x310] sm:$0xff]
    %v191 = vld [vmem:[#allocation4 + $0x318] sm:$0xff]
    %v192 = vld [vmem:[#allocation4 + $0x320] sm:$0xff]
    %v193 = vld [vmem:[#allocation4 + $0x328] sm:$0xff]
    %v194 = vld [vmem:[#allocation4 + $0x330] sm:$0xff]
    %v195 = vld [vmem:[#allocation4 + $0x338] sm:$0xff]
    %v196 = vld [vmem:[#allocation4 + $0x340] sm:$0xff]
    %v197 = vld [vmem:[#allocation4 + $0x348] sm:$0xff]
    %v198 = vld [vmem:[#allocation4 + $0x350] sm:$0xff]
    %v199 = vld [vmem:[#allocation4 + $0x358] sm:$0xff]
    %v200 = vld [vmem:[#allocation4 + $0x360] sm:$0xff]
    %v201 = vld [vmem:[#allocation4 + $0x368] sm:$0xff]
    %v202 = vld [vmem:[#allocation4 + $0x370] sm:$0xff]
    %v203 = vld [vmem:[#allocation4 + $0x378] sm:$0xff]
    %v204 = vld [vmem:[#allocation4 + $0x380] sm:$0xff]
    %v205 = vld [vmem:[#allocation4 + $0x388] sm:$0xff]
    %v206 = vld [vmem:[#allocation4 + $0x390] sm:$0xff]
    %v207 = vld [vmem:[#allocation4 + $0x398] sm:$0xff]
    %v208 = vld [vmem:[#allocation4 + $0x3a0] sm:$0xff]
    %v209 = vld [vmem:[#allocation4 + $0x3a8] sm:$0xff]
    %v210 = vld [vmem:[#allocation4 + $0x3b0] sm:$0xff]
    %v211 = vld [vmem:[#allocation4 + $0x3b8] sm:$0xff]
    %v212 = vld [vmem:[#allocation4 + $0x3c0] sm:$0xff]
    %v213 = vld [vmem:[#allocation4 + $0x3c8] sm:$0xff]
    %v214 = vld [vmem:[#allocation4 + $0x3d0] sm:$0xff]
    %v215 = vld [vmem:[#allocation4 + $0x3d8] sm:$0xff]
    %v216 = vld [vmem:[#allocation4 + $0x3e0] sm:$0xff]
    %v217 = vld [vmem:[#allocation4 + $0x3e8] sm:$0xff]
    %v218 = vld [vmem:[#allocation4 + $0x3f0] sm:$0xff]
    %v219 = vld [vmem:[#allocation4 + $0x3f8] sm:$0xff]
    %v220 = vld [vmem:[#allocation4 + $0x400] sm:$0xff]
    %v221 = vld [vmem:[#allocation4 + $0x408] sm:$0xff]
    %v222 = vld [vmem:[#allocation4 + $0x410] sm:$0xff]
    %v223 = vld [vmem:[#allocation4 + $0x418] sm:$0xff]
    %v224 = vld [vmem:[#allocation4 + $0x420] sm:$0xff]
    %v225 = vld [vmem:[#allocation4 + $0x428] sm:$0xff]
    %v226 = vld [vmem:[#allocation4 + $0x430] sm:$0xff]
    %v227 = vld [vmem:[#allocation4 + $0x438] sm:$0xff]
    %v228 = vld [vmem:[#allocation4 + $0x440] sm:$0xff]
    %v229 = vld [vmem:[#allocation4 + $0x448] sm:$0xff]
    %v230 = vld [vmem:[#allocation4 + $0x450] sm:$0xff]
    %v231 = vld [vmem:[#allocation4 + $0x458] sm:$0xff]
    %v232 = vld [vmem:[#allocation4 + $0x460] sm:$0xff]
    %v233 = vld [vmem:[#allocation4 + $0x468] sm:$0xff]
    %v234 = vld [vmem:[#allocation4 + $0x470] sm:$0xff]
    %v235 = vld [vmem:[#allocation4 + $0x478] sm:$0xff]
    %v236 = vld [vmem:[#allocation4 + $0x480] sm:$0xff]
    %v237 = vld [vmem:[#allocation4 + $0x488] sm:$0xff]
    %v238 = vld [vmem:[#allocation4 + $0x490] sm:$0xff]
    %v239 = vld [vmem:[#allocation4 + $0x498] sm:$0xff]
    %v240 = vld [vmem:[#allocation4 + $0x4a0] sm:$0xff]
    %v241 = vld [vmem:[#allocation4 + $0x4a8] sm:$0xff]
    %v242 = vld [vmem:[#allocation4 + $0x4b0] sm:$0xff]
    %v243 = vld [vmem:[#allocation4 + $0x4b8] sm:$0xff]
    %v244 = vld [vmem:[#allocation4 + $0x4c0] sm:$0xff]
    %v245 = vld [vmem:[#allocation4 + $0x4c8] sm:$0xff]
    %v246 = vld [vmem:[#allocation4 + $0x4d0] sm:$0xff]
    %v247 = vld [vmem:[#allocation4 + $0x4d8] sm:$0xff]
    %v248 = vld [vmem:[#allocation4 + $0x4e0] sm:$0xff]
    %v249 = vld [vmem:[#allocation4 + $0x4e8] sm:$0xff]
    %v250 = vld [vmem:[#allocation4 + $0x4f0] sm:$0xff]
    %v251 = vld [vmem:[#allocation4 + $0x4f8] sm:$0xff]
    %v252 = vld [vmem:[#allocation4 + $0x500] sm:$0xff]
    %v253 = vld [vmem:[#allocation4 + $0x508] sm:$0xff]
    %v254 = vld [vmem:[#allocation4 + $0x510] sm:$0xff]
    %v255 = vld [vmem:[#allocation4 + $0x518] sm:$0xff]
    %v256 = vld [vmem:[#allocation4 + $0x520] sm:$0xff]
    %v257 = vld [vmem:[#allocation4 + $0x528] sm:$0xff]
    %v258 = vld [vmem:[#allocation4 + $0x530] sm:$0xff]
    %v259 = vld [vmem:[#allocation4 + $0x538] sm:$0xff]
    %v260 = vld [vmem:[#allocation4 + $0x540] sm:$0xff]
    %v261 = vld [vmem:[#allocation4 + $0x548] sm:$0xff]
    %v262 = vld [vmem:[#allocation4 + $0x550] sm:$0xff]
    %v263 = vld [vmem:[#allocation4 + $0x558] sm:$0xff]
    %v264 = vld [vmem:[#allocation4 + $0x560] sm:$0xff]
    %v265 = vld [vmem:[#allocation4 + $0x568] sm:$0xff]
    %v266 = vld [vmem:[#allocation4 + $0x570] sm:$0xff]
    %v267 = vld [vmem:[#allocation4 + $0x578] sm:$0xff]
    %v268 = vld [vmem:[#allocation4 + $0x580] sm:$0xff]
    %v269 = vld [vmem:[#allocation4 + $0x588] sm:$0xff]
    %v270 = vld [vmem:[#allocation4 + $0x590] sm:$0xff]
    %v271 = vld [vmem:[#allocation4 + $0x598] sm:$0xff]
    %v272 = vld [vmem:[#allocation4 + $0x5a0] sm:$0xff]
    %v273 = vld [vmem:[#allocation4 + $0x5a8] sm:$0xff]
    %v274 = vld [vmem:[#allocation4 + $0x5b0] sm:$0xff]
    %v275 = vld [vmem:[#allocation4 + $0x5b8] sm:$0xff]
    %v276 = vld [vmem:[#allocation4 + $0x5c0] sm:$0xff]
    %v277 = vld [vmem:[#allocation4 + $0x5c8] sm:$0xff]
    %v278 = vld [vmem:[#allocation4 + $0x5d0] sm:$0xff]
    %v279 = vld [vmem:[#allocation4 + $0x5d8] sm:$0xff]
    %v280 = vld [vmem:[#allocation4 + $0x5e0] sm:$0xff]
    %v281 = vld [vmem:[#allocation4 + $0x5e8] sm:$0xff]
    %v282 = vld [vmem:[#allocation4 + $0x5f0] sm:$0xff]
    %v283 = vld [vmem:[#allocation4 + $0x5f8] sm:$0xff]
    %v284 = vld [vmem:[#allocation4 + $0x600] sm:$0xff]
    %v285 = vld [vmem:[#allocation4 + $0x608] sm:$0xff]
    %v286 = vld [vmem:[#allocation4 + $0x610] sm:$0xff]
    %v287 = vld [vmem:[#allocation4 + $0x618] sm:$0xff]
    %v288 = vld [vmem:[#allocation4 + $0x620] sm:$0xff]
    %v289 = vld [vmem:[#allocation4 + $0x628] sm:$0xff]
    %v290 = vld [vmem:[#allocation4 + $0x630] sm:$0xff]
    %v291 = vld [vmem:[#allocation4 + $0x638] sm:$0xff]
    %v292 = vld [vmem:[#allocation4 + $0x640] sm:$0xff]
    %v293 = vld [vmem:[#allocation4 + $0x648] sm:$0xff]
    %v294 = vld [vmem:[#allocation4 + $0x650] sm:$0xff]
    %v295 = vld [vmem:[#allocation4 + $0x658] sm:$0xff]
    %v296 = vld [vmem:[#allocation4 + $0x660] sm:$0xff]
    %v297 = vld [vmem:[#allocation4 + $0x668] sm:$0xff]
    %v298 = vld [vmem:[#allocation4 + $0x670] sm:$0xff]
    %v299 = vld [vmem:[#allocation4 + $0x678] sm:$0xff]
    %v300 = vld [vmem:[#allocation4 + $0x680] sm:$0xff]
    %v301 = vld [vmem:[#allocation4 + $0x688] sm:$0xff]
    %v302 = vld [vmem:[#allocation4 + $0x690] sm:$0xff]
    %v303 = vld [vmem:[#allocation4 + $0x698] sm:$0xff]
    %v304 = vld [vmem:[#allocation4 + $0x6a0] sm:$0xff]
    %v305 = vld [vmem:[#allocation4 + $0x6a8] sm:$0xff]
    %v306 = vld [vmem:[#allocation4 + $0x6b0] sm:$0xff]
    %v307 = vld [vmem:[#allocation4 + $0x6b8] sm:$0xff]
    %v308 = vld [vmem:[#allocation4 + $0x6c0] sm:$0xff]
    %v309 = vld [vmem:[#allocation4 + $0x6c8] sm:$0xff]
    %v310 = vld [vmem:[#allocation4 + $0x6d0] sm:$0xff]
    %v311 = vld [vmem:[#allocation4 + $0x6d8] sm:$0xff]
    %v312 = vld [vmem:[#allocation4 + $0x6e0] sm:$0xff]
    %v313 = vld [vmem:[#allocation4 + $0x6e8] sm:$0xff]
    %v314 = vld [vmem:[#allocation4 + $0x6f0] sm:$0xff]
    %v315 = vld [vmem:[#allocation4 + $0x6f8] sm:$0xff]
    %v316 = vld [vmem:[#allocation4 + $0x700] sm:$0xff]
    %v317 = vld [vmem:[#allocation4 + $0x708] sm:$0xff]
    %v318 = vld [vmem:[#allocation4 + $0x710] sm:$0xff]
    %v319 = vld [vmem:[#allocation4 + $0x718] sm:$0xff]
    %v320 = vld [vmem:[#allocation4 + $0x720] sm:$0xff]
    %v321 = vld [vmem:[#allocation4 + $0x728] sm:$0xff]
    %v322 = vld [vmem:[#allocation4 + $0x730] sm:$0xff]
    %v323 = vld [vmem:[#allocation4 + $0x738] sm:$0xff]
    %v324 = vld [vmem:[#allocation4 + $0x740] sm:$0xff]
    %v325 = vld [vmem:[#allocation4 + $0x748] sm:$0xff]
    %v326 = vld [vmem:[#allocation4 + $0x750] sm:$0xff]
    %v327 = vld [vmem:[#allocation4 + $0x758] sm:$0xff]
    %v328 = vld [vmem:[#allocation4 + $0x760] sm:$0xff]
    %v329 = vld [vmem:[#allocation4 + $0x768] sm:$0xff]
    %v330 = vld [vmem:[#allocation4 + $0x770] sm:$0xff]
    %v331 = vld [vmem:[#allocation4 + $0x778] sm:$0xff]
    %v332 = vld [vmem:[#allocation4 + $0x780] sm:$0xff]
    %v333 = vld [vmem:[#allocation4 + $0x788] sm:$0xff]
    %v334 = vld [vmem:[#allocation4 + $0x790] sm:$0xff]
    %v335 = vld [vmem:[#allocation4 + $0x798] sm:$0xff]
    %v336 = vld [vmem:[#allocation4 + $0x7a0] sm:$0xff]
    %v337 = vld [vmem:[#allocation4 + $0x7a8] sm:$0xff]
    %v338 = vld [vmem:[#allocation4 + $0x7b0] sm:$0xff]
    %v339 = vld [vmem:[#allocation4 + $0x7b8] sm:$0xff]
    %v340 = vld [vmem:[#allocation4 + $0x7c0] sm:$0xff]
    %v341 = vld [vmem:[#allocation4 + $0x7c8] sm:$0xff]
    %v342 = vld [vmem:[#allocation4 + $0x7d0] sm:$0xff]
    %v343 = vld [vmem:[#allocation4 + $0x7d8] sm:$0xff]
    %v344 = vld [vmem:[#allocation4 + $0x7e0] sm:$0xff]
    %v345 = vld [vmem:[#allocation4 + $0x7e8] sm:$0xff]
    %v346 = vld [vmem:[#allocation4 + $0x7f0] sm:$0xff]
    %v347 = vld [vmem:[#allocation4 + $0x7f8] sm:$0xff]
    %v348 = vpack.c.bf16 %v96, %v92
    %v349 = vpack.c.bf16 %v97, %v93
    %v350 = vpack.c.bf16 %v98, %v94
    %v351 = vpack.c.bf16 %v99, %v95
    %v352 = vpack.c.bf16 %v104, %v100
    %v353 = vpack.c.bf16 %v105, %v101
    %v354 = vpack.c.bf16 %v106, %v102
    %v355 = vpack.c.bf16 %v107, %v103
    %v356 = vpack.c.bf16 %v112, %v108
    %v357 = vpack.c.bf16 %v113, %v109
    %v358 = vpack.c.bf16 %v114, %v110
    %v359 = vpack.c.bf16 %v115, %v111
    %v360 = vpack.c.bf16 %v120, %v116
    %v361 = vpack.c.bf16 %v121, %v117
    %v362 = vpack.c.bf16 %v122, %v118
    %v363 = vpack.c.bf16 %v123, %v119
    %v364 = vpack.c.bf16 %v128, %v124
    %v365 = vpack.c.bf16 %v129, %v125
    %v366 = vpack.c.bf16 %v130, %v126
    %v367 = vpack.c.bf16 %v131, %v127
    %v368 = vpack.c.bf16 %v136, %v132
    %v369 = vpack.c.bf16 %v137, %v133
    %v370 = vpack.c.bf16 %v138, %v134
    %v371 = vpack.c.bf16 %v139, %v135
    %v372 = vpack.c.bf16 %v144, %v140
    %v373 = vpack.c.bf16 %v145, %v141
    %v374 = vpack.c.bf16 %v146, %v142
    %v375 = vpack.c.bf16 %v147, %v143
    %v376 = vpack.c.bf16 %v152, %v148
    %v377 = vpack.c.bf16 %v153, %v149
    %v378 = vpack.c.bf16 %v154, %v150
    %v379 = vpack.c.bf16 %v155, %v151
    %v380 = vpack.c.bf16 %v160, %v156
    %v381 = vpack.c.bf16 %v161, %v157
    %v382 = vpack.c.bf16 %v162, %v158
    %v383 = vpack.c.bf16 %v163, %v159
    %v384 = vpack.c.bf16 %v168, %v164
    %v385 = vpack.c.bf16 %v169, %v165
    %v386 = vpack.c.bf16 %v170, %v166
    %v387 = vpack.c.bf16 %v171, %v167
    %v388 = vpack.c.bf16 %v176, %v172
    %v389 = vpack.c.bf16 %v177, %v173
    %v390 = vpack.c.bf16 %v178, %v174
    %v391 = vpack.c.bf16 %v179, %v175
    %v392 = vpack.c.bf16 %v184, %v180
    %v393 = vpack.c.bf16 %v185, %v181
    %v394 = vpack.c.bf16 %v186, %v182
    %v395 = vpack.c.bf16 %v187, %v183
    %v396 = vpack.c.bf16 %v192, %v188
    %v397 = vpack.c.bf16 %v193, %v189
    %v398 = vpack.c.bf16 %v194, %v190
    %v399 = vpack.c.bf16 %v195, %v191
    %v400 = vpack.c.bf16 %v200, %v196
    %v401 = vpack.c.bf16 %v201, %v197
    %v402 = vpack.c.bf16 %v202, %v198
    %v403 = vpack.c.bf16 %v203, %v199
    %v404 = vpack.c.bf16 %v208, %v204
    %v405 = vpack.c.bf16 %v209, %v205
    %v406 = vpack.c.bf16 %v210, %v206
    %v407 = vpack.c.bf16 %v211, %v207
    %v408 = vpack.c.bf16 %v216, %v212
    %v409 = vpack.c.bf16 %v217, %v213
    %v410 = vpack.c.bf16 %v218, %v214
    %v411 = vpack.c.bf16 %v219, %v215
    %v412 = vpack.c.bf16 %v224, %v220
    %v413 = vpack.c.bf16 %v225, %v221
    %v414 = vpack.c.bf16 %v226, %v222
    %v415 = vpack.c.bf16 %v227, %v223
    %v416 = vpack.c.bf16 %v232, %v228
    %v417 = vpack.c.bf16 %v233, %v229
    %v418 = vpack.c.bf16 %v234, %v230
    %v419 = vpack.c.bf16 %v235, %v231
    %v420 = vpack.c.bf16 %v240, %v236
    %v421 = vpack.c.bf16 %v241, %v237
    %v422 = vpack.c.bf16 %v242, %v238
    %v423 = vpack.c.bf16 %v243, %v239
    %v424 = vpack.c.bf16 %v248, %v244
    %v425 = vpack.c.bf16 %v249, %v245
    %v426 = vpack.c.bf16 %v250, %v246
    %v427 = vpack.c.bf16 %v251, %v247
    %v428 = vpack.c.bf16 %v256, %v252
    %v429 = vpack.c.bf16 %v257, %v253
    %v430 = vpack.c.bf16 %v258, %v254
    %v431 = vpack.c.bf16 %v259, %v255
    %v432 = vpack.c.bf16 %v264, %v260
    %v433 = vpack.c.bf16 %v265, %v261
    %v434 = vpack.c.bf16 %v266, %v262
    %v435 = vpack.c.bf16 %v267, %v263
    %v436 = vpack.c.bf16 %v272, %v268
    %v437 = vpack.c.bf16 %v273, %v269
    %v438 = vpack.c.bf16 %v274, %v270
    %v439 = vpack.c.bf16 %v275, %v271
    %v440 = vpack.c.bf16 %v280, %v276
    %v441 = vpack.c.bf16 %v281, %v277
    %v442 = vpack.c.bf16 %v282, %v278
    %v443 = vpack.c.bf16 %v283, %v279
    %v444 = vpack.c.bf16 %v288, %v284
    %v445 = vpack.c.bf16 %v289, %v285
    %v446 = vpack.c.bf16 %v290, %v286
    %v447 = vpack.c.bf16 %v291, %v287
    %v448 = vpack.c.bf16 %v296, %v292
    %v449 = vpack.c.bf16 %v297, %v293
    %v450 = vpack.c.bf16 %v298, %v294
    %v451 = vpack.c.bf16 %v299, %v295
    %v452 = vpack.c.bf16 %v304, %v300
    %v453 = vpack.c.bf16 %v305, %v301
    %v454 = vpack.c.bf16 %v306, %v302
    %v455 = vpack.c.bf16 %v307, %v303
    %v456 = vpack.c.bf16 %v312, %v308
    %v457 = vpack.c.bf16 %v313, %v309
    %v458 = vpack.c.bf16 %v314, %v310
    %v459 = vpack.c.bf16 %v315, %v311
    %v460 = vpack.c.bf16 %v320, %v316
    %v461 = vpack.c.bf16 %v321, %v317
    %v462 = vpack.c.bf16 %v322, %v318
    %v463 = vpack.c.bf16 %v323, %v319
    %v464 = vpack.c.bf16 %v328, %v324
    %v465 = vpack.c.bf16 %v329, %v325
    %v466 = vpack.c.bf16 %v330, %v326
    %v467 = vpack.c.bf16 %v331, %v327
    %v468 = vpack.c.bf16 %v336, %v332
    %v469 = vpack.c.bf16 %v337, %v333
    %v470 = vpack.c.bf16 %v338, %v334
    %v471 = vpack.c.bf16 %v339, %v335
    %v472 = vpack.c.bf16 %v344, %v340
    %v473 = vpack.c.bf16 %v345, %v341
    %v474 = vpack.c.bf16 %v346, %v342
    %v475 = vpack.c.bf16 %v347, %v343
    %v476 = vld [vmem:[#allocation7] sm:$0xf]
    %v477 = vld [vmem:[#allocation7 + $0x4] sm:$0xf]
    %v478 = vld [vmem:[#allocation7 + $0x8] sm:$0xf]
    %v479 = vld [vmem:[#allocation7 + $0xc] sm:$0xf]
    %v480 = vld [vmem:[#allocation7 + $0x10] sm:$0xf]
    %v481 = vld [vmem:[#allocation7 + $0x14] sm:$0xf]
    %v482 = vld [vmem:[#allocation7 + $0x18] sm:$0xf]
    %v483 = vld [vmem:[#allocation7 + $0x1c] sm:$0xf]
    %v484 = vld [vmem:[#allocation7 + $0x20] sm:$0xf]
    %v485 = vld [vmem:[#allocation7 + $0x24] sm:$0xf]
    %v486 = vld [vmem:[#allocation7 + $0x28] sm:$0xf]
    %v487 = vld [vmem:[#allocation7 + $0x2c] sm:$0xf]
    %v488 = vld [vmem:[#allocation7 + $0x30] sm:$0xf]
    %v489 = vld [vmem:[#allocation7 + $0x34] sm:$0xf]
    %v490 = vld [vmem:[#allocation7 + $0x38] sm:$0xf]
    %v491 = vld [vmem:[#allocation7 + $0x3c] sm:$0xf]
    %v492 = vld [vmem:[#allocation7 + $0x40] sm:$0xf]
    %v493 = vld [vmem:[#allocation7 + $0x44] sm:$0xf]
    %v494 = vld [vmem:[#allocation7 + $0x48] sm:$0xf]
    %v495 = vld [vmem:[#allocation7 + $0x4c] sm:$0xf]
    %v496 = vld [vmem:[#allocation7 + $0x50] sm:$0xf]
    %v497 = vld [vmem:[#allocation7 + $0x54] sm:$0xf]
    %v498 = vld [vmem:[#allocation7 + $0x58] sm:$0xf]
    %v499 = vld [vmem:[#allocation7 + $0x5c] sm:$0xf]
    %v500 = vld [vmem:[#allocation7 + $0x60] sm:$0xf]
    %v501 = vld [vmem:[#allocation7 + $0x64] sm:$0xf]
    %v502 = vld [vmem:[#allocation7 + $0x68] sm:$0xf]
    %v503 = vld [vmem:[#allocation7 + $0x6c] sm:$0xf]
    %v504 = vld [vmem:[#allocation7 + $0x70] sm:$0xf]
    %v505 = vld [vmem:[#allocation7 + $0x74] sm:$0xf]
    %v506 = vld [vmem:[#allocation7 + $0x78] sm:$0xf]
    %v507 = vld [vmem:[#allocation7 + $0x7c] sm:$0xf]
    %v508 = vld [vmem:[#allocation7 + $0x80] sm:$0xf]
    %v509 = vld [vmem:[#allocation7 + $0x84] sm:$0xf]
    %v510 = vld [vmem:[#allocation7 + $0x88] sm:$0xf]
    %v511 = vld [vmem:[#allocation7 + $0x8c] sm:$0xf]
    %v512 = vld [vmem:[#allocation7 + $0x90] sm:$0xf]
    %v513 = vld [vmem:[#allocation7 + $0x94] sm:$0xf]
    %v514 = vld [vmem:[#allocation7 + $0x98] sm:$0xf]
    %v515 = vld [vmem:[#allocation7 + $0x9c] sm:$0xf]
    %v516 = vld [vmem:[#allocation7 + $0xa0] sm:$0xf]
    %v517 = vld [vmem:[#allocation7 + $0xa4] sm:$0xf]
    %v518 = vld [vmem:[#allocation7 + $0xa8] sm:$0xf]
    %v519 = vld [vmem:[#allocation7 + $0xac] sm:$0xf]
    %v520 = vld [vmem:[#allocation7 + $0xb0] sm:$0xf]
    %v521 = vld [vmem:[#allocation7 + $0xb4] sm:$0xf]
    %v522 = vld [vmem:[#allocation7 + $0xb8] sm:$0xf]
    %v523 = vld [vmem:[#allocation7 + $0xbc] sm:$0xf]
    %v524 = vld [vmem:[#allocation7 + $0xc0] sm:$0xf]
    %v525 = vld [vmem:[#allocation7 + $0xc4] sm:$0xf]
    %v526 = vld [vmem:[#allocation7 + $0xc8] sm:$0xf]
    %v527 = vld [vmem:[#allocation7 + $0xcc] sm:$0xf]
    %v528 = vld [vmem:[#allocation7 + $0xd0] sm:$0xf]
    %v529 = vld [vmem:[#allocation7 + $0xd4] sm:$0xf]
    %v530 = vld [vmem:[#allocation7 + $0xd8] sm:$0xf]
    %v531 = vld [vmem:[#allocation7 + $0xdc] sm:$0xf]
    %v532 = vld [vmem:[#allocation7 + $0xe0] sm:$0xf]
    %v533 = vld [vmem:[#allocation7 + $0xe4] sm:$0xf]
    %v534 = vld [vmem:[#allocation7 + $0xe8] sm:$0xf]
    %v535 = vld [vmem:[#allocation7 + $0xec] sm:$0xf]
    %v536 = vld [vmem:[#allocation7 + $0xf0] sm:$0xf]
    %v537 = vld [vmem:[#allocation7 + $0xf4] sm:$0xf]
    %v538 = vld [vmem:[#allocation7 + $0xf8] sm:$0xf]
    %v539 = vld [vmem:[#allocation7 + $0xfc] sm:$0xf]
    %v604 = vunpack.c.l.b16 %v476
    %v605 = vunpack.c.l.b16 %v477
    %v606 = vunpack.c.l.b16 %v478
    %v607 = vunpack.c.l.b16 %v479
    %v608 = vunpack.c.l.b16 %v480
    %v609 = vunpack.c.l.b16 %v481
    %v610 = vunpack.c.l.b16 %v482
    %v611 = vunpack.c.l.b16 %v483
    %v612 = vunpack.c.l.b16 %v484
    %v613 = vunpack.c.l.b16 %v485
    %v614 = vunpack.c.l.b16 %v486
    %v615 = vunpack.c.l.b16 %v487
    %v616 = vunpack.c.l.b16 %v488
    %v617 = vunpack.c.l.b16 %v489
    %v618 = vunpack.c.l.b16 %v490
    %v619 = vunpack.c.l.b16 %v491
    %v620 = vunpack.c.l.b16 %v492
    %v621 = vunpack.c.l.b16 %v493
    %v622 = vunpack.c.l.b16 %v494
    %v623 = vunpack.c.l.b16 %v495
    %v624 = vunpack.c.l.b16 %v496
    %v625 = vunpack.c.l.b16 %v497
    %v626 = vunpack.c.l.b16 %v498
    %v627 = vunpack.c.l.b16 %v499
    %v628 = vunpack.c.l.b16 %v500
    %v629 = vunpack.c.l.b16 %v501
    %v630 = vunpack.c.l.b16 %v502
    %v631 = vunpack.c.l.b16 %v503
    %v632 = vunpack.c.l.b16 %v504
    %v633 = vunpack.c.l.b16 %v505
    %v634 = vunpack.c.l.b16 %v506
    %v635 = vunpack.c.l.b16 %v507
    %v636 = vunpack.c.l.b16 %v508
    %v637 = vunpack.c.l.b16 %v509
    %v638 = vunpack.c.l.b16 %v510
    %v639 = vunpack.c.l.b16 %v511
    %v640 = vunpack.c.l.b16 %v512
    %v641 = vunpack.c.l.b16 %v513
    %v642 = vunpack.c.l.b16 %v514
    %v643 = vunpack.c.l.b16 %v515
    %v644 = vunpack.c.l.b16 %v516
    %v645 = vunpack.c.l.b16 %v517
    %v646 = vunpack.c.l.b16 %v518
    %v647 = vunpack.c.l.b16 %v519
    %v648 = vunpack.c.l.b16 %v520
    %v649 = vunpack.c.l.b16 %v521
    %v650 = vunpack.c.l.b16 %v522
    %v651 = vunpack.c.l.b16 %v523
    %v652 = vunpack.c.l.b16 %v524
    %v653 = vunpack.c.l.b16 %v525
    %v654 = vunpack.c.l.b16 %v526
    %v655 = vunpack.c.l.b16 %v527
    %v656 = vunpack.c.l.b16 %v528
    %v657 = vunpack.c.l.b16 %v529
    %v658 = vunpack.c.l.b16 %v530
    %v659 = vunpack.c.l.b16 %v531
    %v660 = vunpack.c.l.b16 %v532
    %v661 = vunpack.c.l.b16 %v533
    %v662 = vunpack.c.l.b16 %v534
    %v663 = vunpack.c.l.b16 %v535
    %v664 = vunpack.c.l.b16 %v536
    %v665 = vunpack.c.l.b16 %v537
    %v666 = vunpack.c.l.b16 %v538
    %v667 = vunpack.c.l.b16 %v539
    %v668 = vpack.c.b16 %v605, %v604
    %v669 = vpack.c.b16 %v607, %v606
    %v670 = vpack.c.b16 %v609, %v608
    %v671 = vpack.c.b16 %v611, %v610
    %v672 = vpack.c.b16 %v613, %v612
    %v673 = vpack.c.b16 %v615, %v614
    %v674 = vpack.c.b16 %v617, %v616
    %v675 = vpack.c.b16 %v619, %v618
    %v676 = vpack.c.b16 %v621, %v620
    %v677 = vpack.c.b16 %v623, %v622
    %v678 = vpack.c.b16 %v625, %v624
    %v679 = vpack.c.b16 %v627, %v626
    %v680 = vpack.c.b16 %v629, %v628
    %v681 = vpack.c.b16 %v631, %v630
    %v682 = vpack.c.b16 %v633, %v632
    %v683 = vpack.c.b16 %v635, %v634
    %v684 = vpack.c.b16 %v637, %v636
    %v685 = vpack.c.b16 %v639, %v638
    %v686 = vpack.c.b16 %v641, %v640
    %v687 = vpack.c.b16 %v643, %v642
    %v688 = vpack.c.b16 %v645, %v644
    %v689 = vpack.c.b16 %v647, %v646
    %v690 = vpack.c.b16 %v649, %v648
    %v691 = vpack.c.b16 %v651, %v650
    %v692 = vpack.c.b16 %v653, %v652
    %v693 = vpack.c.b16 %v655, %v654
    %v694 = vpack.c.b16 %v657, %v656
    %v695 = vpack.c.b16 %v659, %v658
    %v696 = vpack.c.b16 %v661, %v660
    %v697 = vpack.c.b16 %v663, %v662
    %v698 = vpack.c.b16 %v665, %v664
    %v699 = vpack.c.b16 %v667, %v666
    %732 = vmatprep.subr.bf16.mxu0 0
    %733 = vmatpush1.bf16.msra.mxu0 %v668
    %734 = vmatprep.subr.bf16.mxu0 0
    %735 = vmatpush1.bf16.msra.mxu0 %v669
    %736 = vmatprep.subr.bf16.mxu0 0
    %737 = vmatpush1.bf16.msra.mxu0 %v670
    %738 = vmatprep.subr.bf16.mxu0 0
    %739 = vmatpush1.bf16.msra.mxu0 %v671
    %740 = vmatprep.subr.bf16.mxu0 0
    %741 = vmatpush1.bf16.msra.mxu0 %v672
    %742 = vmatprep.subr.bf16.mxu0 0
    %743 = vmatpush1.bf16.msra.mxu0 %v673
    %744 = vmatprep.subr.bf16.mxu0 0
    %745 = vmatpush1.bf16.msra.mxu0 %v674
    %746 = vmatprep.subr.bf16.mxu0 0
    %747 = vmatpush1.bf16.msra.mxu0 %v675
    %748 = vmatprep.subr.bf16.mxu0 0
    %749 = vmatpush1.bf16.msra.mxu0 %v676
    %750 = vmatprep.subr.bf16.mxu0 0
    %751 = vmatpush1.bf16.msra.mxu0 %v677
    %752 = vmatprep.subr.bf16.mxu0 0
    %753 = vmatpush1.bf16.msra.mxu0 %v678
    %754 = vmatprep.subr.bf16.mxu0 0
    %755 = vmatpush1.bf16.msra.mxu0 %v679
    %756 = vmatprep.subr.bf16.mxu0 0
    %757 = vmatpush1.bf16.msra.mxu0 %v680
    %758 = vmatprep.subr.bf16.mxu0 0
    %759 = vmatpush1.bf16.msra.mxu0 %v681
    %760 = vmatprep.subr.bf16.mxu0 0
    %761 = vmatpush1.bf16.msra.mxu0 %v682
    %762 = vmatprep.subr.bf16.mxu0 0
    %763 = vmatpush1.bf16.msra.mxu0 %v683
    %764 = vmatprep.mubr.bf16.mxu0 %v349
    %765 = vmatmul.mubr.bf16.gmra.mrb[0].mxu0 %v348
    %v766 = vpop.f32.mrb[0].mxu0
    %v767 = vadd.f32 0.0, %v766
    %v768 = vpop.f32.mrb[0].mxu0
    %v769 = vpop.f32.mrb[0].mxu0
    %v770 = vadd.f32 0.0, %v769
    %v771 = vpop.f32.mrb[0].mxu0
    %772 = vmatprep.mubr.bf16.mxu0 %v353
    %773 = vmatmul.mubr.bf16.gmra.mrb[0].mxu0 %v352
    %v774 = vpop.f32.mrb[0].mxu0
    %v775 = vadd.f32 0.0, %v774
    %v776 = vpop.f32.mrb[0].mxu0
    %v777 = vpop.f32.mrb[0].mxu0
    %v778 = vadd.f32 0.0, %v777
    %v779 = vpop.f32.mrb[0].mxu0
    %780 = vmatprep.mubr.bf16.mxu0 %v357
    %781 = vmatmul.mubr.bf16.gmra.mrb[0].mxu0 %v356
    %v782 = vpop.f32.mrb[0].mxu0
    %v783 = vadd.f32 0.0, %v782
    %v784 = vpop.f32.mrb[0].mxu0
    %v785 = vpop.f32.mrb[0].mxu0
    %v786 = vadd.f32 0.0, %v785
    %v787 = vpop.f32.mrb[0].mxu0
    %788 = vmatprep.mubr.bf16.mxu0 %v361
    %789 = vmatmul.mubr.bf16.gmra.mrb[0].mxu0 %v360
    %v790 = vpop.f32.mrb[0].mxu0
    %v791 = vadd.f32 0.0, %v790
    %v792 = vpop.f32.mrb[0].mxu0
    %v793 = vpop.f32.mrb[0].mxu0
    %v794 = vadd.f32 0.0, %v793
    %v795 = vpop.f32.mrb[0].mxu0
    %796 = vmatprep.mubr.bf16.mxu0 %v365
    %797 = vmatmul.mubr.bf16.gmra.mrb[0].mxu0 %v364
    %v798 = vpop.f32.mrb[0].mxu0
    %v799 = vadd.f32 0.0, %v798
    %v800 = vpop.f32.mrb[0].mxu0
    %v801 = vpop.f32.mrb[0].mxu0
    %v802 = vadd.f32 0.0, %v801
    %v803 = vpop.f32.mrb[0].mxu0
    %804 = vmatprep.mubr.bf16.mxu0 %v369
    %805 = vmatmul.mubr.bf16.gmra.mrb[0].mxu0 %v368
    %v806 = vpop.f32.mrb[0].mxu0
    %v807 = vadd.f32 0.0, %v806
    %v808 = vpop.f32.mrb[0].mxu0
    %v809 = vpop.f32.mrb[0].mxu0
    %v810 = vadd.f32 0.0, %v809
    %v811 = vpop.f32.mrb[0].mxu0
    %812 = vmatprep.mubr.bf16.mxu0 %v373
    %813 = vmatmul.mubr.bf16.gmra.mrb[0].mxu0 %v372
    %v814 = vpop.f32.mrb[0].mxu0
    %v815 = vadd.f32 0.0, %v814
    %v816 = vpop.f32.mrb[0].mxu0
    %v817 = vpop.f32.mrb[0].mxu0
    %v818 = vadd.f32 0.0, %v817
    %v819 = vpop.f32.mrb[0].mxu0
    %820 = vmatprep.mubr.bf16.mxu0 %v377
    %821 = vmatmul.mubr.bf16.gmra.mrb[0].mxu0 %v376
    %v822 = vpop.f32.mrb[0].mxu0
    %v823 = vadd.f32 0.0, %v822
    %v824 = vpop.f32.mrb[0].mxu0
    %v825 = vpop.f32.mrb[0].mxu0
    %v826 = vadd.f32 0.0, %v825
    %v827 = vpop.f32.mrb[0].mxu0
    %828 = vmatprep.mubr.bf16.mxu0 %v381
    %829 = vmatmul.mubr.bf16.gmra.mrb[0].mxu0 %v380
    %v830 = vpop.f32.mrb[0].mxu0
    %v831 = vadd.f32 0.0, %v830
    %v832 = vpop.f32.mrb[0].mxu0
    %v833 = vpop.f32.mrb[0].mxu0
    %v834 = vadd.f32 0.0, %v833
    %v835 = vpop.f32.mrb[0].mxu0
    %836 = vmatprep.mubr.bf16.mxu0 %v385
    %837 = vmatmul.mubr.bf16.gmra.mrb[0].mxu0 %v384
    %v838 = vpop.f32.mrb[0].mxu0
    %v839 = vadd.f32 0.0, %v838
    %v840 = vpop.f32.mrb[0].mxu0
    %v841 = vpop.f32.mrb[0].mxu0
    %v842 = vadd.f32 0.0, %v841
    %v843 = vpop.f32.mrb[0].mxu0
    %844 = vmatprep.mubr.bf16.mxu0 %v389
    %845 = vmatmul.mubr.bf16.gmra.mrb[0].mxu0 %v388
    %v846 = vpop.f32.mrb[0].mxu0
    %v847 = vadd.f32 0.0, %v846
    %v848 = vpop.f32.mrb[0].mxu0
    %v849 = vpop.f32.mrb[0].mxu0
    %v850 = vadd.f32 0.0, %v849
    %v851 = vpop.f32.mrb[0].mxu0
    %852 = vmatprep.mubr.bf16.mxu0 %v393
    %853 = vmatmul.mubr.bf16.gmra.mrb[0].mxu0 %v392
    %v854 = vpop.f32.mrb[0].mxu0
    %v855 = vadd.f32 0.0, %v854
    %v856 = vpop.f32.mrb[0].mxu0
    %v857 = vpop.f32.mrb[0].mxu0
    %v858 = vadd.f32 0.0, %v857
    %v859 = vpop.f32.mrb[0].mxu0
    %860 = vmatprep.mubr.bf16.mxu0 %v397
    %861 = vmatmul.mubr.bf16.gmra.mrb[0].mxu0 %v396
    %v862 = vpop.f32.mrb[0].mxu0
    %v863 = vadd.f32 0.0, %v862
    %v864 = vpop.f32.mrb[0].mxu0
    %v865 = vpop.f32.mrb[0].mxu0
    %v866 = vadd.f32 0.0, %v865
    %v867 = vpop.f32.mrb[0].mxu0
    %868 = vmatprep.mubr.bf16.mxu0 %v401
    %869 = vmatmul.mubr.bf16.gmra.mrb[0].mxu0 %v400
    %v870 = vpop.f32.mrb[0].mxu0
    %v871 = vadd.f32 0.0, %v870
    %v872 = vpop.f32.mrb[0].mxu0
    %v873 = vpop.f32.mrb[0].mxu0
    %v874 = vadd.f32 0.0, %v873
    %v875 = vpop.f32.mrb[0].mxu0
    %876 = vmatprep.mubr.bf16.mxu0 %v405
    %877 = vmatmul.mubr.bf16.gmra.mrb[0].mxu0 %v404
    %v878 = vpop.f32.mrb[0].mxu0
    %v879 = vadd.f32 0.0, %v878
    %v880 = vpop.f32.mrb[0].mxu0
    %v881 = vpop.f32.mrb[0].mxu0
    %v882 = vadd.f32 0.0, %v881
    %v883 = vpop.f32.mrb[0].mxu0
    %884 = vmatprep.mubr.bf16.mxu0 %v409
    %885 = vmatmul.mubr.bf16.gmra.mrb[0].mxu0 %v408
    %v886 = vpop.f32.mrb[0].mxu0
    %v887 = vadd.f32 0.0, %v886
    %v888 = vpop.f32.mrb[0].mxu0
    %v889 = vpop.f32.mrb[0].mxu0
    %v890 = vadd.f32 0.0, %v889
    %v891 = vpop.f32.mrb[0].mxu0
    %892 = vmatprep.mubr.bf16.mxu0 %v413
    %893 = vmatmul.mubr.bf16.gmra.mrb[0].mxu0 %v412
    %v894 = vpop.f32.mrb[0].mxu0
    %v895 = vadd.f32 0.0, %v894
    %v896 = vpop.f32.mrb[0].mxu0
    %v897 = vpop.f32.mrb[0].mxu0
    %v898 = vadd.f32 0.0, %v897
    %v899 = vpop.f32.mrb[0].mxu0
    %900 = vmatprep.mubr.bf16.mxu0 %v417
    %901 = vmatmul.mubr.bf16.gmra.mrb[0].mxu0 %v416
    %v902 = vpop.f32.mrb[0].mxu0
    %v903 = vadd.f32 0.0, %v902
    %v904 = vpop.f32.mrb[0].mxu0
    %v905 = vpop.f32.mrb[0].mxu0
    %v906 = vadd.f32 0.0, %v905
    %v907 = vpop.f32.mrb[0].mxu0
    %908 = vmatprep.mubr.bf16.mxu0 %v421
    %909 = vmatmul.mubr.bf16.gmra.mrb[0].mxu0 %v420
    %v910 = vpop.f32.mrb[0].mxu0
    %v911 = vadd.f32 0.0, %v910
    %v912 = vpop.f32.mrb[0].mxu0
    %v913 = vpop.f32.mrb[0].mxu0
    %v914 = vadd.f32 0.0, %v913
    %v915 = vpop.f32.mrb[0].mxu0
    %916 = vmatprep.mubr.bf16.mxu0 %v425
    %917 = vmatmul.mubr.bf16.gmra.mrb[0].mxu0 %v424
    %v918 = vpop.f32.mrb[0].mxu0
    %v919 = vadd.f32 0.0, %v918
    %v920 = vpop.f32.mrb[0].mxu0
    %v921 = vpop.f32.mrb[0].mxu0
    %v922 = vadd.f32 0.0, %v921
    %v923 = vpop.f32.mrb[0].mxu0
    %924 = vmatprep.mubr.bf16.mxu0 %v429
    %925 = vmatmul.mubr.bf16.gmra.mrb[0].mxu0 %v428
    %v926 = vpop.f32.mrb[0].mxu0
    %v927 = vadd.f32 0.0, %v926
    %v928 = vpop.f32.mrb[0].mxu0
    %v929 = vpop.f32.mrb[0].mxu0
    %v930 = vadd.f32 0.0, %v929
    %v931 = vpop.f32.mrb[0].mxu0
    %932 = vmatprep.mubr.bf16.mxu0 %v433
    %933 = vmatmul.mubr.bf16.gmra.mrb[0].mxu0 %v432
    %v934 = vpop.f32.mrb[0].mxu0
    %v935 = vadd.f32 0.0, %v934
    %v936 = vpop.f32.mrb[0].mxu0
    %v937 = vpop.f32.mrb[0].mxu0
    %v938 = vadd.f32 0.0, %v937
    %v939 = vpop.f32.mrb[0].mxu0
    %940 = vmatprep.mubr.bf16.mxu0 %v437
    %941 = vmatmul.mubr.bf16.gmra.mrb[0].mxu0 %v436
    %v942 = vpop.f32.mrb[0].mxu0
    %v943 = vadd.f32 0.0, %v942
    %v944 = vpop.f32.mrb[0].mxu0
    %v945 = vpop.f32.mrb[0].mxu0
    %v946 = vadd.f32 0.0, %v945
    %v947 = vpop.f32.mrb[0].mxu0
    %948 = vmatprep.mubr.bf16.mxu0 %v441
    %949 = vmatmul.mubr.bf16.gmra.mrb[0].mxu0 %v440
    %v950 = vpop.f32.mrb[0].mxu0
    %v951 = vadd.f32 0.0, %v950
    %v952 = vpop.f32.mrb[0].mxu0
    %v953 = vpop.f32.mrb[0].mxu0
    %v954 = vadd.f32 0.0, %v953
    %v955 = vpop.f32.mrb[0].mxu0
    %956 = vmatprep.mubr.bf16.mxu0 %v445
    %957 = vmatmul.mubr.bf16.gmra.mrb[0].mxu0 %v444
    %v958 = vpop.f32.mrb[0].mxu0
    %v959 = vadd.f32 0.0, %v958
    %v960 = vpop.f32.mrb[0].mxu0
    %v961 = vpop.f32.mrb[0].mxu0
    %v962 = vadd.f32 0.0, %v961
    %v963 = vpop.f32.mrb[0].mxu0
    %964 = vmatprep.mubr.bf16.mxu0 %v449
    %965 = vmatmul.mubr.bf16.gmra.mrb[0].mxu0 %v448
    %v966 = vpop.f32.mrb[0].mxu0
    %v967 = vadd.f32 0.0, %v966
    %v968 = vpop.f32.mrb[0].mxu0
    %v969 = vpop.f32.mrb[0].mxu0
    %v970 = vadd.f32 0.0, %v969
    %v971 = vpop.f32.mrb[0].mxu0
    %972 = vmatprep.mubr.bf16.mxu0 %v453
    %973 = vmatmul.mubr.bf16.gmra.mrb[0].mxu0 %v452
    %v974 = vpop.f32.mrb[0].mxu0
    %v975 = vadd.f32 0.0, %v974
    %v976 = vpop.f32.mrb[0].mxu0
    %v977 = vpop.f32.mrb[0].mxu0
    %v978 = vadd.f32 0.0, %v977
    %v979 = vpop.f32.mrb[0].mxu0
    %980 = vmatprep.mubr.bf16.mxu0 %v457
    %981 = vmatmul.mubr.bf16.gmra.mrb[0].mxu0 %v456
    %v982 = vpop.f32.mrb[0].mxu0
    %v983 = vadd.f32 0.0, %v982
    %v984 = vpop.f32.mrb[0].mxu0
    %v985 = vpop.f32.mrb[0].mxu0
    %v986 = vadd.f32 0.0, %v985
    %v987 = vpop.f32.mrb[0].mxu0
    %988 = vmatprep.mubr.bf16.mxu0 %v461
    %989 = vmatmul.mubr.bf16.gmra.mrb[0].mxu0 %v460
    %v990 = vpop.f32.mrb[0].mxu0
    %v991 = vadd.f32 0.0, %v990
    %v992 = vpop.f32.mrb[0].mxu0
    %v993 = vpop.f32.mrb[0].mxu0
    %v994 = vadd.f32 0.0, %v993
    %v995 = vpop.f32.mrb[0].mxu0
    %996 = vmatprep.mubr.bf16.mxu0 %v465
    %997 = vmatmul.mubr.bf16.gmra.mrb[0].mxu0 %v464
    %v998 = vpop.f32.mrb[0].mxu0
    %v999 = vadd.f32 0.0, %v998
    %v1000 = vpop.f32.mrb[0].mxu0
    %v1001 = vpop.f32.mrb[0].mxu0
    %v1002 = vadd.f32 0.0, %v1001
    %v1003 = vpop.f32.mrb[0].mxu0
    %1004 = vmatprep.mubr.bf16.mxu0 %v469
    %1005 = vmatmul.mubr.bf16.gmra.mrb[0].mxu0 %v468
    %v1006 = vpop.f32.mrb[0].mxu0
    %v1007 = vadd.f32 0.0, %v1006
    %v1008 = vpop.f32.mrb[0].mxu0
    %v1009 = vpop.f32.mrb[0].mxu0
    %v1010 = vadd.f32 0.0, %v1009
    %v1011 = vpop.f32.mrb[0].mxu0
    %1012 = vmatprep.mubr.bf16.mxu0 %v473
    %1013 = vmatmul.mubr.bf16.gmra.mrb[0].mxu0 %v472
    %v1014 = vpop.f32.mrb[0].mxu0
    %v1015 = vadd.f32 0.0, %v1014
    %v1016 = vpop.f32.mrb[0].mxu0
    %v1017 = vpop.f32.mrb[0].mxu0
    %v1018 = vadd.f32 0.0, %v1017
    %v1019 = vpop.f32.mrb[0].mxu0
    %1020 = vdwg.mxu0
    %1021 = vmatprep.subr.bf16.mxu0 0
    %1022 = vmatpush1.bf16.msra.mxu0 %v684
    %1023 = vmatprep.subr.bf16.mxu0 0
    %1024 = vmatpush1.bf16.msra.mxu0 %v685
    %1025 = vmatprep.subr.bf16.mxu0 0
    %1026 = vmatpush1.bf16.msra.mxu0 %v686
    %1027 = vmatprep.subr.bf16.mxu0 0
    %1028 = vmatpush1.bf16.msra.mxu0 %v687
    %1029 = vmatprep.subr.bf16.mxu0 0
    %1030 = vmatpush1.bf16.msra.mxu0 %v688
    %1031 = vmatprep.subr.bf16.mxu0 0
    %1032 = vmatpush1.bf16.msra.mxu0 %v689
    %1033 = vmatprep.subr.bf16.mxu0 0
    %1034 = vmatpush1.bf16.msra.mxu0 %v690
    %1035 = vmatprep.subr.bf16.mxu0 0
    %1036 = vmatpush1.bf16.msra.mxu0 %v691
    %1037 = vmatprep.subr.bf16.mxu0 0
    %1038 = vmatpush1.bf16.msra.mxu0 %v692
    %1039 = vmatprep.subr.bf16.mxu0 0
    %1040 = vmatpush1.bf16.msra.mxu0 %v693
    %1041 = vmatprep.subr.bf16.mxu0 0
    %1042 = vmatpush1.bf16.msra.mxu0 %v694
    %1043 = vmatprep.subr.bf16.mxu0 0
    %1044 = vmatpush1.bf16.msra.mxu0 %v695
    %1045 = vmatprep.subr.bf16.mxu0 0
    %1046 = vmatpush1.bf16.msra.mxu0 %v696
    %1047 = vmatprep.subr.bf16.mxu0 0
    %1048 = vmatpush1.bf16.msra.mxu0 %v697
    %1049 = vmatprep.subr.bf16.mxu0 0
    %1050 = vmatpush1.bf16.msra.mxu0 %v698
    %1051 = vmatprep.subr.bf16.mxu0 0
    %1052 = vmatpush1.bf16.msra.mxu0 %v699
    %1053 = vmatprep.mubr.bf16.mxu0 %v351
    %1054 = vmatmul.mubr.bf16.gmra.mrb[0].mxu0 %v350
    %v1055 = vpop.f32.mrb[0].mxu0
    %v1056 = vadd.f32 %v767, %v1055
    %v1057 = vpop.f32.mrb[0].mxu0
    %v1058 = vpop.f32.mrb[0].mxu0
    %v1059 = vadd.f32 %v770, %v1058
    %v1060 = vpop.f32.mrb[0].mxu0
    %1061 = vmatprep.mubr.bf16.mxu0 %v355
    %1062 = vmatmul.mubr.bf16.gmra.mrb[0].mxu0 %v354
    %v1063 = vpop.f32.mrb[0].mxu0
    %v1064 = vadd.f32 %v775, %v1063
    %v1065 = vpop.f32.mrb[0].mxu0
    %v1066 = vpop.f32.mrb[0].mxu0
    %v1067 = vadd.f32 %v778, %v1066
    %v1068 = vpop.f32.mrb[0].mxu0
    %1069 = vmatprep.mubr.bf16.mxu0 %v359
    %1070 = vmatmul.mubr.bf16.gmra.mrb[0].mxu0 %v358
    %v1071 = vpop.f32.mrb[0].mxu0
    %v1072 = vadd.f32 %v783, %v1071
    %v1073 = vpop.f32.mrb[0].mxu0
    %v1074 = vpop.f32.mrb[0].mxu0
    %v1075 = vadd.f32 %v786, %v1074
    %v1076 = vpop.f32.mrb[0].mxu0
    %1077 = vmatprep.mubr.bf16.mxu0 %v363
    %1078 = vmatmul.mubr.bf16.gmra.mrb[0].mxu0 %v362
    %v1079 = vpop.f32.mrb[0].mxu0
    %v1080 = vadd.f32 %v791, %v1079
    %v1081 = vpop.f32.mrb[0].mxu0
    %v1082 = vpop.f32.mrb[0].mxu0
    %v1083 = vadd.f32 %v794, %v1082
    %v1084 = vpop.f32.mrb[0].mxu0
    %1085 = vmatprep.mubr.bf16.mxu0 %v367
    %1086 = vmatmul.mubr.bf16.gmra.mrb[0].mxu0 %v366
    %v1087 = vpop.f32.mrb[0].mxu0
    %v1088 = vadd.f32 %v799, %v1087
    %v1089 = vpop.f32.mrb[0].mxu0
    %v1090 = vpop.f32.mrb[0].mxu0
    %v1091 = vadd.f32 %v802, %v1090
    %v1092 = vpop.f32.mrb[0].mxu0
    %1093 = vmatprep.mubr.bf16.mxu0 %v371
    %1094 = vmatmul.mubr.bf16.gmra.mrb[0].mxu0 %v370
    %v1095 = vpop.f32.mrb[0].mxu0
    %v1096 = vadd.f32 %v807, %v1095
    %v1097 = vpop.f32.mrb[0].mxu0
    %v1098 = vpop.f32.mrb[0].mxu0
    %v1099 = vadd.f32 %v810, %v1098
    %v1100 = vpop.f32.mrb[0].mxu0
    %1101 = vmatprep.mubr.bf16.mxu0 %v375
    %1102 = vmatmul.mubr.bf16.gmra.mrb[0].mxu0 %v374
    %v1103 = vpop.f32.mrb[0].mxu0
    %v1104 = vadd.f32 %v815, %v1103
    %v1105 = vpop.f32.mrb[0].mxu0
    %v1106 = vpop.f32.mrb[0].mxu0
    %v1107 = vadd.f32 %v818, %v1106
    %v1108 = vpop.f32.mrb[0].mxu0
    %1109 = vmatprep.mubr.bf16.mxu0 %v379
    %1110 = vmatmul.mubr.bf16.gmra.mrb[0].mxu0 %v378
    %v1111 = vpop.f32.mrb[0].mxu0
    %v1112 = vadd.f32 %v823, %v1111
    %v1113 = vpop.f32.mrb[0].mxu0
    %v1114 = vpop.f32.mrb[0].mxu0
    %v1115 = vadd.f32 %v826, %v1114
    %v1116 = vpop.f32.mrb[0].mxu0
    %1117 = vmatprep.mubr.bf16.mxu0 %v383
    %1118 = vmatmul.mubr.bf16.gmra.mrb[0].mxu0 %v382
    %v1119 = vpop.f32.mrb[0].mxu0
    %v1120 = vadd.f32 %v831, %v1119
    %v1121 = vpop.f32.mrb[0].mxu0
    %v1122 = vpop.f32.mrb[0].mxu0
    %v1123 = vadd.f32 %v834, %v1122
    %v1124 = vpop.f32.mrb[0].mxu0
    %1125 = vmatprep.mubr.bf16.mxu0 %v387
    %1126 = vmatmul.mubr.bf16.gmra.mrb[0].mxu0 %v386
    %v1127 = vpop.f32.mrb[0].mxu0
    %v1128 = vadd.f32 %v839, %v1127
    %v1129 = vpop.f32.mrb[0].mxu0
    %v1130 = vpop.f32.mrb[0].mxu0
    %v1131 = vadd.f32 %v842, %v1130
    %v1132 = vpop.f32.mrb[0].mxu0
    %1133 = vmatprep.mubr.bf16.mxu0 %v391
    %1134 = vmatmul.mubr.bf16.gmra.mrb[0].mxu0 %v390
    %v1135 = vpop.f32.mrb[0].mxu0
    %v1136 = vadd.f32 %v847, %v1135
    %v1137 = vpop.f32.mrb[0].mxu0
    %v1138 = vpop.f32.mrb[0].mxu0
    %v1139 = vadd.f32 %v850, %v1138
    %v1140 = vpop.f32.mrb[0].mxu0
    %1141 = vmatprep.mubr.bf16.mxu0 %v395
    %1142 = vmatmul.mubr.bf16.gmra.mrb[0].mxu0 %v394
    %v1143 = vpop.f32.mrb[0].mxu0
    %v1144 = vadd.f32 %v855, %v1143
    %v1145 = vpop.f32.mrb[0].mxu0
    %v1146 = vpop.f32.mrb[0].mxu0
    %v1147 = vadd.f32 %v858, %v1146
    %v1148 = vpop.f32.mrb[0].mxu0
    %1149 = vmatprep.mubr.bf16.mxu0 %v399
    %1150 = vmatmul.mubr.bf16.gmra.mrb[0].mxu0 %v398
    %v1151 = vpop.f32.mrb[0].mxu0
    %v1152 = vadd.f32 %v863, %v1151
    %v1153 = vpop.f32.mrb[0].mxu0
    %v1154 = vpop.f32.mrb[0].mxu0
    %v1155 = vadd.f32 %v866, %v1154
    %v1156 = vpop.f32.mrb[0].mxu0
    %1157 = vmatprep.mubr.bf16.mxu0 %v403
    %1158 = vmatmul.mubr.bf16.gmra.mrb[0].mxu0 %v402
    %v1159 = vpop.f32.mrb[0].mxu0
    %v1160 = vadd.f32 %v871, %v1159
    %v1161 = vpop.f32.mrb[0].mxu0
    %v1162 = vpop.f32.mrb[0].mxu0
    %v1163 = vadd.f32 %v874, %v1162
    %v1164 = vpop.f32.mrb[0].mxu0
    %1165 = vmatprep.mubr.bf16.mxu0 %v407
    %1166 = vmatmul.mubr.bf16.gmra.mrb[0].mxu0 %v406
    %v1167 = vpop.f32.mrb[0].mxu0
    %v1168 = vadd.f32 %v879, %v1167
    %v1169 = vpop.f32.mrb[0].mxu0
    %v1170 = vpop.f32.mrb[0].mxu0
    %v1171 = vadd.f32 %v882, %v1170
    %v1172 = vpop.f32.mrb[0].mxu0
    %1173 = vmatprep.mubr.bf16.mxu0 %v411
    %1174 = vmatmul.mubr.bf16.gmra.mrb[0].mxu0 %v410
    %v1175 = vpop.f32.mrb[0].mxu0
    %v1176 = vadd.f32 %v887, %v1175
    %v1177 = vpop.f32.mrb[0].mxu0
    %v1178 = vpop.f32.mrb[0].mxu0
    %v1179 = vadd.f32 %v890, %v1178
    %v1180 = vpop.f32.mrb[0].mxu0
    %1181 = vmatprep.mubr.bf16.mxu0 %v415
    %1182 = vmatmul.mubr.bf16.gmra.mrb[0].mxu0 %v414
    %v1183 = vpop.f32.mrb[0].mxu0
    %v1184 = vadd.f32 %v895, %v1183
    %v1185 = vpop.f32.mrb[0].mxu0
    %v1186 = vpop.f32.mrb[0].mxu0
    %v1187 = vadd.f32 %v898, %v1186
    %v1188 = vpop.f32.mrb[0].mxu0
    %1189 = vmatprep.mubr.bf16.mxu0 %v419
    %1190 = vmatmul.mubr.bf16.gmra.mrb[0].mxu0 %v418
    %v1191 = vpop.f32.mrb[0].mxu0
    %v1192 = vadd.f32 %v903, %v1191
    %v1193 = vpop.f32.mrb[0].mxu0
    %v1194 = vpop.f32.mrb[0].mxu0
    %v1195 = vadd.f32 %v906, %v1194
    %v1196 = vpop.f32.mrb[0].mxu0
    %1197 = vmatprep.mubr.bf16.mxu0 %v423
    %1198 = vmatmul.mubr.bf16.gmra.mrb[0].mxu0 %v422
    %v1199 = vpop.f32.mrb[0].mxu0
    %v1200 = vadd.f32 %v911, %v1199
    %v1201 = vpop.f32.mrb[0].mxu0
    %v1202 = vpop.f32.mrb[0].mxu0
    %v1203 = vadd.f32 %v914, %v1202
    %v1204 = vpop.f32.mrb[0].mxu0
    %1205 = vmatprep.mubr.bf16.mxu0 %v427
    %1206 = vmatmul.mubr.bf16.gmra.mrb[0].mxu0 %v426
    %v1207 = vpop.f32.mrb[0].mxu0
    %v1208 = vadd.f32 %v919, %v1207
    %v1209 = vpop.f32.mrb[0].mxu0
    %v1210 = vpop.f32.mrb[0].mxu0
    %v1211 = vadd.f32 %v922, %v1210
    %v1212 = vpop.f32.mrb[0].mxu0
    %1213 = vmatprep.mubr.bf16.mxu0 %v431
    %1214 = vmatmul.mubr.bf16.gmra.mrb[0].mxu0 %v430
    %v1215 = vpop.f32.mrb[0].mxu0
    %v1216 = vadd.f32 %v927, %v1215
    %v1217 = vpop.f32.mrb[0].mxu0
    %v1218 = vpop.f32.mrb[0].mxu0
    %v1219 = vadd.f32 %v930, %v1218
    %v1220 = vpop.f32.mrb[0].mxu0
    %1221 = vmatprep.mubr.bf16.mxu0 %v435
    %1222 = vmatmul.mubr.bf16.gmra.mrb[0].mxu0 %v434
    %v1223 = vpop.f32.mrb[0].mxu0
    %v1224 = vadd.f32 %v935, %v1223
    %v1225 = vpop.f32.mrb[0].mxu0
    %v1226 = vpop.f32.mrb[0].mxu0
    %v1227 = vadd.f32 %v938, %v1226
    %v1228 = vpop.f32.mrb[0].mxu0
    %1229 = vmatprep.mubr.bf16.mxu0 %v439
    %1230 = vmatmul.mubr.bf16.gmra.mrb[0].mxu0 %v438
    %v1231 = vpop.f32.mrb[0].mxu0
    %v1232 = vadd.f32 %v943, %v1231
    %v1233 = vpop.f32.mrb[0].mxu0
    %v1234 = vpop.f32.mrb[0].mxu0
    %v1235 = vadd.f32 %v946, %v1234
    %v1236 = vpop.f32.mrb[0].mxu0
    %1237 = vmatprep.mubr.bf16.mxu0 %v443
    %1238 = vmatmul.mubr.bf16.gmra.mrb[0].mxu0 %v442
    %v1239 = vpop.f32.mrb[0].mxu0
    %v1240 = vadd.f32 %v951, %v1239
    %v1241 = vpop.f32.mrb[0].mxu0
    %v1242 = vpop.f32.mrb[0].mxu0
    %v1243 = vadd.f32 %v954, %v1242
    %v1244 = vpop.f32.mrb[0].mxu0
    %1245 = vmatprep.mubr.bf16.mxu0 %v447
    %1246 = vmatmul.mubr.bf16.gmra.mrb[0].mxu0 %v446
    %v1247 = vpop.f32.mrb[0].mxu0
    %v1248 = vadd.f32 %v959, %v1247
    %v1249 = vpop.f32.mrb[0].mxu0
    %v1250 = vpop.f32.mrb[0].mxu0
    %v1251 = vadd.f32 %v962, %v1250
    %v1252 = vpop.f32.mrb[0].mxu0
    %1253 = vmatprep.mubr.bf16.mxu0 %v451
    %1254 = vmatmul.mubr.bf16.gmra.mrb[0].mxu0 %v450
    %v1255 = vpop.f32.mrb[0].mxu0
    %v1256 = vadd.f32 %v967, %v1255
    %v1257 = vpop.f32.mrb[0].mxu0
    %v1258 = vpop.f32.mrb[0].mxu0
    %v1259 = vadd.f32 %v970, %v1258
    %v1260 = vpop.f32.mrb[0].mxu0
    %1261 = vmatprep.mubr.bf16.mxu0 %v455
    %1262 = vmatmul.mubr.bf16.gmra.mrb[0].mxu0 %v454
    %v1263 = vpop.f32.mrb[0].mxu0
    %v1264 = vadd.f32 %v975, %v1263
    %v1265 = vpop.f32.mrb[0].mxu0
    %v1266 = vpop.f32.mrb[0].mxu0
    %v1267 = vadd.f32 %v978, %v1266
    %v1268 = vpop.f32.mrb[0].mxu0
    %1269 = vmatprep.mubr.bf16.mxu0 %v459
    %1270 = vmatmul.mubr.bf16.gmra.mrb[0].mxu0 %v458
    %v1271 = vpop.f32.mrb[0].mxu0
    %v1272 = vadd.f32 %v983, %v1271
    %v1273 = vpop.f32.mrb[0].mxu0
    %v1274 = vpop.f32.mrb[0].mxu0
    %v1275 = vadd.f32 %v986, %v1274
    %v1276 = vpop.f32.mrb[0].mxu0
    %1277 = vmatprep.mubr.bf16.mxu0 %v463
    %1278 = vmatmul.mubr.bf16.gmra.mrb[0].mxu0 %v462
    %v1279 = vpop.f32.mrb[0].mxu0
    %v1280 = vadd.f32 %v991, %v1279
    %v1281 = vpop.f32.mrb[0].mxu0
    %v1282 = vpop.f32.mrb[0].mxu0
    %v1283 = vadd.f32 %v994, %v1282
    %v1284 = vpop.f32.mrb[0].mxu0
    %1285 = vmatprep.mubr.bf16.mxu0 %v467
    %1286 = vmatmul.mubr.bf16.gmra.mrb[0].mxu0 %v466
    %v1287 = vpop.f32.mrb[0].mxu0
    %v1288 = vadd.f32 %v999, %v1287
    %v1289 = vpop.f32.mrb[0].mxu0
    %v1290 = vpop.f32.mrb[0].mxu0
    %v1291 = vadd.f32 %v1002, %v1290
    %v1292 = vpop.f32.mrb[0].mxu0
    %1293 = vmatprep.mubr.bf16.mxu0 %v471
    %1294 = vmatmul.mubr.bf16.gmra.mrb[0].mxu0 %v470
    %v1295 = vpop.f32.mrb[0].mxu0
    %v1296 = vadd.f32 %v1007, %v1295
    %v1297 = vpop.f32.mrb[0].mxu0
    %v1298 = vpop.f32.mrb[0].mxu0
    %v1299 = vadd.f32 %v1010, %v1298
    %v1300 = vpop.f32.mrb[0].mxu0
    %1301 = vmatprep.mubr.bf16.mxu0 %v475
    %1302 = vmatmul.mubr.bf16.gmra.mrb[0].mxu0 %v474
    %v1303 = vpop.f32.mrb[0].mxu0
    %v1304 = vadd.f32 %v1015, %v1303
    %v1305 = vpop.f32.mrb[0].mxu0
    %v1306 = vpop.f32.mrb[0].mxu0
    %v1307 = vadd.f32 %v1018, %v1306
    %v1308 = vpop.f32.mrb[0].mxu0
    %1309 = vdwg.mxu0
    %v1310 = vld [vmem:[%s4] sm:$0x1]
    %v1311 = vld [vmem:[%s5] sm:$0x1]
    %v1312 = vadd.f32 %v1056, %v1059
    %v1313 = vadd.f32 %v1312, %v1064
    %v1314 = vadd.f32 %v1313, %v1067
    %v1315 = vadd.f32 %v1314, %v1072
    %v1316 = vadd.f32 %v1315, %v1075
    %v1317 = vadd.f32 %v1316, %v1080
    %v1318 = vadd.f32 %v1317, %v1083
    %v1319 = vadd.f32 %v1318, %v1088
    %v1320 = vadd.f32 %v1319, %v1091
    %v1321 = vadd.f32 %v1320, %v1096
    %v1322 = vadd.f32 %v1321, %v1099
    %v1323 = vadd.f32 %v1322, %v1104
    %v1324 = vadd.f32 %v1323, %v1107
    %v1325 = vadd.f32 %v1324, %v1112
    %v1326 = vadd.f32 %v1325, %v1115
    %v1327 = vadd.f32 %v1326, %v1120
    %v1328 = vadd.f32 %v1327, %v1123
    %v1329 = vadd.f32 %v1328, %v1128
    %v1330 = vadd.f32 %v1329, %v1131
    %v1331 = vadd.f32 %v1330, %v1136
    %v1332 = vadd.f32 %v1331, %v1139
    %v1333 = vadd.f32 %v1332, %v1144
    %v1334 = vadd.f32 %v1333, %v1147
    %v1335 = vadd.f32 %v1334, %v1152
    %v1336 = vadd.f32 %v1335, %v1155
    %v1337 = vadd.f32 %v1336, %v1160
    %v1338 = vadd.f32 %v1337, %v1163
    %v1339 = vadd.f32 %v1338, %v1168
    %v1340 = vadd.f32 %v1339, %v1171
    %v1341 = vadd.f32 %v1340, %v1176
    %v1342 = vadd.f32 %v1341, %v1179
    %v1343 = vadd.f32 %v1342, %v1184
    %v1344 = vadd.f32 %v1343, %v1187
    %v1345 = vadd.f32 %v1344, %v1192
    %v1346 = vadd.f32 %v1345, %v1195
    %v1347 = vadd.f32 %v1346, %v1200
    %v1348 = vadd.f32 %v1347, %v1203
    %v1349 = vadd.f32 %v1348, %v1208
    %v1350 = vadd.f32 %v1349, %v1211
    %v1351 = vadd.f32 %v1350, %v1216
    %v1352 = vadd.f32 %v1351, %v1219
    %v1353 = vadd.f32 %v1352, %v1224
    %v1354 = vadd.f32 %v1353, %v1227
    %v1355 = vadd.f32 %v1354, %v1232
    %v1356 = vadd.f32 %v1355, %v1235
    %v1357 = vadd.f32 %v1356, %v1240
    %v1358 = vadd.f32 %v1357, %v1243
    %v1359 = vadd.f32 %v1358, %v1248
    %v1360 = vadd.f32 %v1359, %v1251
    %v1361 = vadd.f32 %v1360, %v1256
    %v1362 = vadd.f32 %v1361, %v1259
    %v1363 = vadd.f32 %v1362, %v1264
    %v1364 = vadd.f32 %v1363, %v1267
    %v1365 = vadd.f32 %v1364, %v1272
    %v1366 = vadd.f32 %v1365, %v1275
    %v1367 = vadd.f32 %v1366, %v1280
    %v1368 = vadd.f32 %v1367, %v1283
    %v1369 = vadd.f32 %v1368, %v1288
    %v1370 = vadd.f32 %v1369, %v1291
    %v1371 = vadd.f32 %v1370, %v1296
    %v1372 = vadd.f32 %v1371, %v1299
    %v1373 = vadd.f32 %v1372, %v1304
    %v1374 = vadd.f32 %v1373, %v1307
    %v1375 = vrot.slane %v1374, 4
    %v1376 = vadd.f32 %v1374, %v1375
    %v1377 = vrot.slane %v1376, 2
    %v1378 = vadd.f32 %v1376, %v1377
    %v1379 = vrot.slane %v1378, 1
    %v1380 = vadd.f32 %v1378, %v1379
    %v1381 = vrcp.pop 512.0
    %v1382 = vmul.f32 %v1380, %v1381
    %v1383 = vsub.f32 %v1056, %v1382
    %v1384 = vsub.f32 %v1059, %v1382
    %v1385 = vsub.f32 %v1064, %v1382
    %v1386 = vsub.f32 %v1067, %v1382
    %v1387 = vsub.f32 %v1072, %v1382
    %v1388 = vsub.f32 %v1075, %v1382
    %v1389 = vsub.f32 %v1080, %v1382
    %v1390 = vsub.f32 %v1083, %v1382
    %v1391 = vsub.f32 %v1088, %v1382
    %v1392 = vsub.f32 %v1091, %v1382
    %v1393 = vsub.f32 %v1096, %v1382
    %v1394 = vsub.f32 %v1099, %v1382
    %v1395 = vsub.f32 %v1104, %v1382
    %v1396 = vsub.f32 %v1107, %v1382
    %v1397 = vsub.f32 %v1112, %v1382
    %v1398 = vsub.f32 %v1115, %v1382
    %v1399 = vsub.f32 %v1120, %v1382
    %v1400 = vsub.f32 %v1123, %v1382
    %v1401 = vsub.f32 %v1128, %v1382
    %v1402 = vsub.f32 %v1131, %v1382
    %v1403 = vsub.f32 %v1136, %v1382
    %v1404 = vsub.f32 %v1139, %v1382
    %v1405 = vsub.f32 %v1144, %v1382
    %v1406 = vsub.f32 %v1147, %v1382
    %v1407 = vsub.f32 %v1152, %v1382
    %v1408 = vsub.f32 %v1155, %v1382
    %v1409 = vsub.f32 %v1160, %v1382
    %v1410 = vsub.f32 %v1163, %v1382
    %v1411 = vsub.f32 %v1168, %v1382
    %v1412 = vsub.f32 %v1171, %v1382
    %v1413 = vsub.f32 %v1176, %v1382
    %v1414 = vsub.f32 %v1179, %v1382
    %v1415 = vsub.f32 %v1184, %v1382
    %v1416 = vsub.f32 %v1187, %v1382
    %v1417 = vsub.f32 %v1192, %v1382
    %v1418 = vsub.f32 %v1195, %v1382
    %v1419 = vsub.f32 %v1200, %v1382
    %v1420 = vsub.f32 %v1203, %v1382
    %v1421 = vsub.f32 %v1208, %v1382
    %v1422 = vsub.f32 %v1211, %v1382
    %v1423 = vsub.f32 %v1216, %v1382
    %v1424 = vsub.f32 %v1219, %v1382
    %v1425 = vsub.f32 %v1224, %v1382
    %v1426 = vsub.f32 %v1227, %v1382
    %v1427 = vsub.f32 %v1232, %v1382
    %v1428 = vsub.f32 %v1235, %v1382
    %v1429 = vsub.f32 %v1240, %v1382
    %v1430 = vsub.f32 %v1243, %v1382
    %v1431 = vsub.f32 %v1248, %v1382
    %v1432 = vsub.f32 %v1251, %v1382
    %v1433 = vsub.f32 %v1256, %v1382
    %v1434 = vsub.f32 %v1259, %v1382
    %v1435 = vsub.f32 %v1264, %v1382
    %v1436 = vsub.f32 %v1267, %v1382
    %v1437 = vsub.f32 %v1272, %v1382
    %v1438 = vsub.f32 %v1275, %v1382
    %v1439 = vsub.f32 %v1280, %v1382
    %v1440 = vsub.f32 %v1283, %v1382
    %v1441 = vsub.f32 %v1288, %v1382
    %v1442 = vsub.f32 %v1291, %v1382
    %v1443 = vsub.f32 %v1296, %v1382
    %v1444 = vsub.f32 %v1299, %v1382
    %v1445 = vsub.f32 %v1304, %v1382
    %v1446 = vsub.f32 %v1307, %v1382
    %v1447 = vmul.f32 %v1383, %v1383
    %v1448 = vmul.f32 %v1384, %v1384
    %v1449 = vmul.f32 %v1385, %v1385
    %v1450 = vmul.f32 %v1386, %v1386
    %v1451 = vmul.f32 %v1387, %v1387
    %v1452 = vmul.f32 %v1388, %v1388
    %v1453 = vmul.f32 %v1389, %v1389
    %v1454 = vmul.f32 %v1390, %v1390
    %v1455 = vmul.f32 %v1391, %v1391
    %v1456 = vmul.f32 %v1392, %v1392
    %v1457 = vmul.f32 %v1393, %v1393
    %v1458 = vmul.f32 %v1394, %v1394
    %v1459 = vmul.f32 %v1395, %v1395
    %v1460 = vmul.f32 %v1396, %v1396
    %v1461 = vmul.f32 %v1397, %v1397
    %v1462 = vmul.f32 %v1398, %v1398
    %v1463 = vmul.f32 %v1399, %v1399
    %v1464 = vmul.f32 %v1400, %v1400
    %v1465 = vmul.f32 %v1401, %v1401
    %v1466 = vmul.f32 %v1402, %v1402
    %v1467 = vmul.f32 %v1403, %v1403
    %v1468 = vmul.f32 %v1404, %v1404
    %v1469 = vmul.f32 %v1405, %v1405
    %v1470 = vmul.f32 %v1406, %v1406
    %v1471 = vmul.f32 %v1407, %v1407
    %v1472 = vmul.f32 %v1408, %v1408
    %v1473 = vmul.f32 %v1409, %v1409
    %v1474 = vmul.f32 %v1410, %v1410
    %v1475 = vmul.f32 %v1411, %v1411
    %v1476 = vmul.f32 %v1412, %v1412
    %v1477 = vmul.f32 %v1413, %v1413
    %v1478 = vmul.f32 %v1414, %v1414
    %v1479 = vmul.f32 %v1415, %v1415
    %v1480 = vmul.f32 %v1416, %v1416
    %v1481 = vmul.f32 %v1417, %v1417
    %v1482 = vmul.f32 %v1418, %v1418
    %v1483 = vmul.f32 %v1419, %v1419
    %v1484 = vmul.f32 %v1420, %v1420
    %v1485 = vmul.f32 %v1421, %v1421
    %v1486 = vmul.f32 %v1422, %v1422
    %v1487 = vmul.f32 %v1423, %v1423
    %v1488 = vmul.f32 %v1424, %v1424
    %v1489 = vmul.f32 %v1425, %v1425
    %v1490 = vmul.f32 %v1426, %v1426
    %v1491 = vmul.f32 %v1427, %v1427
    %v1492 = vmul.f32 %v1428, %v1428
    %v1493 = vmul.f32 %v1429, %v1429
    %v1494 = vmul.f32 %v1430, %v1430
    %v1495 = vmul.f32 %v1431, %v1431
    %v1496 = vmul.f32 %v1432, %v1432
    %v1497 = vmul.f32 %v1433, %v1433
    %v1498 = vmul.f32 %v1434, %v1434
    %v1499 = vmul.f32 %v1435, %v1435
    %v1500 = vmul.f32 %v1436, %v1436
    %v1501 = vmul.f32 %v1437, %v1437
    %v1502 = vmul.f32 %v1438, %v1438
    %v1503 = vmul.f32 %v1439, %v1439
    %v1504 = vmul.f32 %v1440, %v1440
    %v1505 = vmul.f32 %v1441, %v1441
    %v1506 = vmul.f32 %v1442, %v1442
    %v1507 = vmul.f32 %v1443, %v1443
    %v1508 = vmul.f32 %v1444, %v1444
    %v1509 = vmul.f32 %v1445, %v1445
    %v1510 = vmul.f32 %v1446, %v1446
    %v1511 = vadd.f32 %v1447, %v1448
    %v1512 = vadd.f32 %v1511, %v1449
    %v1513 = vadd.f32 %v1512, %v1450
    %v1514 = vadd.f32 %v1513, %v1451
    %v1515 = vadd.f32 %v1514, %v1452
    %v1516 = vadd.f32 %v1515, %v1453
    %v1517 = vadd.f32 %v1516, %v1454
    %v1518 = vadd.f32 %v1517, %v1455
    %v1519 = vadd.f32 %v1518, %v1456
    %v1520 = vadd.f32 %v1519, %v1457
    %v1521 = vadd.f32 %v1520, %v1458
    %v1522 = vadd.f32 %v1521, %v1459
    %v1523 = vadd.f32 %v1522, %v1460
    %v1524 = vadd.f32 %v1523, %v1461
    %v1525 = vadd.f32 %v1524, %v1462
    %v1526 = vadd.f32 %v1525, %v1463
    %v1527 = vadd.f32 %v1526, %v1464
    %v1528 = vadd.f32 %v1527, %v1465
    %v1529 = vadd.f32 %v1528, %v1466
    %v1530 = vadd.f32 %v1529, %v1467
    %v1531 = vadd.f32 %v1530, %v1468
    %v1532 = vadd.f32 %v1531, %v1469
    %v1533 = vadd.f32 %v1532, %v1470
    %v1534 = vadd.f32 %v1533, %v1471
    %v1535 = vadd.f32 %v1534, %v1472
    %v1536 = vadd.f32 %v1535, %v1473
    %v1537 = vadd.f32 %v1536, %v1474
    %v1538 = vadd.f32 %v1537, %v1475
    %v1539 = vadd.f32 %v1538, %v1476
    %v1540 = vadd.f32 %v1539, %v1477
    %v1541 = vadd.f32 %v1540, %v1478
    %v1542 = vadd.f32 %v1541, %v1479
    %v1543 = vadd.f32 %v1542, %v1480
    %v1544 = vadd.f32 %v1543, %v1481
    %v1545 = vadd.f32 %v1544, %v1482
    %v1546 = vadd.f32 %v1545, %v1483
    %v1547 = vadd.f32 %v1546, %v1484
    %v1548 = vadd.f32 %v1547, %v1485
    %v1549 = vadd.f32 %v1548, %v1486
    %v1550 = vadd.f32 %v1549, %v1487
    %v1551 = vadd.f32 %v1550, %v1488
    %v1552 = vadd.f32 %v1551, %v1489
    %v1553 = vadd.f32 %v1552, %v1490
    %v1554 = vadd.f32 %v1553, %v1491
    %v1555 = vadd.f32 %v1554, %v1492
    %v1556 = vadd.f32 %v1555, %v1493
    %v1557 = vadd.f32 %v1556, %v1494
    %v1558 = vadd.f32 %v1557, %v1495
    %v1559 = vadd.f32 %v1558, %v1496
    %v1560 = vadd.f32 %v1559, %v1497
    %v1561 = vadd.f32 %v1560, %v1498
    %v1562 = vadd.f32 %v1561, %v1499
    %v1563 = vadd.f32 %v1562, %v1500
    %v1564 = vadd.f32 %v1563, %v1501
    %v1565 = vadd.f32 %v1564, %v1502
    %v1566 = vadd.f32 %v1565, %v1503
    %v1567 = vadd.f32 %v1566, %v1504
    %v1568 = vadd.f32 %v1567, %v1505
    %v1569 = vadd.f32 %v1568, %v1506
    %v1570 = vadd.f32 %v1569, %v1507
    %v1571 = vadd.f32 %v1570, %v1508
    %v1572 = vadd.f32 %v1571, %v1509
    %v1573 = vadd.f32 %v1572, %v1510
    %v1574 = vrot.slane %v1573, 4
    %v1575 = vadd.f32 %v1573, %v1574
    %v1576 = vrot.slane %v1575, 2
    %v1577 = vadd.f32 %v1575, %v1576
    %v1578 = vrot.slane %v1577, 1
    %v1579 = vadd.f32 %v1577, %v1578
    %v1580 = vmul.f32 %v1579, %v1381
    %v1581 = vadd.f32 %v1580, 1e-05
    %v1582 = vrsqrt.pop %v1581
    %v1583 = vmul.f32 %v1310, %v1582
    %v1584 = vmul.f32 %v1382, %v1583
    %v1585 = vsub.f32 %v1311, %v1584
    %v1587 = vlaneseq
    %v1588 = vshrl.u32 %v1587, 7
    %v1589 = vsub.s32 0, %v1588
    %v1590 = vrot.slane %v1583, %v1589
    %v1592 = vmul.f32 %v1056, %v1590
    %v1593 = vmul.f32 %v1059, %v1590
    %v1594 = vmul.f32 %v1064, %v1590
    %v1595 = vmul.f32 %v1067, %v1590
    %v1596 = vmul.f32 %v1072, %v1590
    %v1597 = vmul.f32 %v1075, %v1590
    %v1598 = vmul.f32 %v1080, %v1590
    %v1599 = vmul.f32 %v1083, %v1590
    %v1600 = vmul.f32 %v1088, %v1590
    %v1601 = vmul.f32 %v1091, %v1590
    %v1602 = vmul.f32 %v1096, %v1590
    %v1603 = vmul.f32 %v1099, %v1590
    %v1604 = vmul.f32 %v1104, %v1590
    %v1605 = vmul.f32 %v1107, %v1590
    %v1606 = vmul.f32 %v1112, %v1590
    %v1607 = vmul.f32 %v1115, %v1590
    %v1608 = vmul.f32 %v1120, %v1590
    %v1609 = vmul.f32 %v1123, %v1590
    %v1610 = vmul.f32 %v1128, %v1590
    %v1611 = vmul.f32 %v1131, %v1590
    %v1612 = vmul.f32 %v1136, %v1590
    %v1613 = vmul.f32 %v1139, %v1590
    %v1614 = vmul.f32 %v1144, %v1590
    %v1615 = vmul.f32 %v1147, %v1590
    %v1616 = vmul.f32 %v1152, %v1590
    %v1617 = vmul.f32 %v1155, %v1590
    %v1618 = vmul.f32 %v1160, %v1590
    %v1619 = vmul.f32 %v1163, %v1590
    %v1620 = vmul.f32 %v1168, %v1590
    %v1621 = vmul.f32 %v1171, %v1590
    %v1622 = vmul.f32 %v1176, %v1590
    %v1623 = vmul.f32 %v1179, %v1590
    %v1624 = vmul.f32 %v1184, %v1590
    %v1625 = vmul.f32 %v1187, %v1590
    %v1626 = vmul.f32 %v1192, %v1590
    %v1627 = vmul.f32 %v1195, %v1590
    %v1628 = vmul.f32 %v1200, %v1590
    %v1629 = vmul.f32 %v1203, %v1590
    %v1630 = vmul.f32 %v1208, %v1590
    %v1631 = vmul.f32 %v1211, %v1590
    %v1632 = vmul.f32 %v1216, %v1590
    %v1633 = vmul.f32 %v1219, %v1590
    %v1634 = vmul.f32 %v1224, %v1590
    %v1635 = vmul.f32 %v1227, %v1590
    %v1636 = vmul.f32 %v1232, %v1590
    %v1637 = vmul.f32 %v1235, %v1590
    %v1638 = vmul.f32 %v1240, %v1590
    %v1639 = vmul.f32 %v1243, %v1590
    %v1640 = vmul.f32 %v1248, %v1590
    %v1641 = vmul.f32 %v1251, %v1590
    %v1642 = vmul.f32 %v1256, %v1590
    %v1643 = vmul.f32 %v1259, %v1590
    %v1644 = vmul.f32 %v1264, %v1590
    %v1645 = vmul.f32 %v1267, %v1590
    %v1646 = vmul.f32 %v1272, %v1590
    %v1647 = vmul.f32 %v1275, %v1590
    %v1648 = vmul.f32 %v1280, %v1590
    %v1649 = vmul.f32 %v1283, %v1590
    %v1650 = vmul.f32 %v1288, %v1590
    %v1651 = vmul.f32 %v1291, %v1590
    %v1652 = vmul.f32 %v1296, %v1590
    %v1653 = vmul.f32 %v1299, %v1590
    %v1654 = vmul.f32 %v1304, %v1590
    %v1655 = vmul.f32 %v1307, %v1590
    %v1657 = vlaneseq
    %v1658 = vshrl.u32 %v1657, 7
    %v1659 = vsub.s32 0, %v1658
    %v1660 = vrot.slane %v1585, %v1659
    %v1662 = vadd.f32 %v1592, %v1660
    %v1663 = vadd.f32 %v1593, %v1660
    %v1664 = vadd.f32 %v1594, %v1660
    %v1665 = vadd.f32 %v1595, %v1660
    %v1666 = vadd.f32 %v1596, %v1660
    %v1667 = vadd.f32 %v1597, %v1660
    %v1668 = vadd.f32 %v1598, %v1660
    %v1669 = vadd.f32 %v1599, %v1660
    %v1670 = vadd.f32 %v1600, %v1660
    %v1671 = vadd.f32 %v1601, %v1660
    %v1672 = vadd.f32 %v1602, %v1660
    %v1673 = vadd.f32 %v1603, %v1660
    %v1674 = vadd.f32 %v1604, %v1660
    %v1675 = vadd.f32 %v1605, %v1660
    %v1676 = vadd.f32 %v1606, %v1660
    %v1677 = vadd.f32 %v1607, %v1660
    %v1678 = vadd.f32 %v1608, %v1660
    %v1679 = vadd.f32 %v1609, %v1660
    %v1680 = vadd.f32 %v1610, %v1660
    %v1681 = vadd.f32 %v1611, %v1660
    %v1682 = vadd.f32 %v1612, %v1660
    %v1683 = vadd.f32 %v1613, %v1660
    %v1684 = vadd.f32 %v1614, %v1660
    %v1685 = vadd.f32 %v1615, %v1660
    %v1686 = vadd.f32 %v1616, %v1660
    %v1687 = vadd.f32 %v1617, %v1660
    %v1688 = vadd.f32 %v1618, %v1660
    %v1689 = vadd.f32 %v1619, %v1660
    %v1690 = vadd.f32 %v1620, %v1660
    %v1691 = vadd.f32 %v1621, %v1660
    %v1692 = vadd.f32 %v1622, %v1660
    %v1693 = vadd.f32 %v1623, %v1660
    %v1694 = vadd.f32 %v1624, %v1660
    %v1695 = vadd.f32 %v1625, %v1660
    %v1696 = vadd.f32 %v1626, %v1660
    %v1697 = vadd.f32 %v1627, %v1660
    %v1698 = vadd.f32 %v1628, %v1660
    %v1699 = vadd.f32 %v1629, %v1660
    %v1700 = vadd.f32 %v1630, %v1660
    %v1701 = vadd.f32 %v1631, %v1660
    %v1702 = vadd.f32 %v1632, %v1660
    %v1703 = vadd.f32 %v1633, %v1660
    %v1704 = vadd.f32 %v1634, %v1660
    %v1705 = vadd.f32 %v1635, %v1660
    %v1706 = vadd.f32 %v1636, %v1660
    %v1707 = vadd.f32 %v1637, %v1660
    %v1708 = vadd.f32 %v1638, %v1660
    %v1709 = vadd.f32 %v1639, %v1660
    %v1710 = vadd.f32 %v1640, %v1660
    %v1711 = vadd.f32 %v1641, %v1660
    %v1712 = vadd.f32 %v1642, %v1660
    %v1713 = vadd.f32 %v1643, %v1660
    %v1714 = vadd.f32 %v1644, %v1660
    %v1715 = vadd.f32 %v1645, %v1660
    %v1716 = vadd.f32 %v1646, %v1660
    %v1717 = vadd.f32 %v1647, %v1660
    %v1718 = vadd.f32 %v1648, %v1660
    %v1719 = vadd.f32 %v1649, %v1660
    %v1720 = vadd.f32 %v1650, %v1660
    %v1721 = vadd.f32 %v1651, %v1660
    %v1722 = vadd.f32 %v1652, %v1660
    %v1723 = vadd.f32 %v1653, %v1660
    %v1724 = vadd.f32 %v1654, %v1660
    %v1725 = vadd.f32 %v1655, %v1660
    %v1726 = vmax.f32 %v1662, 0.0
    %v1727 = vmax.f32 %v1663, 0.0
    %v1728 = vmax.f32 %v1664, 0.0
    %v1729 = vmax.f32 %v1665, 0.0
    %v1730 = vmax.f32 %v1666, 0.0
    %v1731 = vmax.f32 %v1667, 0.0
    %v1732 = vmax.f32 %v1668, 0.0
    %v1733 = vmax.f32 %v1669, 0.0
    %v1734 = vmax.f32 %v1670, 0.0
    %v1735 = vmax.f32 %v1671, 0.0
    %v1736 = vmax.f32 %v1672, 0.0
    %v1737 = vmax.f32 %v1673, 0.0
    %v1738 = vmax.f32 %v1674, 0.0
    %v1739 = vmax.f32 %v1675, 0.0
    %v1740 = vmax.f32 %v1676, 0.0
    %v1741 = vmax.f32 %v1677, 0.0
    %v1742 = vmax.f32 %v1678, 0.0
    %v1743 = vmax.f32 %v1679, 0.0
    %v1744 = vmax.f32 %v1680, 0.0
    %v1745 = vmax.f32 %v1681, 0.0
    %v1746 = vmax.f32 %v1682, 0.0
    %v1747 = vmax.f32 %v1683, 0.0
    %v1748 = vmax.f32 %v1684, 0.0
    %v1749 = vmax.f32 %v1685, 0.0
    %v1750 = vmax.f32 %v1686, 0.0
    %v1751 = vmax.f32 %v1687, 0.0
    %v1752 = vmax.f32 %v1688, 0.0
    %v1753 = vmax.f32 %v1689, 0.0
    %v1754 = vmax.f32 %v1690, 0.0
    %v1755 = vmax.f32 %v1691, 0.0
    %v1756 = vmax.f32 %v1692, 0.0
    %v1757 = vmax.f32 %v1693, 0.0
    %v1758 = vmax.f32 %v1694, 0.0
    %v1759 = vmax.f32 %v1695, 0.0
    %v1760 = vmax.f32 %v1696, 0.0
    %v1761 = vmax.f32 %v1697, 0.0
    %v1762 = vmax.f32 %v1698, 0.0
    %v1763 = vmax.f32 %v1699, 0.0
    %v1764 = vmax.f32 %v1700, 0.0
    %v1765 = vmax.f32 %v1701, 0.0
    %v1766 = vmax.f32 %v1702, 0.0
    %v1767 = vmax.f32 %v1703, 0.0
    %v1768 = vmax.f32 %v1704, 0.0
    %v1769 = vmax.f32 %v1705, 0.0
    %v1770 = vmax.f32 %v1706, 0.0
    %v1771 = vmax.f32 %v1707, 0.0
    %v1772 = vmax.f32 %v1708, 0.0
    %v1773 = vmax.f32 %v1709, 0.0
    %v1774 = vmax.f32 %v1710, 0.0
    %v1775 = vmax.f32 %v1711, 0.0
    %v1776 = vmax.f32 %v1712, 0.0
    %v1777 = vmax.f32 %v1713, 0.0
    %v1778 = vmax.f32 %v1714, 0.0
    %v1779 = vmax.f32 %v1715, 0.0
    %v1780 = vmax.f32 %v1716, 0.0
    %v1781 = vmax.f32 %v1717, 0.0
    %v1782 = vmax.f32 %v1718, 0.0
    %v1783 = vmax.f32 %v1719, 0.0
    %v1784 = vmax.f32 %v1720, 0.0
    %v1785 = vmax.f32 %v1721, 0.0
    %v1786 = vmax.f32 %v1722, 0.0
    %v1787 = vmax.f32 %v1723, 0.0
    %v1788 = vmax.f32 %v1724, 0.0
    %v1789 = vmax.f32 %v1725, 0.0
    %1790 = vst [vmem:[#allocation2] sm:$0xff] 0.0
    %1791 = vst [vmem:[#allocation2 + $0x8] sm:$0xff] 0.0
    %1792 = vst [vmem:[#allocation2 + $0x10] sm:$0x3] 0.0
    %1793 = vst [vmem:[#allocation2 + $0x18] sm:$0xff] 0.0
    %1794 = vst [vmem:[#allocation2 + $0x20] sm:$0xff] 0.0
    %1795 = vst [vmem:[#allocation2 + $0x28] sm:$0x3] 0.0
    %1796 = vst [vmem:[#allocation2 + $0x30] sm:$0xff] 0.0
    %1797 = vst [vmem:[#allocation2 + $0x38] sm:$0xff] 0.0
    %1798 = vst [vmem:[#allocation2 + $0x40] sm:$0x3] 0.0
    %1799 = vst [vmem:[#allocation2 + $0x48] sm:$0xff] 0.0
    %1800 = vst [vmem:[#allocation2 + $0x50] sm:$0xff] 0.0
    %1801 = vst [vmem:[#allocation2 + $0x58] sm:$0x3] 0.0
    %1802 = vst [vmem:[#allocation2 + $0x60] sm:$0xff] 0.0
    %1803 = vst [vmem:[#allocation2 + $0x68] sm:$0xff] 0.0
    %1804 = vst [vmem:[#allocation2 + $0x70] sm:$0x3] 0.0
    %1805 = vst [vmem:[#allocation2 + $0x78] sm:$0xff] 0.0
    %1806 = vst [vmem:[#allocation2 + $0x80] sm:$0xff] 0.0
    %1807 = vst [vmem:[#allocation2 + $0x88] sm:$0x3] 0.0
    %1808 = vst [vmem:[#allocation2 + $0x90] sm:$0xff] 0.0
    %1809 = vst [vmem:[#allocation2 + $0x98] sm:$0xff] 0.0
    %1810 = vst [vmem:[#allocation2 + $0xa0] sm:$0x3] 0.0
    %1811 = vst [vmem:[#allocation2 + $0xa8] sm:$0xff] 0.0
    %1812 = vst [vmem:[#allocation2 + $0xb0] sm:$0xff] 0.0
    %1813 = vst [vmem:[#allocation2 + $0xb8] sm:$0x3] 0.0
    %1814 = vst [vmem:[#allocation2 + $0xc0] sm:$0xff] 0.0
    %1815 = vst [vmem:[#allocation2 + $0xc8] sm:$0xff] 0.0
    %1816 = vst [vmem:[#allocation2 + $0xd0] sm:$0x3] 0.0
    %1817 = vst [vmem:[#allocation2 + $0xd8] sm:$0xff] 0.0
    %1818 = vst [vmem:[#allocation2 + $0xe0] sm:$0xff] 0.0
    %1819 = vst [vmem:[#allocation2 + $0xe8] sm:$0x3] 0.0
    %1820 = vst [vmem:[#allocation2 + $0xf0] sm:$0xff] 0.0
    %1821 = vst [vmem:[#allocation2 + $0xf8] sm:$0xff] 0.0
    %1822 = vst [vmem:[#allocation2 + $0x100] sm:$0x3] 0.0
    %1823 = vst [vmem:[#allocation2 + $0x108] sm:$0xff] 0.0
    %1824 = vst [vmem:[#allocation2 + $0x110] sm:$0xff] 0.0
    %1825 = vst [vmem:[#allocation2 + $0x118] sm:$0x3] 0.0
    %1826 = vst [vmem:[#allocation2 + $0x120] sm:$0xff] 0.0
    %1827 = vst [vmem:[#allocation2 + $0x128] sm:$0xff] 0.0
    %1828 = vst [vmem:[#allocation2 + $0x130] sm:$0x3] 0.0
    %1829 = vst [vmem:[#allocation2 + $0x138] sm:$0xff] 0.0
    %1830 = vst [vmem:[#allocation2 + $0x140] sm:$0xff] 0.0
    %1831 = vst [vmem:[#allocation2 + $0x148] sm:$0x3] 0.0
    %1832 = vst [vmem:[#allocation2 + $0x150] sm:$0xff] 0.0
    %1833 = vst [vmem:[#allocation2 + $0x158] sm:$0xff] 0.0
    %1834 = vst [vmem:[#allocation2 + $0x160] sm:$0x3] 0.0
    %1835 = vst [vmem:[#allocation2 + $0x168] sm:$0xff] 0.0
    %1836 = vst [vmem:[#allocation2 + $0x170] sm:$0xff] 0.0
    %1837 = vst [vmem:[#allocation2 + $0x178] sm:$0x3] 0.0
    %1838 = vst [vmem:[#allocation2 + $0x180] sm:$0xff] 0.0
    %1839 = vst [vmem:[#allocation2 + $0x188] sm:$0xff] 0.0
    %1840 = vst [vmem:[#allocation2 + $0x190] sm:$0x3] 0.0
    %1841 = vst [vmem:[#allocation2 + $0x198] sm:$0xff] 0.0
    %1842 = vst [vmem:[#allocation2 + $0x1a0] sm:$0xff] 0.0
    %1843 = vst [vmem:[#allocation2 + $0x1a8] sm:$0x3] 0.0
    %1844 = vst [vmem:[#allocation2 + $0x1b0] sm:$0xff] 0.0
    %1845 = vst [vmem:[#allocation2 + $0x1b8] sm:$0xff] 0.0
    %1846 = vst [vmem:[#allocation2 + $0x1c0] sm:$0x3] 0.0
    %1847 = vst [vmem:[#allocation2 + $0x1c8] sm:$0xff] 0.0
    %1848 = vst [vmem:[#allocation2 + $0x1d0] sm:$0xff] 0.0
    %1849 = vst [vmem:[#allocation2 + $0x1d8] sm:$0x3] 0.0
    %1850 = vst [vmem:[#allocation2 + $0x1e0] sm:$0xff] 0.0
    %1851 = vst [vmem:[#allocation2 + $0x1e8] sm:$0xff] 0.0
    %1852 = vst [vmem:[#allocation2 + $0x1f0] sm:$0x3] 0.0
    %1853 = vst [vmem:[#allocation2 + $0x1f8] sm:$0xff] 0.0
    %1854 = vst [vmem:[#allocation2 + $0x200] sm:$0xff] 0.0
    %1855 = vst [vmem:[#allocation2 + $0x208] sm:$0x3] 0.0
    %1856 = vst [vmem:[#allocation2 + $0x210] sm:$0xff] 0.0
    %1857 = vst [vmem:[#allocation2 + $0x218] sm:$0xff] 0.0
    %1858 = vst [vmem:[#allocation2 + $0x220] sm:$0x3] 0.0
    %1859 = vst [vmem:[#allocation2 + $0x228] sm:$0xff] 0.0
    %1860 = vst [vmem:[#allocation2 + $0x230] sm:$0xff] 0.0
    %1861 = vst [vmem:[#allocation2 + $0x238] sm:$0x3] 0.0
    %1862 = vst [vmem:[#allocation2 + $0x240] sm:$0xff] 0.0
    %1863 = vst [vmem:[#allocation2 + $0x248] sm:$0xff] 0.0
    %1864 = vst [vmem:[#allocation2 + $0x250] sm:$0x3] 0.0
    %1865 = vst [vmem:[#allocation2 + $0x258] sm:$0xff] 0.0
    %1866 = vst [vmem:[#allocation2 + $0x260] sm:$0xff] 0.0
    %1867 = vst [vmem:[#allocation2 + $0x268] sm:$0x3] 0.0
    %1868 = vst [vmem:[#allocation2 + $0x270] sm:$0xff] 0.0
    %1869 = vst [vmem:[#allocation2 + $0x278] sm:$0xff] 0.0
    %1870 = vst [vmem:[#allocation2 + $0x280] sm:$0x3] 0.0
    %1871 = vst [vmem:[#allocation2 + $0x288] sm:$0xff] 0.0
    %1872 = vst [vmem:[#allocation2 + $0x290] sm:$0xff] 0.0
    %1873 = vst [vmem:[#allocation2 + $0x298] sm:$0x3] 0.0
    %1874 = vst [vmem:[#allocation2 + $0x2a0] sm:$0xff] 0.0
    %1875 = vst [vmem:[#allocation2 + $0x2a8] sm:$0xff] 0.0
    %1876 = vst [vmem:[#allocation2 + $0x2b0] sm:$0x3] 0.0
    %1877 = vst [vmem:[#allocation2 + $0x2b8] sm:$0xff] 0.0
    %1878 = vst [vmem:[#allocation2 + $0x2c0] sm:$0xff] 0.0
    %1879 = vst [vmem:[#allocation2 + $0x2c8] sm:$0x3] 0.0
    %1880 = vst [vmem:[#allocation2 + $0x2d0] sm:$0xff] 0.0
    %1881 = vst [vmem:[#allocation2 + $0x2d8] sm:$0xff] 0.0
    %1882 = vst [vmem:[#allocation2 + $0x2e0] sm:$0x3] 0.0
    %1883 = vst [vmem:[#allocation2 + $0x2e8] sm:$0xff] 0.0
    %1884 = vst [vmem:[#allocation2 + $0x2f0] sm:$0xff] 0.0
    %1885 = vst [vmem:[#allocation2 + $0x2f8] sm:$0x3] 0.0
    %1886 = vst [vmem:[#allocation2 + $0x300] sm:$0xff] 0.0
    %1887 = vst [vmem:[#allocation2 + $0x308] sm:$0xff] 0.0
    %1888 = vst [vmem:[#allocation2 + $0x310] sm:$0x3] 0.0
    %1889 = vst [vmem:[#allocation2 + $0x318] sm:$0xff] 0.0
    %1890 = vst [vmem:[#allocation2 + $0x320] sm:$0xff] 0.0
    %1891 = vst [vmem:[#allocation2 + $0x328] sm:$0x3] 0.0
    %1892 = vst [vmem:[#allocation2 + $0x330] sm:$0xff] 0.0
    %1893 = vst [vmem:[#allocation2 + $0x338] sm:$0xff] 0.0
    %1894 = vst [vmem:[#allocation2 + $0x340] sm:$0x3] 0.0
    %1895 = vst [vmem:[#allocation2 + $0x348] sm:$0xff] 0.0
    %1896 = vst [vmem:[#allocation2 + $0x350] sm:$0xff] 0.0
    %1897 = vst [vmem:[#allocation2 + $0x358] sm:$0x3] 0.0
    %s1898 = scalar_lea.vmem [#allocation2], 24
    %1899 = vst [vmem:[%s1898 + $0x1] sm:$0xff] %v1726
    %1900 = vst [vmem:[%s1898 + $0x9] sm:$0xff] %v1727
    %1901 = vst [vmem:[%s1898 + $0x19] sm:$0xff] %v1728
    %1902 = vst [vmem:[%s1898 + $0x21] sm:$0xff] %v1729
    %1903 = vst [vmem:[%s1898 + $0x31] sm:$0xff] %v1730
    %1904 = vst [vmem:[%s1898 + $0x39] sm:$0xff] %v1731
    %1905 = vst [vmem:[%s1898 + $0x49] sm:$0xff] %v1732
    %1906 = vst [vmem:[%s1898 + $0x51] sm:$0xff] %v1733
    %1907 = vst [vmem:[%s1898 + $0x61] sm:$0xff] %v1734
    %1908 = vst [vmem:[%s1898 + $0x69] sm:$0xff] %v1735
    %1909 = vst [vmem:[%s1898 + $0x79] sm:$0xff] %v1736
    %1910 = vst [vmem:[%s1898 + $0x81] sm:$0xff] %v1737
    %1911 = vst [vmem:[%s1898 + $0x91] sm:$0xff] %v1738
    %1912 = vst [vmem:[%s1898 + $0x99] sm:$0xff] %v1739
    %1913 = vst [vmem:[%s1898 + $0xa9] sm:$0xff] %v1740
    %1914 = vst [vmem:[%s1898 + $0xb1] sm:$0xff] %v1741
    %1915 = vst [vmem:[%s1898 + $0xc1] sm:$0xff] %v1742
    %1916 = vst [vmem:[%s1898 + $0xc9] sm:$0xff] %v1743
    %1917 = vst [vmem:[%s1898 + $0xd9] sm:$0xff] %v1744
    %1918 = vst [vmem:[%s1898 + $0xe1] sm:$0xff] %v1745
    %1919 = vst [vmem:[%s1898 + $0xf1] sm:$0xff] %v1746
    %1920 = vst [vmem:[%s1898 + $0xf9] sm:$0xff] %v1747
    %1921 = vst [vmem:[%s1898 + $0x109] sm:$0xff] %v1748
    %1922 = vst [vmem:[%s1898 + $0x111] sm:$0xff] %v1749
    %1923 = vst [vmem:[%s1898 + $0x121] sm:$0xff] %v1750
    %1924 = vst [vmem:[%s1898 + $0x129] sm:$0xff] %v1751
    %1925 = vst [vmem:[%s1898 + $0x139] sm:$0xff] %v1752
    %1926 = vst [vmem:[%s1898 + $0x141] sm:$0xff] %v1753
    %1927 = vst [vmem:[%s1898 + $0x151] sm:$0xff] %v1754
    %1928 = vst [vmem:[%s1898 + $0x159] sm:$0xff] %v1755
    %1929 = vst [vmem:[%s1898 + $0x169] sm:$0xff] %v1756
    %1930 = vst [vmem:[%s1898 + $0x171] sm:$0xff] %v1757
    %1931 = vst [vmem:[%s1898 + $0x1b1] sm:$0xff] %v1758
    %1932 = vst [vmem:[%s1898 + $0x1b9] sm:$0xff] %v1759
    %1933 = vst [vmem:[%s1898 + $0x1c9] sm:$0xff] %v1760
    %1934 = vst [vmem:[%s1898 + $0x1d1] sm:$0xff] %v1761
    %1935 = vst [vmem:[%s1898 + $0x1e1] sm:$0xff] %v1762
    %1936 = vst [vmem:[%s1898 + $0x1e9] sm:$0xff] %v1763
    %1937 = vst [vmem:[%s1898 + $0x1f9] sm:$0xff] %v1764
    %1938 = vst [vmem:[%s1898 + $0x201] sm:$0xff] %v1765
    %1939 = vst [vmem:[%s1898 + $0x211] sm:$0xff] %v1766
    %1940 = vst [vmem:[%s1898 + $0x219] sm:$0xff] %v1767
    %1941 = vst [vmem:[%s1898 + $0x229] sm:$0xff] %v1768
    %1942 = vst [vmem:[%s1898 + $0x231] sm:$0xff] %v1769
    %1943 = vst [vmem:[%s1898 + $0x241] sm:$0xff] %v1770
    %1944 = vst [vmem:[%s1898 + $0x249] sm:$0xff] %v1771
    %1945 = vst [vmem:[%s1898 + $0x259] sm:$0xff] %v1772
    %1946 = vst [vmem:[%s1898 + $0x261] sm:$0xff] %v1773
    %1947 = vst [vmem:[%s1898 + $0x271] sm:$0xff] %v1774
    %1948 = vst [vmem:[%s1898 + $0x279] sm:$0xff] %v1775
    %1949 = vst [vmem:[%s1898 + $0x289] sm:$0xff] %v1776
    %1950 = vst [vmem:[%s1898 + $0x291] sm:$0xff] %v1777
    %1951 = vst [vmem:[%s1898 + $0x2a1] sm:$0xff] %v1778
    %1952 = vst [vmem:[%s1898 + $0x2a9] sm:$0xff] %v1779
    %1953 = vst [vmem:[%s1898 + $0x2b9] sm:$0xff] %v1780
    %1954 = vst [vmem:[%s1898 + $0x2c1] sm:$0xff] %v1781
    %1955 = vst [vmem:[%s1898 + $0x2d1] sm:$0xff] %v1782
    %1956 = vst [vmem:[%s1898 + $0x2d9] sm:$0xff] %v1783
    %1957 = vst [vmem:[%s1898 + $0x2e9] sm:$0xff] %v1784
    %1958 = vst [vmem:[%s1898 + $0x2f1] sm:$0xff] %v1785
    %1959 = vst [vmem:[%s1898 + $0x301] sm:$0xff] %v1786
    %1960 = vst [vmem:[%s1898 + $0x309] sm:$0xff] %v1787
    %1961 = vst [vmem:[%s1898 + $0x319] sm:$0xff] %v1788
    %1962 = vst [vmem:[%s1898 + $0x321] sm:$0xff] %v1789
    %v1963 = vld [vmem:[#allocation2] sm:$0xff]
    %v1964 = vld [vmem:[#allocation2 + $0x8] sm:$0xff]
    %v1965 = vld [vmem:[#allocation2 + $0x18] sm:$0xff]
    %v1966 = vld [vmem:[#allocation2 + $0x20] sm:$0xff]
    %v1967 = vld [vmem:[#allocation2 + $0x30] sm:$0xff]
    %v1968 = vld [vmem:[#allocation2 + $0x38] sm:$0xff]
    %v1969 = vld [vmem:[#allocation2 + $0x48] sm:$0xff]
    %v1970 = vld [vmem:[#allocation2 + $0x50] sm:$0xff]
    %v1971 = vld [vmem:[#allocation2 + $0x60] sm:$0xff]
    %v1972 = vld [vmem:[#allocation2 + $0x68] sm:$0xff]
    %v1973 = vld [vmem:[#allocation2 + $0x78] sm:$0xff]
    %v1974 = vld [vmem:[#allocation2 + $0x80] sm:$0xff]
    %v1975 = vld [vmem:[#allocation2 + $0x90] sm:$0xff]
    %v1976 = vld [vmem:[#allocation2 + $0x98] sm:$0xff]
    %v1977 = vld [vmem:[#allocation2 + $0xa8] sm:$0xff]
    %v1978 = vld [vmem:[#allocation2 + $0xb0] sm:$0xff]
    %v1979 = vld [vmem:[#allocation2 + $0xc0] sm:$0xff]
    %v1980 = vld [vmem:[#allocation2 + $0xc8] sm:$0xff]
    %v1981 = vld [vmem:[#allocation2 + $0xd8] sm:$0xff]
    %v1982 = vld [vmem:[#allocation2 + $0xe0] sm:$0xff]
    %v1983 = vld [vmem:[#allocation2 + $0xf0] sm:$0xff]
    %v1984 = vld [vmem:[#allocation2 + $0xf8] sm:$0xff]
    %v1985 = vld [vmem:[#allocation2 + $0x108] sm:$0xff]
    %v1986 = vld [vmem:[#allocation2 + $0x110] sm:$0xff]
    %v1987 = vld [vmem:[#allocation2 + $0x120] sm:$0xff]
    %v1988 = vld [vmem:[#allocation2 + $0x128] sm:$0xff]
    %v1989 = vld [vmem:[#allocation2 + $0x138] sm:$0xff]
    %v1990 = vld [vmem:[#allocation2 + $0x140] sm:$0xff]
    %v1991 = vld [vmem:[#allocation2 + $0x150] sm:$0xff]
    %v1992 = vld [vmem:[#allocation2 + $0x158] sm:$0xff]
    %v1993 = vld [vmem:[#allocation2 + $0x168] sm:$0xff]
    %v1994 = vld [vmem:[#allocation2 + $0x170] sm:$0xff]
    %v1995 = vld [vmem:[#allocation2 + $0x1b0] sm:$0xff]
    %v1996 = vld [vmem:[#allocation2 + $0x1b8] sm:$0xff]
    %v1997 = vld [vmem:[#allocation2 + $0x1c8] sm:$0xff]
    %v1998 = vld [vmem:[#allocation2 + $0x1d0] sm:$0xff]
    %v1999 = vld [vmem:[#allocation2 + $0x1e0] sm:$0xff]
    %v2000 = vld [vmem:[#allocation2 + $0x1e8] sm:$0xff]
    %v2001 = vld [vmem:[#allocation2 + $0x1f8] sm:$0xff]
    %v2002 = vld [vmem:[#allocation2 + $0x200] sm:$0xff]
    %v2003 = vld [vmem:[#allocation2 + $0x210] sm:$0xff]
    %v2004 = vld [vmem:[#allocation2 + $0x218] sm:$0xff]
    %v2005 = vld [vmem:[#allocation2 + $0x228] sm:$0xff]
    %v2006 = vld [vmem:[#allocation2 + $0x230] sm:$0xff]
    %v2007 = vld [vmem:[#allocation2 + $0x240] sm:$0xff]
    %v2008 = vld [vmem:[#allocation2 + $0x248] sm:$0xff]
    %v2009 = vld [vmem:[#allocation2 + $0x258] sm:$0xff]
    %v2010 = vld [vmem:[#allocation2 + $0x260] sm:$0xff]
    %v2011 = vld [vmem:[#allocation2 + $0x270] sm:$0xff]
    %v2012 = vld [vmem:[#allocation2 + $0x278] sm:$0xff]
    %v2013 = vld [vmem:[#allocation2 + $0x288] sm:$0xff]
    %v2014 = vld [vmem:[#allocation2 + $0x290] sm:$0xff]
    %v2015 = vld [vmem:[#allocation2 + $0x2a0] sm:$0xff]
    %v2016 = vld [vmem:[#allocation2 + $0x2a8] sm:$0xff]
    %v2017 = vld [vmem:[#allocation2 + $0x2b8] sm:$0xff]
    %v2018 = vld [vmem:[#allocation2 + $0x2c0] sm:$0xff]
    %v2019 = vld [vmem:[#allocation2 + $0x2d0] sm:$0xff]
    %v2020 = vld [vmem:[#allocation2 + $0x2d8] sm:$0xff]
    %v2021 = vld [vmem:[#allocation2 + $0x2e8] sm:$0xff]
    %v2022 = vld [vmem:[#allocation2 + $0x2f0] sm:$0xff]
    %v2023 = vld [vmem:[#allocation2 + $0x300] sm:$0xff]
    %v2024 = vld [vmem:[#allocation2 + $0x308] sm:$0xff]
    %v2025 = vld [vmem:[#allocation2 + $0x318] sm:$0xff]
    %v2026 = vld [vmem:[#allocation2 + $0x320] sm:$0xff]
    %v2027 = vpack.c.bf16 %v1964, %v1963
    %v2028 = vpack.c.bf16 %v1966, %v1965
    %v2029 = vpack.c.bf16 %v1968, %v1967
    %v2030 = vpack.c.bf16 %v1970, %v1969
    %v2031 = vpack.c.bf16 %v1972, %v1971
    %v2032 = vpack.c.bf16 %v1974, %v1973
    %v2033 = vpack.c.bf16 %v1976, %v1975
    %v2034 = vpack.c.bf16 %v1978, %v1977
    %v2035 = vpack.c.bf16 %v1980, %v1979
    %v2036 = vpack.c.bf16 %v1982, %v1981
    %v2037 = vpack.c.bf16 %v1984, %v1983
    %v2038 = vpack.c.bf16 %v1986, %v1985
    %v2039 = vpack.c.bf16 %v1988, %v1987
    %v2040 = vpack.c.bf16 %v1990, %v1989
    %v2041 = vpack.c.bf16 %v1992, %v1991
    %v2042 = vpack.c.bf16 %v1994, %v1993
    %v2043 = vpack.c.bf16 %v1996, %v1995
    %v2044 = vpack.c.bf16 %v1998, %v1997
    %v2045 = vpack.c.bf16 %v2000, %v1999
    %v2046 = vpack.c.bf16 %v2002, %v2001
    %v2047 = vpack.c.bf16 %v2004, %v2003
    %v2048 = vpack.c.bf16 %v2006, %v2005
    %v2049 = vpack.c.bf16 %v2008, %v2007
    %v2050 = vpack.c.bf16 %v2010, %v2009
    %v2051 = vpack.c.bf16 %v2012, %v2011
    %v2052 = vpack.c.bf16 %v2014, %v2013
    %v2053 = vpack.c.bf16 %v2016, %v2015
    %v2054 = vpack.c.bf16 %v2018, %v2017
    %v2055 = vpack.c.bf16 %v2020, %v2019
    %v2056 = vpack.c.bf16 %v2022, %v2021
    %v2057 = vpack.c.bf16 %v2024, %v2023
    %v2058 = vpack.c.bf16 %v2026, %v2025
    %2059 = vst [vmem:[#allocation3] sm:$0xff] %v2027
    %2060 = vst [vmem:[#allocation3 + $0x48] sm:$0xff] %v2028
    %2061 = vst [vmem:[#allocation3 + $0x90] sm:$0xff] %v2029
    %2062 = vst [vmem:[#allocation3 + $0xd8] sm:$0xff] %v2030
    %2063 = vst [vmem:[#allocation3 + $0x120] sm:$0xff] %v2031
    %2064 = vst [vmem:[#allocation3 + $0x168] sm:$0xff] %v2032
    %2065 = vst [vmem:[#allocation3 + $0x1b0] sm:$0xff] %v2033
    %2066 = vst [vmem:[#allocation3 + $0x1f8] sm:$0xff] %v2034
    %2067 = vst [vmem:[#allocation3 + $0x240] sm:$0xff] %v2035
    %2068 = vst [vmem:[#allocation3 + $0x288] sm:$0xff] %v2036
    %2069 = vst [vmem:[#allocation3 + $0x2d0] sm:$0xff] %v2037
    %2070 = vst [vmem:[#allocation3 + $0x318] sm:$0xff] %v2038
    %2071 = vst [vmem:[#allocation3 + $0x360] sm:$0xff] %v2039
    %2072 = vst [vmem:[#allocation3 + $0x3a8] sm:$0xff] %v2040
    %2073 = vst [vmem:[#allocation3 + $0x3f0] sm:$0xff] %v2041
    %2074 = vst [vmem:[#allocation3 + $0x438] sm:$0xff] %v2042
    %2075 = vst [vmem:[#allocation3 + $0x480] sm:$0xff] %v2043
    %2076 = vst [vmem:[#allocation3 + $0x4c8] sm:$0xff] %v2044
    %2077 = vst [vmem:[#allocation3 + $0x510] sm:$0xff] %v2045
    %2078 = vst [vmem:[#allocation3 + $0x558] sm:$0xff] %v2046
    %2079 = vst [vmem:[#allocation3 + $0x5a0] sm:$0xff] %v2047
    %2080 = vst [vmem:[#allocation3 + $0x5e8] sm:$0xff] %v2048
    %2081 = vst [vmem:[#allocation3 + $0x630] sm:$0xff] %v2049
    %2082 = vst [vmem:[#allocation3 + $0x678] sm:$0xff] %v2050
    %2083 = vst [vmem:[#allocation3 + $0x6c0] sm:$0xff] %v2051
    %2084 = vst [vmem:[#allocation3 + $0x708] sm:$0xff] %v2052
    %2085 = vst [vmem:[#allocation3 + $0x750] sm:$0xff] %v2053
    %2086 = vst [vmem:[#allocation3 + $0x798] sm:$0xff] %v2054
    %2087 = vst [vmem:[#allocation3 + $0x7e0] sm:$0xff] %v2055
    %2088 = vst [vmem:[#allocation3 + $0x828] sm:$0xff] %v2056
    %2089 = vst [vmem:[#allocation3 + $0x870] sm:$0xff] %v2057
    %2090 = vst [vmem:[#allocation3 + $0x8b8] sm:$0xff] %v2058
    %v2091 = vld [vmem:[#allocation2 + $0x1] sm:$0xff]
    %v2092 = vld [vmem:[#allocation2 + $0x9] sm:$0xff]
    %v2093 = vld [vmem:[#allocation2 + $0x19] sm:$0xff]
    %v2094 = vld [vmem:[#allocation2 + $0x21] sm:$0xff]
    %v2095 = vld [vmem:[#allocation2 + $0x31] sm:$0xff]
    %v2096 = vld [vmem:[#allocation2 + $0x39] sm:$0xff]
    %v2097 = vld [vmem:[#allocation2 + $0x49] sm:$0xff]
    %v2098 = vld [vmem:[#allocation2 + $0x51] sm:$0xff]
    %v2099 = vld [vmem:[#allocation2 + $0x61] sm:$0xff]
    %v2100 = vld [vmem:[#allocation2 + $0x69] sm:$0xff]
    %v2101 = vld [vmem:[#allocation2 + $0x79] sm:$0xff]
    %v2102 = vld [vmem:[#allocation2 + $0x81] sm:$0xff]
    %v2103 = vld [vmem:[#allocation2 + $0x91] sm:$0xff]
    %v2104 = vld [vmem:[#allocation2 + $0x99] sm:$0xff]
    %v2105 = vld [vmem:[#allocation2 + $0xa9] sm:$0xff]
    %v2106 = vld [vmem:[#allocation2 + $0xb1] sm:$0xff]
    %v2107 = vld [vmem:[#allocation2 + $0xc1] sm:$0xff]
    %v2108 = vld [vmem:[#allocation2 + $0xc9] sm:$0xff]
    %v2109 = vld [vmem:[#allocation2 + $0xd9] sm:$0xff]
    %v2110 = vld [vmem:[#allocation2 + $0xe1] sm:$0xff]
    %v2111 = vld [vmem:[#allocation2 + $0xf1] sm:$0xff]
    %v2112 = vld [vmem:[#allocation2 + $0xf9] sm:$0xff]
    %v2113 = vld [vmem:[#allocation2 + $0x109] sm:$0xff]
    %v2114 = vld [vmem:[#allocation2 + $0x111] sm:$0xff]
    %v2115 = vld [vmem:[#allocation2 + $0x121] sm:$0xff]
    %v2116 = vld [vmem:[#allocation2 + $0x129] sm:$0xff]
    %v2117 = vld [vmem:[#allocation2 + $0x139] sm:$0xff]
    %v2118 = vld [vmem:[#allocation2 + $0x141] sm:$0xff]
    %v2119 = vld [vmem:[#allocation2 + $0x151] sm:$0xff]
    %v2120 = vld [vmem:[#allocation2 + $0x159] sm:$0xff]
    %v2121 = vld [vmem:[#allocation2 + $0x169] sm:$0xff]
    %v2122 = vld [vmem:[#allocation2 + $0x171] sm:$0xff]
    %v2123 = vld [vmem:[#allocation2 + $0x1b1] sm:$0xff]
    %v2124 = vld [vmem:[#allocation2 + $0x1b9] sm:$0xff]
    %v2125 = vld [vmem:[#allocation2 + $0x1c9] sm:$0xff]
    %v2126 = vld [vmem:[#allocation2 + $0x1d1] sm:$0xff]
    %v2127 = vld [vmem:[#allocation2 + $0x1e1] sm:$0xff]
    %v2128 = vld [vmem:[#allocation2 + $0x1e9] sm:$0xff]
    %v2129 = vld [vmem:[#allocation2 + $0x1f9] sm:$0xff]
    %v2130 = vld [vmem:[#allocation2 + $0x201] sm:$0xff]
    %v2131 = vld [vmem:[#allocation2 + $0x211] sm:$0xff]
    %v2132 = vld [vmem:[#allocation2 + $0x219] sm:$0xff]
    %v2133 = vld [vmem:[#allocation2 + $0x229] sm:$0xff]
    %v2134 = vld [vmem:[#allocation2 + $0x231] sm:$0xff]
    %v2135 = vld [vmem:[#allocation2 + $0x241] sm:$0xff]
    %v2136 = vld [vmem:[#allocation2 + $0x249] sm:$0xff]
    %v2137 = vld [vmem:[#allocation2 + $0x259] sm:$0xff]
    %v2138 = vld [vmem:[#allocation2 + $0x261] sm:$0xff]
    %v2139 = vld [vmem:[#allocation2 + $0x271] sm:$0xff]
    %v2140 = vld [vmem:[#allocation2 + $0x279] sm:$0xff]
    %v2141 = vld [vmem:[#allocation2 + $0x289] sm:$0xff]
    %v2142 = vld [vmem:[#allocation2 + $0x291] sm:$0xff]
    %v2143 = vld [vmem:[#allocation2 + $0x2a1] sm:$0xff]
    %v2144 = vld [vmem:[#allocation2 + $0x2a9] sm:$0xff]
    %v2145 = vld [vmem:[#allocation2 + $0x2b9] sm:$0xff]
    %v2146 = vld [vmem:[#allocation2 + $0x2c1] sm:$0xff]
    %v2147 = vld [vmem:[#allocation2 + $0x2d1] sm:$0xff]
    %v2148 = vld [vmem:[#allocation2 + $0x2d9] sm:$0xff]
    %v2149 = vld [vmem:[#allocation2 + $0x2e9] sm:$0xff]
    %v2150 = vld [vmem:[#allocation2 + $0x2f1] sm:$0xff]
    %v2151 = vld [vmem:[#allocation2 + $0x301] sm:$0xff]
    %v2152 = vld [vmem:[#allocation2 + $0x309] sm:$0xff]
    %v2153 = vld [vmem:[#allocation2 + $0x319] sm:$0xff]
    %v2154 = vld [vmem:[#allocation2 + $0x321] sm:$0xff]
    %v2155 = vpack.c.bf16 %v2092, %v2091
    %v2156 = vpack.c.bf16 %v2094, %v2093
    %v2157 = vpack.c.bf16 %v2096, %v2095
    %v2158 = vpack.c.bf16 %v2098, %v2097
    %v2159 = vpack.c.bf16 %v2100, %v2099
    %v2160 = vpack.c.bf16 %v2102, %v2101
    %v2161 = vpack.c.bf16 %v2104, %v2103
    %v2162 = vpack.c.bf16 %v2106, %v2105
    %v2163 = vpack.c.bf16 %v2108, %v2107
    %v2164 = vpack.c.bf16 %v2110, %v2109
    %v2165 = vpack.c.bf16 %v2112, %v2111
    %v2166 = vpack.c.bf16 %v2114, %v2113
    %v2167 = vpack.c.bf16 %v2116, %v2115
    %v2168 = vpack.c.bf16 %v2118, %v2117
    %v2169 = vpack.c.bf16 %v2120, %v2119
    %v2170 = vpack.c.bf16 %v2122, %v2121
    %v2171 = vpack.c.bf16 %v2124, %v2123
    %v2172 = vpack.c.bf16 %v2126, %v2125
    %v2173 = vpack.c.bf16 %v2128, %v2127
    %v2174 = vpack.c.bf16 %v2130, %v2129
    %v2175 = vpack.c.bf16 %v2132, %v2131
    %v2176 = vpack.c.bf16 %v2134, %v2133
    %v2177 = vpack.c.bf16 %v2136, %v2135
    %v2178 = vpack.c.bf16 %v2138, %v2137
    %v2179 = vpack.c.bf16 %v2140, %v2139
    %v2180 = vpack.c.bf16 %v2142, %v2141
    %v2181 = vpack.c.bf16 %v2144, %v2143
    %v2182 = vpack.c.bf16 %v2146, %v2145
    %v2183 = vpack.c.bf16 %v2148, %v2147
    %v2184 = vpack.c.bf16 %v2150, %v2149
    %v2185 = vpack.c.bf16 %v2152, %v2151
    %v2186 = vpack.c.bf16 %v2154, %v2153
    %2187 = vst [vmem:[#allocation3 + $0x8] sm:$0xff] %v2155
    %2188 = vst [vmem:[#allocation3 + $0x50] sm:$0xff] %v2156
    %2189 = vst [vmem:[#allocation3 + $0x98] sm:$0xff] %v2157
    %2190 = vst [vmem:[#allocation3 + $0xe0] sm:$0xff] %v2158
    %2191 = vst [vmem:[#allocation3 + $0x128] sm:$0xff] %v2159
    %2192 = vst [vmem:[#allocation3 + $0x170] sm:$0xff] %v2160
    %2193 = vst [vmem:[#allocation3 + $0x1b8] sm:$0xff] %v2161
    %2194 = vst [vmem:[#allocation3 + $0x200] sm:$0xff] %v2162
    %2195 = vst [vmem:[#allocation3 + $0x248] sm:$0xff] %v2163
    %2196 = vst [vmem:[#allocation3 + $0x290] sm:$0xff] %v2164
    %2197 = vst [vmem:[#allocation3 + $0x2d8] sm:$0xff] %v2165
    %2198 = vst [vmem:[#allocation3 + $0x320] sm:$0xff] %v2166
    %2199 = vst [vmem:[#allocation3 + $0x368] sm:$0xff] %v2167
    %2200 = vst [vmem:[#allocation3 + $0x3b0] sm:$0xff] %v2168
    %2201 = vst [vmem:[#allocation3 + $0x3f8] sm:$0xff] %v2169
    %2202 = vst [vmem:[#allocation3 + $0x440] sm:$0xff] %v2170
    %2203 = vst [vmem:[#allocation3 + $0x488] sm:$0xff] %v2171
    %2204 = vst [vmem:[#allocation3 + $0x4d0] sm:$0xff] %v2172
    %2205 = vst [vmem:[#allocation3 + $0x518] sm:$0xff] %v2173
    %2206 = vst [vmem:[#allocation3 + $0x560] sm:$0xff] %v2174
    %2207 = vst [vmem:[#allocation3 + $0x5a8] sm:$0xff] %v2175
    %2208 = vst [vmem:[#allocation3 + $0x5f0] sm:$0xff] %v2176
    %2209 = vst [vmem:[#allocation3 + $0x638] sm:$0xff] %v2177
    %2210 = vst [vmem:[#allocation3 + $0x680] sm:$0xff] %v2178
    %2211 = vst [vmem:[#allocation3 + $0x6c8] sm:$0xff] %v2179
    %2212 = vst [vmem:[#allocation3 + $0x710] sm:$0xff] %v2180
    %2213 = vst [vmem:[#allocation3 + $0x758] sm:$0xff] %v2181
    %2214 = vst [vmem:[#allocation3 + $0x7a0] sm:$0xff] %v2182
    %2215 = vst [vmem:[#allocation3 + $0x7e8] sm:$0xff] %v2183
    %2216 = vst [vmem:[#allocation3 + $0x830] sm:$0xff] %v2184
    %2217 = vst [vmem:[#allocation3 + $0x878] sm:$0xff] %v2185
    %2218 = vst [vmem:[#allocation3 + $0x8c0] sm:$0xff] %v2186
    %v2219 = vld [vmem:[#allocation2 + $0x2] sm:$0xff]
    %v2220 = vld [vmem:[#allocation2 + $0xa] sm:$0xff]
    %v2221 = vld [vmem:[#allocation2 + $0x1a] sm:$0xff]
    %v2222 = vld [vmem:[#allocation2 + $0x22] sm:$0xff]
    %v2223 = vld [vmem:[#allocation2 + $0x32] sm:$0xff]
    %v2224 = vld [vmem:[#allocation2 + $0x3a] sm:$0xff]
    %v2225 = vld [vmem:[#allocation2 + $0x4a] sm:$0xff]
    %v2226 = vld [vmem:[#allocation2 + $0x52] sm:$0xff]
    %v2227 = vld [vmem:[#allocation2 + $0x62] sm:$0xff]
    %v2228 = vld [vmem:[#allocation2 + $0x6a] sm:$0xff]
    %v2229 = vld [vmem:[#allocation2 + $0x7a] sm:$0xff]
    %v2230 = vld [vmem:[#allocation2 + $0x82] sm:$0xff]
    %v2231 = vld [vmem:[#allocation2 + $0x92] sm:$0xff]
    %v2232 = vld [vmem:[#allocation2 + $0x9a] sm:$0xff]
    %v2233 = vld [vmem:[#allocation2 + $0xaa] sm:$0xff]
    %v2234 = vld [vmem:[#allocation2 + $0xb2] sm:$0xff]
    %v2235 = vld [vmem:[#allocation2 + $0xc2] sm:$0xff]
    %v2236 = vld [vmem:[#allocation2 + $0xca] sm:$0xff]
    %v2237 = vld [vmem:[#allocation2 + $0xda] sm:$0xff]
    %v2238 = vld [vmem:[#allocation2 + $0xe2] sm:$0xff]
    %v2239 = vld [vmem:[#allocation2 + $0xf2] sm:$0xff]
    %v2240 = vld [vmem:[#allocation2 + $0xfa] sm:$0xff]
    %v2241 = vld [vmem:[#allocation2 + $0x10a] sm:$0xff]
    %v2242 = vld [vmem:[#allocation2 + $0x112] sm:$0xff]
    %v2243 = vld [vmem:[#allocation2 + $0x122] sm:$0xff]
    %v2244 = vld [vmem:[#allocation2 + $0x12a] sm:$0xff]
    %v2245 = vld [vmem:[#allocation2 + $0x13a] sm:$0xff]
    %v2246 = vld [vmem:[#allocation2 + $0x142] sm:$0xff]
    %v2247 = vld [vmem:[#allocation2 + $0x152] sm:$0xff]
    %v2248 = vld [vmem:[#allocation2 + $0x15a] sm:$0xff]
    %v2249 = vld [vmem:[#allocation2 + $0x16a] sm:$0xff]
    %v2250 = vld [vmem:[#allocation2 + $0x172] sm:$0xff]
    %v2251 = vld [vmem:[#allocation2 + $0x1b2] sm:$0xff]
    %v2252 = vld [vmem:[#allocation2 + $0x1ba] sm:$0xff]
    %v2253 = vld [vmem:[#allocation2 + $0x1ca] sm:$0xff]
    %v2254 = vld [vmem:[#allocation2 + $0x1d2] sm:$0xff]
    %v2255 = vld [vmem:[#allocation2 + $0x1e2] sm:$0xff]
    %v2256 = vld [vmem:[#allocation2 + $0x1ea] sm:$0xff]
    %v2257 = vld [vmem:[#allocation2 + $0x1fa] sm:$0xff]
    %v2258 = vld [vmem:[#allocation2 + $0x202] sm:$0xff]
    %v2259 = vld [vmem:[#allocation2 + $0x212] sm:$0xff]
    %v2260 = vld [vmem:[#allocation2 + $0x21a] sm:$0xff]
    %v2261 = vld [vmem:[#allocation2 + $0x22a] sm:$0xff]
    %v2262 = vld [vmem:[#allocation2 + $0x232] sm:$0xff]
    %v2263 = vld [vmem:[#allocation2 + $0x242] sm:$0xff]
    %v2264 = vld [vmem:[#allocation2 + $0x24a] sm:$0xff]
    %v2265 = vld [vmem:[#allocation2 + $0x25a] sm:$0xff]
    %v2266 = vld [vmem:[#allocation2 + $0x262] sm:$0xff]
    %v2267 = vld [vmem:[#allocation2 + $0x272] sm:$0xff]
    %v2268 = vld [vmem:[#allocation2 + $0x27a] sm:$0xff]
    %v2269 = vld [vmem:[#allocation2 + $0x28a] sm:$0xff]
    %v2270 = vld [vmem:[#allocation2 + $0x292] sm:$0xff]
    %v2271 = vld [vmem:[#allocation2 + $0x2a2] sm:$0xff]
    %v2272 = vld [vmem:[#allocation2 + $0x2aa] sm:$0xff]
    %v2273 = vld [vmem:[#allocation2 + $0x2ba] sm:$0xff]
    %v2274 = vld [vmem:[#allocation2 + $0x2c2] sm:$0xff]
    %v2275 = vld [vmem:[#allocation2 + $0x2d2] sm:$0xff]
    %v2276 = vld [vmem:[#allocation2 + $0x2da] sm:$0xff]
    %v2277 = vld [vmem:[#allocation2 + $0x2ea] sm:$0xff]
    %v2278 = vld [vmem:[#allocation2 + $0x2f2] sm:$0xff]
    %v2279 = vld [vmem:[#allocation2 + $0x302] sm:$0xff]
    %v2280 = vld [vmem:[#allocation2 + $0x30a] sm:$0xff]
    %v2281 = vld [vmem:[#allocation2 + $0x31a] sm:$0xff]
    %v2282 = vld [vmem:[#allocation2 + $0x322] sm:$0xff]
    %v2283 = vpack.c.bf16 %v2220, %v2219
    %v2284 = vpack.c.bf16 %v2222, %v2221
    %v2285 = vpack.c.bf16 %v2224, %v2223
    %v2286 = vpack.c.bf16 %v2226, %v2225
    %v2287 = vpack.c.bf16 %v2228, %v2227
    %v2288 = vpack.c.bf16 %v2230, %v2229
    %v2289 = vpack.c.bf16 %v2232, %v2231
    %v2290 = vpack.c.bf16 %v2234, %v2233
    %v2291 = vpack.c.bf16 %v2236, %v2235
    %v2292 = vpack.c.bf16 %v2238, %v2237
    %v2293 = vpack.c.bf16 %v2240, %v2239
    %v2294 = vpack.c.bf16 %v2242, %v2241
    %v2295 = vpack.c.bf16 %v2244, %v2243
    %v2296 = vpack.c.bf16 %v2246, %v2245
    %v2297 = vpack.c.bf16 %v2248, %v2247
    %v2298 = vpack.c.bf16 %v2250, %v2249
    %v2299 = vpack.c.bf16 %v2252, %v2251
    %v2300 = vpack.c.bf16 %v2254, %v2253
    %v2301 = vpack.c.bf16 %v2256, %v2255
    %v2302 = vpack.c.bf16 %v2258, %v2257
    %v2303 = vpack.c.bf16 %v2260, %v2259
    %v2304 = vpack.c.bf16 %v2262, %v2261
    %v2305 = vpack.c.bf16 %v2264, %v2263
    %v2306 = vpack.c.bf16 %v2266, %v2265
    %v2307 = vpack.c.bf16 %v2268, %v2267
    %v2308 = vpack.c.bf16 %v2270, %v2269
    %v2309 = vpack.c.bf16 %v2272, %v2271
    %v2310 = vpack.c.bf16 %v2274, %v2273
    %v2311 = vpack.c.bf16 %v2276, %v2275
    %v2312 = vpack.c.bf16 %v2278, %v2277
    %v2313 = vpack.c.bf16 %v2280, %v2279
    %v2314 = vpack.c.bf16 %v2282, %v2281
    %2315 = vst [vmem:[#allocation3 + $0x10] sm:$0xff] %v2283
    %2316 = vst [vmem:[#allocation3 + $0x58] sm:$0xff] %v2284
    %2317 = vst [vmem:[#allocation3 + $0xa0] sm:$0xff] %v2285
    %2318 = vst [vmem:[#allocation3 + $0xe8] sm:$0xff] %v2286
    %2319 = vst [vmem:[#allocation3 + $0x130] sm:$0xff] %v2287
    %2320 = vst [vmem:[#allocation3 + $0x178] sm:$0xff] %v2288
    %2321 = vst [vmem:[#allocation3 + $0x1c0] sm:$0xff] %v2289
    %2322 = vst [vmem:[#allocation3 + $0x208] sm:$0xff] %v2290
    %2323 = vst [vmem:[#allocation3 + $0x250] sm:$0xff] %v2291
    %2324 = vst [vmem:[#allocation3 + $0x298] sm:$0xff] %v2292
    %2325 = vst [vmem:[#allocation3 + $0x2e0] sm:$0xff] %v2293
    %2326 = vst [vmem:[#allocation3 + $0x328] sm:$0xff] %v2294
    %2327 = vst [vmem:[#allocation3 + $0x370] sm:$0xff] %v2295
    %2328 = vst [vmem:[#allocation3 + $0x3b8] sm:$0xff] %v2296
    %2329 = vst [vmem:[#allocation3 + $0x400] sm:$0xff] %v2297
    %2330 = vst [vmem:[#allocation3 + $0x448] sm:$0xff] %v2298
    %2331 = vst [vmem:[#allocation3 + $0x490] sm:$0xff] %v2299
    %2332 = vst [vmem:[#allocation3 + $0x4d8] sm:$0xff] %v2300
    %2333 = vst [vmem:[#allocation3 + $0x520] sm:$0xff] %v2301
    %2334 = vst [vmem:[#allocation3 + $0x568] sm:$0xff] %v2302
    %2335 = vst [vmem:[#allocation3 + $0x5b0] sm:$0xff] %v2303
    %2336 = vst [vmem:[#allocation3 + $0x5f8] sm:$0xff] %v2304
    %2337 = vst [vmem:[#allocation3 + $0x640] sm:$0xff] %v2305
    %2338 = vst [vmem:[#allocation3 + $0x688] sm:$0xff] %v2306
    %2339 = vst [vmem:[#allocation3 + $0x6d0] sm:$0xff] %v2307
    %2340 = vst [vmem:[#allocation3 + $0x718] sm:$0xff] %v2308
    %2341 = vst [vmem:[#allocation3 + $0x760] sm:$0xff] %v2309
    %2342 = vst [vmem:[#allocation3 + $0x7a8] sm:$0xff] %v2310
    %2343 = vst [vmem:[#allocation3 + $0x7f0] sm:$0xff] %v2311
    %2344 = vst [vmem:[#allocation3 + $0x838] sm:$0xff] %v2312
    %2345 = vst [vmem:[#allocation3 + $0x880] sm:$0xff] %v2313
    %2346 = vst [vmem:[#allocation3 + $0x8c8] sm:$0xff] %v2314
    %v2347 = vld [vmem:[%s1898] sm:$0xff]
    %v2348 = vld [vmem:[%s1898 + $0x8] sm:$0xff]
    %v2349 = vld [vmem:[%s1898 + $0x18] sm:$0xff]
    %v2350 = vld [vmem:[%s1898 + $0x20] sm:$0xff]
    %v2351 = vld [vmem:[%s1898 + $0x30] sm:$0xff]
    %v2352 = vld [vmem:[%s1898 + $0x38] sm:$0xff]
    %v2353 = vld [vmem:[%s1898 + $0x48] sm:$0xff]
    %v2354 = vld [vmem:[%s1898 + $0x50] sm:$0xff]
    %v2355 = vld [vmem:[%s1898 + $0x60] sm:$0xff]
    %v2356 = vld [vmem:[%s1898 + $0x68] sm:$0xff]
    %v2357 = vld [vmem:[%s1898 + $0x78] sm:$0xff]
    %v2358 = vld [vmem:[%s1898 + $0x80] sm:$0xff]
    %v2359 = vld [vmem:[%s1898 + $0x90] sm:$0xff]
    %v2360 = vld [vmem:[%s1898 + $0x98] sm:$0xff]
    %v2361 = vld [vmem:[%s1898 + $0xa8] sm:$0xff]
    %v2362 = vld [vmem:[%s1898 + $0xb0] sm:$0xff]
    %v2363 = vld [vmem:[%s1898 + $0xc0] sm:$0xff]
    %v2364 = vld [vmem:[%s1898 + $0xc8] sm:$0xff]
    %v2365 = vld [vmem:[%s1898 + $0xd8] sm:$0xff]
    %v2366 = vld [vmem:[%s1898 + $0xe0] sm:$0xff]
    %v2367 = vld [vmem:[%s1898 + $0xf0] sm:$0xff]
    %v2368 = vld [vmem:[%s1898 + $0xf8] sm:$0xff]
    %v2369 = vld [vmem:[%s1898 + $0x108] sm:$0xff]
    %v2370 = vld [vmem:[%s1898 + $0x110] sm:$0xff]
    %v2371 = vld [vmem:[%s1898 + $0x120] sm:$0xff]
    %v2372 = vld [vmem:[%s1898 + $0x128] sm:$0xff]
    %v2373 = vld [vmem:[%s1898 + $0x138] sm:$0xff]
    %v2374 = vld [vmem:[%s1898 + $0x140] sm:$0xff]
    %v2375 = vld [vmem:[%s1898 + $0x150] sm:$0xff]
    %v2376 = vld [vmem:[%s1898 + $0x158] sm:$0xff]
    %v2377 = vld [vmem:[%s1898 + $0x168] sm:$0xff]
    %v2378 = vld [vmem:[%s1898 + $0x170] sm:$0xff]
    %v2379 = vld [vmem:[%s1898 + $0x1b0] sm:$0xff]
    %v2380 = vld [vmem:[%s1898 + $0x1b8] sm:$0xff]
    %v2381 = vld [vmem:[%s1898 + $0x1c8] sm:$0xff]
    %v2382 = vld [vmem:[%s1898 + $0x1d0] sm:$0xff]
    %v2383 = vld [vmem:[%s1898 + $0x1e0] sm:$0xff]
    %v2384 = vld [vmem:[%s1898 + $0x1e8] sm:$0xff]
    %v2385 = vld [vmem:[%s1898 + $0x1f8] sm:$0xff]
    %v2386 = vld [vmem:[%s1898 + $0x200] sm:$0xff]
    %v2387 = vld [vmem:[%s1898 + $0x210] sm:$0xff]
    %v2388 = vld [vmem:[%s1898 + $0x218] sm:$0xff]
    %v2389 = vld [vmem:[%s1898 + $0x228] sm:$0xff]
    %v2390 = vld [vmem:[%s1898 + $0x230] sm:$0xff]
    %v2391 = vld [vmem:[%s1898 + $0x240] sm:$0xff]
    %v2392 = vld [vmem:[%s1898 + $0x248] sm:$0xff]
    %v2393 = vld [vmem:[%s1898 + $0x258] sm:$0xff]
    %v2394 = vld [vmem:[%s1898 + $0x260] sm:$0xff]
    %v2395 = vld [vmem:[%s1898 + $0x270] sm:$0xff]
    %v2396 = vld [vmem:[%s1898 + $0x278] sm:$0xff]
    %v2397 = vld [vmem:[%s1898 + $0x288] sm:$0xff]
    %v2398 = vld [vmem:[%s1898 + $0x290] sm:$0xff]
    %v2399 = vld [vmem:[%s1898 + $0x2a0] sm:$0xff]
    %v2400 = vld [vmem:[%s1898 + $0x2a8] sm:$0xff]
    %v2401 = vld [vmem:[%s1898 + $0x2b8] sm:$0xff]
    %v2402 = vld [vmem:[%s1898 + $0x2c0] sm:$0xff]
    %v2403 = vld [vmem:[%s1898 + $0x2d0] sm:$0xff]
    %v2404 = vld [vmem:[%s1898 + $0x2d8] sm:$0xff]
    %v2405 = vld [vmem:[%s1898 + $0x2e8] sm:$0xff]
    %v2406 = vld [vmem:[%s1898 + $0x2f0] sm:$0xff]
    %v2407 = vld [vmem:[%s1898 + $0x300] sm:$0xff]
    %v2408 = vld [vmem:[%s1898 + $0x308] sm:$0xff]
    %v2409 = vld [vmem:[%s1898 + $0x318] sm:$0xff]
    %v2410 = vld [vmem:[%s1898 + $0x320] sm:$0xff]
    %v2411 = vpack.c.bf16 %v2348, %v2347
    %v2412 = vpack.c.bf16 %v2350, %v2349
    %v2413 = vpack.c.bf16 %v2352, %v2351
    %v2414 = vpack.c.bf16 %v2354, %v2353
    %v2415 = vpack.c.bf16 %v2356, %v2355
    %v2416 = vpack.c.bf16 %v2358, %v2357
    %v2417 = vpack.c.bf16 %v2360, %v2359
    %v2418 = vpack.c.bf16 %v2362, %v2361
    %v2419 = vpack.c.bf16 %v2364, %v2363
    %v2420 = vpack.c.bf16 %v2366, %v2365
    %v2421 = vpack.c.bf16 %v2368, %v2367
    %v2422 = vpack.c.bf16 %v2370, %v2369
    %v2423 = vpack.c.bf16 %v2372, %v2371
    %v2424 = vpack.c.bf16 %v2374, %v2373
    %v2425 = vpack.c.bf16 %v2376, %v2375
    %v2426 = vpack.c.bf16 %v2378, %v2377
    %v2427 = vpack.c.bf16 %v2380, %v2379
    %v2428 = vpack.c.bf16 %v2382, %v2381
    %v2429 = vpack.c.bf16 %v2384, %v2383
    %v2430 = vpack.c.bf16 %v2386, %v2385
    %v2431 = vpack.c.bf16 %v2388, %v2387
    %v2432 = vpack.c.bf16 %v2390, %v2389
    %v2433 = vpack.c.bf16 %v2392, %v2391
    %v2434 = vpack.c.bf16 %v2394, %v2393
    %v2435 = vpack.c.bf16 %v2396, %v2395
    %v2436 = vpack.c.bf16 %v2398, %v2397
    %v2437 = vpack.c.bf16 %v2400, %v2399
    %v2438 = vpack.c.bf16 %v2402, %v2401
    %v2439 = vpack.c.bf16 %v2404, %v2403
    %v2440 = vpack.c.bf16 %v2406, %v2405
    %v2441 = vpack.c.bf16 %v2408, %v2407
    %v2442 = vpack.c.bf16 %v2410, %v2409
    %2443 = vst [vmem:[#allocation3 + $0x18] sm:$0xff] %v2411
    %2444 = vst [vmem:[#allocation3 + $0x60] sm:$0xff] %v2412
    %2445 = vst [vmem:[#allocation3 + $0xa8] sm:$0xff] %v2413
    %2446 = vst [vmem:[#allocation3 + $0xf0] sm:$0xff] %v2414
    %2447 = vst [vmem:[#allocation3 + $0x138] sm:$0xff] %v2415
    %2448 = vst [vmem:[#allocation3 + $0x180] sm:$0xff] %v2416
    %2449 = vst [vmem:[#allocation3 + $0x1c8] sm:$0xff] %v2417
    %2450 = vst [vmem:[#allocation3 + $0x210] sm:$0xff] %v2418
    %2451 = vst [vmem:[#allocation3 + $0x258] sm:$0xff] %v2419
    %2452 = vst [vmem:[#allocation3 + $0x2a0] sm:$0xff] %v2420
    %2453 = vst [vmem:[#allocation3 + $0x2e8] sm:$0xff] %v2421
    %2454 = vst [vmem:[#allocation3 + $0x330] sm:$0xff] %v2422
    %2455 = vst [vmem:[#allocation3 + $0x378] sm:$0xff] %v2423
    %2456 = vst [vmem:[#allocation3 + $0x3c0] sm:$0xff] %v2424
    %2457 = vst [vmem:[#allocation3 + $0x408] sm:$0xff] %v2425
    %2458 = vst [vmem:[#allocation3 + $0x450] sm:$0xff] %v2426
    %2459 = vst [vmem:[#allocation3 + $0x498] sm:$0xff] %v2427
    %2460 = vst [vmem:[#allocation3 + $0x4e0] sm:$0xff] %v2428
    %2461 = vst [vmem:[#allocation3 + $0x528] sm:$0xff] %v2429
    %2462 = vst [vmem:[#allocation3 + $0x570] sm:$0xff] %v2430
    %2463 = vst [vmem:[#allocation3 + $0x5b8] sm:$0xff] %v2431
    %2464 = vst [vmem:[#allocation3 + $0x600] sm:$0xff] %v2432
    %2465 = vst [vmem:[#allocation3 + $0x648] sm:$0xff] %v2433
    %2466 = vst [vmem:[#allocation3 + $0x690] sm:$0xff] %v2434
    %2467 = vst [vmem:[#allocation3 + $0x6d8] sm:$0xff] %v2435
    %2468 = vst [vmem:[#allocation3 + $0x720] sm:$0xff] %v2436
    %2469 = vst [vmem:[#allocation3 + $0x768] sm:$0xff] %v2437
    %2470 = vst [vmem:[#allocation3 + $0x7b0] sm:$0xff] %v2438
    %2471 = vst [vmem:[#allocation3 + $0x7f8] sm:$0xff] %v2439
    %2472 = vst [vmem:[#allocation3 + $0x840] sm:$0xff] %v2440
    %2473 = vst [vmem:[#allocation3 + $0x888] sm:$0xff] %v2441
    %2474 = vst [vmem:[#allocation3 + $0x8d0] sm:$0xff] %v2442
    %v2475 = vld [vmem:[%s1898 + $0x1] sm:$0xff]
    %v2476 = vld [vmem:[%s1898 + $0x9] sm:$0xff]
    %v2477 = vld [vmem:[%s1898 + $0x19] sm:$0xff]
    %v2478 = vld [vmem:[%s1898 + $0x21] sm:$0xff]
    %v2479 = vld [vmem:[%s1898 + $0x31] sm:$0xff]
    %v2480 = vld [vmem:[%s1898 + $0x39] sm:$0xff]
    %v2481 = vld [vmem:[%s1898 + $0x49] sm:$0xff]
    %v2482 = vld [vmem:[%s1898 + $0x51] sm:$0xff]
    %v2483 = vld [vmem:[%s1898 + $0x61] sm:$0xff]
    %v2484 = vld [vmem:[%s1898 + $0x69] sm:$0xff]
    %v2485 = vld [vmem:[%s1898 + $0x79] sm:$0xff]
    %v2486 = vld [vmem:[%s1898 + $0x81] sm:$0xff]
    %v2487 = vld [vmem:[%s1898 + $0x91] sm:$0xff]
    %v2488 = vld [vmem:[%s1898 + $0x99] sm:$0xff]
    %v2489 = vld [vmem:[%s1898 + $0xa9] sm:$0xff]
    %v2490 = vld [vmem:[%s1898 + $0xb1] sm:$0xff]
    %v2491 = vld [vmem:[%s1898 + $0xc1] sm:$0xff]
    %v2492 = vld [vmem:[%s1898 + $0xc9] sm:$0xff]
    %v2493 = vld [vmem:[%s1898 + $0xd9] sm:$0xff]
    %v2494 = vld [vmem:[%s1898 + $0xe1] sm:$0xff]
    %v2495 = vld [vmem:[%s1898 + $0xf1] sm:$0xff]
    %v2496 = vld [vmem:[%s1898 + $0xf9] sm:$0xff]
    %v2497 = vld [vmem:[%s1898 + $0x109] sm:$0xff]
    %v2498 = vld [vmem:[%s1898 + $0x111] sm:$0xff]
    %v2499 = vld [vmem:[%s1898 + $0x121] sm:$0xff]
    %v2500 = vld [vmem:[%s1898 + $0x129] sm:$0xff]
    %v2501 = vld [vmem:[%s1898 + $0x139] sm:$0xff]
    %v2502 = vld [vmem:[%s1898 + $0x141] sm:$0xff]
    %v2503 = vld [vmem:[%s1898 + $0x151] sm:$0xff]
    %v2504 = vld [vmem:[%s1898 + $0x159] sm:$0xff]
    %v2505 = vld [vmem:[%s1898 + $0x169] sm:$0xff]
    %v2506 = vld [vmem:[%s1898 + $0x171] sm:$0xff]
    %v2507 = vld [vmem:[%s1898 + $0x1b1] sm:$0xff]
    %v2508 = vld [vmem:[%s1898 + $0x1b9] sm:$0xff]
    %v2509 = vld [vmem:[%s1898 + $0x1c9] sm:$0xff]
    %v2510 = vld [vmem:[%s1898 + $0x1d1] sm:$0xff]
    %v2511 = vld [vmem:[%s1898 + $0x1e1] sm:$0xff]
    %v2512 = vld [vmem:[%s1898 + $0x1e9] sm:$0xff]
    %v2513 = vld [vmem:[%s1898 + $0x1f9] sm:$0xff]
    %v2514 = vld [vmem:[%s1898 + $0x201] sm:$0xff]
    %v2515 = vld [vmem:[%s1898 + $0x211] sm:$0xff]
    %v2516 = vld [vmem:[%s1898 + $0x219] sm:$0xff]
    %v2517 = vld [vmem:[%s1898 + $0x229] sm:$0xff]
    %v2518 = vld [vmem:[%s1898 + $0x231] sm:$0xff]
    %v2519 = vld [vmem:[%s1898 + $0x241] sm:$0xff]
    %v2520 = vld [vmem:[%s1898 + $0x249] sm:$0xff]
    %v2521 = vld [vmem:[%s1898 + $0x259] sm:$0xff]
    %v2522 = vld [vmem:[%s1898 + $0x261] sm:$0xff]
    %v2523 = vld [vmem:[%s1898 + $0x271] sm:$0xff]
    %v2524 = vld [vmem:[%s1898 + $0x279] sm:$0xff]
    %v2525 = vld [vmem:[%s1898 + $0x289] sm:$0xff]
    %v2526 = vld [vmem:[%s1898 + $0x291] sm:$0xff]
    %v2527 = vld [vmem:[%s1898 + $0x2a1] sm:$0xff]
    %v2528 = vld [vmem:[%s1898 + $0x2a9] sm:$0xff]
    %v2529 = vld [vmem:[%s1898 + $0x2b9] sm:$0xff]
    %v2530 = vld [vmem:[%s1898 + $0x2c1] sm:$0xff]
    %v2531 = vld [vmem:[%s1898 + $0x2d1] sm:$0xff]
    %v2532 = vld [vmem:[%s1898 + $0x2d9] sm:$0xff]
    %v2533 = vld [vmem:[%s1898 + $0x2e9] sm:$0xff]
    %v2534 = vld [vmem:[%s1898 + $0x2f1] sm:$0xff]
    %v2535 = vld [vmem:[%s1898 + $0x301] sm:$0xff]
    %v2536 = vld [vmem:[%s1898 + $0x309] sm:$0xff]
    %v2537 = vld [vmem:[%s1898 + $0x319] sm:$0xff]
    %v2538 = vld [vmem:[%s1898 + $0x321] sm:$0xff]
    %v2539 = vpack.c.bf16 %v2476, %v2475
    %v2540 = vpack.c.bf16 %v2478, %v2477
    %v2541 = vpack.c.bf16 %v2480, %v2479
    %v2542 = vpack.c.bf16 %v2482, %v2481
    %v2543 = vpack.c.bf16 %v2484, %v2483
    %v2544 = vpack.c.bf16 %v2486, %v2485
    %v2545 = vpack.c.bf16 %v2488, %v2487
    %v2546 = vpack.c.bf16 %v2490, %v2489
    %v2547 = vpack.c.bf16 %v2492, %v2491
    %v2548 = vpack.c.bf16 %v2494, %v2493
    %v2549 = vpack.c.bf16 %v2496, %v2495
    %v2550 = vpack.c.bf16 %v2498, %v2497
    %v2551 = vpack.c.bf16 %v2500, %v2499
    %v2552 = vpack.c.bf16 %v2502, %v2501
    %v2553 = vpack.c.bf16 %v2504, %v2503
    %v2554 = vpack.c.bf16 %v2506, %v2505
    %v2555 = vpack.c.bf16 %v2508, %v2507
    %v2556 = vpack.c.bf16 %v2510, %v2509
    %v2557 = vpack.c.bf16 %v2512, %v2511
    %v2558 = vpack.c.bf16 %v2514, %v2513
    %v2559 = vpack.c.bf16 %v2516, %v2515
    %v2560 = vpack.c.bf16 %v2518, %v2517
    %v2561 = vpack.c.bf16 %v2520, %v2519
    %v2562 = vpack.c.bf16 %v2522, %v2521
    %v2563 = vpack.c.bf16 %v2524, %v2523
    %v2564 = vpack.c.bf16 %v2526, %v2525
    %v2565 = vpack.c.bf16 %v2528, %v2527
    %v2566 = vpack.c.bf16 %v2530, %v2529
    %v2567 = vpack.c.bf16 %v2532, %v2531
    %v2568 = vpack.c.bf16 %v2534, %v2533
    %v2569 = vpack.c.bf16 %v2536, %v2535
    %v2570 = vpack.c.bf16 %v2538, %v2537
    %2571 = vst [vmem:[#allocation3 + $0x20] sm:$0xff] %v2539
    %2572 = vst [vmem:[#allocation3 + $0x68] sm:$0xff] %v2540
    %2573 = vst [vmem:[#allocation3 + $0xb0] sm:$0xff] %v2541
    %2574 = vst [vmem:[#allocation3 + $0xf8] sm:$0xff] %v2542
    %2575 = vst [vmem:[#allocation3 + $0x140] sm:$0xff] %v2543
    %2576 = vst [vmem:[#allocation3 + $0x188] sm:$0xff] %v2544
    %2577 = vst [vmem:[#allocation3 + $0x1d0] sm:$0xff] %v2545
    %2578 = vst [vmem:[#allocation3 + $0x218] sm:$0xff] %v2546
    %2579 = vst [vmem:[#allocation3 + $0x260] sm:$0xff] %v2547
    %2580 = vst [vmem:[#allocation3 + $0x2a8] sm:$0xff] %v2548
    %2581 = vst [vmem:[#allocation3 + $0x2f0] sm:$0xff] %v2549
    %2582 = vst [vmem:[#allocation3 + $0x338] sm:$0xff] %v2550
    %2583 = vst [vmem:[#allocation3 + $0x380] sm:$0xff] %v2551
    %2584 = vst [vmem:[#allocation3 + $0x3c8] sm:$0xff] %v2552
    %2585 = vst [vmem:[#allocation3 + $0x410] sm:$0xff] %v2553
    %2586 = vst [vmem:[#allocation3 + $0x458] sm:$0xff] %v2554
    %2587 = vst [vmem:[#allocation3 + $0x4a0] sm:$0xff] %v2555
    %2588 = vst [vmem:[#allocation3 + $0x4e8] sm:$0xff] %v2556
    %2589 = vst [vmem:[#allocation3 + $0x530] sm:$0xff] %v2557
    %2590 = vst [vmem:[#allocation3 + $0x578] sm:$0xff] %v2558
    %2591 = vst [vmem:[#allocation3 + $0x5c0] sm:$0xff] %v2559
    %2592 = vst [vmem:[#allocation3 + $0x608] sm:$0xff] %v2560
    %2593 = vst [vmem:[#allocation3 + $0x650] sm:$0xff] %v2561
    %2594 = vst [vmem:[#allocation3 + $0x698] sm:$0xff] %v2562
    %2595 = vst [vmem:[#allocation3 + $0x6e0] sm:$0xff] %v2563
    %2596 = vst [vmem:[#allocation3 + $0x728] sm:$0xff] %v2564
    %2597 = vst [vmem:[#allocation3 + $0x770] sm:$0xff] %v2565
    %2598 = vst [vmem:[#allocation3 + $0x7b8] sm:$0xff] %v2566
    %2599 = vst [vmem:[#allocation3 + $0x800] sm:$0xff] %v2567
    %2600 = vst [vmem:[#allocation3 + $0x848] sm:$0xff] %v2568
    %2601 = vst [vmem:[#allocation3 + $0x890] sm:$0xff] %v2569
    %2602 = vst [vmem:[#allocation3 + $0x8d8] sm:$0xff] %v2570
    %v2603 = vld [vmem:[%s1898 + $0x2] sm:$0xff]
    %v2604 = vld [vmem:[%s1898 + $0xa] sm:$0xff]
    %v2605 = vld [vmem:[%s1898 + $0x1a] sm:$0xff]
    %v2606 = vld [vmem:[%s1898 + $0x22] sm:$0xff]
    %v2607 = vld [vmem:[%s1898 + $0x32] sm:$0xff]
    %v2608 = vld [vmem:[%s1898 + $0x3a] sm:$0xff]
    %v2609 = vld [vmem:[%s1898 + $0x4a] sm:$0xff]
    %v2610 = vld [vmem:[%s1898 + $0x52] sm:$0xff]
    %v2611 = vld [vmem:[%s1898 + $0x62] sm:$0xff]
    %v2612 = vld [vmem:[%s1898 + $0x6a] sm:$0xff]
    %v2613 = vld [vmem:[%s1898 + $0x7a] sm:$0xff]
    %v2614 = vld [vmem:[%s1898 + $0x82] sm:$0xff]
    %v2615 = vld [vmem:[%s1898 + $0x92] sm:$0xff]
    %v2616 = vld [vmem:[%s1898 + $0x9a] sm:$0xff]
    %v2617 = vld [vmem:[%s1898 + $0xaa] sm:$0xff]
    %v2618 = vld [vmem:[%s1898 + $0xb2] sm:$0xff]
    %v2619 = vld [vmem:[%s1898 + $0xc2] sm:$0xff]
    %v2620 = vld [vmem:[%s1898 + $0xca] sm:$0xff]
    %v2621 = vld [vmem:[%s1898 + $0xda] sm:$0xff]
    %v2622 = vld [vmem:[%s1898 + $0xe2] sm:$0xff]
    %v2623 = vld [vmem:[%s1898 + $0xf2] sm:$0xff]
    %v2624 = vld [vmem:[%s1898 + $0xfa] sm:$0xff]
    %v2625 = vld [vmem:[%s1898 + $0x10a] sm:$0xff]
    %v2626 = vld [vmem:[%s1898 + $0x112] sm:$0xff]
    %v2627 = vld [vmem:[%s1898 + $0x122] sm:$0xff]
    %v2628 = vld [vmem:[%s1898 + $0x12a] sm:$0xff]
    %v2629 = vld [vmem:[%s1898 + $0x13a] sm:$0xff]
    %v2630 = vld [vmem:[%s1898 + $0x142] sm:$0xff]
    %v2631 = vld [vmem:[%s1898 + $0x152] sm:$0xff]
    %v2632 = vld [vmem:[%s1898 + $0x15a] sm:$0xff]
    %v2633 = vld [vmem:[%s1898 + $0x16a] sm:$0xff]
    %v2634 = vld [vmem:[%s1898 + $0x172] sm:$0xff]
    %v2635 = vld [vmem:[%s1898 + $0x1b2] sm:$0xff]
    %v2636 = vld [vmem:[%s1898 + $0x1ba] sm:$0xff]
    %v2637 = vld [vmem:[%s1898 + $0x1ca] sm:$0xff]
    %v2638 = vld [vmem:[%s1898 + $0x1d2] sm:$0xff]
    %v2639 = vld [vmem:[%s1898 + $0x1e2] sm:$0xff]
    %v2640 = vld [vmem:[%s1898 + $0x1ea] sm:$0xff]
    %v2641 = vld [vmem:[%s1898 + $0x1fa] sm:$0xff]
    %v2642 = vld [vmem:[%s1898 + $0x202] sm:$0xff]
    %v2643 = vld [vmem:[%s1898 + $0x212] sm:$0xff]
    %v2644 = vld [vmem:[%s1898 + $0x21a] sm:$0xff]
    %v2645 = vld [vmem:[%s1898 + $0x22a] sm:$0xff]
    %v2646 = vld [vmem:[%s1898 + $0x232] sm:$0xff]
    %v2647 = vld [vmem:[%s1898 + $0x242] sm:$0xff]
    %v2648 = vld [vmem:[%s1898 + $0x24a] sm:$0xff]
    %v2649 = vld [vmem:[%s1898 + $0x25a] sm:$0xff]
    %v2650 = vld [vmem:[%s1898 + $0x262] sm:$0xff]
    %v2651 = vld [vmem:[%s1898 + $0x272] sm:$0xff]
    %v2652 = vld [vmem:[%s1898 + $0x27a] sm:$0xff]
    %v2653 = vld [vmem:[%s1898 + $0x28a] sm:$0xff]
    %v2654 = vld [vmem:[%s1898 + $0x292] sm:$0xff]
    %v2655 = vld [vmem:[%s1898 + $0x2a2] sm:$0xff]
    %v2656 = vld [vmem:[%s1898 + $0x2aa] sm:$0xff]
    %v2657 = vld [vmem:[%s1898 + $0x2ba] sm:$0xff]
    %v2658 = vld [vmem:[%s1898 + $0x2c2] sm:$0xff]
    %v2659 = vld [vmem:[%s1898 + $0x2d2] sm:$0xff]
    %v2660 = vld [vmem:[%s1898 + $0x2da] sm:$0xff]
    %v2661 = vld [vmem:[%s1898 + $0x2ea] sm:$0xff]
    %v2662 = vld [vmem:[%s1898 + $0x2f2] sm:$0xff]
    %v2663 = vld [vmem:[%s1898 + $0x302] sm:$0xff]
    %v2664 = vld [vmem:[%s1898 + $0x30a] sm:$0xff]
    %v2665 = vld [vmem:[%s1898 + $0x31a] sm:$0xff]
    %v2666 = vld [vmem:[%s1898 + $0x322] sm:$0xff]
    %v2667 = vpack.c.bf16 %v2604, %v2603
    %v2668 = vpack.c.bf16 %v2606, %v2605
    %v2669 = vpack.c.bf16 %v2608, %v2607
    %v2670 = vpack.c.bf16 %v2610, %v2609
    %v2671 = vpack.c.bf16 %v2612, %v2611
    %v2672 = vpack.c.bf16 %v2614, %v2613
    %v2673 = vpack.c.bf16 %v2616, %v2615
    %v2674 = vpack.c.bf16 %v2618, %v2617
    %v2675 = vpack.c.bf16 %v2620, %v2619
    %v2676 = vpack.c.bf16 %v2622, %v2621
    %v2677 = vpack.c.bf16 %v2624, %v2623
    %v2678 = vpack.c.bf16 %v2626, %v2625
    %v2679 = vpack.c.bf16 %v2628, %v2627
    %v2680 = vpack.c.bf16 %v2630, %v2629
    %v2681 = vpack.c.bf16 %v2632, %v2631
    %v2682 = vpack.c.bf16 %v2634, %v2633
    %v2683 = vpack.c.bf16 %v2636, %v2635
    %v2684 = vpack.c.bf16 %v2638, %v2637
    %v2685 = vpack.c.bf16 %v2640, %v2639
    %v2686 = vpack.c.bf16 %v2642, %v2641
    %v2687 = vpack.c.bf16 %v2644, %v2643
    %v2688 = vpack.c.bf16 %v2646, %v2645
    %v2689 = vpack.c.bf16 %v2648, %v2647
    %v2690 = vpack.c.bf16 %v2650, %v2649
    %v2691 = vpack.c.bf16 %v2652, %v2651
    %v2692 = vpack.c.bf16 %v2654, %v2653
    %v2693 = vpack.c.bf16 %v2656, %v2655
    %v2694 = vpack.c.bf16 %v2658, %v2657
    %v2695 = vpack.c.bf16 %v2660, %v2659
    %v2696 = vpack.c.bf16 %v2662, %v2661
    %v2697 = vpack.c.bf16 %v2664, %v2663
    %v2698 = vpack.c.bf16 %v2666, %v2665
    %2699 = vst [vmem:[#allocation3 + $0x28] sm:$0xff] %v2667
    %2700 = vst [vmem:[#allocation3 + $0x70] sm:$0xff] %v2668
    %2701 = vst [vmem:[#allocation3 + $0xb8] sm:$0xff] %v2669
    %2702 = vst [vmem:[#allocation3 + $0x100] sm:$0xff] %v2670
    %2703 = vst [vmem:[#allocation3 + $0x148] sm:$0xff] %v2671
    %2704 = vst [vmem:[#allocation3 + $0x190] sm:$0xff] %v2672
    %2705 = vst [vmem:[#allocation3 + $0x1d8] sm:$0xff] %v2673
    %2706 = vst [vmem:[#allocation3 + $0x220] sm:$0xff] %v2674
    %2707 = vst [vmem:[#allocation3 + $0x268] sm:$0xff] %v2675
    %2708 = vst [vmem:[#allocation3 + $0x2b0] sm:$0xff] %v2676
    %2709 = vst [vmem:[#allocation3 + $0x2f8] sm:$0xff] %v2677
    %2710 = vst [vmem:[#allocation3 + $0x340] sm:$0xff] %v2678
    %2711 = vst [vmem:[#allocation3 + $0x388] sm:$0xff] %v2679
    %2712 = vst [vmem:[#allocation3 + $0x3d0] sm:$0xff] %v2680
    %2713 = vst [vmem:[#allocation3 + $0x418] sm:$0xff] %v2681
    %2714 = vst [vmem:[#allocation3 + $0x460] sm:$0xff] %v2682
    %2715 = vst [vmem:[#allocation3 + $0x4a8] sm:$0xff] %v2683
    %2716 = vst [vmem:[#allocation3 + $0x4f0] sm:$0xff] %v2684
    %2717 = vst [vmem:[#allocation3 + $0x538] sm:$0xff] %v2685
    %2718 = vst [vmem:[#allocation3 + $0x580] sm:$0xff] %v2686
    %2719 = vst [vmem:[#allocation3 + $0x5c8] sm:$0xff] %v2687
    %2720 = vst [vmem:[#allocation3 + $0x610] sm:$0xff] %v2688
    %2721 = vst [vmem:[#allocation3 + $0x658] sm:$0xff] %v2689
    %2722 = vst [vmem:[#allocation3 + $0x6a0] sm:$0xff] %v2690
    %2723 = vst [vmem:[#allocation3 + $0x6e8] sm:$0xff] %v2691
    %2724 = vst [vmem:[#allocation3 + $0x730] sm:$0xff] %v2692
    %2725 = vst [vmem:[#allocation3 + $0x778] sm:$0xff] %v2693
    %2726 = vst [vmem:[#allocation3 + $0x7c0] sm:$0xff] %v2694
    %2727 = vst [vmem:[#allocation3 + $0x808] sm:$0xff] %v2695
    %2728 = vst [vmem:[#allocation3 + $0x850] sm:$0xff] %v2696
    %2729 = vst [vmem:[#allocation3 + $0x898] sm:$0xff] %v2697
    %2730 = vst [vmem:[#allocation3 + $0x8e0] sm:$0xff] %v2698
    %s2731 = scalar_lea.vmem [#allocation2], 48
    %v2732 = vld [vmem:[%s2731] sm:$0xff]
    %v2733 = vld [vmem:[%s2731 + $0x8] sm:$0xff]
    %v2734 = vld [vmem:[%s2731 + $0x18] sm:$0xff]
    %v2735 = vld [vmem:[%s2731 + $0x20] sm:$0xff]
    %v2736 = vld [vmem:[%s2731 + $0x30] sm:$0xff]
    %v2737 = vld [vmem:[%s2731 + $0x38] sm:$0xff]
    %v2738 = vld [vmem:[%s2731 + $0x48] sm:$0xff]
    %v2739 = vld [vmem:[%s2731 + $0x50] sm:$0xff]
    %v2740 = vld [vmem:[%s2731 + $0x60] sm:$0xff]
    %v2741 = vld [vmem:[%s2731 + $0x68] sm:$0xff]
    %v2742 = vld [vmem:[%s2731 + $0x78] sm:$0xff]
    %v2743 = vld [vmem:[%s2731 + $0x80] sm:$0xff]
    %v2744 = vld [vmem:[%s2731 + $0x90] sm:$0xff]
    %v2745 = vld [vmem:[%s2731 + $0x98] sm:$0xff]
    %v2746 = vld [vmem:[%s2731 + $0xa8] sm:$0xff]
    %v2747 = vld [vmem:[%s2731 + $0xb0] sm:$0xff]
    %v2748 = vld [vmem:[%s2731 + $0xc0] sm:$0xff]
    %v2749 = vld [vmem:[%s2731 + $0xc8] sm:$0xff]
    %v2750 = vld [vmem:[%s2731 + $0xd8] sm:$0xff]
    %v2751 = vld [vmem:[%s2731 + $0xe0] sm:$0xff]
    %v2752 = vld [vmem:[%s2731 + $0xf0] sm:$0xff]
    %v2753 = vld [vmem:[%s2731 + $0xf8] sm:$0xff]
    %v2754 = vld [vmem:[%s2731 + $0x108] sm:$0xff]
    %v2755 = vld [vmem:[%s2731 + $0x110] sm:$0xff]
    %v2756 = vld [vmem:[%s2731 + $0x120] sm:$0xff]
    %v2757 = vld [vmem:[%s2731 + $0x128] sm:$0xff]
    %v2758 = vld [vmem:[%s2731 + $0x138] sm:$0xff]
    %v2759 = vld [vmem:[%s2731 + $0x140] sm:$0xff]
    %v2760 = vld [vmem:[%s2731 + $0x150] sm:$0xff]
    %v2761 = vld [vmem:[%s2731 + $0x158] sm:$0xff]
    %v2762 = vld [vmem:[%s2731 + $0x168] sm:$0xff]
    %v2763 = vld [vmem:[%s2731 + $0x170] sm:$0xff]
    %v2764 = vld [vmem:[%s2731 + $0x1b0] sm:$0xff]
    %v2765 = vld [vmem:[%s2731 + $0x1b8] sm:$0xff]
    %v2766 = vld [vmem:[%s2731 + $0x1c8] sm:$0xff]
    %v2767 = vld [vmem:[%s2731 + $0x1d0] sm:$0xff]
    %v2768 = vld [vmem:[%s2731 + $0x1e0] sm:$0xff]
    %v2769 = vld [vmem:[%s2731 + $0x1e8] sm:$0xff]
    %v2770 = vld [vmem:[%s2731 + $0x1f8] sm:$0xff]
    %v2771 = vld [vmem:[%s2731 + $0x200] sm:$0xff]
    %v2772 = vld [vmem:[%s2731 + $0x210] sm:$0xff]
    %v2773 = vld [vmem:[%s2731 + $0x218] sm:$0xff]
    %v2774 = vld [vmem:[%s2731 + $0x228] sm:$0xff]
    %v2775 = vld [vmem:[%s2731 + $0x230] sm:$0xff]
    %v2776 = vld [vmem:[%s2731 + $0x240] sm:$0xff]
    %v2777 = vld [vmem:[%s2731 + $0x248] sm:$0xff]
    %v2778 = vld [vmem:[%s2731 + $0x258] sm:$0xff]
    %v2779 = vld [vmem:[%s2731 + $0x260] sm:$0xff]
    %v2780 = vld [vmem:[%s2731 + $0x270] sm:$0xff]
    %v2781 = vld [vmem:[%s2731 + $0x278] sm:$0xff]
    %v2782 = vld [vmem:[%s2731 + $0x288] sm:$0xff]
    %v2783 = vld [vmem:[%s2731 + $0x290] sm:$0xff]
    %v2784 = vld [vmem:[%s2731 + $0x2a0] sm:$0xff]
    %v2785 = vld [vmem:[%s2731 + $0x2a8] sm:$0xff]
    %v2786 = vld [vmem:[%s2731 + $0x2b8] sm:$0xff]
    %v2787 = vld [vmem:[%s2731 + $0x2c0] sm:$0xff]
    %v2788 = vld [vmem:[%s2731 + $0x2d0] sm:$0xff]
    %v2789 = vld [vmem:[%s2731 + $0x2d8] sm:$0xff]
    %v2790 = vld [vmem:[%s2731 + $0x2e8] sm:$0xff]
    %v2791 = vld [vmem:[%s2731 + $0x2f0] sm:$0xff]
    %v2792 = vld [vmem:[%s2731 + $0x300] sm:$0xff]
    %v2793 = vld [vmem:[%s2731 + $0x308] sm:$0xff]
    %v2794 = vld [vmem:[%s2731 + $0x318] sm:$0xff]
    %v2795 = vld [vmem:[%s2731 + $0x320] sm:$0xff]
    %v2796 = vpack.c.bf16 %v2733, %v2732
    %v2797 = vpack.c.bf16 %v2735, %v2734
    %v2798 = vpack.c.bf16 %v2737, %v2736
    %v2799 = vpack.c.bf16 %v2739, %v2738
    %v2800 = vpack.c.bf16 %v2741, %v2740
    %v2801 = vpack.c.bf16 %v2743, %v2742
    %v2802 = vpack.c.bf16 %v2745, %v2744
    %v2803 = vpack.c.bf16 %v2747, %v2746
    %v2804 = vpack.c.bf16 %v2749, %v2748
    %v2805 = vpack.c.bf16 %v2751, %v2750
    %v2806 = vpack.c.bf16 %v2753, %v2752
    %v2807 = vpack.c.bf16 %v2755, %v2754
    %v2808 = vpack.c.bf16 %v2757, %v2756
    %v2809 = vpack.c.bf16 %v2759, %v2758
    %v2810 = vpack.c.bf16 %v2761, %v2760
    %v2811 = vpack.c.bf16 %v2763, %v2762
    %v2812 = vpack.c.bf16 %v2765, %v2764
    %v2813 = vpack.c.bf16 %v2767, %v2766
    %v2814 = vpack.c.bf16 %v2769, %v2768
    %v2815 = vpack.c.bf16 %v2771, %v2770
    %v2816 = vpack.c.bf16 %v2773, %v2772
    %v2817 = vpack.c.bf16 %v2775, %v2774
    %v2818 = vpack.c.bf16 %v2777, %v2776
    %v2819 = vpack.c.bf16 %v2779, %v2778
    %v2820 = vpack.c.bf16 %v2781, %v2780
    %v2821 = vpack.c.bf16 %v2783, %v2782
    %v2822 = vpack.c.bf16 %v2785, %v2784
    %v2823 = vpack.c.bf16 %v2787, %v2786
    %v2824 = vpack.c.bf16 %v2789, %v2788
    %v2825 = vpack.c.bf16 %v2791, %v2790
    %v2826 = vpack.c.bf16 %v2793, %v2792
    %v2827 = vpack.c.bf16 %v2795, %v2794
    %2828 = vst [vmem:[#allocation3 + $0x30] sm:$0xff] %v2796
    %2829 = vst [vmem:[#allocation3 + $0x78] sm:$0xff] %v2797
    %2830 = vst [vmem:[#allocation3 + $0xc0] sm:$0xff] %v2798
    %2831 = vst [vmem:[#allocation3 + $0x108] sm:$0xff] %v2799
    %2832 = vst [vmem:[#allocation3 + $0x150] sm:$0xff] %v2800
    %2833 = vst [vmem:[#allocation3 + $0x198] sm:$0xff] %v2801
    %2834 = vst [vmem:[#allocation3 + $0x1e0] sm:$0xff] %v2802
    %2835 = vst [vmem:[#allocation3 + $0x228] sm:$0xff] %v2803
    %2836 = vst [vmem:[#allocation3 + $0x270] sm:$0xff] %v2804
    %2837 = vst [vmem:[#allocation3 + $0x2b8] sm:$0xff] %v2805
    %2838 = vst [vmem:[#allocation3 + $0x300] sm:$0xff] %v2806
    %2839 = vst [vmem:[#allocation3 + $0x348] sm:$0xff] %v2807
    %2840 = vst [vmem:[#allocation3 + $0x390] sm:$0xff] %v2808
    %2841 = vst [vmem:[#allocation3 + $0x3d8] sm:$0xff] %v2809
    %2842 = vst [vmem:[#allocation3 + $0x420] sm:$0xff] %v2810
    %2843 = vst [vmem:[#allocation3 + $0x468] sm:$0xff] %v2811
    %2844 = vst [vmem:[#allocation3 + $0x4b0] sm:$0xff] %v2812
    %2845 = vst [vmem:[#allocation3 + $0x4f8] sm:$0xff] %v2813
    %2846 = vst [vmem:[#allocation3 + $0x540] sm:$0xff] %v2814
    %2847 = vst [vmem:[#allocation3 + $0x588] sm:$0xff] %v2815
    %2848 = vst [vmem:[#allocation3 + $0x5d0] sm:$0xff] %v2816
    %2849 = vst [vmem:[#allocation3 + $0x618] sm:$0xff] %v2817
    %2850 = vst [vmem:[#allocation3 + $0x660] sm:$0xff] %v2818
    %2851 = vst [vmem:[#allocation3 + $0x6a8] sm:$0xff] %v2819
    %2852 = vst [vmem:[#allocation3 + $0x6f0] sm:$0xff] %v2820
    %2853 = vst [vmem:[#allocation3 + $0x738] sm:$0xff] %v2821
    %2854 = vst [vmem:[#allocation3 + $0x780] sm:$0xff] %v2822
    %2855 = vst [vmem:[#allocation3 + $0x7c8] sm:$0xff] %v2823
    %2856 = vst [vmem:[#allocation3 + $0x810] sm:$0xff] %v2824
    %2857 = vst [vmem:[#allocation3 + $0x858] sm:$0xff] %v2825
    %2858 = vst [vmem:[#allocation3 + $0x8a0] sm:$0xff] %v2826
    %2859 = vst [vmem:[#allocation3 + $0x8e8] sm:$0xff] %v2827
    %v2860 = vld [vmem:[%s2731 + $0x1] sm:$0xff]
    %v2861 = vld [vmem:[%s2731 + $0x9] sm:$0xff]
    %v2862 = vld [vmem:[%s2731 + $0x19] sm:$0xff]
    %v2863 = vld [vmem:[%s2731 + $0x21] sm:$0xff]
    %v2864 = vld [vmem:[%s2731 + $0x31] sm:$0xff]
    %v2865 = vld [vmem:[%s2731 + $0x39] sm:$0xff]
    %v2866 = vld [vmem:[%s2731 + $0x49] sm:$0xff]
    %v2867 = vld [vmem:[%s2731 + $0x51] sm:$0xff]
    %v2868 = vld [vmem:[%s2731 + $0x61] sm:$0xff]
    %v2869 = vld [vmem:[%s2731 + $0x69] sm:$0xff]
    %v2870 = vld [vmem:[%s2731 + $0x79] sm:$0xff]
    %v2871 = vld [vmem:[%s2731 + $0x81] sm:$0xff]
    %v2872 = vld [vmem:[%s2731 + $0x91] sm:$0xff]
    %v2873 = vld [vmem:[%s2731 + $0x99] sm:$0xff]
    %v2874 = vld [vmem:[%s2731 + $0xa9] sm:$0xff]
    %v2875 = vld [vmem:[%s2731 + $0xb1] sm:$0xff]
    %v2876 = vld [vmem:[%s2731 + $0xc1] sm:$0xff]
    %v2877 = vld [vmem:[%s2731 + $0xc9] sm:$0xff]
    %v2878 = vld [vmem:[%s2731 + $0xd9] sm:$0xff]
    %v2879 = vld [vmem:[%s2731 + $0xe1] sm:$0xff]
    %v2880 = vld [vmem:[%s2731 + $0xf1] sm:$0xff]
    %v2881 = vld [vmem:[%s2731 + $0xf9] sm:$0xff]
    %v2882 = vld [vmem:[%s2731 + $0x109] sm:$0xff]
    %v2883 = vld [vmem:[%s2731 + $0x111] sm:$0xff]
    %v2884 = vld [vmem:[%s2731 + $0x121] sm:$0xff]
    %v2885 = vld [vmem:[%s2731 + $0x129] sm:$0xff]
    %v2886 = vld [vmem:[%s2731 + $0x139] sm:$0xff]
    %v2887 = vld [vmem:[%s2731 + $0x141] sm:$0xff]
    %v2888 = vld [vmem:[%s2731 + $0x151] sm:$0xff]
    %v2889 = vld [vmem:[%s2731 + $0x159] sm:$0xff]
    %v2890 = vld [vmem:[%s2731 + $0x169] sm:$0xff]
    %v2891 = vld [vmem:[%s2731 + $0x171] sm:$0xff]
    %v2892 = vld [vmem:[%s2731 + $0x1b1] sm:$0xff]
    %v2893 = vld [vmem:[%s2731 + $0x1b9] sm:$0xff]
    %v2894 = vld [vmem:[%s2731 + $0x1c9] sm:$0xff]
    %v2895 = vld [vmem:[%s2731 + $0x1d1] sm:$0xff]
    %v2896 = vld [vmem:[%s2731 + $0x1e1] sm:$0xff]
    %v2897 = vld [vmem:[%s2731 + $0x1e9] sm:$0xff]
    %v2898 = vld [vmem:[%s2731 + $0x1f9] sm:$0xff]
    %v2899 = vld [vmem:[%s2731 + $0x201] sm:$0xff]
    %v2900 = vld [vmem:[%s2731 + $0x211] sm:$0xff]
    %v2901 = vld [vmem:[%s2731 + $0x219] sm:$0xff]
    %v2902 = vld [vmem:[%s2731 + $0x229] sm:$0xff]
    %v2903 = vld [vmem:[%s2731 + $0x231] sm:$0xff]
    %v2904 = vld [vmem:[%s2731 + $0x241] sm:$0xff]
    %v2905 = vld [vmem:[%s2731 + $0x249] sm:$0xff]
    %v2906 = vld [vmem:[%s2731 + $0x259] sm:$0xff]
    %v2907 = vld [vmem:[%s2731 + $0x261] sm:$0xff]
    %v2908 = vld [vmem:[%s2731 + $0x271] sm:$0xff]
    %v2909 = vld [vmem:[%s2731 + $0x279] sm:$0xff]
    %v2910 = vld [vmem:[%s2731 + $0x289] sm:$0xff]
    %v2911 = vld [vmem:[%s2731 + $0x291] sm:$0xff]
    %v2912 = vld [vmem:[%s2731 + $0x2a1] sm:$0xff]
    %v2913 = vld [vmem:[%s2731 + $0x2a9] sm:$0xff]
    %v2914 = vld [vmem:[%s2731 + $0x2b9] sm:$0xff]
    %v2915 = vld [vmem:[%s2731 + $0x2c1] sm:$0xff]
    %v2916 = vld [vmem:[%s2731 + $0x2d1] sm:$0xff]
    %v2917 = vld [vmem:[%s2731 + $0x2d9] sm:$0xff]
    %v2918 = vld [vmem:[%s2731 + $0x2e9] sm:$0xff]
    %v2919 = vld [vmem:[%s2731 + $0x2f1] sm:$0xff]
    %v2920 = vld [vmem:[%s2731 + $0x301] sm:$0xff]
    %v2921 = vld [vmem:[%s2731 + $0x309] sm:$0xff]
    %v2922 = vld [vmem:[%s2731 + $0x319] sm:$0xff]
    %v2923 = vld [vmem:[%s2731 + $0x321] sm:$0xff]
    %v2924 = vpack.c.bf16 %v2861, %v2860
    %v2925 = vpack.c.bf16 %v2863, %v2862
    %v2926 = vpack.c.bf16 %v2865, %v2864
    %v2927 = vpack.c.bf16 %v2867, %v2866
    %v2928 = vpack.c.bf16 %v2869, %v2868
    %v2929 = vpack.c.bf16 %v2871, %v2870
    %v2930 = vpack.c.bf16 %v2873, %v2872
    %v2931 = vpack.c.bf16 %v2875, %v2874
    %v2932 = vpack.c.bf16 %v2877, %v2876
    %v2933 = vpack.c.bf16 %v2879, %v2878
    %v2934 = vpack.c.bf16 %v2881, %v2880
    %v2935 = vpack.c.bf16 %v2883, %v2882
    %v2936 = vpack.c.bf16 %v2885, %v2884
    %v2937 = vpack.c.bf16 %v2887, %v2886
    %v2938 = vpack.c.bf16 %v2889, %v2888
    %v2939 = vpack.c.bf16 %v2891, %v2890
    %v2940 = vpack.c.bf16 %v2893, %v2892
    %v2941 = vpack.c.bf16 %v2895, %v2894
    %v2942 = vpack.c.bf16 %v2897, %v2896
    %v2943 = vpack.c.bf16 %v2899, %v2898
    %v2944 = vpack.c.bf16 %v2901, %v2900
    %v2945 = vpack.c.bf16 %v2903, %v2902
    %v2946 = vpack.c.bf16 %v2905, %v2904
    %v2947 = vpack.c.bf16 %v2907, %v2906
    %v2948 = vpack.c.bf16 %v2909, %v2908
    %v2949 = vpack.c.bf16 %v2911, %v2910
    %v2950 = vpack.c.bf16 %v2913, %v2912
    %v2951 = vpack.c.bf16 %v2915, %v2914
    %v2952 = vpack.c.bf16 %v2917, %v2916
    %v2953 = vpack.c.bf16 %v2919, %v2918
    %v2954 = vpack.c.bf16 %v2921, %v2920
    %v2955 = vpack.c.bf16 %v2923, %v2922
    %2956 = vst [vmem:[#allocation3 + $0x38] sm:$0xff] %v2924
    %2957 = vst [vmem:[#allocation3 + $0x80] sm:$0xff] %v2925
    %2958 = vst [vmem:[#allocation3 + $0xc8] sm:$0xff] %v2926
    %2959 = vst [vmem:[#allocation3 + $0x110] sm:$0xff] %v2927
    %2960 = vst [vmem:[#allocation3 + $0x158] sm:$0xff] %v2928
    %2961 = vst [vmem:[#allocation3 + $0x1a0] sm:$0xff] %v2929
    %2962 = vst [vmem:[#allocation3 + $0x1e8] sm:$0xff] %v2930
    %2963 = vst [vmem:[#allocation3 + $0x230] sm:$0xff] %v2931
    %2964 = vst [vmem:[#allocation3 + $0x278] sm:$0xff] %v2932
    %2965 = vst [vmem:[#allocation3 + $0x2c0] sm:$0xff] %v2933
    %2966 = vst [vmem:[#allocation3 + $0x308] sm:$0xff] %v2934
    %2967 = vst [vmem:[#allocation3 + $0x350] sm:$0xff] %v2935
    %2968 = vst [vmem:[#allocation3 + $0x398] sm:$0xff] %v2936
    %2969 = vst [vmem:[#allocation3 + $0x3e0] sm:$0xff] %v2937
    %2970 = vst [vmem:[#allocation3 + $0x428] sm:$0xff] %v2938
    %2971 = vst [vmem:[#allocation3 + $0x470] sm:$0xff] %v2939
    %2972 = vst [vmem:[#allocation3 + $0x4b8] sm:$0xff] %v2940
    %2973 = vst [vmem:[#allocation3 + $0x500] sm:$0xff] %v2941
    %2974 = vst [vmem:[#allocation3 + $0x548] sm:$0xff] %v2942
    %2975 = vst [vmem:[#allocation3 + $0x590] sm:$0xff] %v2943
    %2976 = vst [vmem:[#allocation3 + $0x5d8] sm:$0xff] %v2944
    %2977 = vst [vmem:[#allocation3 + $0x620] sm:$0xff] %v2945
    %2978 = vst [vmem:[#allocation3 + $0x668] sm:$0xff] %v2946
    %2979 = vst [vmem:[#allocation3 + $0x6b0] sm:$0xff] %v2947
    %2980 = vst [vmem:[#allocation3 + $0x6f8] sm:$0xff] %v2948
    %2981 = vst [vmem:[#allocation3 + $0x740] sm:$0xff] %v2949
    %2982 = vst [vmem:[#allocation3 + $0x788] sm:$0xff] %v2950
    %2983 = vst [vmem:[#allocation3 + $0x7d0] sm:$0xff] %v2951
    %2984 = vst [vmem:[#allocation3 + $0x818] sm:$0xff] %v2952
    %2985 = vst [vmem:[#allocation3 + $0x860] sm:$0xff] %v2953
    %2986 = vst [vmem:[#allocation3 + $0x8a8] sm:$0xff] %v2954
    %2987 = vst [vmem:[#allocation3 + $0x8f0] sm:$0xff] %v2955
    %v2988 = vld [vmem:[%s2731 + $0x2] sm:$0xff]
    %v2989 = vld [vmem:[%s2731 + $0xa] sm:$0xff]
    %v2990 = vld [vmem:[%s2731 + $0x1a] sm:$0xff]
    %v2991 = vld [vmem:[%s2731 + $0x22] sm:$0xff]
    %v2992 = vld [vmem:[%s2731 + $0x32] sm:$0xff]
    %v2993 = vld [vmem:[%s2731 + $0x3a] sm:$0xff]
    %v2994 = vld [vmem:[%s2731 + $0x4a] sm:$0xff]
    %v2995 = vld [vmem:[%s2731 + $0x52] sm:$0xff]
    %v2996 = vld [vmem:[%s2731 + $0x62] sm:$0xff]
    %v2997 = vld [vmem:[%s2731 + $0x6a] sm:$0xff]
    %v2998 = vld [vmem:[%s2731 + $0x7a] sm:$0xff]
    %v2999 = vld [vmem:[%s2731 + $0x82] sm:$0xff]
    %v3000 = vld [vmem:[%s2731 + $0x92] sm:$0xff]
    %v3001 = vld [vmem:[%s2731 + $0x9a] sm:$0xff]
    %v3002 = vld [vmem:[%s2731 + $0xaa] sm:$0xff]
    %v3003 = vld [vmem:[%s2731 + $0xb2] sm:$0xff]
    %v3004 = vld [vmem:[%s2731 + $0xc2] sm:$0xff]
    %v3005 = vld [vmem:[%s2731 + $0xca] sm:$0xff]
    %v3006 = vld [vmem:[%s2731 + $0xda] sm:$0xff]
    %v3007 = vld [vmem:[%s2731 + $0xe2] sm:$0xff]
    %v3008 = vld [vmem:[%s2731 + $0xf2] sm:$0xff]
    %v3009 = vld [vmem:[%s2731 + $0xfa] sm:$0xff]
    %v3010 = vld [vmem:[%s2731 + $0x10a] sm:$0xff]
    %v3011 = vld [vmem:[%s2731 + $0x112] sm:$0xff]
    %v3012 = vld [vmem:[%s2731 + $0x122] sm:$0xff]
    %v3013 = vld [vmem:[%s2731 + $0x12a] sm:$0xff]
    %v3014 = vld [vmem:[%s2731 + $0x13a] sm:$0xff]
    %v3015 = vld [vmem:[%s2731 + $0x142] sm:$0xff]
    %v3016 = vld [vmem:[%s2731 + $0x152] sm:$0xff]
    %v3017 = vld [vmem:[%s2731 + $0x15a] sm:$0xff]
    %v3018 = vld [vmem:[%s2731 + $0x16a] sm:$0xff]
    %v3019 = vld [vmem:[%s2731 + $0x172] sm:$0xff]
    %v3020 = vld [vmem:[%s2731 + $0x1b2] sm:$0xff]
    %v3021 = vld [vmem:[%s2731 + $0x1ba] sm:$0xff]
    %v3022 = vld [vmem:[%s2731 + $0x1ca] sm:$0xff]
    %v3023 = vld [vmem:[%s2731 + $0x1d2] sm:$0xff]
    %v3024 = vld [vmem:[%s2731 + $0x1e2] sm:$0xff]
    %v3025 = vld [vmem:[%s2731 + $0x1ea] sm:$0xff]
    %v3026 = vld [vmem:[%s2731 + $0x1fa] sm:$0xff]
    %v3027 = vld [vmem:[%s2731 + $0x202] sm:$0xff]
    %v3028 = vld [vmem:[%s2731 + $0x212] sm:$0xff]
    %v3029 = vld [vmem:[%s2731 + $0x21a] sm:$0xff]
    %v3030 = vld [vmem:[%s2731 + $0x22a] sm:$0xff]
    %v3031 = vld [vmem:[%s2731 + $0x232] sm:$0xff]
    %v3032 = vld [vmem:[%s2731 + $0x242] sm:$0xff]
    %v3033 = vld [vmem:[%s2731 + $0x24a] sm:$0xff]
    %v3034 = vld [vmem:[%s2731 + $0x25a] sm:$0xff]
    %v3035 = vld [vmem:[%s2731 + $0x262] sm:$0xff]
    %v3036 = vld [vmem:[%s2731 + $0x272] sm:$0xff]
    %v3037 = vld [vmem:[%s2731 + $0x27a] sm:$0xff]
    %v3038 = vld [vmem:[%s2731 + $0x28a] sm:$0xff]
    %v3039 = vld [vmem:[%s2731 + $0x292] sm:$0xff]
    %v3040 = vld [vmem:[%s2731 + $0x2a2] sm:$0xff]
    %v3041 = vld [vmem:[%s2731 + $0x2aa] sm:$0xff]
    %v3042 = vld [vmem:[%s2731 + $0x2ba] sm:$0xff]
    %v3043 = vld [vmem:[%s2731 + $0x2c2] sm:$0xff]
    %v3044 = vld [vmem:[%s2731 + $0x2d2] sm:$0xff]
    %v3045 = vld [vmem:[%s2731 + $0x2da] sm:$0xff]
    %v3046 = vld [vmem:[%s2731 + $0x2ea] sm:$0xff]
    %v3047 = vld [vmem:[%s2731 + $0x2f2] sm:$0xff]
    %v3048 = vld [vmem:[%s2731 + $0x302] sm:$0xff]
    %v3049 = vld [vmem:[%s2731 + $0x30a] sm:$0xff]
    %v3050 = vld [vmem:[%s2731 + $0x31a] sm:$0xff]
    %v3051 = vld [vmem:[%s2731 + $0x322] sm:$0xff]
    %v3052 = vpack.c.bf16 %v2989, %v2988
    %v3053 = vpack.c.bf16 %v2991, %v2990
    %v3054 = vpack.c.bf16 %v2993, %v2992
    %v3055 = vpack.c.bf16 %v2995, %v2994
    %v3056 = vpack.c.bf16 %v2997, %v2996
    %v3057 = vpack.c.bf16 %v2999, %v2998
    %v3058 = vpack.c.bf16 %v3001, %v3000
    %v3059 = vpack.c.bf16 %v3003, %v3002
    %v3060 = vpack.c.bf16 %v3005, %v3004
    %v3061 = vpack.c.bf16 %v3007, %v3006
    %v3062 = vpack.c.bf16 %v3009, %v3008
    %v3063 = vpack.c.bf16 %v3011, %v3010
    %v3064 = vpack.c.bf16 %v3013, %v3012
    %v3065 = vpack.c.bf16 %v3015, %v3014
    %v3066 = vpack.c.bf16 %v3017, %v3016
    %v3067 = vpack.c.bf16 %v3019, %v3018
    %v3068 = vpack.c.bf16 %v3021, %v3020
    %v3069 = vpack.c.bf16 %v3023, %v3022
    %v3070 = vpack.c.bf16 %v3025, %v3024
    %v3071 = vpack.c.bf16 %v3027, %v3026
    %v3072 = vpack.c.bf16 %v3029, %v3028
    %v3073 = vpack.c.bf16 %v3031, %v3030
    %v3074 = vpack.c.bf16 %v3033, %v3032
    %v3075 = vpack.c.bf16 %v3035, %v3034
    %v3076 = vpack.c.bf16 %v3037, %v3036
    %v3077 = vpack.c.bf16 %v3039, %v3038
    %v3078 = vpack.c.bf16 %v3041, %v3040
    %v3079 = vpack.c.bf16 %v3043, %v3042
    %v3080 = vpack.c.bf16 %v3045, %v3044
    %v3081 = vpack.c.bf16 %v3047, %v3046
    %v3082 = vpack.c.bf16 %v3049, %v3048
    %v3083 = vpack.c.bf16 %v3051, %v3050
    %3084 = vst [vmem:[#allocation3 + $0x40] sm:$0xff] %v3052
    %3085 = vst [vmem:[#allocation3 + $0x88] sm:$0xff] %v3053
    %3086 = vst [vmem:[#allocation3 + $0xd0] sm:$0xff] %v3054
    %3087 = vst [vmem:[#allocation3 + $0x118] sm:$0xff] %v3055
    %3088 = vst [vmem:[#allocation3 + $0x160] sm:$0xff] %v3056
    %3089 = vst [vmem:[#allocation3 + $0x1a8] sm:$0xff] %v3057
    %3090 = vst [vmem:[#allocation3 + $0x1f0] sm:$0xff] %v3058
    %3091 = vst [vmem:[#allocation3 + $0x238] sm:$0xff] %v3059
    %3092 = vst [vmem:[#allocation3 + $0x280] sm:$0xff] %v3060
    %3093 = vst [vmem:[#allocation3 + $0x2c8] sm:$0xff] %v3061
    %3094 = vst [vmem:[#allocation3 + $0x310] sm:$0xff] %v3062
    %3095 = vst [vmem:[#allocation3 + $0x358] sm:$0xff] %v3063
    %3096 = vst [vmem:[#allocation3 + $0x3a0] sm:$0xff] %v3064
    %3097 = vst [vmem:[#allocation3 + $0x3e8] sm:$0xff] %v3065
    %3098 = vst [vmem:[#allocation3 + $0x430] sm:$0xff] %v3066
    %3099 = vst [vmem:[#allocation3 + $0x478] sm:$0xff] %v3067
    %3100 = vst [vmem:[#allocation3 + $0x4c0] sm:$0xff] %v3068
    %3101 = vst [vmem:[#allocation3 + $0x508] sm:$0xff] %v3069
    %3102 = vst [vmem:[#allocation3 + $0x550] sm:$0xff] %v3070
    %3103 = vst [vmem:[#allocation3 + $0x598] sm:$0xff] %v3071
    %3104 = vst [vmem:[#allocation3 + $0x5e0] sm:$0xff] %v3072
    %3105 = vst [vmem:[#allocation3 + $0x628] sm:$0xff] %v3073
    %3106 = vst [vmem:[#allocation3 + $0x670] sm:$0xff] %v3074
    %3107 = vst [vmem:[#allocation3 + $0x6b8] sm:$0xff] %v3075
    %3108 = vst [vmem:[#allocation3 + $0x700] sm:$0xff] %v3076
    %3109 = vst [vmem:[#allocation3 + $0x748] sm:$0xff] %v3077
    %3110 = vst [vmem:[#allocation3 + $0x790] sm:$0xff] %v3078
    %3111 = vst [vmem:[#allocation3 + $0x7d8] sm:$0xff] %v3079
    %3112 = vst [vmem:[#allocation3 + $0x820] sm:$0xff] %v3080
    %3113 = vst [vmem:[#allocation3 + $0x868] sm:$0xff] %v3081
    %3114 = vst [vmem:[#allocation3 + $0x8b0] sm:$0xff] %v3082
    %3115 = vst [vmem:[#allocation3 + $0x8f8] sm:$0xff] %v3083
    %v3116 = vld [vmem:[#allocation3] sm:$0xff]
    %v3117 = vld [vmem:[#allocation3 + $0x8] sm:$0xff]
    %v3118 = vld [vmem:[#allocation3 + $0x10] sm:$0xff]
    %v3119 = vld [vmem:[#allocation3 + $0x18] sm:$0xff]
    %v3120 = vld [vmem:[#allocation3 + $0x20] sm:$0xff]
    %v3121 = vld [vmem:[#allocation3 + $0x28] sm:$0xff]
    %v3122 = vld [vmem:[#allocation3 + $0x30] sm:$0xff]
    %v3123 = vld [vmem:[#allocation3 + $0x38] sm:$0xff]
    %v3124 = vld [vmem:[#allocation3 + $0x40] sm:$0xff]
    %v3125 = vld [vmem:[#allocation3 + $0x48] sm:$0xff]
    %v3126 = vld [vmem:[#allocation3 + $0x50] sm:$0xff]
    %v3127 = vld [vmem:[#allocation3 + $0x58] sm:$0xff]
    %v3128 = vld [vmem:[#allocation3 + $0x60] sm:$0xff]
    %v3129 = vld [vmem:[#allocation3 + $0x68] sm:$0xff]
    %v3130 = vld [vmem:[#allocation3 + $0x70] sm:$0xff]
    %v3131 = vld [vmem:[#allocation3 + $0x78] sm:$0xff]
    %v3132 = vld [vmem:[#allocation3 + $0x80] sm:$0xff]
    %v3133 = vld [vmem:[#allocation3 + $0x88] sm:$0xff]
    %v3134 = vld [vmem:[#allocation3 + $0x90] sm:$0xff]
    %v3135 = vld [vmem:[#allocation3 + $0x98] sm:$0xff]
    %v3136 = vld [vmem:[#allocation3 + $0xa0] sm:$0xff]
    %v3137 = vld [vmem:[#allocation3 + $0xa8] sm:$0xff]
    %v3138 = vld [vmem:[#allocation3 + $0xb0] sm:$0xff]
    %v3139 = vld [vmem:[#allocation3 + $0xb8] sm:$0xff]
    %v3140 = vld [vmem:[#allocation3 + $0xc0] sm:$0xff]
    %v3141 = vld [vmem:[#allocation3 + $0xc8] sm:$0xff]
    %v3142 = vld [vmem:[#allocation3 + $0xd0] sm:$0xff]
    %v3143 = vld [vmem:[#allocation3 + $0xd8] sm:$0xff]
    %v3144 = vld [vmem:[#allocation3 + $0xe0] sm:$0xff]
    %v3145 = vld [vmem:[#allocation3 + $0xe8] sm:$0xff]
    %v3146 = vld [vmem:[#allocation3 + $0xf0] sm:$0xff]
    %v3147 = vld [vmem:[#allocation3 + $0xf8] sm:$0xff]
    %v3148 = vld [vmem:[#allocation3 + $0x100] sm:$0xff]
    %v3149 = vld [vmem:[#allocation3 + $0x108] sm:$0xff]
    %v3150 = vld [vmem:[#allocation3 + $0x110] sm:$0xff]
    %v3151 = vld [vmem:[#allocation3 + $0x118] sm:$0xff]
    %v3152 = vld [vmem:[#allocation3 + $0x120] sm:$0xff]
    %v3153 = vld [vmem:[#allocation3 + $0x128] sm:$0xff]
    %v3154 = vld [vmem:[#allocation3 + $0x130] sm:$0xff]
    %v3155 = vld [vmem:[#allocation3 + $0x138] sm:$0xff]
    %v3156 = vld [vmem:[#allocation3 + $0x140] sm:$0xff]
    %v3157 = vld [vmem:[#allocation3 + $0x148] sm:$0xff]
    %v3158 = vld [vmem:[#allocation3 + $0x150] sm:$0xff]
    %v3159 = vld [vmem:[#allocation3 + $0x158] sm:$0xff]
    %v3160 = vld [vmem:[#allocation3 + $0x160] sm:$0xff]
    %v3161 = vld [vmem:[#allocation3 + $0x168] sm:$0xff]
    %v3162 = vld [vmem:[#allocation3 + $0x170] sm:$0xff]
    %v3163 = vld [vmem:[#allocation3 + $0x178] sm:$0xff]
    %v3164 = vld [vmem:[#allocation3 + $0x180] sm:$0xff]
    %v3165 = vld [vmem:[#allocation3 + $0x188] sm:$0xff]
    %v3166 = vld [vmem:[#allocation3 + $0x190] sm:$0xff]
    %v3167 = vld [vmem:[#allocation3 + $0x198] sm:$0xff]
    %v3168 = vld [vmem:[#allocation3 + $0x1a0] sm:$0xff]
    %v3169 = vld [vmem:[#allocation3 + $0x1a8] sm:$0xff]
    %v3170 = vld [vmem:[#allocation3 + $0x1b0] sm:$0xff]
    %v3171 = vld [vmem:[#allocation3 + $0x1b8] sm:$0xff]
    %v3172 = vld [vmem:[#allocation3 + $0x1c0] sm:$0xff]
    %v3173 = vld [vmem:[#allocation3 + $0x1c8] sm:$0xff]
    %v3174 = vld [vmem:[#allocation3 + $0x1d0] sm:$0xff]
    %v3175 = vld [vmem:[#allocation3 + $0x1d8] sm:$0xff]
    %v3176 = vld [vmem:[#allocation3 + $0x1e0] sm:$0xff]
    %v3177 = vld [vmem:[#allocation3 + $0x1e8] sm:$0xff]
    %v3178 = vld [vmem:[#allocation3 + $0x1f0] sm:$0xff]
    %v3179 = vld [vmem:[#allocation3 + $0x1f8] sm:$0xff]
    %v3180 = vld [vmem:[#allocation3 + $0x200] sm:$0xff]
    %v3181 = vld [vmem:[#allocation3 + $0x208] sm:$0xff]
    %v3182 = vld [vmem:[#allocation3 + $0x210] sm:$0xff]
    %v3183 = vld [vmem:[#allocation3 + $0x218] sm:$0xff]
    %v3184 = vld [vmem:[#allocation3 + $0x220] sm:$0xff]
    %v3185 = vld [vmem:[#allocation3 + $0x228] sm:$0xff]
    %v3186 = vld [vmem:[#allocation3 + $0x230] sm:$0xff]
    %v3187 = vld [vmem:[#allocation3 + $0x238] sm:$0xff]
    %v3188 = vld [vmem:[#allocation3 + $0x240] sm:$0xff]
    %v3189 = vld [vmem:[#allocation3 + $0x248] sm:$0xff]
    %v3190 = vld [vmem:[#allocation3 + $0x250] sm:$0xff]
    %v3191 = vld [vmem:[#allocation3 + $0x258] sm:$0xff]
    %v3192 = vld [vmem:[#allocation3 + $0x260] sm:$0xff]
    %v3193 = vld [vmem:[#allocation3 + $0x268] sm:$0xff]
    %v3194 = vld [vmem:[#allocation3 + $0x270] sm:$0xff]
    %v3195 = vld [vmem:[#allocation3 + $0x278] sm:$0xff]
    %v3196 = vld [vmem:[#allocation3 + $0x280] sm:$0xff]
    %v3197 = vld [vmem:[#allocation3 + $0x288] sm:$0xff]
    %v3198 = vld [vmem:[#allocation3 + $0x290] sm:$0xff]
    %v3199 = vld [vmem:[#allocation3 + $0x298] sm:$0xff]
    %v3200 = vld [vmem:[#allocation3 + $0x2a0] sm:$0xff]
    %v3201 = vld [vmem:[#allocation3 + $0x2a8] sm:$0xff]
    %v3202 = vld [vmem:[#allocation3 + $0x2b0] sm:$0xff]
    %v3203 = vld [vmem:[#allocation3 + $0x2b8] sm:$0xff]
    %v3204 = vld [vmem:[#allocation3 + $0x2c0] sm:$0xff]
    %v3205 = vld [vmem:[#allocation3 + $0x2c8] sm:$0xff]
    %v3206 = vld [vmem:[#allocation3 + $0x2d0] sm:$0xff]
    %v3207 = vld [vmem:[#allocation3 + $0x2d8] sm:$0xff]
    %v3208 = vld [vmem:[#allocation3 + $0x2e0] sm:$0xff]
    %v3209 = vld [vmem:[#allocation3 + $0x2e8] sm:$0xff]
    %v3210 = vld [vmem:[#allocation3 + $0x2f0] sm:$0xff]
    %v3211 = vld [vmem:[#allocation3 + $0x2f8] sm:$0xff]
    %v3212 = vld [vmem:[#allocation3 + $0x300] sm:$0xff]
    %v3213 = vld [vmem:[#allocation3 + $0x308] sm:$0xff]
    %v3214 = vld [vmem:[#allocation3 + $0x310] sm:$0xff]
    %v3215 = vld [vmem:[#allocation3 + $0x318] sm:$0xff]
    %v3216 = vld [vmem:[#allocation3 + $0x320] sm:$0xff]
    %v3217 = vld [vmem:[#allocation3 + $0x328] sm:$0xff]
    %v3218 = vld [vmem:[#allocation3 + $0x330] sm:$0xff]
    %v3219 = vld [vmem:[#allocation3 + $0x338] sm:$0xff]
    %v3220 = vld [vmem:[#allocation3 + $0x340] sm:$0xff]
    %v3221 = vld [vmem:[#allocation3 + $0x348] sm:$0xff]
    %v3222 = vld [vmem:[#allocation3 + $0x350] sm:$0xff]
    %v3223 = vld [vmem:[#allocation3 + $0x358] sm:$0xff]
    %v3224 = vld [vmem:[#allocation3 + $0x360] sm:$0xff]
    %v3225 = vld [vmem:[#allocation3 + $0x368] sm:$0xff]
    %v3226 = vld [vmem:[#allocation3 + $0x370] sm:$0xff]
    %v3227 = vld [vmem:[#allocation3 + $0x378] sm:$0xff]
    %v3228 = vld [vmem:[#allocation3 + $0x380] sm:$0xff]
    %v3229 = vld [vmem:[#allocation3 + $0x388] sm:$0xff]
    %v3230 = vld [vmem:[#allocation3 + $0x390] sm:$0xff]
    %v3231 = vld [vmem:[#allocation3 + $0x398] sm:$0xff]
    %v3232 = vld [vmem:[#allocation3 + $0x3a0] sm:$0xff]
    %v3233 = vld [vmem:[#allocation3 + $0x3a8] sm:$0xff]
    %v3234 = vld [vmem:[#allocation3 + $0x3b0] sm:$0xff]
    %v3235 = vld [vmem:[#allocation3 + $0x3b8] sm:$0xff]
    %v3236 = vld [vmem:[#allocation3 + $0x3c0] sm:$0xff]
    %v3237 = vld [vmem:[#allocation3 + $0x3c8] sm:$0xff]
    %v3238 = vld [vmem:[#allocation3 + $0x3d0] sm:$0xff]
    %v3239 = vld [vmem:[#allocation3 + $0x3d8] sm:$0xff]
    %v3240 = vld [vmem:[#allocation3 + $0x3e0] sm:$0xff]
    %v3241 = vld [vmem:[#allocation3 + $0x3e8] sm:$0xff]
    %v3242 = vld [vmem:[#allocation3 + $0x3f0] sm:$0xff]
    %v3243 = vld [vmem:[#allocation3 + $0x3f8] sm:$0xff]
    %v3244 = vld [vmem:[#allocation3 + $0x400] sm:$0xff]
    %v3245 = vld [vmem:[#allocation3 + $0x408] sm:$0xff]
    %v3246 = vld [vmem:[#allocation3 + $0x410] sm:$0xff]
    %v3247 = vld [vmem:[#allocation3 + $0x418] sm:$0xff]
    %v3248 = vld [vmem:[#allocation3 + $0x420] sm:$0xff]
    %v3249 = vld [vmem:[#allocation3 + $0x428] sm:$0xff]
    %v3250 = vld [vmem:[#allocation3 + $0x430] sm:$0xff]
    %v3251 = vld [vmem:[#allocation3 + $0x438] sm:$0xff]
    %v3252 = vld [vmem:[#allocation3 + $0x440] sm:$0xff]
    %v3253 = vld [vmem:[#allocation3 + $0x448] sm:$0xff]
    %v3254 = vld [vmem:[#allocation3 + $0x450] sm:$0xff]
    %v3255 = vld [vmem:[#allocation3 + $0x458] sm:$0xff]
    %v3256 = vld [vmem:[#allocation3 + $0x460] sm:$0xff]
    %v3257 = vld [vmem:[#allocation3 + $0x468] sm:$0xff]
    %v3258 = vld [vmem:[#allocation3 + $0x470] sm:$0xff]
    %v3259 = vld [vmem:[#allocation3 + $0x478] sm:$0xff]
    %v3260 = vld [vmem:[#allocation3 + $0x480] sm:$0xff]
    %v3261 = vld [vmem:[#allocation3 + $0x488] sm:$0xff]
    %v3262 = vld [vmem:[#allocation3 + $0x490] sm:$0xff]
    %v3263 = vld [vmem:[#allocation3 + $0x498] sm:$0xff]
    %v3264 = vld [vmem:[#allocation3 + $0x4a0] sm:$0xff]
    %v3265 = vld [vmem:[#allocation3 + $0x4a8] sm:$0xff]
    %v3266 = vld [vmem:[#allocation3 + $0x4b0] sm:$0xff]
    %v3267 = vld [vmem:[#allocation3 + $0x4b8] sm:$0xff]
    %v3268 = vld [vmem:[#allocation3 + $0x4c0] sm:$0xff]
    %v3269 = vld [vmem:[#allocation3 + $0x4c8] sm:$0xff]
    %v3270 = vld [vmem:[#allocation3 + $0x4d0] sm:$0xff]
    %v3271 = vld [vmem:[#allocation3 + $0x4d8] sm:$0xff]
    %v3272 = vld [vmem:[#allocation3 + $0x4e0] sm:$0xff]
    %v3273 = vld [vmem:[#allocation3 + $0x4e8] sm:$0xff]
    %v3274 = vld [vmem:[#allocation3 + $0x4f0] sm:$0xff]
    %v3275 = vld [vmem:[#allocation3 + $0x4f8] sm:$0xff]
    %v3276 = vld [vmem:[#allocation3 + $0x500] sm:$0xff]
    %v3277 = vld [vmem:[#allocation3 + $0x508] sm:$0xff]
    %v3278 = vld [vmem:[#allocation3 + $0x510] sm:$0xff]
    %v3279 = vld [vmem:[#allocation3 + $0x518] sm:$0xff]
    %v3280 = vld [vmem:[#allocation3 + $0x520] sm:$0xff]
    %v3281 = vld [vmem:[#allocation3 + $0x528] sm:$0xff]
    %v3282 = vld [vmem:[#allocation3 + $0x530] sm:$0xff]
    %v3283 = vld [vmem:[#allocation3 + $0x538] sm:$0xff]
    %v3284 = vld [vmem:[#allocation3 + $0x540] sm:$0xff]
    %v3285 = vld [vmem:[#allocation3 + $0x548] sm:$0xff]
    %v3286 = vld [vmem:[#allocation3 + $0x550] sm:$0xff]
    %v3287 = vld [vmem:[#allocation3 + $0x558] sm:$0xff]
    %v3288 = vld [vmem:[#allocation3 + $0x560] sm:$0xff]
    %v3289 = vld [vmem:[#allocation3 + $0x568] sm:$0xff]
    %v3290 = vld [vmem:[#allocation3 + $0x570] sm:$0xff]
    %v3291 = vld [vmem:[#allocation3 + $0x578] sm:$0xff]
    %v3292 = vld [vmem:[#allocation3 + $0x580] sm:$0xff]
    %v3293 = vld [vmem:[#allocation3 + $0x588] sm:$0xff]
    %v3294 = vld [vmem:[#allocation3 + $0x590] sm:$0xff]
    %v3295 = vld [vmem:[#allocation3 + $0x598] sm:$0xff]
    %v3296 = vld [vmem:[#allocation3 + $0x5a0] sm:$0xff]
    %v3297 = vld [vmem:[#allocation3 + $0x5a8] sm:$0xff]
    %v3298 = vld [vmem:[#allocation3 + $0x5b0] sm:$0xff]
    %v3299 = vld [vmem:[#allocation3 + $0x5b8] sm:$0xff]
    %v3300 = vld [vmem:[#allocation3 + $0x5c0] sm:$0xff]
    %v3301 = vld [vmem:[#allocation3 + $0x5c8] sm:$0xff]
    %v3302 = vld [vmem:[#allocation3 + $0x5d0] sm:$0xff]
    %v3303 = vld [vmem:[#allocation3 + $0x5d8] sm:$0xff]
    %v3304 = vld [vmem:[#allocation3 + $0x5e0] sm:$0xff]
    %v3305 = vld [vmem:[#allocation3 + $0x5e8] sm:$0xff]
    %v3306 = vld [vmem:[#allocation3 + $0x5f0] sm:$0xff]
    %v3307 = vld [vmem:[#allocation3 + $0x5f8] sm:$0xff]
    %v3308 = vld [vmem:[#allocation3 + $0x600] sm:$0xff]
    %v3309 = vld [vmem:[#allocation3 + $0x608] sm:$0xff]
    %v3310 = vld [vmem:[#allocation3 + $0x610] sm:$0xff]
    %v3311 = vld [vmem:[#allocation3 + $0x618] sm:$0xff]
    %v3312 = vld [vmem:[#allocation3 + $0x620] sm:$0xff]
    %v3313 = vld [vmem:[#allocation3 + $0x628] sm:$0xff]
    %v3314 = vld [vmem:[#allocation3 + $0x630] sm:$0xff]
    %v3315 = vld [vmem:[#allocation3 + $0x638] sm:$0xff]
    %v3316 = vld [vmem:[#allocation3 + $0x640] sm:$0xff]
    %v3317 = vld [vmem:[#allocation3 + $0x648] sm:$0xff]
    %v3318 = vld [vmem:[#allocation3 + $0x650] sm:$0xff]
    %v3319 = vld [vmem:[#allocation3 + $0x658] sm:$0xff]
    %v3320 = vld [vmem:[#allocation3 + $0x660] sm:$0xff]
    %v3321 = vld [vmem:[#allocation3 + $0x668] sm:$0xff]
    %v3322 = vld [vmem:[#allocation3 + $0x670] sm:$0xff]
    %v3323 = vld [vmem:[#allocation3 + $0x678] sm:$0xff]
    %v3324 = vld [vmem:[#allocation3 + $0x680] sm:$0xff]
    %v3325 = vld [vmem:[#allocation3 + $0x688] sm:$0xff]
    %v3326 = vld [vmem:[#allocation3 + $0x690] sm:$0xff]
    %v3327 = vld [vmem:[#allocation3 + $0x698] sm:$0xff]
    %v3328 = vld [vmem:[#allocation3 + $0x6a0] sm:$0xff]
    %v3329 = vld [vmem:[#allocation3 + $0x6a8] sm:$0xff]
    %v3330 = vld [vmem:[#allocation3 + $0x6b0] sm:$0xff]
    %v3331 = vld [vmem:[#allocation3 + $0x6b8] sm:$0xff]
    %v3332 = vld [vmem:[#allocation3 + $0x6c0] sm:$0xff]
    %v3333 = vld [vmem:[#allocation3 + $0x6c8] sm:$0xff]
    %v3334 = vld [vmem:[#allocation3 + $0x6d0] sm:$0xff]
    %v3335 = vld [vmem:[#allocation3 + $0x6d8] sm:$0xff]
    %v3336 = vld [vmem:[#allocation3 + $0x6e0] sm:$0xff]
    %v3337 = vld [vmem:[#allocation3 + $0x6e8] sm:$0xff]
    %v3338 = vld [vmem:[#allocation3 + $0x6f0] sm:$0xff]
    %v3339 = vld [vmem:[#allocation3 + $0x6f8] sm:$0xff]
    %v3340 = vld [vmem:[#allocation3 + $0x700] sm:$0xff]
    %v3341 = vld [vmem:[#allocation3 + $0x708] sm:$0xff]
    %v3342 = vld [vmem:[#allocation3 + $0x710] sm:$0xff]
    %v3343 = vld [vmem:[#allocation3 + $0x718] sm:$0xff]
    %v3344 = vld [vmem:[#allocation3 + $0x720] sm:$0xff]
    %v3345 = vld [vmem:[#allocation3 + $0x728] sm:$0xff]
    %v3346 = vld [vmem:[#allocation3 + $0x730] sm:$0xff]
    %v3347 = vld [vmem:[#allocation3 + $0x738] sm:$0xff]
    %v3348 = vld [vmem:[#allocation3 + $0x740] sm:$0xff]
    %v3349 = vld [vmem:[#allocation3 + $0x748] sm:$0xff]
    %v3350 = vld [vmem:[#allocation3 + $0x750] sm:$0xff]
    %v3351 = vld [vmem:[#allocation3 + $0x758] sm:$0xff]
    %v3352 = vld [vmem:[#allocation3 + $0x760] sm:$0xff]
    %v3353 = vld [vmem:[#allocation3 + $0x768] sm:$0xff]
    %v3354 = vld [vmem:[#allocation3 + $0x770] sm:$0xff]
    %v3355 = vld [vmem:[#allocation3 + $0x778] sm:$0xff]
    %v3356 = vld [vmem:[#allocation3 + $0x780] sm:$0xff]
    %v3357 = vld [vmem:[#allocation3 + $0x788] sm:$0xff]
    %v3358 = vld [vmem:[#allocation3 + $0x790] sm:$0xff]
    %v3359 = vld [vmem:[#allocation3 + $0x798] sm:$0xff]
    %v3360 = vld [vmem:[#allocation3 + $0x7a0] sm:$0xff]
    %v3361 = vld [vmem:[#allocation3 + $0x7a8] sm:$0xff]
    %v3362 = vld [vmem:[#allocation3 + $0x7b0] sm:$0xff]
    %v3363 = vld [vmem:[#allocation3 + $0x7b8] sm:$0xff]
    %v3364 = vld [vmem:[#allocation3 + $0x7c0] sm:$0xff]
    %v3365 = vld [vmem:[#allocation3 + $0x7c8] sm:$0xff]
    %v3366 = vld [vmem:[#allocation3 + $0x7d0] sm:$0xff]
    %v3367 = vld [vmem:[#allocation3 + $0x7d8] sm:$0xff]
    %v3368 = vld [vmem:[#allocation3 + $0x7e0] sm:$0xff]
    %v3369 = vld [vmem:[#allocation3 + $0x7e8] sm:$0xff]
    %v3370 = vld [vmem:[#allocation3 + $0x7f0] sm:$0xff]
    %v3371 = vld [vmem:[#allocation3 + $0x7f8] sm:$0xff]
    %v3372 = vld [vmem:[#allocation3 + $0x800] sm:$0xff]
    %v3373 = vld [vmem:[#allocation3 + $0x808] sm:$0xff]
    %v3374 = vld [vmem:[#allocation3 + $0x810] sm:$0xff]
    %v3375 = vld [vmem:[#allocation3 + $0x818] sm:$0xff]
    %v3376 = vld [vmem:[#allocation3 + $0x820] sm:$0xff]
    %v3377 = vld [vmem:[#allocation3 + $0x828] sm:$0xff]
    %v3378 = vld [vmem:[#allocation3 + $0x830] sm:$0xff]
    %v3379 = vld [vmem:[#allocation3 + $0x838] sm:$0xff]
    %v3380 = vld [vmem:[#allocation3 + $0x840] sm:$0xff]
    %v3381 = vld [vmem:[#allocation3 + $0x848] sm:$0xff]
    %v3382 = vld [vmem:[#allocation3 + $0x850] sm:$0xff]
    %v3383 = vld [vmem:[#allocation3 + $0x858] sm:$0xff]
    %v3384 = vld [vmem:[#allocation3 + $0x860] sm:$0xff]
    %v3385 = vld [vmem:[#allocation3 + $0x868] sm:$0xff]
    %v3386 = vld [vmem:[#allocation3 + $0x870] sm:$0xff]
    %v3387 = vld [vmem:[#allocation3 + $0x878] sm:$0xff]
    %v3388 = vld [vmem:[#allocation3 + $0x880] sm:$0xff]
    %v3389 = vld [vmem:[#allocation3 + $0x888] sm:$0xff]
    %v3390 = vld [vmem:[#allocation3 + $0x890] sm:$0xff]
    %v3391 = vld [vmem:[#allocation3 + $0x898] sm:$0xff]
    %v3392 = vld [vmem:[#allocation3 + $0x8a0] sm:$0xff]
    %v3393 = vld [vmem:[#allocation3 + $0x8a8] sm:$0xff]
    %v3394 = vld [vmem:[#allocation3 + $0x8b0] sm:$0xff]
    %v3395 = vld [vmem:[#allocation3 + $0x8b8] sm:$0xff]
    %v3396 = vld [vmem:[#allocation3 + $0x8c0] sm:$0xff]
    %v3397 = vld [vmem:[#allocation3 + $0x8c8] sm:$0xff]
    %v3398 = vld [vmem:[#allocation3 + $0x8d0] sm:$0xff]
    %v3399 = vld [vmem:[#allocation3 + $0x8d8] sm:$0xff]
    %v3400 = vld [vmem:[#allocation3 + $0x8e0] sm:$0xff]
    %v3401 = vld [vmem:[#allocation3 + $0x8e8] sm:$0xff]
    %v3402 = vld [vmem:[#allocation3 + $0x8f0] sm:$0xff]
    %v3403 = vld [vmem:[#allocation3 + $0x8f8] sm:$0xff]
    %v3404 = vld [vmem:[#allocation9] sm:$0xf]
    %v3405 = vld [vmem:[#allocation9 + $0x4] sm:$0xf]
    %v3406 = vld [vmem:[#allocation9 + $0x8] sm:$0xf]
    %v3407 = vld [vmem:[#allocation9 + $0xc] sm:$0xf]
    %v3408 = vld [vmem:[#allocation9 + $0x10] sm:$0xf]
    %v3409 = vld [vmem:[#allocation9 + $0x14] sm:$0xf]
    %v3410 = vld [vmem:[#allocation9 + $0x18] sm:$0xf]
    %v3411 = vld [vmem:[#allocation9 + $0x1c] sm:$0xf]
    %v3412 = vld [vmem:[#allocation9 + $0x20] sm:$0xf]
    %v3413 = vld [vmem:[#allocation9 + $0x24] sm:$0xf]
    %v3414 = vld [vmem:[#allocation9 + $0x28] sm:$0xf]
    %v3415 = vld [vmem:[#allocation9 + $0x2c] sm:$0xf]
    %v3416 = vld [vmem:[#allocation9 + $0x30] sm:$0xf]
    %v3417 = vld [vmem:[#allocation9 + $0x34] sm:$0xf]
    %v3418 = vld [vmem:[#allocation9 + $0x38] sm:$0xf]
    %v3419 = vld [vmem:[#allocation9 + $0x3c] sm:$0xf]
    %v3420 = vld [vmem:[#allocation9 + $0x40] sm:$0xf]
    %v3421 = vld [vmem:[#allocation9 + $0x44] sm:$0xf]
    %v3422 = vld [vmem:[#allocation9 + $0x48] sm:$0xf]
    %v3423 = vld [vmem:[#allocation9 + $0x4c] sm:$0xf]
    %v3424 = vld [vmem:[#allocation9 + $0x50] sm:$0xf]
    %v3425 = vld [vmem:[#allocation9 + $0x54] sm:$0xf]
    %v3426 = vld [vmem:[#allocation9 + $0x58] sm:$0xf]
    %v3427 = vld [vmem:[#allocation9 + $0x5c] sm:$0xf]
    %v3428 = vld [vmem:[#allocation9 + $0x60] sm:$0xf]
    %v3429 = vld [vmem:[#allocation9 + $0x64] sm:$0xf]
    %v3430 = vld [vmem:[#allocation9 + $0x68] sm:$0xf]
    %v3431 = vld [vmem:[#allocation9 + $0x6c] sm:$0xf]
    %v3432 = vld [vmem:[#allocation9 + $0x70] sm:$0xf]
    %v3433 = vld [vmem:[#allocation9 + $0x74] sm:$0xf]
    %v3434 = vld [vmem:[#allocation9 + $0x78] sm:$0xf]
    %v3435 = vld [vmem:[#allocation9 + $0x7c] sm:$0xf]
    %v3436 = vld [vmem:[#allocation9 + $0x80] sm:$0xf]
    %v3437 = vld [vmem:[#allocation9 + $0x84] sm:$0xf]
    %v3438 = vld [vmem:[#allocation9 + $0x88] sm:$0xf]
    %v3439 = vld [vmem:[#allocation9 + $0x8c] sm:$0xf]
    %v3440 = vld [vmem:[#allocation9 + $0x90] sm:$0xf]
    %v3441 = vld [vmem:[#allocation9 + $0x94] sm:$0xf]
    %v3442 = vld [vmem:[#allocation9 + $0x98] sm:$0xf]
    %v3443 = vld [vmem:[#allocation9 + $0x9c] sm:$0xf]
    %v3444 = vld [vmem:[#allocation9 + $0xa0] sm:$0xf]
    %v3445 = vld [vmem:[#allocation9 + $0xa4] sm:$0xf]
    %v3446 = vld [vmem:[#allocation9 + $0xa8] sm:$0xf]
    %v3447 = vld [vmem:[#allocation9 + $0xac] sm:$0xf]
    %v3448 = vld [vmem:[#allocation9 + $0xb0] sm:$0xf]
    %v3449 = vld [vmem:[#allocation9 + $0xb4] sm:$0xf]
    %v3450 = vld [vmem:[#allocation9 + $0xb8] sm:$0xf]
    %v3451 = vld [vmem:[#allocation9 + $0xbc] sm:$0xf]
    %v3452 = vld [vmem:[#allocation9 + $0xc0] sm:$0xf]
    %v3453 = vld [vmem:[#allocation9 + $0xc4] sm:$0xf]
    %v3454 = vld [vmem:[#allocation9 + $0xc8] sm:$0xf]
    %v3455 = vld [vmem:[#allocation9 + $0xcc] sm:$0xf]
    %v3456 = vld [vmem:[#allocation9 + $0xd0] sm:$0xf]
    %v3457 = vld [vmem:[#allocation9 + $0xd4] sm:$0xf]
    %v3458 = vld [vmem:[#allocation9 + $0xd8] sm:$0xf]
    %v3459 = vld [vmem:[#allocation9 + $0xdc] sm:$0xf]
    %v3460 = vld [vmem:[#allocation9 + $0xe0] sm:$0xf]
    %v3461 = vld [vmem:[#allocation9 + $0xe4] sm:$0xf]
    %v3462 = vld [vmem:[#allocation9 + $0xe8] sm:$0xf]
    %v3463 = vld [vmem:[#allocation9 + $0xec] sm:$0xf]
    %v3464 = vld [vmem:[#allocation9 + $0xf0] sm:$0xf]
    %v3465 = vld [vmem:[#allocation9 + $0xf4] sm:$0xf]
    %v3466 = vld [vmem:[#allocation9 + $0xf8] sm:$0xf]
    %v3467 = vld [vmem:[#allocation9 + $0xfc] sm:$0xf]
    %v3468 = vld [vmem:[#allocation9 + $0x100] sm:$0xf]
    %v3469 = vld [vmem:[#allocation9 + $0x104] sm:$0xf]
    %v3470 = vld [vmem:[#allocation9 + $0x108] sm:$0xf]
    %v3471 = vld [vmem:[#allocation9 + $0x10c] sm:$0xf]
    %v3472 = vld [vmem:[#allocation9 + $0x110] sm:$0xf]
    %v3473 = vld [vmem:[#allocation9 + $0x114] sm:$0xf]
    %v3474 = vld [vmem:[#allocation9 + $0x118] sm:$0xf]
    %v3475 = vld [vmem:[#allocation9 + $0x11c] sm:$0xf]
    %v3476 = vld [vmem:[#allocation9 + $0x120] sm:$0xf]
    %v3477 = vld [vmem:[#allocation9 + $0x124] sm:$0xf]
    %v3478 = vld [vmem:[#allocation9 + $0x128] sm:$0xf]
    %v3479 = vld [vmem:[#allocation9 + $0x12c] sm:$0xf]
    %v3480 = vld [vmem:[#allocation9 + $0x130] sm:$0xf]
    %v3481 = vld [vmem:[#allocation9 + $0x134] sm:$0xf]
    %v3482 = vld [vmem:[#allocation9 + $0x138] sm:$0xf]
    %v3483 = vld [vmem:[#allocation9 + $0x13c] sm:$0xf]
    %v3484 = vld [vmem:[#allocation9 + $0x140] sm:$0xf]
    %v3485 = vld [vmem:[#allocation9 + $0x144] sm:$0xf]
    %v3486 = vld [vmem:[#allocation9 + $0x148] sm:$0xf]
    %v3487 = vld [vmem:[#allocation9 + $0x14c] sm:$0xf]
    %v3488 = vld [vmem:[#allocation9 + $0x150] sm:$0xf]
    %v3489 = vld [vmem:[#allocation9 + $0x154] sm:$0xf]
    %v3490 = vld [vmem:[#allocation9 + $0x158] sm:$0xf]
    %v3491 = vld [vmem:[#allocation9 + $0x15c] sm:$0xf]
    %v3492 = vld [vmem:[#allocation9 + $0x160] sm:$0xf]
    %v3493 = vld [vmem:[#allocation9 + $0x164] sm:$0xf]
    %v3494 = vld [vmem:[#allocation9 + $0x168] sm:$0xf]
    %v3495 = vld [vmem:[#allocation9 + $0x16c] sm:$0xf]
    %v3496 = vld [vmem:[#allocation9 + $0x170] sm:$0xf]
    %v3497 = vld [vmem:[#allocation9 + $0x174] sm:$0xf]
    %v3498 = vld [vmem:[#allocation9 + $0x178] sm:$0xf]
    %v3499 = vld [vmem:[#allocation9 + $0x17c] sm:$0xf]
    %v3500 = vld [vmem:[#allocation9 + $0x180] sm:$0xf]
    %v3501 = vld [vmem:[#allocation9 + $0x184] sm:$0xf]
    %v3502 = vld [vmem:[#allocation9 + $0x188] sm:$0xf]
    %v3503 = vld [vmem:[#allocation9 + $0x18c] sm:$0xf]
    %v3504 = vld [vmem:[#allocation9 + $0x190] sm:$0xf]
    %v3505 = vld [vmem:[#allocation9 + $0x194] sm:$0xf]
    %v3506 = vld [vmem:[#allocation9 + $0x198] sm:$0xf]
    %v3507 = vld [vmem:[#allocation9 + $0x19c] sm:$0xf]
    %v3508 = vld [vmem:[#allocation9 + $0x1a0] sm:$0xf]
    %v3509 = vld [vmem:[#allocation9 + $0x1a4] sm:$0xf]
    %v3510 = vld [vmem:[#allocation9 + $0x1a8] sm:$0xf]
    %v3511 = vld [vmem:[#allocation9 + $0x1ac] sm:$0xf]
    %v3512 = vld [vmem:[#allocation9 + $0x1b0] sm:$0xf]
    %v3513 = vld [vmem:[#allocation9 + $0x1b4] sm:$0xf]
    %v3514 = vld [vmem:[#allocation9 + $0x1b8] sm:$0xf]
    %v3515 = vld [vmem:[#allocation9 + $0x1bc] sm:$0xf]
    %v3516 = vld [vmem:[#allocation9 + $0x1c0] sm:$0xf]
    %v3517 = vld [vmem:[#allocation9 + $0x1c4] sm:$0xf]
    %v3518 = vld [vmem:[#allocation9 + $0x1c8] sm:$0xf]
    %v3519 = vld [vmem:[#allocation9 + $0x1cc] sm:$0xf]
    %v3520 = vld [vmem:[#allocation9 + $0x1d0] sm:$0xf]
    %v3521 = vld [vmem:[#allocation9 + $0x1d4] sm:$0xf]
    %v3522 = vld [vmem:[#allocation9 + $0x1d8] sm:$0xf]
    %v3523 = vld [vmem:[#allocation9 + $0x1dc] sm:$0xf]
    %v3524 = vld [vmem:[#allocation9 + $0x1e0] sm:$0xf]
    %v3525 = vld [vmem:[#allocation9 + $0x1e4] sm:$0xf]
    %v3526 = vld [vmem:[#allocation9 + $0x1e8] sm:$0xf]
    %v3527 = vld [vmem:[#allocation9 + $0x1ec] sm:$0xf]
    %v3528 = vld [vmem:[#allocation9 + $0x1f0] sm:$0xf]
    %v3529 = vld [vmem:[#allocation9 + $0x1f4] sm:$0xf]
    %v3530 = vld [vmem:[#allocation9 + $0x1f8] sm:$0xf]
    %v3531 = vld [vmem:[#allocation9 + $0x1fc] sm:$0xf]
    %v3532 = vld [vmem:[#allocation9 + $0x200] sm:$0xf]
    %v3533 = vld [vmem:[#allocation9 + $0x204] sm:$0xf]
    %v3534 = vld [vmem:[#allocation9 + $0x208] sm:$0xf]
    %v3535 = vld [vmem:[#allocation9 + $0x20c] sm:$0xf]
    %v3536 = vld [vmem:[#allocation9 + $0x210] sm:$0xf]
    %v3537 = vld [vmem:[#allocation9 + $0x214] sm:$0xf]
    %v3538 = vld [vmem:[#allocation9 + $0x218] sm:$0xf]
    %v3539 = vld [vmem:[#allocation9 + $0x21c] sm:$0xf]
    %v3540 = vld [vmem:[#allocation9 + $0x220] sm:$0xf]
    %v3541 = vld [vmem:[#allocation9 + $0x224] sm:$0xf]
    %v3542 = vld [vmem:[#allocation9 + $0x228] sm:$0xf]
    %v3543 = vld [vmem:[#allocation9 + $0x22c] sm:$0xf]
    %v3544 = vld [vmem:[#allocation9 + $0x230] sm:$0xf]
    %v3545 = vld [vmem:[#allocation9 + $0x234] sm:$0xf]
    %v3546 = vld [vmem:[#allocation9 + $0x238] sm:$0xf]
    %v3547 = vld [vmem:[#allocation9 + $0x23c] sm:$0xf]
    %v3692 = vunpack.c.l.b16 %v3404
    %v3693 = vunpack.c.l.b16 %v3405
    %v3694 = vunpack.c.l.b16 %v3406
    %v3695 = vunpack.c.l.b16 %v3407
    %v3696 = vunpack.c.l.b16 %v3408
    %v3697 = vunpack.c.l.b16 %v3409
    %v3698 = vunpack.c.l.b16 %v3410
    %v3699 = vunpack.c.l.b16 %v3411
    %v3700 = vunpack.c.l.b16 %v3412
    %v3701 = vunpack.c.l.b16 %v3413
    %v3702 = vunpack.c.l.b16 %v3414
    %v3703 = vunpack.c.l.b16 %v3415
    %v3704 = vunpack.c.l.b16 %v3416
    %v3705 = vunpack.c.l.b16 %v3417
    %v3706 = vunpack.c.l.b16 %v3418
    %v3707 = vunpack.c.l.b16 %v3419
    %v3708 = vunpack.c.l.b16 %v3420
    %v3709 = vunpack.c.l.b16 %v3421
    %v3710 = vunpack.c.l.b16 %v3422
    %v3711 = vunpack.c.l.b16 %v3423
    %v3712 = vunpack.c.l.b16 %v3424
    %v3713 = vunpack.c.l.b16 %v3425
    %v3714 = vunpack.c.l.b16 %v3426
    %v3715 = vunpack.c.l.b16 %v3427
    %v3716 = vunpack.c.l.b16 %v3428
    %v3717 = vunpack.c.l.b16 %v3429
    %v3718 = vunpack.c.l.b16 %v3430
    %v3719 = vunpack.c.l.b16 %v3431
    %v3720 = vunpack.c.l.b16 %v3432
    %v3721 = vunpack.c.l.b16 %v3433
    %v3722 = vunpack.c.l.b16 %v3434
    %v3723 = vunpack.c.l.b16 %v3435
    %v3724 = vunpack.c.l.b16 %v3436
    %v3725 = vunpack.c.l.b16 %v3437
    %v3726 = vunpack.c.l.b16 %v3438
    %v3727 = vunpack.c.l.b16 %v3439
    %v3728 = vunpack.c.l.b16 %v3440
    %v3729 = vunpack.c.l.b16 %v3441
    %v3730 = vunpack.c.l.b16 %v3442
    %v3731 = vunpack.c.l.b16 %v3443
    %v3732 = vunpack.c.l.b16 %v3444
    %v3733 = vunpack.c.l.b16 %v3445
    %v3734 = vunpack.c.l.b16 %v3446
    %v3735 = vunpack.c.l.b16 %v3447
    %v3736 = vunpack.c.l.b16 %v3448
    %v3737 = vunpack.c.l.b16 %v3449
    %v3738 = vunpack.c.l.b16 %v3450
    %v3739 = vunpack.c.l.b16 %v3451
    %v3740 = vunpack.c.l.b16 %v3452
    %v3741 = vunpack.c.l.b16 %v3453
    %v3742 = vunpack.c.l.b16 %v3454
    %v3743 = vunpack.c.l.b16 %v3455
    %v3744 = vunpack.c.l.b16 %v3456
    %v3745 = vunpack.c.l.b16 %v3457
    %v3746 = vunpack.c.l.b16 %v3458
    %v3747 = vunpack.c.l.b16 %v3459
    %v3748 = vunpack.c.l.b16 %v3460
    %v3749 = vunpack.c.l.b16 %v3461
    %v3750 = vunpack.c.l.b16 %v3462
    %v3751 = vunpack.c.l.b16 %v3463
    %v3752 = vunpack.c.l.b16 %v3464
    %v3753 = vunpack.c.l.b16 %v3465
    %v3754 = vunpack.c.l.b16 %v3466
    %v3755 = vunpack.c.l.b16 %v3467
    %v3756 = vunpack.c.l.b16 %v3468
    %v3757 = vunpack.c.l.b16 %v3469
    %v3758 = vunpack.c.l.b16 %v3470
    %v3759 = vunpack.c.l.b16 %v3471
    %v3760 = vunpack.c.l.b16 %v3472
    %v3761 = vunpack.c.l.b16 %v3473
    %v3762 = vunpack.c.l.b16 %v3474
    %v3763 = vunpack.c.l.b16 %v3475
    %v3764 = vunpack.c.l.b16 %v3476
    %v3765 = vunpack.c.l.b16 %v3477
    %v3766 = vunpack.c.l.b16 %v3478
    %v3767 = vunpack.c.l.b16 %v3479
    %v3768 = vunpack.c.l.b16 %v3480
    %v3769 = vunpack.c.l.b16 %v3481
    %v3770 = vunpack.c.l.b16 %v3482
    %v3771 = vunpack.c.l.b16 %v3483
    %v3772 = vunpack.c.l.b16 %v3484
    %v3773 = vunpack.c.l.b16 %v3485
    %v3774 = vunpack.c.l.b16 %v3486
    %v3775 = vunpack.c.l.b16 %v3487
    %v3776 = vunpack.c.l.b16 %v3488
    %v3777 = vunpack.c.l.b16 %v3489
    %v3778 = vunpack.c.l.b16 %v3490
    %v3779 = vunpack.c.l.b16 %v3491
    %v3780 = vunpack.c.l.b16 %v3492
    %v3781 = vunpack.c.l.b16 %v3493
    %v3782 = vunpack.c.l.b16 %v3494
    %v3783 = vunpack.c.l.b16 %v3495
    %v3784 = vunpack.c.l.b16 %v3496
    %v3785 = vunpack.c.l.b16 %v3497
    %v3786 = vunpack.c.l.b16 %v3498
    %v3787 = vunpack.c.l.b16 %v3499
    %v3788 = vunpack.c.l.b16 %v3500
    %v3789 = vunpack.c.l.b16 %v3501
    %v3790 = vunpack.c.l.b16 %v3502
    %v3791 = vunpack.c.l.b16 %v3503
    %v3792 = vunpack.c.l.b16 %v3504
    %v3793 = vunpack.c.l.b16 %v3505
    %v3794 = vunpack.c.l.b16 %v3506
    %v3795 = vunpack.c.l.b16 %v3507
    %v3796 = vunpack.c.l.b16 %v3508
    %v3797 = vunpack.c.l.b16 %v3509
    %v3798 = vunpack.c.l.b16 %v3510
    %v3799 = vunpack.c.l.b16 %v3511
    %v3800 = vunpack.c.l.b16 %v3512
    %v3801 = vunpack.c.l.b16 %v3513
    %v3802 = vunpack.c.l.b16 %v3514
    %v3803 = vunpack.c.l.b16 %v3515
    %v3804 = vunpack.c.l.b16 %v3516
    %v3805 = vunpack.c.l.b16 %v3517
    %v3806 = vunpack.c.l.b16 %v3518
    %v3807 = vunpack.c.l.b16 %v3519
    %v3808 = vunpack.c.l.b16 %v3520
    %v3809 = vunpack.c.l.b16 %v3521
    %v3810 = vunpack.c.l.b16 %v3522
    %v3811 = vunpack.c.l.b16 %v3523
    %v3812 = vunpack.c.l.b16 %v3524
    %v3813 = vunpack.c.l.b16 %v3525
    %v3814 = vunpack.c.l.b16 %v3526
    %v3815 = vunpack.c.l.b16 %v3527
    %v3816 = vunpack.c.l.b16 %v3528
    %v3817 = vunpack.c.l.b16 %v3529
    %v3818 = vunpack.c.l.b16 %v3530
    %v3819 = vunpack.c.l.b16 %v3531
    %v3820 = vunpack.c.l.b16 %v3532
    %v3821 = vunpack.c.l.b16 %v3533
    %v3822 = vunpack.c.l.b16 %v3534
    %v3823 = vunpack.c.l.b16 %v3535
    %v3824 = vunpack.c.l.b16 %v3536
    %v3825 = vunpack.c.l.b16 %v3537
    %v3826 = vunpack.c.l.b16 %v3538
    %v3827 = vunpack.c.l.b16 %v3539
    %v3828 = vunpack.c.l.b16 %v3540
    %v3829 = vunpack.c.l.b16 %v3541
    %v3830 = vunpack.c.l.b16 %v3542
    %v3831 = vunpack.c.l.b16 %v3543
    %v3832 = vunpack.c.l.b16 %v3544
    %v3833 = vunpack.c.l.b16 %v3545
    %v3834 = vunpack.c.l.b16 %v3546
    %v3835 = vunpack.c.l.b16 %v3547
    %v3836 = vpack.c.b16 %v3693, %v3692
    %v3837 = vpack.c.b16 %v3695, %v3694
    %v3838 = vpack.c.b16 %v3697, %v3696
    %v3839 = vpack.c.b16 %v3699, %v3698
    %v3840 = vpack.c.b16 %v3701, %v3700
    %v3841 = vpack.c.b16 %v3703, %v3702
    %v3842 = vpack.c.b16 %v3705, %v3704
    %v3843 = vpack.c.b16 %v3707, %v3706
    %v3844 = vpack.c.b16 %v3709, %v3708
    %v3845 = vpack.c.b16 %v3711, %v3710
    %v3846 = vpack.c.b16 %v3713, %v3712
    %v3847 = vpack.c.b16 %v3715, %v3714
    %v3848 = vpack.c.b16 %v3717, %v3716
    %v3849 = vpack.c.b16 %v3719, %v3718
    %v3850 = vpack.c.b16 %v3721, %v3720
    %v3851 = vpack.c.b16 %v3723, %v3722
    %v3852 = vpack.c.b16 %v3725, %v3724
    %v3853 = vpack.c.b16 %v3727, %v3726
    %v3854 = vpack.c.b16 %v3729, %v3728
    %v3855 = vpack.c.b16 %v3731, %v3730
    %v3856 = vpack.c.b16 %v3733, %v3732
    %v3857 = vpack.c.b16 %v3735, %v3734
    %v3858 = vpack.c.b16 %v3737, %v3736
    %v3859 = vpack.c.b16 %v3739, %v3738
    %v3860 = vpack.c.b16 %v3741, %v3740
    %v3861 = vpack.c.b16 %v3743, %v3742
    %v3862 = vpack.c.b16 %v3745, %v3744
    %v3863 = vpack.c.b16 %v3747, %v3746
    %v3864 = vpack.c.b16 %v3749, %v3748
    %v3865 = vpack.c.b16 %v3751, %v3750
    %v3866 = vpack.c.b16 %v3753, %v3752
    %v3867 = vpack.c.b16 %v3755, %v3754
    %v3868 = vpack.c.b16 %v3757, %v3756
    %v3869 = vpack.c.b16 %v3759, %v3758
    %v3870 = vpack.c.b16 %v3761, %v3760
    %v3871 = vpack.c.b16 %v3763, %v3762
    %v3872 = vpack.c.b16 %v3765, %v3764
    %v3873 = vpack.c.b16 %v3767, %v3766
    %v3874 = vpack.c.b16 %v3769, %v3768
    %v3875 = vpack.c.b16 %v3771, %v3770
    %v3876 = vpack.c.b16 %v3773, %v3772
    %v3877 = vpack.c.b16 %v3775, %v3774
    %v3878 = vpack.c.b16 %v3777, %v3776
    %v3879 = vpack.c.b16 %v3779, %v3778
    %v3880 = vpack.c.b16 %v3781, %v3780
    %v3881 = vpack.c.b16 %v3783, %v3782
    %v3882 = vpack.c.b16 %v3785, %v3784
    %v3883 = vpack.c.b16 %v3787, %v3786
    %v3884 = vpack.c.b16 %v3789, %v3788
    %v3885 = vpack.c.b16 %v3791, %v3790
    %v3886 = vpack.c.b16 %v3793, %v3792
    %v3887 = vpack.c.b16 %v3795, %v3794
    %v3888 = vpack.c.b16 %v3797, %v3796
    %v3889 = vpack.c.b16 %v3799, %v3798
    %v3890 = vpack.c.b16 %v3801, %v3800
    %v3891 = vpack.c.b16 %v3803, %v3802
    %v3892 = vpack.c.b16 %v3805, %v3804
    %v3893 = vpack.c.b16 %v3807, %v3806
    %v3894 = vpack.c.b16 %v3809, %v3808
    %v3895 = vpack.c.b16 %v3811, %v3810
    %v3896 = vpack.c.b16 %v3813, %v3812
    %v3897 = vpack.c.b16 %v3815, %v3814
    %v3898 = vpack.c.b16 %v3817, %v3816
    %v3899 = vpack.c.b16 %v3819, %v3818
    %v3900 = vpack.c.b16 %v3821, %v3820
    %v3901 = vpack.c.b16 %v3823, %v3822
    %v3902 = vpack.c.b16 %v3825, %v3824
    %v3903 = vpack.c.b16 %v3827, %v3826
    %v3904 = vpack.c.b16 %v3829, %v3828
    %v3905 = vpack.c.b16 %v3831, %v3830
    %v3906 = vpack.c.b16 %v3833, %v3832
    %v3907 = vpack.c.b16 %v3835, %v3834
    %3980 = vmatprep.subr.bf16.mxu0 0
    %3981 = vmatpush1.bf16.msra.mxu0 %v3836
    %3982 = vmatprep.subr.bf16.mxu0 0
    %3983 = vmatpush1.bf16.msra.mxu0 %v3837
    %3984 = vmatprep.subr.bf16.mxu0 0
    %3985 = vmatpush1.bf16.msra.mxu0 %v3838
    %3986 = vmatprep.subr.bf16.mxu0 0
    %3987 = vmatpush1.bf16.msra.mxu0 %v3839
    %3988 = vmatprep.subr.bf16.mxu0 0
    %3989 = vmatpush1.bf16.msra.mxu0 %v3840
    %3990 = vmatprep.subr.bf16.mxu0 0
    %3991 = vmatpush1.bf16.msra.mxu0 %v3841
    %3992 = vmatprep.subr.bf16.mxu0 0
    %3993 = vmatpush1.bf16.msra.mxu0 %v3842
    %3994 = vmatprep.subr.bf16.mxu0 0
    %3995 = vmatpush1.bf16.msra.mxu0 %v3843
    %3996 = vmatprep.subr.bf16.mxu0 0
    %3997 = vmatpush1.bf16.msra.mxu0 %v3844
    %3998 = vmatprep.subr.bf16.mxu0 0
    %3999 = vmatpush1.bf16.msra.mxu0 %v3845
    %4000 = vmatprep.subr.bf16.mxu0 0
    %4001 = vmatpush1.bf16.msra.mxu0 %v3846
    %4002 = vmatprep.subr.bf16.mxu0 0
    %4003 = vmatpush1.bf16.msra.mxu0 %v3847
    %4004 = vmatprep.subr.bf16.mxu0 0
    %4005 = vmatpush1.bf16.msra.mxu0 %v3848
    %4006 = vmatprep.subr.bf16.mxu0 0
    %4007 = vmatpush1.bf16.msra.mxu0 %v3849
    %4008 = vmatprep.subr.bf16.mxu0 0
    %4009 = vmatpush1.bf16.msra.mxu0 %v3850
    %4010 = vmatprep.subr.bf16.mxu0 0
    %4011 = vmatpush1.bf16.msra.mxu0 %v3851
    %4012 = vmatprep.mubr.bf16.mxu0 %v3117
    %4013 = vmatmul.mubr.bf16.gmra.mrb[0].mxu0 %v3116
    %v4014 = vpop.f32.mrb[0].mxu0
    %v4015 = vadd.f32 0.0, %v4014
    %v4016 = vpop.f32.mrb[0].mxu0
    %v4017 = vpop.f32.mrb[0].mxu0
    %v4018 = vadd.f32 0.0, %v4017
    %v4019 = vpop.f32.mrb[0].mxu0
    %4020 = vmatprep.mubr.bf16.mxu0 %v3126
    %4021 = vmatmul.mubr.bf16.gmra.mrb[0].mxu0 %v3125
    %v4022 = vpop.f32.mrb[0].mxu0
    %v4023 = vadd.f32 0.0, %v4022
    %v4024 = vpop.f32.mrb[0].mxu0
    %v4025 = vpop.f32.mrb[0].mxu0
    %v4026 = vadd.f32 0.0, %v4025
    %v4027 = vpop.f32.mrb[0].mxu0
    %4028 = vmatprep.mubr.bf16.mxu0 %v3135
    %4029 = vmatmul.mubr.bf16.gmra.mrb[0].mxu0 %v3134
    %v4030 = vpop.f32.mrb[0].mxu0
    %v4031 = vadd.f32 0.0, %v4030
    %v4032 = vpop.f32.mrb[0].mxu0
    %v4033 = vpop.f32.mrb[0].mxu0
    %v4034 = vadd.f32 0.0, %v4033
    %v4035 = vpop.f32.mrb[0].mxu0
    %4036 = vmatprep.mubr.bf16.mxu0 %v3144
    %4037 = vmatmul.mubr.bf16.gmra.mrb[0].mxu0 %v3143
    %v4038 = vpop.f32.mrb[0].mxu0
    %v4039 = vadd.f32 0.0, %v4038
    %v4040 = vpop.f32.mrb[0].mxu0
    %v4041 = vpop.f32.mrb[0].mxu0
    %v4042 = vadd.f32 0.0, %v4041
    %v4043 = vpop.f32.mrb[0].mxu0
    %4044 = vmatprep.mubr.bf16.mxu0 %v3153
    %4045 = vmatmul.mubr.bf16.gmra.mrb[0].mxu0 %v3152
    %v4046 = vpop.f32.mrb[0].mxu0
    %v4047 = vadd.f32 0.0, %v4046
    %v4048 = vpop.f32.mrb[0].mxu0
    %v4049 = vpop.f32.mrb[0].mxu0
    %v4050 = vadd.f32 0.0, %v4049
    %v4051 = vpop.f32.mrb[0].mxu0
    %4052 = vmatprep.mubr.bf16.mxu0 %v3162
    %4053 = vmatmul.mubr.bf16.gmra.mrb[0].mxu0 %v3161
    %v4054 = vpop.f32.mrb[0].mxu0
    %v4055 = vadd.f32 0.0, %v4054
    %v4056 = vpop.f32.mrb[0].mxu0
    %v4057 = vpop.f32.mrb[0].mxu0
    %v4058 = vadd.f32 0.0, %v4057
    %v4059 = vpop.f32.mrb[0].mxu0
    %4060 = vmatprep.mubr.bf16.mxu0 %v3171
    %4061 = vmatmul.mubr.bf16.gmra.mrb[0].mxu0 %v3170
    %v4062 = vpop.f32.mrb[0].mxu0
    %v4063 = vadd.f32 0.0, %v4062
    %v4064 = vpop.f32.mrb[0].mxu0
    %v4065 = vpop.f32.mrb[0].mxu0
    %v4066 = vadd.f32 0.0, %v4065
    %v4067 = vpop.f32.mrb[0].mxu0
    %4068 = vmatprep.mubr.bf16.mxu0 %v3180
    %4069 = vmatmul.mubr.bf16.gmra.mrb[0].mxu0 %v3179
    %v4070 = vpop.f32.mrb[0].mxu0
    %v4071 = vadd.f32 0.0, %v4070
    %v4072 = vpop.f32.mrb[0].mxu0
    %v4073 = vpop.f32.mrb[0].mxu0
    %v4074 = vadd.f32 0.0, %v4073
    %v4075 = vpop.f32.mrb[0].mxu0
    %4076 = vmatprep.mubr.bf16.mxu0 %v3189
    %4077 = vmatmul.mubr.bf16.gmra.mrb[0].mxu0 %v3188
    %v4078 = vpop.f32.mrb[0].mxu0
    %v4079 = vadd.f32 0.0, %v4078
    %v4080 = vpop.f32.mrb[0].mxu0
    %v4081 = vpop.f32.mrb[0].mxu0
    %v4082 = vadd.f32 0.0, %v4081
    %v4083 = vpop.f32.mrb[0].mxu0
    %4084 = vmatprep.mubr.bf16.mxu0 %v3198
    %4085 = vmatmul.mubr.bf16.gmra.mrb[0].mxu0 %v3197
    %v4086 = vpop.f32.mrb[0].mxu0
    %v4087 = vadd.f32 0.0, %v4086
    %v4088 = vpop.f32.mrb[0].mxu0
    %v4089 = vpop.f32.mrb[0].mxu0
    %v4090 = vadd.f32 0.0, %v4089
    %v4091 = vpop.f32.mrb[0].mxu0
    %4092 = vmatprep.mubr.bf16.mxu0 %v3207
    %4093 = vmatmul.mubr.bf16.gmra.mrb[0].mxu0 %v3206
    %v4094 = vpop.f32.mrb[0].mxu0
    %v4095 = vadd.f32 0.0, %v4094
    %v4096 = vpop.f32.mrb[0].mxu0
    %v4097 = vpop.f32.mrb[0].mxu0
    %v4098 = vadd.f32 0.0, %v4097
    %v4099 = vpop.f32.mrb[0].mxu0
    %4100 = vmatprep.mubr.bf16.mxu0 %v3216
    %4101 = vmatmul.mubr.bf16.gmra.mrb[0].mxu0 %v3215
    %v4102 = vpop.f32.mrb[0].mxu0
    %v4103 = vadd.f32 0.0, %v4102
    %v4104 = vpop.f32.mrb[0].mxu0
    %v4105 = vpop.f32.mrb[0].mxu0
    %v4106 = vadd.f32 0.0, %v4105
    %v4107 = vpop.f32.mrb[0].mxu0
    %4108 = vmatprep.mubr.bf16.mxu0 %v3225
    %4109 = vmatmul.mubr.bf16.gmra.mrb[0].mxu0 %v3224
    %v4110 = vpop.f32.mrb[0].mxu0
    %v4111 = vadd.f32 0.0, %v4110
    %v4112 = vpop.f32.mrb[0].mxu0
    %v4113 = vpop.f32.mrb[0].mxu0
    %v4114 = vadd.f32 0.0, %v4113
    %v4115 = vpop.f32.mrb[0].mxu0
    %4116 = vmatprep.mubr.bf16.mxu0 %v3234
    %4117 = vmatmul.mubr.bf16.gmra.mrb[0].mxu0 %v3233
    %v4118 = vpop.f32.mrb[0].mxu0
    %v4119 = vadd.f32 0.0, %v4118
    %v4120 = vpop.f32.mrb[0].mxu0
    %v4121 = vpop.f32.mrb[0].mxu0
    %v4122 = vadd.f32 0.0, %v4121
    %v4123 = vpop.f32.mrb[0].mxu0
    %4124 = vmatprep.mubr.bf16.mxu0 %v3243
    %4125 = vmatmul.mubr.bf16.gmra.mrb[0].mxu0 %v3242
    %v4126 = vpop.f32.mrb[0].mxu0
    %v4127 = vadd.f32 0.0, %v4126
    %v4128 = vpop.f32.mrb[0].mxu0
    %v4129 = vpop.f32.mrb[0].mxu0
    %v4130 = vadd.f32 0.0, %v4129
    %v4131 = vpop.f32.mrb[0].mxu0
    %4132 = vmatprep.mubr.bf16.mxu0 %v3252
    %4133 = vmatmul.mubr.bf16.gmra.mrb[0].mxu0 %v3251
    %v4134 = vpop.f32.mrb[0].mxu0
    %v4135 = vadd.f32 0.0, %v4134
    %v4136 = vpop.f32.mrb[0].mxu0
    %v4137 = vpop.f32.mrb[0].mxu0
    %v4138 = vadd.f32 0.0, %v4137
    %v4139 = vpop.f32.mrb[0].mxu0
    %4140 = vmatprep.mubr.bf16.mxu0 %v3261
    %4141 = vmatmul.mubr.bf16.gmra.mrb[0].mxu0 %v3260
    %v4142 = vpop.f32.mrb[0].mxu0
    %v4143 = vadd.f32 0.0, %v4142
    %v4144 = vpop.f32.mrb[0].mxu0
    %v4145 = vpop.f32.mrb[0].mxu0
    %v4146 = vadd.f32 0.0, %v4145
    %v4147 = vpop.f32.mrb[0].mxu0
    %4148 = vmatprep.mubr.bf16.mxu0 %v3270
    %4149 = vmatmul.mubr.bf16.gmra.mrb[0].mxu0 %v3269
    %v4150 = vpop.f32.mrb[0].mxu0
    %v4151 = vadd.f32 0.0, %v4150
    %v4152 = vpop.f32.mrb[0].mxu0
    %v4153 = vpop.f32.mrb[0].mxu0
    %v4154 = vadd.f32 0.0, %v4153
    %v4155 = vpop.f32.mrb[0].mxu0
    %4156 = vmatprep.mubr.bf16.mxu0 %v3279
    %4157 = vmatmul.mubr.bf16.gmra.mrb[0].mxu0 %v3278
    %v4158 = vpop.f32.mrb[0].mxu0
    %v4159 = vadd.f32 0.0, %v4158
    %v4160 = vpop.f32.mrb[0].mxu0
    %v4161 = vpop.f32.mrb[0].mxu0
    %v4162 = vadd.f32 0.0, %v4161
    %v4163 = vpop.f32.mrb[0].mxu0
    %4164 = vmatprep.mubr.bf16.mxu0 %v3288
    %4165 = vmatmul.mubr.bf16.gmra.mrb[0].mxu0 %v3287
    %v4166 = vpop.f32.mrb[0].mxu0
    %v4167 = vadd.f32 0.0, %v4166
    %v4168 = vpop.f32.mrb[0].mxu0
    %v4169 = vpop.f32.mrb[0].mxu0
    %v4170 = vadd.f32 0.0, %v4169
    %v4171 = vpop.f32.mrb[0].mxu0
    %4172 = vmatprep.mubr.bf16.mxu0 %v3297
    %4173 = vmatmul.mubr.bf16.gmra.mrb[0].mxu0 %v3296
    %v4174 = vpop.f32.mrb[0].mxu0
    %v4175 = vadd.f32 0.0, %v4174
    %v4176 = vpop.f32.mrb[0].mxu0
    %v4177 = vpop.f32.mrb[0].mxu0
    %v4178 = vadd.f32 0.0, %v4177
    %v4179 = vpop.f32.mrb[0].mxu0
    %4180 = vmatprep.mubr.bf16.mxu0 %v3306
    %4181 = vmatmul.mubr.bf16.gmra.mrb[0].mxu0 %v3305
    %v4182 = vpop.f32.mrb[0].mxu0
    %v4183 = vadd.f32 0.0, %v4182
    %v4184 = vpop.f32.mrb[0].mxu0
    %v4185 = vpop.f32.mrb[0].mxu0
    %v4186 = vadd.f32 0.0, %v4185
    %v4187 = vpop.f32.mrb[0].mxu0
    %4188 = vmatprep.mubr.bf16.mxu0 %v3315
    %4189 = vmatmul.mubr.bf16.gmra.mrb[0].mxu0 %v3314
    %v4190 = vpop.f32.mrb[0].mxu0
    %v4191 = vadd.f32 0.0, %v4190
    %v4192 = vpop.f32.mrb[0].mxu0
    %v4193 = vpop.f32.mrb[0].mxu0
    %v4194 = vadd.f32 0.0, %v4193
    %v4195 = vpop.f32.mrb[0].mxu0
    %4196 = vmatprep.mubr.bf16.mxu0 %v3324
    %4197 = vmatmul.mubr.bf16.gmra.mrb[0].mxu0 %v3323
    %v4198 = vpop.f32.mrb[0].mxu0
    %v4199 = vadd.f32 0.0, %v4198
    %v4200 = vpop.f32.mrb[0].mxu0
    %v4201 = vpop.f32.mrb[0].mxu0
    %v4202 = vadd.f32 0.0, %v4201
    %v4203 = vpop.f32.mrb[0].mxu0
    %4204 = vmatprep.mubr.bf16.mxu0 %v3333
    %4205 = vmatmul.mubr.bf16.gmra.mrb[0].mxu0 %v3332
    %v4206 = vpop.f32.mrb[0].mxu0
    %v4207 = vadd.f32 0.0, %v4206
    %v4208 = vpop.f32.mrb[0].mxu0
    %v4209 = vpop.f32.mrb[0].mxu0
    %v4210 = vadd.f32 0.0, %v4209
    %v4211 = vpop.f32.mrb[0].mxu0
    %4212 = vmatprep.mubr.bf16.mxu0 %v3342
    %4213 = vmatmul.mubr.bf16.gmra.mrb[0].mxu0 %v3341
    %v4214 = vpop.f32.mrb[0].mxu0
    %v4215 = vadd.f32 0.0, %v4214
    %v4216 = vpop.f32.mrb[0].mxu0
    %v4217 = vpop.f32.mrb[0].mxu0
    %v4218 = vadd.f32 0.0, %v4217
    %v4219 = vpop.f32.mrb[0].mxu0
    %4220 = vmatprep.mubr.bf16.mxu0 %v3351
    %4221 = vmatmul.mubr.bf16.gmra.mrb[0].mxu0 %v3350
    %v4222 = vpop.f32.mrb[0].mxu0
    %v4223 = vadd.f32 0.0, %v4222
    %v4224 = vpop.f32.mrb[0].mxu0
    %v4225 = vpop.f32.mrb[0].mxu0
    %v4226 = vadd.f32 0.0, %v4225
    %v4227 = vpop.f32.mrb[0].mxu0
    %4228 = vmatprep.mubr.bf16.mxu0 %v3360
    %4229 = vmatmul.mubr.bf16.gmra.mrb[0].mxu0 %v3359
    %v4230 = vpop.f32.mrb[0].mxu0
    %v4231 = vadd.f32 0.0, %v4230
    %v4232 = vpop.f32.mrb[0].mxu0
    %v4233 = vpop.f32.mrb[0].mxu0
    %v4234 = vadd.f32 0.0, %v4233
    %v4235 = vpop.f32.mrb[0].mxu0
    %4236 = vmatprep.mubr.bf16.mxu0 %v3369
    %4237 = vmatmul.mubr.bf16.gmra.mrb[0].mxu0 %v3368
    %v4238 = vpop.f32.mrb[0].mxu0
    %v4239 = vadd.f32 0.0, %v4238
    %v4240 = vpop.f32.mrb[0].mxu0
    %v4241 = vpop.f32.mrb[0].mxu0
    %v4242 = vadd.f32 0.0, %v4241
    %v4243 = vpop.f32.mrb[0].mxu0
    %4244 = vmatprep.mubr.bf16.mxu0 %v3378
    %4245 = vmatmul.mubr.bf16.gmra.mrb[0].mxu0 %v3377
    %v4246 = vpop.f32.mrb[0].mxu0
    %v4247 = vadd.f32 0.0, %v4246
    %v4248 = vpop.f32.mrb[0].mxu0
    %v4249 = vpop.f32.mrb[0].mxu0
    %v4250 = vadd.f32 0.0, %v4249
    %v4251 = vpop.f32.mrb[0].mxu0
    %4252 = vmatprep.mubr.bf16.mxu0 %v3387
    %4253 = vmatmul.mubr.bf16.gmra.mrb[0].mxu0 %v3386
    %v4254 = vpop.f32.mrb[0].mxu0
    %v4255 = vadd.f32 0.0, %v4254
    %v4256 = vpop.f32.mrb[0].mxu0
    %v4257 = vpop.f32.mrb[0].mxu0
    %v4258 = vadd.f32 0.0, %v4257
    %v4259 = vpop.f32.mrb[0].mxu0
    %4260 = vmatprep.mubr.bf16.mxu0 %v3396
    %4261 = vmatmul.mubr.bf16.gmra.mrb[0].mxu0 %v3395
    %v4262 = vpop.f32.mrb[0].mxu0
    %v4263 = vadd.f32 0.0, %v4262
    %v4264 = vpop.f32.mrb[0].mxu0
    %v4265 = vpop.f32.mrb[0].mxu0
    %v4266 = vadd.f32 0.0, %v4265
    %v4267 = vpop.f32.mrb[0].mxu0
    %4268 = vdwg.mxu0
    %4269 = vmatprep.subr.bf16.mxu0 0
    %4270 = vmatpush1.bf16.msra.mxu0 %v3852
    %4271 = vmatprep.subr.bf16.mxu0 0
    %4272 = vmatpush1.bf16.msra.mxu0 %v3853
    %4273 = vmatprep.subr.bf16.mxu0 0
    %4274 = vmatpush1.bf16.msra.mxu0 %v3854
    %4275 = vmatprep.subr.bf16.mxu0 0
    %4276 = vmatpush1.bf16.msra.mxu0 %v3855
    %4277 = vmatprep.subr.bf16.mxu0 0
    %4278 = vmatpush1.bf16.msra.mxu0 %v3856
    %4279 = vmatprep.subr.bf16.mxu0 0
    %4280 = vmatpush1.bf16.msra.mxu0 %v3857
    %4281 = vmatprep.subr.bf16.mxu0 0
    %4282 = vmatpush1.bf16.msra.mxu0 %v3858
    %4283 = vmatprep.subr.bf16.mxu0 0
    %4284 = vmatpush1.bf16.msra.mxu0 %v3859
    %4285 = vmatprep.subr.bf16.mxu0 0
    %4286 = vmatpush1.bf16.msra.mxu0 %v3860
    %4287 = vmatprep.subr.bf16.mxu0 0
    %4288 = vmatpush1.bf16.msra.mxu0 %v3861
    %4289 = vmatprep.subr.bf16.mxu0 0
    %4290 = vmatpush1.bf16.msra.mxu0 %v3862
    %4291 = vmatprep.subr.bf16.mxu0 0
    %4292 = vmatpush1.bf16.msra.mxu0 %v3863
    %4293 = vmatprep.subr.bf16.mxu0 0
    %4294 = vmatpush1.bf16.msra.mxu0 %v3864
    %4295 = vmatprep.subr.bf16.mxu0 0
    %4296 = vmatpush1.bf16.msra.mxu0 %v3865
    %4297 = vmatprep.subr.bf16.mxu0 0
    %4298 = vmatpush1.bf16.msra.mxu0 %v3866
    %4299 = vmatprep.subr.bf16.mxu0 0
    %4300 = vmatpush1.bf16.msra.mxu0 %v3867
    %4301 = vmatprep.mubr.bf16.mxu0 %v3119
    %4302 = vmatmul.mubr.bf16.gmra.mrb[0].mxu0 %v3118
    %v4303 = vpop.f32.mrb[0].mxu0
    %v4304 = vadd.f32 %v4015, %v4303
    %v4305 = vpop.f32.mrb[0].mxu0
    %v4306 = vpop.f32.mrb[0].mxu0
    %v4307 = vadd.f32 %v4018, %v4306
    %v4308 = vpop.f32.mrb[0].mxu0
    %4309 = vmatprep.mubr.bf16.mxu0 %v3128
    %4310 = vmatmul.mubr.bf16.gmra.mrb[0].mxu0 %v3127
    %v4311 = vpop.f32.mrb[0].mxu0
    %v4312 = vadd.f32 %v4023, %v4311
    %v4313 = vpop.f32.mrb[0].mxu0
    %v4314 = vpop.f32.mrb[0].mxu0
    %v4315 = vadd.f32 %v4026, %v4314
    %v4316 = vpop.f32.mrb[0].mxu0
    %4317 = vmatprep.mubr.bf16.mxu0 %v3137
    %4318 = vmatmul.mubr.bf16.gmra.mrb[0].mxu0 %v3136
    %v4319 = vpop.f32.mrb[0].mxu0
    %v4320 = vadd.f32 %v4031, %v4319
    %v4321 = vpop.f32.mrb[0].mxu0
    %v4322 = vpop.f32.mrb[0].mxu0
    %v4323 = vadd.f32 %v4034, %v4322
    %v4324 = vpop.f32.mrb[0].mxu0
    %4325 = vmatprep.mubr.bf16.mxu0 %v3146
    %4326 = vmatmul.mubr.bf16.gmra.mrb[0].mxu0 %v3145
    %v4327 = vpop.f32.mrb[0].mxu0
    %v4328 = vadd.f32 %v4039, %v4327
    %v4329 = vpop.f32.mrb[0].mxu0
    %v4330 = vpop.f32.mrb[0].mxu0
    %v4331 = vadd.f32 %v4042, %v4330
    %v4332 = vpop.f32.mrb[0].mxu0
    %4333 = vmatprep.mubr.bf16.mxu0 %v3155
    %4334 = vmatmul.mubr.bf16.gmra.mrb[0].mxu0 %v3154
    %v4335 = vpop.f32.mrb[0].mxu0
    %v4336 = vadd.f32 %v4047, %v4335
    %v4337 = vpop.f32.mrb[0].mxu0
    %v4338 = vpop.f32.mrb[0].mxu0
    %v4339 = vadd.f32 %v4050, %v4338
    %v4340 = vpop.f32.mrb[0].mxu0
    %4341 = vmatprep.mubr.bf16.mxu0 %v3164
    %4342 = vmatmul.mubr.bf16.gmra.mrb[0].mxu0 %v3163
    %v4343 = vpop.f32.mrb[0].mxu0
    %v4344 = vadd.f32 %v4055, %v4343
    %v4345 = vpop.f32.mrb[0].mxu0
    %v4346 = vpop.f32.mrb[0].mxu0
    %v4347 = vadd.f32 %v4058, %v4346
    %v4348 = vpop.f32.mrb[0].mxu0
    %4349 = vmatprep.mubr.bf16.mxu0 %v3173
    %4350 = vmatmul.mubr.bf16.gmra.mrb[0].mxu0 %v3172
    %v4351 = vpop.f32.mrb[0].mxu0
    %v4352 = vadd.f32 %v4063, %v4351
    %v4353 = vpop.f32.mrb[0].mxu0
    %v4354 = vpop.f32.mrb[0].mxu0
    %v4355 = vadd.f32 %v4066, %v4354
    %v4356 = vpop.f32.mrb[0].mxu0
    %4357 = vmatprep.mubr.bf16.mxu0 %v3182
    %4358 = vmatmul.mubr.bf16.gmra.mrb[0].mxu0 %v3181
    %v4359 = vpop.f32.mrb[0].mxu0
    %v4360 = vadd.f32 %v4071, %v4359
    %v4361 = vpop.f32.mrb[0].mxu0
    %v4362 = vpop.f32.mrb[0].mxu0
    %v4363 = vadd.f32 %v4074, %v4362
    %v4364 = vpop.f32.mrb[0].mxu0
    %4365 = vmatprep.mubr.bf16.mxu0 %v3191
    %4366 = vmatmul.mubr.bf16.gmra.mrb[0].mxu0 %v3190
    %v4367 = vpop.f32.mrb[0].mxu0
    %v4368 = vadd.f32 %v4079, %v4367
    %v4369 = vpop.f32.mrb[0].mxu0
    %v4370 = vpop.f32.mrb[0].mxu0
    %v4371 = vadd.f32 %v4082, %v4370
    %v4372 = vpop.f32.mrb[0].mxu0
    %4373 = vmatprep.mubr.bf16.mxu0 %v3200
    %4374 = vmatmul.mubr.bf16.gmra.mrb[0].mxu0 %v3199
    %v4375 = vpop.f32.mrb[0].mxu0
    %v4376 = vadd.f32 %v4087, %v4375
    %v4377 = vpop.f32.mrb[0].mxu0
    %v4378 = vpop.f32.mrb[0].mxu0
    %v4379 = vadd.f32 %v4090, %v4378
    %v4380 = vpop.f32.mrb[0].mxu0
    %4381 = vmatprep.mubr.bf16.mxu0 %v3209
    %4382 = vmatmul.mubr.bf16.gmra.mrb[0].mxu0 %v3208
    %v4383 = vpop.f32.mrb[0].mxu0
    %v4384 = vadd.f32 %v4095, %v4383
    %v4385 = vpop.f32.mrb[0].mxu0
    %v4386 = vpop.f32.mrb[0].mxu0
    %v4387 = vadd.f32 %v4098, %v4386
    %v4388 = vpop.f32.mrb[0].mxu0
    %4389 = vmatprep.mubr.bf16.mxu0 %v3218
    %4390 = vmatmul.mubr.bf16.gmra.mrb[0].mxu0 %v3217
    %v4391 = vpop.f32.mrb[0].mxu0
    %v4392 = vadd.f32 %v4103, %v4391
    %v4393 = vpop.f32.mrb[0].mxu0
    %v4394 = vpop.f32.mrb[0].mxu0
    %v4395 = vadd.f32 %v4106, %v4394
    %v4396 = vpop.f32.mrb[0].mxu0
    %4397 = vmatprep.mubr.bf16.mxu0 %v3227
    %4398 = vmatmul.mubr.bf16.gmra.mrb[0].mxu0 %v3226
    %v4399 = vpop.f32.mrb[0].mxu0
    %v4400 = vadd.f32 %v4111, %v4399
    %v4401 = vpop.f32.mrb[0].mxu0
    %v4402 = vpop.f32.mrb[0].mxu0
    %v4403 = vadd.f32 %v4114, %v4402
    %v4404 = vpop.f32.mrb[0].mxu0
    %4405 = vmatprep.mubr.bf16.mxu0 %v3236
    %4406 = vmatmul.mubr.bf16.gmra.mrb[0].mxu0 %v3235
    %v4407 = vpop.f32.mrb[0].mxu0
    %v4408 = vadd.f32 %v4119, %v4407
    %v4409 = vpop.f32.mrb[0].mxu0
    %v4410 = vpop.f32.mrb[0].mxu0
    %v4411 = vadd.f32 %v4122, %v4410
    %v4412 = vpop.f32.mrb[0].mxu0
    %4413 = vmatprep.mubr.bf16.mxu0 %v3245
    %4414 = vmatmul.mubr.bf16.gmra.mrb[0].mxu0 %v3244
    %v4415 = vpop.f32.mrb[0].mxu0
    %v4416 = vadd.f32 %v4127, %v4415
    %v4417 = vpop.f32.mrb[0].mxu0
    %v4418 = vpop.f32.mrb[0].mxu0
    %v4419 = vadd.f32 %v4130, %v4418
    %v4420 = vpop.f32.mrb[0].mxu0
    %4421 = vmatprep.mubr.bf16.mxu0 %v3254
    %4422 = vmatmul.mubr.bf16.gmra.mrb[0].mxu0 %v3253
    %v4423 = vpop.f32.mrb[0].mxu0
    %v4424 = vadd.f32 %v4135, %v4423
    %v4425 = vpop.f32.mrb[0].mxu0
    %v4426 = vpop.f32.mrb[0].mxu0
    %v4427 = vadd.f32 %v4138, %v4426
    %v4428 = vpop.f32.mrb[0].mxu0
    %4429 = vmatprep.mubr.bf16.mxu0 %v3263
    %4430 = vmatmul.mubr.bf16.gmra.mrb[0].mxu0 %v3262
    %v4431 = vpop.f32.mrb[0].mxu0
    %v4432 = vadd.f32 %v4143, %v4431
    %v4433 = vpop.f32.mrb[0].mxu0
    %v4434 = vpop.f32.mrb[0].mxu0
    %v4435 = vadd.f32 %v4146, %v4434
    %v4436 = vpop.f32.mrb[0].mxu0
    %4437 = vmatprep.mubr.bf16.mxu0 %v3272
    %4438 = vmatmul.mubr.bf16.gmra.mrb[0].mxu0 %v3271
    %v4439 = vpop.f32.mrb[0].mxu0
    %v4440 = vadd.f32 %v4151, %v4439
    %v4441 = vpop.f32.mrb[0].mxu0
    %v4442 = vpop.f32.mrb[0].mxu0
    %v4443 = vadd.f32 %v4154, %v4442
    %v4444 = vpop.f32.mrb[0].mxu0
    %4445 = vmatprep.mubr.bf16.mxu0 %v3281
    %4446 = vmatmul.mubr.bf16.gmra.mrb[0].mxu0 %v3280
    %v4447 = vpop.f32.mrb[0].mxu0
    %v4448 = vadd.f32 %v4159, %v4447
    %v4449 = vpop.f32.mrb[0].mxu0
    %v4450 = vpop.f32.mrb[0].mxu0
    %v4451 = vadd.f32 %v4162, %v4450
    %v4452 = vpop.f32.mrb[0].mxu0
    %4453 = vmatprep.mubr.bf16.mxu0 %v3290
    %4454 = vmatmul.mubr.bf16.gmra.mrb[0].mxu0 %v3289
    %v4455 = vpop.f32.mrb[0].mxu0
    %v4456 = vadd.f32 %v4167, %v4455
    %v4457 = vpop.f32.mrb[0].mxu0
    %v4458 = vpop.f32.mrb[0].mxu0
    %v4459 = vadd.f32 %v4170, %v4458
    %v4460 = vpop.f32.mrb[0].mxu0
    %4461 = vmatprep.mubr.bf16.mxu0 %v3299
    %4462 = vmatmul.mubr.bf16.gmra.mrb[0].mxu0 %v3298
    %v4463 = vpop.f32.mrb[0].mxu0
    %v4464 = vadd.f32 %v4175, %v4463
    %v4465 = vpop.f32.mrb[0].mxu0
    %v4466 = vpop.f32.mrb[0].mxu0
    %v4467 = vadd.f32 %v4178, %v4466
    %v4468 = vpop.f32.mrb[0].mxu0
    %4469 = vmatprep.mubr.bf16.mxu0 %v3308
    %4470 = vmatmul.mubr.bf16.gmra.mrb[0].mxu0 %v3307
    %v4471 = vpop.f32.mrb[0].mxu0
    %v4472 = vadd.f32 %v4183, %v4471
    %v4473 = vpop.f32.mrb[0].mxu0
    %v4474 = vpop.f32.mrb[0].mxu0
    %v4475 = vadd.f32 %v4186, %v4474
    %v4476 = vpop.f32.mrb[0].mxu0
    %4477 = vmatprep.mubr.bf16.mxu0 %v3317
    %4478 = vmatmul.mubr.bf16.gmra.mrb[0].mxu0 %v3316
    %v4479 = vpop.f32.mrb[0].mxu0
    %v4480 = vadd.f32 %v4191, %v4479
    %v4481 = vpop.f32.mrb[0].mxu0
    %v4482 = vpop.f32.mrb[0].mxu0
    %v4483 = vadd.f32 %v4194, %v4482
    %v4484 = vpop.f32.mrb[0].mxu0
    %4485 = vmatprep.mubr.bf16.mxu0 %v3326
    %4486 = vmatmul.mubr.bf16.gmra.mrb[0].mxu0 %v3325
    %v4487 = vpop.f32.mrb[0].mxu0
    %v4488 = vadd.f32 %v4199, %v4487
    %v4489 = vpop.f32.mrb[0].mxu0
    %v4490 = vpop.f32.mrb[0].mxu0
    %v4491 = vadd.f32 %v4202, %v4490
    %v4492 = vpop.f32.mrb[0].mxu0
    %4493 = vmatprep.mubr.bf16.mxu0 %v3335
    %4494 = vmatmul.mubr.bf16.gmra.mrb[0].mxu0 %v3334
    %v4495 = vpop.f32.mrb[0].mxu0
    %v4496 = vadd.f32 %v4207, %v4495
    %v4497 = vpop.f32.mrb[0].mxu0
    %v4498 = vpop.f32.mrb[0].mxu0
    %v4499 = vadd.f32 %v4210, %v4498
    %v4500 = vpop.f32.mrb[0].mxu0
    %4501 = vmatprep.mubr.bf16.mxu0 %v3344
    %4502 = vmatmul.mubr.bf16.gmra.mrb[0].mxu0 %v3343
    %v4503 = vpop.f32.mrb[0].mxu0
    %v4504 = vadd.f32 %v4215, %v4503
    %v4505 = vpop.f32.mrb[0].mxu0
    %v4506 = vpop.f32.mrb[0].mxu0
    %v4507 = vadd.f32 %v4218, %v4506
    %v4508 = vpop.f32.mrb[0].mxu0
    %4509 = vmatprep.mubr.bf16.mxu0 %v3353
    %4510 = vmatmul.mubr.bf16.gmra.mrb[0].mxu0 %v3352
    %v4511 = vpop.f32.mrb[0].mxu0
    %v4512 = vadd.f32 %v4223, %v4511
    %v4513 = vpop.f32.mrb[0].mxu0
    %v4514 = vpop.f32.mrb[0].mxu0
    %v4515 = vadd.f32 %v4226, %v4514
    %v4516 = vpop.f32.mrb[0].mxu0
    %4517 = vmatprep.mubr.bf16.mxu0 %v3362
    %4518 = vmatmul.mubr.bf16.gmra.mrb[0].mxu0 %v3361
    %v4519 = vpop.f32.mrb[0].mxu0
    %v4520 = vadd.f32 %v4231, %v4519
    %v4521 = vpop.f32.mrb[0].mxu0
    %v4522 = vpop.f32.mrb[0].mxu0
    %v4523 = vadd.f32 %v4234, %v4522
    %v4524 = vpop.f32.mrb[0].mxu0
    %4525 = vmatprep.mubr.bf16.mxu0 %v3371
    %4526 = vmatmul.mubr.bf16.gmra.mrb[0].mxu0 %v3370
    %v4527 = vpop.f32.mrb[0].mxu0
    %v4528 = vadd.f32 %v4239, %v4527
    %v4529 = vpop.f32.mrb[0].mxu0
    %v4530 = vpop.f32.mrb[0].mxu0
    %v4531 = vadd.f32 %v4242, %v4530
    %v4532 = vpop.f32.mrb[0].mxu0
    %4533 = vmatprep.mubr.bf16.mxu0 %v3380
    %4534 = vmatmul.mubr.bf16.gmra.mrb[0].mxu0 %v3379
    %v4535 = vpop.f32.mrb[0].mxu0
    %v4536 = vadd.f32 %v4247, %v4535
    %v4537 = vpop.f32.mrb[0].mxu0
    %v4538 = vpop.f32.mrb[0].mxu0
    %v4539 = vadd.f32 %v4250, %v4538
    %v4540 = vpop.f32.mrb[0].mxu0
    %4541 = vmatprep.mubr.bf16.mxu0 %v3389
    %4542 = vmatmul.mubr.bf16.gmra.mrb[0].mxu0 %v3388
    %v4543 = vpop.f32.mrb[0].mxu0
    %v4544 = vadd.f32 %v4255, %v4543
    %v4545 = vpop.f32.mrb[0].mxu0
    %v4546 = vpop.f32.mrb[0].mxu0
    %v4547 = vadd.f32 %v4258, %v4546
    %v4548 = vpop.f32.mrb[0].mxu0
    %4549 = vmatprep.mubr.bf16.mxu0 %v3398
    %4550 = vmatmul.mubr.bf16.gmra.mrb[0].mxu0 %v3397
    %v4551 = vpop.f32.mrb[0].mxu0
    %v4552 = vadd.f32 %v4263, %v4551
    %v4553 = vpop.f32.mrb[0].mxu0
    %v4554 = vpop.f32.mrb[0].mxu0
    %v4555 = vadd.f32 %v4266, %v4554
    %v4556 = vpop.f32.mrb[0].mxu0
    %4557 = vdwg.mxu0
    %4558 = vmatprep.subr.bf16.mxu0 0
    %4559 = vmatpush1.bf16.msra.mxu0 %v3868
    %4560 = vmatprep.subr.bf16.mxu0 0
    %4561 = vmatpush1.bf16.msra.mxu0 %v3869
    %4562 = vmatprep.subr.bf16.mxu0 0
    %4563 = vmatpush1.bf16.msra.mxu0 %v3870
    %4564 = vmatprep.subr.bf16.mxu0 0
    %4565 = vmatpush1.bf16.msra.mxu0 %v3871
    %4566 = vmatprep.subr.bf16.mxu0 0
    %4567 = vmatpush1.bf16.msra.mxu0 %v3872
    %4568 = vmatprep.subr.bf16.mxu0 0
    %4569 = vmatpush1.bf16.msra.mxu0 %v3873
    %4570 = vmatprep.subr.bf16.mxu0 0
    %4571 = vmatpush1.bf16.msra.mxu0 %v3874
    %4572 = vmatprep.subr.bf16.mxu0 0
    %4573 = vmatpush1.bf16.msra.mxu0 %v3875
    %4574 = vmatprep.subr.bf16.mxu0 0
    %4575 = vmatpush1.bf16.msra.mxu0 %v3876
    %4576 = vmatprep.subr.bf16.mxu0 0
    %4577 = vmatpush1.bf16.msra.mxu0 %v3877
    %4578 = vmatprep.subr.bf16.mxu0 0
    %4579 = vmatpush1.bf16.msra.mxu0 %v3878
    %4580 = vmatprep.subr.bf16.mxu0 0
    %4581 = vmatpush1.bf16.msra.mxu0 %v3879
    %4582 = vmatprep.subr.bf16.mxu0 0
    %4583 = vmatpush1.bf16.msra.mxu0 %v3880
    %4584 = vmatprep.subr.bf16.mxu0 0
    %4585 = vmatpush1.bf16.msra.mxu0 %v3881
    %4586 = vmatprep.subr.bf16.mxu0 0
    %4587 = vmatpush1.bf16.msra.mxu0 %v3882
    %4588 = vmatprep.subr.bf16.mxu0 0
    %4589 = vmatpush1.bf16.msra.mxu0 %v3883
    %4590 = vmatprep.mubr.bf16.mxu0 %v3121
    %4591 = vmatmul.mubr.bf16.gmra.mrb[0].mxu0 %v3120
    %v4592 = vpop.f32.mrb[0].mxu0
    %v4593 = vadd.f32 %v4304, %v4592
    %v4594 = vpop.f32.mrb[0].mxu0
    %v4595 = vpop.f32.mrb[0].mxu0
    %v4596 = vadd.f32 %v4307, %v4595
    %v4597 = vpop.f32.mrb[0].mxu0
    %4598 = vmatprep.mubr.bf16.mxu0 %v3130
    %4599 = vmatmul.mubr.bf16.gmra.mrb[0].mxu0 %v3129
    %v4600 = vpop.f32.mrb[0].mxu0
    %v4601 = vadd.f32 %v4312, %v4600
    %v4602 = vpop.f32.mrb[0].mxu0
    %v4603 = vpop.f32.mrb[0].mxu0
    %v4604 = vadd.f32 %v4315, %v4603
    %v4605 = vpop.f32.mrb[0].mxu0
    %4606 = vmatprep.mubr.bf16.mxu0 %v3139
    %4607 = vmatmul.mubr.bf16.gmra.mrb[0].mxu0 %v3138
    %v4608 = vpop.f32.mrb[0].mxu0
    %v4609 = vadd.f32 %v4320, %v4608
    %v4610 = vpop.f32.mrb[0].mxu0
    %v4611 = vpop.f32.mrb[0].mxu0
    %v4612 = vadd.f32 %v4323, %v4611
    %v4613 = vpop.f32.mrb[0].mxu0
    %4614 = vmatprep.mubr.bf16.mxu0 %v3148
    %4615 = vmatmul.mubr.bf16.gmra.mrb[0].mxu0 %v3147
    %v4616 = vpop.f32.mrb[0].mxu0
    %v4617 = vadd.f32 %v4328, %v4616
    %v4618 = vpop.f32.mrb[0].mxu0
    %v4619 = vpop.f32.mrb[0].mxu0
    %v4620 = vadd.f32 %v4331, %v4619
    %v4621 = vpop.f32.mrb[0].mxu0
    %4622 = vmatprep.mubr.bf16.mxu0 %v3157
    %4623 = vmatmul.mubr.bf16.gmra.mrb[0].mxu0 %v3156
    %v4624 = vpop.f32.mrb[0].mxu0
    %v4625 = vadd.f32 %v4336, %v4624
    %v4626 = vpop.f32.mrb[0].mxu0
    %v4627 = vpop.f32.mrb[0].mxu0
    %v4628 = vadd.f32 %v4339, %v4627
    %v4629 = vpop.f32.mrb[0].mxu0
    %4630 = vmatprep.mubr.bf16.mxu0 %v3166
    %4631 = vmatmul.mubr.bf16.gmra.mrb[0].mxu0 %v3165
    %v4632 = vpop.f32.mrb[0].mxu0
    %v4633 = vadd.f32 %v4344, %v4632
    %v4634 = vpop.f32.mrb[0].mxu0
    %v4635 = vpop.f32.mrb[0].mxu0
    %v4636 = vadd.f32 %v4347, %v4635
    %v4637 = vpop.f32.mrb[0].mxu0
    %4638 = vmatprep.mubr.bf16.mxu0 %v3175
    %4639 = vmatmul.mubr.bf16.gmra.mrb[0].mxu0 %v3174
    %v4640 = vpop.f32.mrb[0].mxu0
    %v4641 = vadd.f32 %v4352, %v4640
    %v4642 = vpop.f32.mrb[0].mxu0
    %v4643 = vpop.f32.mrb[0].mxu0
    %v4644 = vadd.f32 %v4355, %v4643
    %v4645 = vpop.f32.mrb[0].mxu0
    %4646 = vmatprep.mubr.bf16.mxu0 %v3184
    %4647 = vmatmul.mubr.bf16.gmra.mrb[0].mxu0 %v3183
    %v4648 = vpop.f32.mrb[0].mxu0
    %v4649 = vadd.f32 %v4360, %v4648
    %v4650 = vpop.f32.mrb[0].mxu0
    %v4651 = vpop.f32.mrb[0].mxu0
    %v4652 = vadd.f32 %v4363, %v4651
    %v4653 = vpop.f32.mrb[0].mxu0
    %4654 = vmatprep.mubr.bf16.mxu0 %v3193
    %4655 = vmatmul.mubr.bf16.gmra.mrb[0].mxu0 %v3192
    %v4656 = vpop.f32.mrb[0].mxu0
    %v4657 = vadd.f32 %v4368, %v4656
    %v4658 = vpop.f32.mrb[0].mxu0
    %v4659 = vpop.f32.mrb[0].mxu0
    %v4660 = vadd.f32 %v4371, %v4659
    %v4661 = vpop.f32.mrb[0].mxu0
    %4662 = vmatprep.mubr.bf16.mxu0 %v3202
    %4663 = vmatmul.mubr.bf16.gmra.mrb[0].mxu0 %v3201
    %v4664 = vpop.f32.mrb[0].mxu0
    %v4665 = vadd.f32 %v4376, %v4664
    %v4666 = vpop.f32.mrb[0].mxu0
    %v4667 = vpop.f32.mrb[0].mxu0
    %v4668 = vadd.f32 %v4379, %v4667
    %v4669 = vpop.f32.mrb[0].mxu0
    %4670 = vmatprep.mubr.bf16.mxu0 %v3211
    %4671 = vmatmul.mubr.bf16.gmra.mrb[0].mxu0 %v3210
    %v4672 = vpop.f32.mrb[0].mxu0
    %v4673 = vadd.f32 %v4384, %v4672
    %v4674 = vpop.f32.mrb[0].mxu0
    %v4675 = vpop.f32.mrb[0].mxu0
    %v4676 = vadd.f32 %v4387, %v4675
    %v4677 = vpop.f32.mrb[0].mxu0
    %4678 = vmatprep.mubr.bf16.mxu0 %v3220
    %4679 = vmatmul.mubr.bf16.gmra.mrb[0].mxu0 %v3219
    %v4680 = vpop.f32.mrb[0].mxu0
    %v4681 = vadd.f32 %v4392, %v4680
    %v4682 = vpop.f32.mrb[0].mxu0
    %v4683 = vpop.f32.mrb[0].mxu0
    %v4684 = vadd.f32 %v4395, %v4683
    %v4685 = vpop.f32.mrb[0].mxu0
    %4686 = vmatprep.mubr.bf16.mxu0 %v3229
    %4687 = vmatmul.mubr.bf16.gmra.mrb[0].mxu0 %v3228
    %v4688 = vpop.f32.mrb[0].mxu0
    %v4689 = vadd.f32 %v4400, %v4688
    %v4690 = vpop.f32.mrb[0].mxu0
    %v4691 = vpop.f32.mrb[0].mxu0
    %v4692 = vadd.f32 %v4403, %v4691
    %v4693 = vpop.f32.mrb[0].mxu0
    %4694 = vmatprep.mubr.bf16.mxu0 %v3238
    %4695 = vmatmul.mubr.bf16.gmra.mrb[0].mxu0 %v3237
    %v4696 = vpop.f32.mrb[0].mxu0
    %v4697 = vadd.f32 %v4408, %v4696
    %v4698 = vpop.f32.mrb[0].mxu0
    %v4699 = vpop.f32.mrb[0].mxu0
    %v4700 = vadd.f32 %v4411, %v4699
    %v4701 = vpop.f32.mrb[0].mxu0
    %4702 = vmatprep.mubr.bf16.mxu0 %v3247
    %4703 = vmatmul.mubr.bf16.gmra.mrb[0].mxu0 %v3246
    %v4704 = vpop.f32.mrb[0].mxu0
    %v4705 = vadd.f32 %v4416, %v4704
    %v4706 = vpop.f32.mrb[0].mxu0
    %v4707 = vpop.f32.mrb[0].mxu0
    %v4708 = vadd.f32 %v4419, %v4707
    %v4709 = vpop.f32.mrb[0].mxu0
    %4710 = vmatprep.mubr.bf16.mxu0 %v3256
    %4711 = vmatmul.mubr.bf16.gmra.mrb[0].mxu0 %v3255
    %v4712 = vpop.f32.mrb[0].mxu0
    %v4713 = vadd.f32 %v4424, %v4712
    %v4714 = vpop.f32.mrb[0].mxu0
    %v4715 = vpop.f32.mrb[0].mxu0
    %v4716 = vadd.f32 %v4427, %v4715
    %v4717 = vpop.f32.mrb[0].mxu0
    %4718 = vmatprep.mubr.bf16.mxu0 %v3265
    %4719 = vmatmul.mubr.bf16.gmra.mrb[0].mxu0 %v3264
    %v4720 = vpop.f32.mrb[0].mxu0
    %v4721 = vadd.f32 %v4432, %v4720
    %v4722 = vpop.f32.mrb[0].mxu0
    %v4723 = vpop.f32.mrb[0].mxu0
    %v4724 = vadd.f32 %v4435, %v4723
    %v4725 = vpop.f32.mrb[0].mxu0
    %4726 = vmatprep.mubr.bf16.mxu0 %v3274
    %4727 = vmatmul.mubr.bf16.gmra.mrb[0].mxu0 %v3273
    %v4728 = vpop.f32.mrb[0].mxu0
    %v4729 = vadd.f32 %v4440, %v4728
    %v4730 = vpop.f32.mrb[0].mxu0
    %v4731 = vpop.f32.mrb[0].mxu0
    %v4732 = vadd.f32 %v4443, %v4731
    %v4733 = vpop.f32.mrb[0].mxu0
    %4734 = vmatprep.mubr.bf16.mxu0 %v3283
    %4735 = vmatmul.mubr.bf16.gmra.mrb[0].mxu0 %v3282
    %v4736 = vpop.f32.mrb[0].mxu0
    %v4737 = vadd.f32 %v4448, %v4736
    %v4738 = vpop.f32.mrb[0].mxu0
    %v4739 = vpop.f32.mrb[0].mxu0
    %v4740 = vadd.f32 %v4451, %v4739
    %v4741 = vpop.f32.mrb[0].mxu0
    %4742 = vmatprep.mubr.bf16.mxu0 %v3292
    %4743 = vmatmul.mubr.bf16.gmra.mrb[0].mxu0 %v3291
    %v4744 = vpop.f32.mrb[0].mxu0
    %v4745 = vadd.f32 %v4456, %v4744
    %v4746 = vpop.f32.mrb[0].mxu0
    %v4747 = vpop.f32.mrb[0].mxu0
    %v4748 = vadd.f32 %v4459, %v4747
    %v4749 = vpop.f32.mrb[0].mxu0
    %4750 = vmatprep.mubr.bf16.mxu0 %v3301
    %4751 = vmatmul.mubr.bf16.gmra.mrb[0].mxu0 %v3300
    %v4752 = vpop.f32.mrb[0].mxu0
    %v4753 = vadd.f32 %v4464, %v4752
    %v4754 = vpop.f32.mrb[0].mxu0
    %v4755 = vpop.f32.mrb[0].mxu0
    %v4756 = vadd.f32 %v4467, %v4755
    %v4757 = vpop.f32.mrb[0].mxu0
    %4758 = vmatprep.mubr.bf16.mxu0 %v3310
    %4759 = vmatmul.mubr.bf16.gmra.mrb[0].mxu0 %v3309
    %v4760 = vpop.f32.mrb[0].mxu0
    %v4761 = vadd.f32 %v4472, %v4760
    %v4762 = vpop.f32.mrb[0].mxu0
    %v4763 = vpop.f32.mrb[0].mxu0
    %v4764 = vadd.f32 %v4475, %v4763
    %v4765 = vpop.f32.mrb[0].mxu0
    %4766 = vmatprep.mubr.bf16.mxu0 %v3319
    %4767 = vmatmul.mubr.bf16.gmra.mrb[0].mxu0 %v3318
    %v4768 = vpop.f32.mrb[0].mxu0
    %v4769 = vadd.f32 %v4480, %v4768
    %v4770 = vpop.f32.mrb[0].mxu0
    %v4771 = vpop.f32.mrb[0].mxu0
    %v4772 = vadd.f32 %v4483, %v4771
    %v4773 = vpop.f32.mrb[0].mxu0
    %4774 = vmatprep.mubr.bf16.mxu0 %v3328
    %4775 = vmatmul.mubr.bf16.gmra.mrb[0].mxu0 %v3327
    %v4776 = vpop.f32.mrb[0].mxu0
    %v4777 = vadd.f32 %v4488, %v4776
    %v4778 = vpop.f32.mrb[0].mxu0
    %v4779 = vpop.f32.mrb[0].mxu0
    %v4780 = vadd.f32 %v4491, %v4779
    %v4781 = vpop.f32.mrb[0].mxu0
    %4782 = vmatprep.mubr.bf16.mxu0 %v3337
    %4783 = vmatmul.mubr.bf16.gmra.mrb[0].mxu0 %v3336
    %v4784 = vpop.f32.mrb[0].mxu0
    %v4785 = vadd.f32 %v4496, %v4784
    %v4786 = vpop.f32.mrb[0].mxu0
    %v4787 = vpop.f32.mrb[0].mxu0
    %v4788 = vadd.f32 %v4499, %v4787
    %v4789 = vpop.f32.mrb[0].mxu0
    %4790 = vmatprep.mubr.bf16.mxu0 %v3346
    %4791 = vmatmul.mubr.bf16.gmra.mrb[0].mxu0 %v3345
    %v4792 = vpop.f32.mrb[0].mxu0
    %v4793 = vadd.f32 %v4504, %v4792
    %v4794 = vpop.f32.mrb[0].mxu0
    %v4795 = vpop.f32.mrb[0].mxu0
    %v4796 = vadd.f32 %v4507, %v4795
    %v4797 = vpop.f32.mrb[0].mxu0
    %4798 = vmatprep.mubr.bf16.mxu0 %v3355
    %4799 = vmatmul.mubr.bf16.gmra.mrb[0].mxu0 %v3354
    %v4800 = vpop.f32.mrb[0].mxu0
    %v4801 = vadd.f32 %v4512, %v4800
    %v4802 = vpop.f32.mrb[0].mxu0
    %v4803 = vpop.f32.mrb[0].mxu0
    %v4804 = vadd.f32 %v4515, %v4803
    %v4805 = vpop.f32.mrb[0].mxu0
    %4806 = vmatprep.mubr.bf16.mxu0 %v3364
    %4807 = vmatmul.mubr.bf16.gmra.mrb[0].mxu0 %v3363
    %v4808 = vpop.f32.mrb[0].mxu0
    %v4809 = vadd.f32 %v4520, %v4808
    %v4810 = vpop.f32.mrb[0].mxu0
    %v4811 = vpop.f32.mrb[0].mxu0
    %v4812 = vadd.f32 %v4523, %v4811
    %v4813 = vpop.f32.mrb[0].mxu0
    %4814 = vmatprep.mubr.bf16.mxu0 %v3373
    %4815 = vmatmul.mubr.bf16.gmra.mrb[0].mxu0 %v3372
    %v4816 = vpop.f32.mrb[0].mxu0
    %v4817 = vadd.f32 %v4528, %v4816
    %v4818 = vpop.f32.mrb[0].mxu0
    %v4819 = vpop.f32.mrb[0].mxu0
    %v4820 = vadd.f32 %v4531, %v4819
    %v4821 = vpop.f32.mrb[0].mxu0
    %4822 = vmatprep.mubr.bf16.mxu0 %v3382
    %4823 = vmatmul.mubr.bf16.gmra.mrb[0].mxu0 %v3381
    %v4824 = vpop.f32.mrb[0].mxu0
    %v4825 = vadd.f32 %v4536, %v4824
    %v4826 = vpop.f32.mrb[0].mxu0
    %v4827 = vpop.f32.mrb[0].mxu0
    %v4828 = vadd.f32 %v4539, %v4827
    %v4829 = vpop.f32.mrb[0].mxu0
    %4830 = vmatprep.mubr.bf16.mxu0 %v3391
    %4831 = vmatmul.mubr.bf16.gmra.mrb[0].mxu0 %v3390
    %v4832 = vpop.f32.mrb[0].mxu0
    %v4833 = vadd.f32 %v4544, %v4832
    %v4834 = vpop.f32.mrb[0].mxu0
    %v4835 = vpop.f32.mrb[0].mxu0
    %v4836 = vadd.f32 %v4547, %v4835
    %v4837 = vpop.f32.mrb[0].mxu0
    %4838 = vmatprep.mubr.bf16.mxu0 %v3400
    %4839 = vmatmul.mubr.bf16.gmra.mrb[0].mxu0 %v3399
    %v4840 = vpop.f32.mrb[0].mxu0
    %v4841 = vadd.f32 %v4552, %v4840
    %v4842 = vpop.f32.mrb[0].mxu0
    %v4843 = vpop.f32.mrb[0].mxu0
    %v4844 = vadd.f32 %v4555, %v4843
    %v4845 = vpop.f32.mrb[0].mxu0
    %4846 = vdwg.mxu0
    %4847 = vmatprep.subr.bf16.mxu0 0
    %4848 = vmatpush1.bf16.msra.mxu0 %v3884
    %4849 = vmatprep.subr.bf16.mxu0 0
    %4850 = vmatpush1.bf16.msra.mxu0 %v3885
    %4851 = vmatprep.subr.bf16.mxu0 0
    %4852 = vmatpush1.bf16.msra.mxu0 %v3886
    %4853 = vmatprep.subr.bf16.mxu0 0
    %4854 = vmatpush1.bf16.msra.mxu0 %v3887
    %4855 = vmatprep.subr.bf16.mxu0 0
    %4856 = vmatpush1.bf16.msra.mxu0 %v3888
    %4857 = vmatprep.subr.bf16.mxu0 0
    %4858 = vmatpush1.bf16.msra.mxu0 %v3889
    %4859 = vmatprep.subr.bf16.mxu0 0
    %4860 = vmatpush1.bf16.msra.mxu0 %v3890
    %4861 = vmatprep.subr.bf16.mxu0 0
    %4862 = vmatpush1.bf16.msra.mxu0 %v3891
    %4863 = vmatprep.subr.bf16.mxu0 0
    %4864 = vmatpush1.bf16.msra.mxu0 %v3892
    %4865 = vmatprep.subr.bf16.mxu0 0
    %4866 = vmatpush1.bf16.msra.mxu0 %v3893
    %4867 = vmatprep.subr.bf16.mxu0 0
    %4868 = vmatpush1.bf16.msra.mxu0 %v3894
    %4869 = vmatprep.subr.bf16.mxu0 0
    %4870 = vmatpush1.bf16.msra.mxu0 %v3895
    %4871 = vmatprep.subr.bf16.mxu0 0
    %4872 = vmatpush1.bf16.msra.mxu0 %v3896
    %4873 = vmatprep.subr.bf16.mxu0 0
    %4874 = vmatpush1.bf16.msra.mxu0 %v3897
    %4875 = vmatprep.subr.bf16.mxu0 0
    %4876 = vmatpush1.bf16.msra.mxu0 %v3898
    %4877 = vmatprep.subr.bf16.mxu0 0
    %4878 = vmatpush1.bf16.msra.mxu0 %v3899
    %4879 = vmatprep.mubr.bf16.mxu0 %v3123
    %4880 = vmatmul.mubr.bf16.gmra.mrb[0].mxu0 %v3122
    %v4881 = vpop.f32.mrb[0].mxu0
    %v4882 = vadd.f32 %v4593, %v4881
    %v4883 = vpop.f32.mrb[0].mxu0
    %v4884 = vpop.f32.mrb[0].mxu0
    %v4885 = vadd.f32 %v4596, %v4884
    %v4886 = vpop.f32.mrb[0].mxu0
    %4887 = vmatprep.mubr.bf16.mxu0 %v3132
    %4888 = vmatmul.mubr.bf16.gmra.mrb[0].mxu0 %v3131
    %v4889 = vpop.f32.mrb[0].mxu0
    %v4890 = vadd.f32 %v4601, %v4889
    %v4891 = vpop.f32.mrb[0].mxu0
    %v4892 = vpop.f32.mrb[0].mxu0
    %v4893 = vadd.f32 %v4604, %v4892
    %v4894 = vpop.f32.mrb[0].mxu0
    %4895 = vmatprep.mubr.bf16.mxu0 %v3141
    %4896 = vmatmul.mubr.bf16.gmra.mrb[0].mxu0 %v3140
    %v4897 = vpop.f32.mrb[0].mxu0
    %v4898 = vadd.f32 %v4609, %v4897
    %v4899 = vpop.f32.mrb[0].mxu0
    %v4900 = vpop.f32.mrb[0].mxu0
    %v4901 = vadd.f32 %v4612, %v4900
    %v4902 = vpop.f32.mrb[0].mxu0
    %4903 = vmatprep.mubr.bf16.mxu0 %v3150
    %4904 = vmatmul.mubr.bf16.gmra.mrb[0].mxu0 %v3149
    %v4905 = vpop.f32.mrb[0].mxu0
    %v4906 = vadd.f32 %v4617, %v4905
    %v4907 = vpop.f32.mrb[0].mxu0
    %v4908 = vpop.f32.mrb[0].mxu0
    %v4909 = vadd.f32 %v4620, %v4908
    %v4910 = vpop.f32.mrb[0].mxu0
    %4911 = vmatprep.mubr.bf16.mxu0 %v3159
    %4912 = vmatmul.mubr.bf16.gmra.mrb[0].mxu0 %v3158
    %v4913 = vpop.f32.mrb[0].mxu0
    %v4914 = vadd.f32 %v4625, %v4913
    %v4915 = vpop.f32.mrb[0].mxu0
    %v4916 = vpop.f32.mrb[0].mxu0
    %v4917 = vadd.f32 %v4628, %v4916
    %v4918 = vpop.f32.mrb[0].mxu0
    %4919 = vmatprep.mubr.bf16.mxu0 %v3168
    %4920 = vmatmul.mubr.bf16.gmra.mrb[0].mxu0 %v3167
    %v4921 = vpop.f32.mrb[0].mxu0
    %v4922 = vadd.f32 %v4633, %v4921
    %v4923 = vpop.f32.mrb[0].mxu0
    %v4924 = vpop.f32.mrb[0].mxu0
    %v4925 = vadd.f32 %v4636, %v4924
    %v4926 = vpop.f32.mrb[0].mxu0
    %4927 = vmatprep.mubr.bf16.mxu0 %v3177
    %4928 = vmatmul.mubr.bf16.gmra.mrb[0].mxu0 %v3176
    %v4929 = vpop.f32.mrb[0].mxu0
    %v4930 = vadd.f32 %v4641, %v4929
    %v4931 = vpop.f32.mrb[0].mxu0
    %v4932 = vpop.f32.mrb[0].mxu0
    %v4933 = vadd.f32 %v4644, %v4932
    %v4934 = vpop.f32.mrb[0].mxu0
    %4935 = vmatprep.mubr.bf16.mxu0 %v3186
    %4936 = vmatmul.mubr.bf16.gmra.mrb[0].mxu0 %v3185
    %v4937 = vpop.f32.mrb[0].mxu0
    %v4938 = vadd.f32 %v4649, %v4937
    %v4939 = vpop.f32.mrb[0].mxu0
    %v4940 = vpop.f32.mrb[0].mxu0
    %v4941 = vadd.f32 %v4652, %v4940
    %v4942 = vpop.f32.mrb[0].mxu0
    %4943 = vmatprep.mubr.bf16.mxu0 %v3195
    %4944 = vmatmul.mubr.bf16.gmra.mrb[0].mxu0 %v3194
    %v4945 = vpop.f32.mrb[0].mxu0
    %v4946 = vadd.f32 %v4657, %v4945
    %v4947 = vpop.f32.mrb[0].mxu0
    %v4948 = vpop.f32.mrb[0].mxu0
    %v4949 = vadd.f32 %v4660, %v4948
    %v4950 = vpop.f32.mrb[0].mxu0
    %4951 = vmatprep.mubr.bf16.mxu0 %v3204
    %4952 = vmatmul.mubr.bf16.gmra.mrb[0].mxu0 %v3203
    %v4953 = vpop.f32.mrb[0].mxu0
    %v4954 = vadd.f32 %v4665, %v4953
    %v4955 = vpop.f32.mrb[0].mxu0
    %v4956 = vpop.f32.mrb[0].mxu0
    %v4957 = vadd.f32 %v4668, %v4956
    %v4958 = vpop.f32.mrb[0].mxu0
    %4959 = vmatprep.mubr.bf16.mxu0 %v3213
    %4960 = vmatmul.mubr.bf16.gmra.mrb[0].mxu0 %v3212
    %v4961 = vpop.f32.mrb[0].mxu0
    %v4962 = vadd.f32 %v4673, %v4961
    %v4963 = vpop.f32.mrb[0].mxu0
    %v4964 = vpop.f32.mrb[0].mxu0
    %v4965 = vadd.f32 %v4676, %v4964
    %v4966 = vpop.f32.mrb[0].mxu0
    %4967 = vmatprep.mubr.bf16.mxu0 %v3222
    %4968 = vmatmul.mubr.bf16.gmra.mrb[0].mxu0 %v3221
    %v4969 = vpop.f32.mrb[0].mxu0
    %v4970 = vadd.f32 %v4681, %v4969
    %v4971 = vpop.f32.mrb[0].mxu0
    %v4972 = vpop.f32.mrb[0].mxu0
    %v4973 = vadd.f32 %v4684, %v4972
    %v4974 = vpop.f32.mrb[0].mxu0
    %4975 = vmatprep.mubr.bf16.mxu0 %v3231
    %4976 = vmatmul.mubr.bf16.gmra.mrb[0].mxu0 %v3230
    %v4977 = vpop.f32.mrb[0].mxu0
    %v4978 = vadd.f32 %v4689, %v4977
    %v4979 = vpop.f32.mrb[0].mxu0
    %v4980 = vpop.f32.mrb[0].mxu0
    %v4981 = vadd.f32 %v4692, %v4980
    %v4982 = vpop.f32.mrb[0].mxu0
    %4983 = vmatprep.mubr.bf16.mxu0 %v3240
    %4984 = vmatmul.mubr.bf16.gmra.mrb[0].mxu0 %v3239
    %v4985 = vpop.f32.mrb[0].mxu0
    %v4986 = vadd.f32 %v4697, %v4985
    %v4987 = vpop.f32.mrb[0].mxu0
    %v4988 = vpop.f32.mrb[0].mxu0
    %v4989 = vadd.f32 %v4700, %v4988
    %v4990 = vpop.f32.mrb[0].mxu0
    %4991 = vmatprep.mubr.bf16.mxu0 %v3249
    %4992 = vmatmul.mubr.bf16.gmra.mrb[0].mxu0 %v3248
    %v4993 = vpop.f32.mrb[0].mxu0
    %v4994 = vadd.f32 %v4705, %v4993
    %v4995 = vpop.f32.mrb[0].mxu0
    %v4996 = vpop.f32.mrb[0].mxu0
    %v4997 = vadd.f32 %v4708, %v4996
    %v4998 = vpop.f32.mrb[0].mxu0
    %4999 = vmatprep.mubr.bf16.mxu0 %v3258
    %5000 = vmatmul.mubr.bf16.gmra.mrb[0].mxu0 %v3257
    %v5001 = vpop.f32.mrb[0].mxu0
    %v5002 = vadd.f32 %v4713, %v5001
    %v5003 = vpop.f32.mrb[0].mxu0
    %v5004 = vpop.f32.mrb[0].mxu0
    %v5005 = vadd.f32 %v4716, %v5004
    %v5006 = vpop.f32.mrb[0].mxu0
    %5007 = vmatprep.mubr.bf16.mxu0 %v3267
    %5008 = vmatmul.mubr.bf16.gmra.mrb[0].mxu0 %v3266
    %v5009 = vpop.f32.mrb[0].mxu0
    %v5010 = vadd.f32 %v4721, %v5009
    %v5011 = vpop.f32.mrb[0].mxu0
    %v5012 = vpop.f32.mrb[0].mxu0
    %v5013 = vadd.f32 %v4724, %v5012
    %v5014 = vpop.f32.mrb[0].mxu0
    %5015 = vmatprep.mubr.bf16.mxu0 %v3276
    %5016 = vmatmul.mubr.bf16.gmra.mrb[0].mxu0 %v3275
    %v5017 = vpop.f32.mrb[0].mxu0
    %v5018 = vadd.f32 %v4729, %v5017
    %v5019 = vpop.f32.mrb[0].mxu0
    %v5020 = vpop.f32.mrb[0].mxu0
    %v5021 = vadd.f32 %v4732, %v5020
    %v5022 = vpop.f32.mrb[0].mxu0
    %5023 = vmatprep.mubr.bf16.mxu0 %v3285
    %5024 = vmatmul.mubr.bf16.gmra.mrb[0].mxu0 %v3284
    %v5025 = vpop.f32.mrb[0].mxu0
    %v5026 = vadd.f32 %v4737, %v5025
    %v5027 = vpop.f32.mrb[0].mxu0
    %v5028 = vpop.f32.mrb[0].mxu0
    %v5029 = vadd.f32 %v4740, %v5028
    %v5030 = vpop.f32.mrb[0].mxu0
    %5031 = vmatprep.mubr.bf16.mxu0 %v3294
    %5032 = vmatmul.mubr.bf16.gmra.mrb[0].mxu0 %v3293
    %v5033 = vpop.f32.mrb[0].mxu0
    %v5034 = vadd.f32 %v4745, %v5033
    %v5035 = vpop.f32.mrb[0].mxu0
    %v5036 = vpop.f32.mrb[0].mxu0
    %v5037 = vadd.f32 %v4748, %v5036
    %v5038 = vpop.f32.mrb[0].mxu0
    %5039 = vmatprep.mubr.bf16.mxu0 %v3303
    %5040 = vmatmul.mubr.bf16.gmra.mrb[0].mxu0 %v3302
    %v5041 = vpop.f32.mrb[0].mxu0
    %v5042 = vadd.f32 %v4753, %v5041
    %v5043 = vpop.f32.mrb[0].mxu0
    %v5044 = vpop.f32.mrb[0].mxu0
    %v5045 = vadd.f32 %v4756, %v5044
    %v5046 = vpop.f32.mrb[0].mxu0
    %5047 = vmatprep.mubr.bf16.mxu0 %v3312
    %5048 = vmatmul.mubr.bf16.gmra.mrb[0].mxu0 %v3311
    %v5049 = vpop.f32.mrb[0].mxu0
    %v5050 = vadd.f32 %v4761, %v5049
    %v5051 = vpop.f32.mrb[0].mxu0
    %v5052 = vpop.f32.mrb[0].mxu0
    %v5053 = vadd.f32 %v4764, %v5052
    %v5054 = vpop.f32.mrb[0].mxu0
    %5055 = vmatprep.mubr.bf16.mxu0 %v3321
    %5056 = vmatmul.mubr.bf16.gmra.mrb[0].mxu0 %v3320
    %v5057 = vpop.f32.mrb[0].mxu0
    %v5058 = vadd.f32 %v4769, %v5057
    %v5059 = vpop.f32.mrb[0].mxu0
    %v5060 = vpop.f32.mrb[0].mxu0
    %v5061 = vadd.f32 %v4772, %v5060
    %v5062 = vpop.f32.mrb[0].mxu0
    %5063 = vmatprep.mubr.bf16.mxu0 %v3330
    %5064 = vmatmul.mubr.bf16.gmra.mrb[0].mxu0 %v3329
    %v5065 = vpop.f32.mrb[0].mxu0
    %v5066 = vadd.f32 %v4777, %v5065
    %v5067 = vpop.f32.mrb[0].mxu0
    %v5068 = vpop.f32.mrb[0].mxu0
    %v5069 = vadd.f32 %v4780, %v5068
    %v5070 = vpop.f32.mrb[0].mxu0
    %5071 = vmatprep.mubr.bf16.mxu0 %v3339
    %5072 = vmatmul.mubr.bf16.gmra.mrb[0].mxu0 %v3338
    %v5073 = vpop.f32.mrb[0].mxu0
    %v5074 = vadd.f32 %v4785, %v5073
    %v5075 = vpop.f32.mrb[0].mxu0
    %v5076 = vpop.f32.mrb[0].mxu0
    %v5077 = vadd.f32 %v4788, %v5076
    %v5078 = vpop.f32.mrb[0].mxu0
    %5079 = vmatprep.mubr.bf16.mxu0 %v3348
    %5080 = vmatmul.mubr.bf16.gmra.mrb[0].mxu0 %v3347
    %v5081 = vpop.f32.mrb[0].mxu0
    %v5082 = vadd.f32 %v4793, %v5081
    %v5083 = vpop.f32.mrb[0].mxu0
    %v5084 = vpop.f32.mrb[0].mxu0
    %v5085 = vadd.f32 %v4796, %v5084
    %v5086 = vpop.f32.mrb[0].mxu0
    %5087 = vmatprep.mubr.bf16.mxu0 %v3357
    %5088 = vmatmul.mubr.bf16.gmra.mrb[0].mxu0 %v3356
    %v5089 = vpop.f32.mrb[0].mxu0
    %v5090 = vadd.f32 %v4801, %v5089
    %v5091 = vpop.f32.mrb[0].mxu0
    %v5092 = vpop.f32.mrb[0].mxu0
    %v5093 = vadd.f32 %v4804, %v5092
    %v5094 = vpop.f32.mrb[0].mxu0
    %5095 = vmatprep.mubr.bf16.mxu0 %v3366
    %5096 = vmatmul.mubr.bf16.gmra.mrb[0].mxu0 %v3365
    %v5097 = vpop.f32.mrb[0].mxu0
    %v5098 = vadd.f32 %v4809, %v5097
    %v5099 = vpop.f32.mrb[0].mxu0
    %v5100 = vpop.f32.mrb[0].mxu0
    %v5101 = vadd.f32 %v4812, %v5100
    %v5102 = vpop.f32.mrb[0].mxu0
    %5103 = vmatprep.mubr.bf16.mxu0 %v3375
    %5104 = vmatmul.mubr.bf16.gmra.mrb[0].mxu0 %v3374
    %v5105 = vpop.f32.mrb[0].mxu0
    %v5106 = vadd.f32 %v4817, %v5105
    %v5107 = vpop.f32.mrb[0].mxu0
    %v5108 = vpop.f32.mrb[0].mxu0
    %v5109 = vadd.f32 %v4820, %v5108
    %v5110 = vpop.f32.mrb[0].mxu0
    %5111 = vmatprep.mubr.bf16.mxu0 %v3384
    %5112 = vmatmul.mubr.bf16.gmra.mrb[0].mxu0 %v3383
    %v5113 = vpop.f32.mrb[0].mxu0
    %v5114 = vadd.f32 %v4825, %v5113
    %v5115 = vpop.f32.mrb[0].mxu0
    %v5116 = vpop.f32.mrb[0].mxu0
    %v5117 = vadd.f32 %v4828, %v5116
    %v5118 = vpop.f32.mrb[0].mxu0
    %5119 = vmatprep.mubr.bf16.mxu0 %v3393
    %5120 = vmatmul.mubr.bf16.gmra.mrb[0].mxu0 %v3392
    %v5121 = vpop.f32.mrb[0].mxu0
    %v5122 = vadd.f32 %v4833, %v5121
    %v5123 = vpop.f32.mrb[0].mxu0
    %v5124 = vpop.f32.mrb[0].mxu0
    %v5125 = vadd.f32 %v4836, %v5124
    %v5126 = vpop.f32.mrb[0].mxu0
    %5127 = vmatprep.mubr.bf16.mxu0 %v3402
    %5128 = vmatmul.mubr.bf16.gmra.mrb[0].mxu0 %v3401
    %v5129 = vpop.f32.mrb[0].mxu0
    %v5130 = vadd.f32 %v4841, %v5129
    %v5131 = vpop.f32.mrb[0].mxu0
    %v5132 = vpop.f32.mrb[0].mxu0
    %v5133 = vadd.f32 %v4844, %v5132
    %v5134 = vpop.f32.mrb[0].mxu0
    %5135 = vdwg.mxu0
    %5136 = vmatprep.subr.bf16.mxu0 0
    %5137 = vmatpush1.bf16.msra.mxu0 %v3900
    %5138 = vmatprep.subr.bf16.mxu0 0
    %5139 = vmatpush1.bf16.msra.mxu0 %v3901
    %5140 = vmatprep.subr.bf16.mxu0 0
    %5141 = vmatpush1.bf16.msra.mxu0 %v3902
    %5142 = vmatprep.subr.bf16.mxu0 0
    %5143 = vmatpush1.bf16.msra.mxu0 %v3903
    %5144 = vmatprep.subr.bf16.mxu0 0
    %5145 = vmatpush1.bf16.msra.mxu0 %v3904
    %5146 = vmatprep.subr.bf16.mxu0 0
    %5147 = vmatpush1.bf16.msra.mxu0 %v3905
    %5148 = vmatprep.subr.bf16.mxu0 0
    %5149 = vmatpush1.bf16.msra.mxu0 %v3906
    %5150 = vmatprep.subr.bf16.mxu0 0
    %5151 = vmatpush1.bf16.msra.mxu0 %v3907
    %5152 = vmatprep.subr.bf16.mxu0 0
    %5153 = vmatpush1.bf16.msra.mxu0 0
    %5154 = vmatprep.subr.bf16.mxu0 0
    %5155 = vmatpush1.bf16.msra.mxu0 0
    %5156 = vmatprep.subr.bf16.mxu0 0
    %5157 = vmatpush1.bf16.msra.mxu0 0
    %5158 = vmatprep.subr.bf16.mxu0 0
    %5159 = vmatpush1.bf16.msra.mxu0 0
    %5160 = vmatprep.subr.bf16.mxu0 0
    %5161 = vmatpush1.bf16.msra.mxu0 0
    %5162 = vmatprep.subr.bf16.mxu0 0
    %5163 = vmatpush1.bf16.msra.mxu0 0
    %5164 = vmatprep.subr.bf16.mxu0 0
    %5165 = vmatpush1.bf16.msra.mxu0 0
    %5166 = vmatprep.subr.bf16.mxu0 0
    %5167 = vmatpush1.bf16.msra.mxu0 0
    %5168 = vmatprep.mubr.bf16.mxu0 0
    %5169 = vmatmul.mubr.bf16.gmra.mrb[0].mxu0 %v3124
    %v5170 = vpop.f32.mrb[0].mxu0
    %v5171 = vadd.f32 %v4882, %v5170
    %v5172 = vpop.f32.mrb[0].mxu0
    %v5173 = vpop.f32.mrb[0].mxu0
    %v5174 = vadd.f32 %v4885, %v5173
    %v5175 = vpop.f32.mrb[0].mxu0
    %5176 = vmatprep.mubr.bf16.mxu0 0
    %5177 = vmatmul.mubr.bf16.gmra.mrb[0].mxu0 %v3133
    %v5178 = vpop.f32.mrb[0].mxu0
    %v5179 = vadd.f32 %v4890, %v5178
    %v5180 = vpop.f32.mrb[0].mxu0
    %v5181 = vpop.f32.mrb[0].mxu0
    %v5182 = vadd.f32 %v4893, %v5181
    %v5183 = vpop.f32.mrb[0].mxu0
    %5184 = vmatprep.mubr.bf16.mxu0 0
    %5185 = vmatmul.mubr.bf16.gmra.mrb[0].mxu0 %v3142
    %v5186 = vpop.f32.mrb[0].mxu0
    %v5187 = vadd.f32 %v4898, %v5186
    %v5188 = vpop.f32.mrb[0].mxu0
    %v5189 = vpop.f32.mrb[0].mxu0
    %v5190 = vadd.f32 %v4901, %v5189
    %v5191 = vpop.f32.mrb[0].mxu0
    %5192 = vmatprep.mubr.bf16.mxu0 0
    %5193 = vmatmul.mubr.bf16.gmra.mrb[0].mxu0 %v3151
    %v5194 = vpop.f32.mrb[0].mxu0
    %v5195 = vadd.f32 %v4906, %v5194
    %v5196 = vpop.f32.mrb[0].mxu0
    %v5197 = vpop.f32.mrb[0].mxu0
    %v5198 = vadd.f32 %v4909, %v5197
    %v5199 = vpop.f32.mrb[0].mxu0
    %5200 = vmatprep.mubr.bf16.mxu0 0
    %5201 = vmatmul.mubr.bf16.gmra.mrb[0].mxu0 %v3160
    %v5202 = vpop.f32.mrb[0].mxu0
    %v5203 = vadd.f32 %v4914, %v5202
    %v5204 = vpop.f32.mrb[0].mxu0
    %v5205 = vpop.f32.mrb[0].mxu0
    %v5206 = vadd.f32 %v4917, %v5205
    %v5207 = vpop.f32.mrb[0].mxu0
    %5208 = vmatprep.mubr.bf16.mxu0 0
    %5209 = vmatmul.mubr.bf16.gmra.mrb[0].mxu0 %v3169
    %v5210 = vpop.f32.mrb[0].mxu0
    %v5211 = vadd.f32 %v4922, %v5210
    %v5212 = vpop.f32.mrb[0].mxu0
    %v5213 = vpop.f32.mrb[0].mxu0
    %v5214 = vadd.f32 %v4925, %v5213
    %v5215 = vpop.f32.mrb[0].mxu0
    %5216 = vmatprep.mubr.bf16.mxu0 0
    %5217 = vmatmul.mubr.bf16.gmra.mrb[0].mxu0 %v3178
    %v5218 = vpop.f32.mrb[0].mxu0
    %v5219 = vadd.f32 %v4930, %v5218
    %v5220 = vpop.f32.mrb[0].mxu0
    %v5221 = vpop.f32.mrb[0].mxu0
    %v5222 = vadd.f32 %v4933, %v5221
    %v5223 = vpop.f32.mrb[0].mxu0
    %5224 = vmatprep.mubr.bf16.mxu0 0
    %5225 = vmatmul.mubr.bf16.gmra.mrb[0].mxu0 %v3187
    %v5226 = vpop.f32.mrb[0].mxu0
    %v5227 = vadd.f32 %v4938, %v5226
    %v5228 = vpop.f32.mrb[0].mxu0
    %v5229 = vpop.f32.mrb[0].mxu0
    %v5230 = vadd.f32 %v4941, %v5229
    %v5231 = vpop.f32.mrb[0].mxu0
    %5232 = vmatprep.mubr.bf16.mxu0 0
    %5233 = vmatmul.mubr.bf16.gmra.mrb[0].mxu0 %v3196
    %v5234 = vpop.f32.mrb[0].mxu0
    %v5235 = vadd.f32 %v4946, %v5234
    %v5236 = vpop.f32.mrb[0].mxu0
    %v5237 = vpop.f32.mrb[0].mxu0
    %v5238 = vadd.f32 %v4949, %v5237
    %v5239 = vpop.f32.mrb[0].mxu0
    %5240 = vmatprep.mubr.bf16.mxu0 0
    %5241 = vmatmul.mubr.bf16.gmra.mrb[0].mxu0 %v3205
    %v5242 = vpop.f32.mrb[0].mxu0
    %v5243 = vadd.f32 %v4954, %v5242
    %v5244 = vpop.f32.mrb[0].mxu0
    %v5245 = vpop.f32.mrb[0].mxu0
    %v5246 = vadd.f32 %v4957, %v5245
    %v5247 = vpop.f32.mrb[0].mxu0
    %5248 = vmatprep.mubr.bf16.mxu0 0
    %5249 = vmatmul.mubr.bf16.gmra.mrb[0].mxu0 %v3214
    %v5250 = vpop.f32.mrb[0].mxu0
    %v5251 = vadd.f32 %v4962, %v5250
    %v5252 = vpop.f32.mrb[0].mxu0
    %v5253 = vpop.f32.mrb[0].mxu0
    %v5254 = vadd.f32 %v4965, %v5253
    %v5255 = vpop.f32.mrb[0].mxu0
    %5256 = vmatprep.mubr.bf16.mxu0 0
    %5257 = vmatmul.mubr.bf16.gmra.mrb[0].mxu0 %v3223
    %v5258 = vpop.f32.mrb[0].mxu0
    %v5259 = vadd.f32 %v4970, %v5258
    %v5260 = vpop.f32.mrb[0].mxu0
    %v5261 = vpop.f32.mrb[0].mxu0
    %v5262 = vadd.f32 %v4973, %v5261
    %v5263 = vpop.f32.mrb[0].mxu0
    %5264 = vmatprep.mubr.bf16.mxu0 0
    %5265 = vmatmul.mubr.bf16.gmra.mrb[0].mxu0 %v3232
    %v5266 = vpop.f32.mrb[0].mxu0
    %v5267 = vadd.f32 %v4978, %v5266
    %v5268 = vpop.f32.mrb[0].mxu0
    %v5269 = vpop.f32.mrb[0].mxu0
    %v5270 = vadd.f32 %v4981, %v5269
    %v5271 = vpop.f32.mrb[0].mxu0
    %5272 = vmatprep.mubr.bf16.mxu0 0
    %5273 = vmatmul.mubr.bf16.gmra.mrb[0].mxu0 %v3241
    %v5274 = vpop.f32.mrb[0].mxu0
    %v5275 = vadd.f32 %v4986, %v5274
    %v5276 = vpop.f32.mrb[0].mxu0
    %v5277 = vpop.f32.mrb[0].mxu0
    %v5278 = vadd.f32 %v4989, %v5277
    %v5279 = vpop.f32.mrb[0].mxu0
    %5280 = vmatprep.mubr.bf16.mxu0 0
    %5281 = vmatmul.mubr.bf16.gmra.mrb[0].mxu0 %v3250
    %v5282 = vpop.f32.mrb[0].mxu0
    %v5283 = vadd.f32 %v4994, %v5282
    %v5284 = vpop.f32.mrb[0].mxu0
    %v5285 = vpop.f32.mrb[0].mxu0
    %v5286 = vadd.f32 %v4997, %v5285
    %v5287 = vpop.f32.mrb[0].mxu0
    %5288 = vmatprep.mubr.bf16.mxu0 0
    %5289 = vmatmul.mubr.bf16.gmra.mrb[0].mxu0 %v3259
    %v5290 = vpop.f32.mrb[0].mxu0
    %v5291 = vadd.f32 %v5002, %v5290
    %v5292 = vpop.f32.mrb[0].mxu0
    %v5293 = vpop.f32.mrb[0].mxu0
    %v5294 = vadd.f32 %v5005, %v5293
    %v5295 = vpop.f32.mrb[0].mxu0
    %5296 = vmatprep.mubr.bf16.mxu0 0
    %5297 = vmatmul.mubr.bf16.gmra.mrb[0].mxu0 %v3268
    %v5298 = vpop.f32.mrb[0].mxu0
    %v5299 = vadd.f32 %v5010, %v5298
    %v5300 = vpop.f32.mrb[0].mxu0
    %v5301 = vpop.f32.mrb[0].mxu0
    %v5302 = vadd.f32 %v5013, %v5301
    %v5303 = vpop.f32.mrb[0].mxu0
    %5304 = vmatprep.mubr.bf16.mxu0 0
    %5305 = vmatmul.mubr.bf16.gmra.mrb[0].mxu0 %v3277
    %v5306 = vpop.f32.mrb[0].mxu0
    %v5307 = vadd.f32 %v5018, %v5306
    %v5308 = vpop.f32.mrb[0].mxu0
    %v5309 = vpop.f32.mrb[0].mxu0
    %v5310 = vadd.f32 %v5021, %v5309
    %v5311 = vpop.f32.mrb[0].mxu0
    %5312 = vmatprep.mubr.bf16.mxu0 0
    %5313 = vmatmul.mubr.bf16.gmra.mrb[0].mxu0 %v3286
    %v5314 = vpop.f32.mrb[0].mxu0
    %v5315 = vadd.f32 %v5026, %v5314
    %v5316 = vpop.f32.mrb[0].mxu0
    %v5317 = vpop.f32.mrb[0].mxu0
    %v5318 = vadd.f32 %v5029, %v5317
    %v5319 = vpop.f32.mrb[0].mxu0
    %5320 = vmatprep.mubr.bf16.mxu0 0
    %5321 = vmatmul.mubr.bf16.gmra.mrb[0].mxu0 %v3295
    %v5322 = vpop.f32.mrb[0].mxu0
    %v5323 = vadd.f32 %v5034, %v5322
    %v5324 = vpop.f32.mrb[0].mxu0
    %v5325 = vpop.f32.mrb[0].mxu0
    %v5326 = vadd.f32 %v5037, %v5325
    %v5327 = vpop.f32.mrb[0].mxu0
    %5328 = vmatprep.mubr.bf16.mxu0 0
    %5329 = vmatmul.mubr.bf16.gmra.mrb[0].mxu0 %v3304
    %v5330 = vpop.f32.mrb[0].mxu0
    %v5331 = vadd.f32 %v5042, %v5330
    %v5332 = vpop.f32.mrb[0].mxu0
    %v5333 = vpop.f32.mrb[0].mxu0
    %v5334 = vadd.f32 %v5045, %v5333
    %v5335 = vpop.f32.mrb[0].mxu0
    %5336 = vmatprep.mubr.bf16.mxu0 0
    %5337 = vmatmul.mubr.bf16.gmra.mrb[0].mxu0 %v3313
    %v5338 = vpop.f32.mrb[0].mxu0
    %v5339 = vadd.f32 %v5050, %v5338
    %v5340 = vpop.f32.mrb[0].mxu0
    %v5341 = vpop.f32.mrb[0].mxu0
    %v5342 = vadd.f32 %v5053, %v5341
    %v5343 = vpop.f32.mrb[0].mxu0
    %5344 = vmatprep.mubr.bf16.mxu0 0
    %5345 = vmatmul.mubr.bf16.gmra.mrb[0].mxu0 %v3322
    %v5346 = vpop.f32.mrb[0].mxu0
    %v5347 = vadd.f32 %v5058, %v5346
    %v5348 = vpop.f32.mrb[0].mxu0
    %v5349 = vpop.f32.mrb[0].mxu0
    %v5350 = vadd.f32 %v5061, %v5349
    %v5351 = vpop.f32.mrb[0].mxu0
    %5352 = vmatprep.mubr.bf16.mxu0 0
    %5353 = vmatmul.mubr.bf16.gmra.mrb[0].mxu0 %v3331
    %v5354 = vpop.f32.mrb[0].mxu0
    %v5355 = vadd.f32 %v5066, %v5354
    %v5356 = vpop.f32.mrb[0].mxu0
    %v5357 = vpop.f32.mrb[0].mxu0
    %v5358 = vadd.f32 %v5069, %v5357
    %v5359 = vpop.f32.mrb[0].mxu0
    %5360 = vmatprep.mubr.bf16.mxu0 0
    %5361 = vmatmul.mubr.bf16.gmra.mrb[0].mxu0 %v3340
    %v5362 = vpop.f32.mrb[0].mxu0
    %v5363 = vadd.f32 %v5074, %v5362
    %v5364 = vpop.f32.mrb[0].mxu0
    %v5365 = vpop.f32.mrb[0].mxu0
    %v5366 = vadd.f32 %v5077, %v5365
    %v5367 = vpop.f32.mrb[0].mxu0
    %5368 = vmatprep.mubr.bf16.mxu0 0
    %5369 = vmatmul.mubr.bf16.gmra.mrb[0].mxu0 %v3349
    %v5370 = vpop.f32.mrb[0].mxu0
    %v5371 = vadd.f32 %v5082, %v5370
    %v5372 = vpop.f32.mrb[0].mxu0
    %v5373 = vpop.f32.mrb[0].mxu0
    %v5374 = vadd.f32 %v5085, %v5373
    %v5375 = vpop.f32.mrb[0].mxu0
    %5376 = vmatprep.mubr.bf16.mxu0 0
    %5377 = vmatmul.mubr.bf16.gmra.mrb[0].mxu0 %v3358
    %v5378 = vpop.f32.mrb[0].mxu0
    %v5379 = vadd.f32 %v5090, %v5378
    %v5380 = vpop.f32.mrb[0].mxu0
    %v5381 = vpop.f32.mrb[0].mxu0
    %v5382 = vadd.f32 %v5093, %v5381
    %v5383 = vpop.f32.mrb[0].mxu0
    %5384 = vmatprep.mubr.bf16.mxu0 0
    %5385 = vmatmul.mubr.bf16.gmra.mrb[0].mxu0 %v3367
    %v5386 = vpop.f32.mrb[0].mxu0
    %v5387 = vadd.f32 %v5098, %v5386
    %v5388 = vpop.f32.mrb[0].mxu0
    %v5389 = vpop.f32.mrb[0].mxu0
    %v5390 = vadd.f32 %v5101, %v5389
    %v5391 = vpop.f32.mrb[0].mxu0
    %5392 = vmatprep.mubr.bf16.mxu0 0
    %5393 = vmatmul.mubr.bf16.gmra.mrb[0].mxu0 %v3376
    %v5394 = vpop.f32.mrb[0].mxu0
    %v5395 = vadd.f32 %v5106, %v5394
    %v5396 = vpop.f32.mrb[0].mxu0
    %v5397 = vpop.f32.mrb[0].mxu0
    %v5398 = vadd.f32 %v5109, %v5397
    %v5399 = vpop.f32.mrb[0].mxu0
    %5400 = vmatprep.mubr.bf16.mxu0 0
    %5401 = vmatmul.mubr.bf16.gmra.mrb[0].mxu0 %v3385
    %v5402 = vpop.f32.mrb[0].mxu0
    %v5403 = vadd.f32 %v5114, %v5402
    %v5404 = vpop.f32.mrb[0].mxu0
    %v5405 = vpop.f32.mrb[0].mxu0
    %v5406 = vadd.f32 %v5117, %v5405
    %v5407 = vpop.f32.mrb[0].mxu0
    %5408 = vmatprep.mubr.bf16.mxu0 0
    %5409 = vmatmul.mubr.bf16.gmra.mrb[0].mxu0 %v3394
    %v5410 = vpop.f32.mrb[0].mxu0
    %v5411 = vadd.f32 %v5122, %v5410
    %v5412 = vpop.f32.mrb[0].mxu0
    %v5413 = vpop.f32.mrb[0].mxu0
    %v5414 = vadd.f32 %v5125, %v5413
    %v5415 = vpop.f32.mrb[0].mxu0
    %5416 = vmatprep.mubr.bf16.mxu0 0
    %5417 = vmatmul.mubr.bf16.gmra.mrb[0].mxu0 %v3403
    %v5418 = vpop.f32.mrb[0].mxu0
    %v5419 = vadd.f32 %v5130, %v5418
    %v5420 = vpop.f32.mrb[0].mxu0
    %v5421 = vpop.f32.mrb[0].mxu0
    %v5422 = vadd.f32 %v5133, %v5421
    %v5423 = vpop.f32.mrb[0].mxu0
    %5424 = vdwg.mxu0
    %v5425 = vld [vmem:[%s6] sm:$0x1]
    %v5426 = vld [vmem:[%s7] sm:$0x1]
    %v5427 = vadd.f32 %v5171, %v5174
    %v5428 = vadd.f32 %v5427, %v5179
    %v5429 = vadd.f32 %v5428, %v5182
    %v5430 = vadd.f32 %v5429, %v5187
    %v5431 = vadd.f32 %v5430, %v5190
    %v5432 = vadd.f32 %v5431, %v5195
    %v5433 = vadd.f32 %v5432, %v5198
    %v5434 = vadd.f32 %v5433, %v5203
    %v5435 = vadd.f32 %v5434, %v5206
    %v5436 = vadd.f32 %v5435, %v5211
    %v5437 = vadd.f32 %v5436, %v5214
    %v5438 = vadd.f32 %v5437, %v5219
    %v5439 = vadd.f32 %v5438, %v5222
    %v5440 = vadd.f32 %v5439, %v5227
    %v5441 = vadd.f32 %v5440, %v5230
    %v5442 = vadd.f32 %v5441, %v5235
    %v5443 = vadd.f32 %v5442, %v5238
    %v5444 = vadd.f32 %v5443, %v5243
    %v5445 = vadd.f32 %v5444, %v5246
    %v5446 = vadd.f32 %v5445, %v5251
    %v5447 = vadd.f32 %v5446, %v5254
    %v5448 = vadd.f32 %v5447, %v5259
    %v5449 = vadd.f32 %v5448, %v5262
    %v5450 = vadd.f32 %v5449, %v5267
    %v5451 = vadd.f32 %v5450, %v5270
    %v5452 = vadd.f32 %v5451, %v5275
    %v5453 = vadd.f32 %v5452, %v5278
    %v5454 = vadd.f32 %v5453, %v5283
    %v5455 = vadd.f32 %v5454, %v5286
    %v5456 = vadd.f32 %v5455, %v5291
    %v5457 = vadd.f32 %v5456, %v5294
    %v5458 = vadd.f32 %v5457, %v5299
    %v5459 = vadd.f32 %v5458, %v5302
    %v5460 = vadd.f32 %v5459, %v5307
    %v5461 = vadd.f32 %v5460, %v5310
    %v5462 = vadd.f32 %v5461, %v5315
    %v5463 = vadd.f32 %v5462, %v5318
    %v5464 = vadd.f32 %v5463, %v5323
    %v5465 = vadd.f32 %v5464, %v5326
    %v5466 = vadd.f32 %v5465, %v5331
    %v5467 = vadd.f32 %v5466, %v5334
    %v5468 = vadd.f32 %v5467, %v5339
    %v5469 = vadd.f32 %v5468, %v5342
    %v5470 = vadd.f32 %v5469, %v5347
    %v5471 = vadd.f32 %v5470, %v5350
    %v5472 = vadd.f32 %v5471, %v5355
    %v5473 = vadd.f32 %v5472, %v5358
    %v5474 = vadd.f32 %v5473, %v5363
    %v5475 = vadd.f32 %v5474, %v5366
    %v5476 = vadd.f32 %v5475, %v5371
    %v5477 = vadd.f32 %v5476, %v5374
    %v5478 = vadd.f32 %v5477, %v5379
    %v5479 = vadd.f32 %v5478, %v5382
    %v5480 = vadd.f32 %v5479, %v5387
    %v5481 = vadd.f32 %v5480, %v5390
    %v5482 = vadd.f32 %v5481, %v5395
    %v5483 = vadd.f32 %v5482, %v5398
    %v5484 = vadd.f32 %v5483, %v5403
    %v5485 = vadd.f32 %v5484, %v5406
    %v5486 = vadd.f32 %v5485, %v5411
    %v5487 = vadd.f32 %v5486, %v5414
    %v5488 = vadd.f32 %v5487, %v5419
    %v5489 = vadd.f32 %v5488, %v5422
    %v5490 = vrot.slane %v5489, 4
    %v5491 = vadd.f32 %v5489, %v5490
    %v5492 = vrot.slane %v5491, 2
    %v5493 = vadd.f32 %v5491, %v5492
    %v5494 = vrot.slane %v5493, 1
    %v5495 = vadd.f32 %v5493, %v5494
    %v5496 = vmul.f32 %v5495, %v1381
    %v5497 = vsub.f32 %v5171, %v5496
    %v5498 = vsub.f32 %v5174, %v5496
    %v5499 = vsub.f32 %v5179, %v5496
    %v5500 = vsub.f32 %v5182, %v5496
    %v5501 = vsub.f32 %v5187, %v5496
    %v5502 = vsub.f32 %v5190, %v5496
    %v5503 = vsub.f32 %v5195, %v5496
    %v5504 = vsub.f32 %v5198, %v5496
    %v5505 = vsub.f32 %v5203, %v5496
    %v5506 = vsub.f32 %v5206, %v5496
    %v5507 = vsub.f32 %v5211, %v5496
    %v5508 = vsub.f32 %v5214, %v5496
    %v5509 = vsub.f32 %v5219, %v5496
    %v5510 = vsub.f32 %v5222, %v5496
    %v5511 = vsub.f32 %v5227, %v5496
    %v5512 = vsub.f32 %v5230, %v5496
    %v5513 = vsub.f32 %v5235, %v5496
    %v5514 = vsub.f32 %v5238, %v5496
    %v5515 = vsub.f32 %v5243, %v5496
    %v5516 = vsub.f32 %v5246, %v5496
    %v5517 = vsub.f32 %v5251, %v5496
    %v5518 = vsub.f32 %v5254, %v5496
    %v5519 = vsub.f32 %v5259, %v5496
    %v5520 = vsub.f32 %v5262, %v5496
    %v5521 = vsub.f32 %v5267, %v5496
    %v5522 = vsub.f32 %v5270, %v5496
    %v5523 = vsub.f32 %v5275, %v5496
    %v5524 = vsub.f32 %v5278, %v5496
    %v5525 = vsub.f32 %v5283, %v5496
    %v5526 = vsub.f32 %v5286, %v5496
    %v5527 = vsub.f32 %v5291, %v5496
    %v5528 = vsub.f32 %v5294, %v5496
    %v5529 = vsub.f32 %v5299, %v5496
    %v5530 = vsub.f32 %v5302, %v5496
    %v5531 = vsub.f32 %v5307, %v5496
    %v5532 = vsub.f32 %v5310, %v5496
    %v5533 = vsub.f32 %v5315, %v5496
    %v5534 = vsub.f32 %v5318, %v5496
    %v5535 = vsub.f32 %v5323, %v5496
    %v5536 = vsub.f32 %v5326, %v5496
    %v5537 = vsub.f32 %v5331, %v5496
    %v5538 = vsub.f32 %v5334, %v5496
    %v5539 = vsub.f32 %v5339, %v5496
    %v5540 = vsub.f32 %v5342, %v5496
    %v5541 = vsub.f32 %v5347, %v5496
    %v5542 = vsub.f32 %v5350, %v5496
    %v5543 = vsub.f32 %v5355, %v5496
    %v5544 = vsub.f32 %v5358, %v5496
    %v5545 = vsub.f32 %v5363, %v5496
    %v5546 = vsub.f32 %v5366, %v5496
    %v5547 = vsub.f32 %v5371, %v5496
    %v5548 = vsub.f32 %v5374, %v5496
    %v5549 = vsub.f32 %v5379, %v5496
    %v5550 = vsub.f32 %v5382, %v5496
    %v5551 = vsub.f32 %v5387, %v5496
    %v5552 = vsub.f32 %v5390, %v5496
    %v5553 = vsub.f32 %v5395, %v5496
    %v5554 = vsub.f32 %v5398, %v5496
    %v5555 = vsub.f32 %v5403, %v5496
    %v5556 = vsub.f32 %v5406, %v5496
    %v5557 = vsub.f32 %v5411, %v5496
    %v5558 = vsub.f32 %v5414, %v5496
    %v5559 = vsub.f32 %v5419, %v5496
    %v5560 = vsub.f32 %v5422, %v5496
    %v5561 = vmul.f32 %v5497, %v5497
    %v5562 = vmul.f32 %v5498, %v5498
    %v5563 = vmul.f32 %v5499, %v5499
    %v5564 = vmul.f32 %v5500, %v5500
    %v5565 = vmul.f32 %v5501, %v5501
    %v5566 = vmul.f32 %v5502, %v5502
    %v5567 = vmul.f32 %v5503, %v5503
    %v5568 = vmul.f32 %v5504, %v5504
    %v5569 = vmul.f32 %v5505, %v5505
    %v5570 = vmul.f32 %v5506, %v5506
    %v5571 = vmul.f32 %v5507, %v5507
    %v5572 = vmul.f32 %v5508, %v5508
    %v5573 = vmul.f32 %v5509, %v5509
    %v5574 = vmul.f32 %v5510, %v5510
    %v5575 = vmul.f32 %v5511, %v5511
    %v5576 = vmul.f32 %v5512, %v5512
    %v5577 = vmul.f32 %v5513, %v5513
    %v5578 = vmul.f32 %v5514, %v5514
    %v5579 = vmul.f32 %v5515, %v5515
    %v5580 = vmul.f32 %v5516, %v5516
    %v5581 = vmul.f32 %v5517, %v5517
    %v5582 = vmul.f32 %v5518, %v5518
    %v5583 = vmul.f32 %v5519, %v5519
    %v5584 = vmul.f32 %v5520, %v5520
    %v5585 = vmul.f32 %v5521, %v5521
    %v5586 = vmul.f32 %v5522, %v5522
    %v5587 = vmul.f32 %v5523, %v5523
    %v5588 = vmul.f32 %v5524, %v5524
    %v5589 = vmul.f32 %v5525, %v5525
    %v5590 = vmul.f32 %v5526, %v5526
    %v5591 = vmul.f32 %v5527, %v5527
    %v5592 = vmul.f32 %v5528, %v5528
    %v5593 = vmul.f32 %v5529, %v5529
    %v5594 = vmul.f32 %v5530, %v5530
    %v5595 = vmul.f32 %v5531, %v5531
    %v5596 = vmul.f32 %v5532, %v5532
    %v5597 = vmul.f32 %v5533, %v5533
    %v5598 = vmul.f32 %v5534, %v5534
    %v5599 = vmul.f32 %v5535, %v5535
    %v5600 = vmul.f32 %v5536, %v5536
    %v5601 = vmul.f32 %v5537, %v5537
    %v5602 = vmul.f32 %v5538, %v5538
    %v5603 = vmul.f32 %v5539, %v5539
    %v5604 = vmul.f32 %v5540, %v5540
    %v5605 = vmul.f32 %v5541, %v5541
    %v5606 = vmul.f32 %v5542, %v5542
    %v5607 = vmul.f32 %v5543, %v5543
    %v5608 = vmul.f32 %v5544, %v5544
    %v5609 = vmul.f32 %v5545, %v5545
    %v5610 = vmul.f32 %v5546, %v5546
    %v5611 = vmul.f32 %v5547, %v5547
    %v5612 = vmul.f32 %v5548, %v5548
    %v5613 = vmul.f32 %v5549, %v5549
    %v5614 = vmul.f32 %v5550, %v5550
    %v5615 = vmul.f32 %v5551, %v5551
    %v5616 = vmul.f32 %v5552, %v5552
    %v5617 = vmul.f32 %v5553, %v5553
    %v5618 = vmul.f32 %v5554, %v5554
    %v5619 = vmul.f32 %v5555, %v5555
    %v5620 = vmul.f32 %v5556, %v5556
    %v5621 = vmul.f32 %v5557, %v5557
    %v5622 = vmul.f32 %v5558, %v5558
    %v5623 = vmul.f32 %v5559, %v5559
    %v5624 = vmul.f32 %v5560, %v5560
    %v5625 = vadd.f32 %v5561, %v5562
    %v5626 = vadd.f32 %v5625, %v5563
    %v5627 = vadd.f32 %v5626, %v5564
    %v5628 = vadd.f32 %v5627, %v5565
    %v5629 = vadd.f32 %v5628, %v5566
    %v5630 = vadd.f32 %v5629, %v5567
    %v5631 = vadd.f32 %v5630, %v5568
    %v5632 = vadd.f32 %v5631, %v5569
    %v5633 = vadd.f32 %v5632, %v5570
    %v5634 = vadd.f32 %v5633, %v5571
    %v5635 = vadd.f32 %v5634, %v5572
    %v5636 = vadd.f32 %v5635, %v5573
    %v5637 = vadd.f32 %v5636, %v5574
    %v5638 = vadd.f32 %v5637, %v5575
    %v5639 = vadd.f32 %v5638, %v5576
    %v5640 = vadd.f32 %v5639, %v5577
    %v5641 = vadd.f32 %v5640, %v5578
    %v5642 = vadd.f32 %v5641, %v5579
    %v5643 = vadd.f32 %v5642, %v5580
    %v5644 = vadd.f32 %v5643, %v5581
    %v5645 = vadd.f32 %v5644, %v5582
    %v5646 = vadd.f32 %v5645, %v5583
    %v5647 = vadd.f32 %v5646, %v5584
    %v5648 = vadd.f32 %v5647, %v5585
    %v5649 = vadd.f32 %v5648, %v5586
    %v5650 = vadd.f32 %v5649, %v5587
    %v5651 = vadd.f32 %v5650, %v5588
    %v5652 = vadd.f32 %v5651, %v5589
    %v5653 = vadd.f32 %v5652, %v5590
    %v5654 = vadd.f32 %v5653, %v5591
    %v5655 = vadd.f32 %v5654, %v5592
    %v5656 = vadd.f32 %v5655, %v5593
    %v5657 = vadd.f32 %v5656, %v5594
    %v5658 = vadd.f32 %v5657, %v5595
    %v5659 = vadd.f32 %v5658, %v5596
    %v5660 = vadd.f32 %v5659, %v5597
    %v5661 = vadd.f32 %v5660, %v5598
    %v5662 = vadd.f32 %v5661, %v5599
    %v5663 = vadd.f32 %v5662, %v5600
    %v5664 = vadd.f32 %v5663, %v5601
    %v5665 = vadd.f32 %v5664, %v5602
    %v5666 = vadd.f32 %v5665, %v5603
    %v5667 = vadd.f32 %v5666, %v5604
    %v5668 = vadd.f32 %v5667, %v5605
    %v5669 = vadd.f32 %v5668, %v5606
    %v5670 = vadd.f32 %v5669, %v5607
    %v5671 = vadd.f32 %v5670, %v5608
    %v5672 = vadd.f32 %v5671, %v5609
    %v5673 = vadd.f32 %v5672, %v5610
    %v5674 = vadd.f32 %v5673, %v5611
    %v5675 = vadd.f32 %v5674, %v5612
    %v5676 = vadd.f32 %v5675, %v5613
    %v5677 = vadd.f32 %v5676, %v5614
    %v5678 = vadd.f32 %v5677, %v5615
    %v5679 = vadd.f32 %v5678, %v5616
    %v5680 = vadd.f32 %v5679, %v5617
    %v5681 = vadd.f32 %v5680, %v5618
    %v5682 = vadd.f32 %v5681, %v5619
    %v5683 = vadd.f32 %v5682, %v5620
    %v5684 = vadd.f32 %v5683, %v5621
    %v5685 = vadd.f32 %v5684, %v5622
    %v5686 = vadd.f32 %v5685, %v5623
    %v5687 = vadd.f32 %v5686, %v5624
    %v5688 = vrot.slane %v5687, 4
    %v5689 = vadd.f32 %v5687, %v5688
    %v5690 = vrot.slane %v5689, 2
    %v5691 = vadd.f32 %v5689, %v5690
    %v5692 = vrot.slane %v5691, 1
    %v5693 = vadd.f32 %v5691, %v5692
    %v5694 = vmul.f32 %v5693, %v1381
    %v5695 = vadd.f32 %v5694, 1e-05
    %v5696 = vrsqrt.pop %v5695
    %v5697 = vmul.f32 %v5425, %v5696
    %v5698 = vmul.f32 %v5496, %v5697
    %v5699 = vsub.f32 %v5426, %v5698
    %v5701 = vlaneseq
    %v5702 = vshrl.u32 %v5701, 7
    %v5703 = vsub.s32 0, %v5702
    %v5704 = vrot.slane %v5697, %v5703
    %v5706 = vmul.f32 %v5171, %v5704
    %v5707 = vmul.f32 %v5174, %v5704
    %v5708 = vmul.f32 %v5179, %v5704
    %v5709 = vmul.f32 %v5182, %v5704
    %v5710 = vmul.f32 %v5187, %v5704
    %v5711 = vmul.f32 %v5190, %v5704
    %v5712 = vmul.f32 %v5195, %v5704
    %v5713 = vmul.f32 %v5198, %v5704
    %v5714 = vmul.f32 %v5203, %v5704
    %v5715 = vmul.f32 %v5206, %v5704
    %v5716 = vmul.f32 %v5211, %v5704
    %v5717 = vmul.f32 %v5214, %v5704
    %v5718 = vmul.f32 %v5219, %v5704
    %v5719 = vmul.f32 %v5222, %v5704
    %v5720 = vmul.f32 %v5227, %v5704
    %v5721 = vmul.f32 %v5230, %v5704
    %v5722 = vmul.f32 %v5235, %v5704
    %v5723 = vmul.f32 %v5238, %v5704
    %v5724 = vmul.f32 %v5243, %v5704
    %v5725 = vmul.f32 %v5246, %v5704
    %v5726 = vmul.f32 %v5251, %v5704
    %v5727 = vmul.f32 %v5254, %v5704
    %v5728 = vmul.f32 %v5259, %v5704
    %v5729 = vmul.f32 %v5262, %v5704
    %v5730 = vmul.f32 %v5267, %v5704
    %v5731 = vmul.f32 %v5270, %v5704
    %v5732 = vmul.f32 %v5275, %v5704
    %v5733 = vmul.f32 %v5278, %v5704
    %v5734 = vmul.f32 %v5283, %v5704
    %v5735 = vmul.f32 %v5286, %v5704
    %v5736 = vmul.f32 %v5291, %v5704
    %v5737 = vmul.f32 %v5294, %v5704
    %v5738 = vmul.f32 %v5299, %v5704
    %v5739 = vmul.f32 %v5302, %v5704
    %v5740 = vmul.f32 %v5307, %v5704
    %v5741 = vmul.f32 %v5310, %v5704
    %v5742 = vmul.f32 %v5315, %v5704
    %v5743 = vmul.f32 %v5318, %v5704
    %v5744 = vmul.f32 %v5323, %v5704
    %v5745 = vmul.f32 %v5326, %v5704
    %v5746 = vmul.f32 %v5331, %v5704
    %v5747 = vmul.f32 %v5334, %v5704
    %v5748 = vmul.f32 %v5339, %v5704
    %v5749 = vmul.f32 %v5342, %v5704
    %v5750 = vmul.f32 %v5347, %v5704
    %v5751 = vmul.f32 %v5350, %v5704
    %v5752 = vmul.f32 %v5355, %v5704
    %v5753 = vmul.f32 %v5358, %v5704
    %v5754 = vmul.f32 %v5363, %v5704
    %v5755 = vmul.f32 %v5366, %v5704
    %v5756 = vmul.f32 %v5371, %v5704
    %v5757 = vmul.f32 %v5374, %v5704
    %v5758 = vmul.f32 %v5379, %v5704
    %v5759 = vmul.f32 %v5382, %v5704
    %v5760 = vmul.f32 %v5387, %v5704
    %v5761 = vmul.f32 %v5390, %v5704
    %v5762 = vmul.f32 %v5395, %v5704
    %v5763 = vmul.f32 %v5398, %v5704
    %v5764 = vmul.f32 %v5403, %v5704
    %v5765 = vmul.f32 %v5406, %v5704
    %v5766 = vmul.f32 %v5411, %v5704
    %v5767 = vmul.f32 %v5414, %v5704
    %v5768 = vmul.f32 %v5419, %v5704
    %v5769 = vmul.f32 %v5422, %v5704
    %v5771 = vlaneseq
    %v5772 = vshrl.u32 %v5771, 7
    %v5773 = vsub.s32 0, %v5772
    %v5774 = vrot.slane %v5699, %v5773
    %v5776 = vadd.f32 %v5706, %v5774
    %v5777 = vadd.f32 %v5707, %v5774
    %v5778 = vadd.f32 %v5708, %v5774
    %v5779 = vadd.f32 %v5709, %v5774
    %v5780 = vadd.f32 %v5710, %v5774
    %v5781 = vadd.f32 %v5711, %v5774
    %v5782 = vadd.f32 %v5712, %v5774
    %v5783 = vadd.f32 %v5713, %v5774
    %v5784 = vadd.f32 %v5714, %v5774
    %v5785 = vadd.f32 %v5715, %v5774
    %v5786 = vadd.f32 %v5716, %v5774
    %v5787 = vadd.f32 %v5717, %v5774
    %v5788 = vadd.f32 %v5718, %v5774
    %v5789 = vadd.f32 %v5719, %v5774
    %v5790 = vadd.f32 %v5720, %v5774
    %v5791 = vadd.f32 %v5721, %v5774
    %v5792 = vadd.f32 %v5722, %v5774
    %v5793 = vadd.f32 %v5723, %v5774
    %v5794 = vadd.f32 %v5724, %v5774
    %v5795 = vadd.f32 %v5725, %v5774
    %v5796 = vadd.f32 %v5726, %v5774
    %v5797 = vadd.f32 %v5727, %v5774
    %v5798 = vadd.f32 %v5728, %v5774
    %v5799 = vadd.f32 %v5729, %v5774
    %v5800 = vadd.f32 %v5730, %v5774
    %v5801 = vadd.f32 %v5731, %v5774
    %v5802 = vadd.f32 %v5732, %v5774
    %v5803 = vadd.f32 %v5733, %v5774
    %v5804 = vadd.f32 %v5734, %v5774
    %v5805 = vadd.f32 %v5735, %v5774
    %v5806 = vadd.f32 %v5736, %v5774
    %v5807 = vadd.f32 %v5737, %v5774
    %v5808 = vadd.f32 %v5738, %v5774
    %v5809 = vadd.f32 %v5739, %v5774
    %v5810 = vadd.f32 %v5740, %v5774
    %v5811 = vadd.f32 %v5741, %v5774
    %v5812 = vadd.f32 %v5742, %v5774
    %v5813 = vadd.f32 %v5743, %v5774
    %v5814 = vadd.f32 %v5744, %v5774
    %v5815 = vadd.f32 %v5745, %v5774
    %v5816 = vadd.f32 %v5746, %v5774
    %v5817 = vadd.f32 %v5747, %v5774
    %v5818 = vadd.f32 %v5748, %v5774
    %v5819 = vadd.f32 %v5749, %v5774
    %v5820 = vadd.f32 %v5750, %v5774
    %v5821 = vadd.f32 %v5751, %v5774
    %v5822 = vadd.f32 %v5752, %v5774
    %v5823 = vadd.f32 %v5753, %v5774
    %v5824 = vadd.f32 %v5754, %v5774
    %v5825 = vadd.f32 %v5755, %v5774
    %v5826 = vadd.f32 %v5756, %v5774
    %v5827 = vadd.f32 %v5757, %v5774
    %v5828 = vadd.f32 %v5758, %v5774
    %v5829 = vadd.f32 %v5759, %v5774
    %v5830 = vadd.f32 %v5760, %v5774
    %v5831 = vadd.f32 %v5761, %v5774
    %v5832 = vadd.f32 %v5762, %v5774
    %v5833 = vadd.f32 %v5763, %v5774
    %v5834 = vadd.f32 %v5764, %v5774
    %v5835 = vadd.f32 %v5765, %v5774
    %v5836 = vadd.f32 %v5766, %v5774
    %v5837 = vadd.f32 %v5767, %v5774
    %v5838 = vadd.f32 %v5768, %v5774
    %v5839 = vadd.f32 %v5769, %v5774
    %v5840 = vmax.f32 %v5776, 0.0
    %v5841 = vmax.f32 %v5777, 0.0
    %v5842 = vmax.f32 %v5778, 0.0
    %v5843 = vmax.f32 %v5779, 0.0
    %v5844 = vmax.f32 %v5780, 0.0
    %v5845 = vmax.f32 %v5781, 0.0
    %v5846 = vmax.f32 %v5782, 0.0
    %v5847 = vmax.f32 %v5783, 0.0
    %v5848 = vmax.f32 %v5784, 0.0
    %v5849 = vmax.f32 %v5785, 0.0
    %v5850 = vmax.f32 %v5786, 0.0
    %v5851 = vmax.f32 %v5787, 0.0
    %v5852 = vmax.f32 %v5788, 0.0
    %v5853 = vmax.f32 %v5789, 0.0
    %v5854 = vmax.f32 %v5790, 0.0
    %v5855 = vmax.f32 %v5791, 0.0
    %v5856 = vmax.f32 %v5792, 0.0
    %v5857 = vmax.f32 %v5793, 0.0
    %v5858 = vmax.f32 %v5794, 0.0
    %v5859 = vmax.f32 %v5795, 0.0
    %v5860 = vmax.f32 %v5796, 0.0
    %v5861 = vmax.f32 %v5797, 0.0
    %v5862 = vmax.f32 %v5798, 0.0
    %v5863 = vmax.f32 %v5799, 0.0
    %v5864 = vmax.f32 %v5800, 0.0
    %v5865 = vmax.f32 %v5801, 0.0
    %v5866 = vmax.f32 %v5802, 0.0
    %v5867 = vmax.f32 %v5803, 0.0
    %v5868 = vmax.f32 %v5804, 0.0
    %v5869 = vmax.f32 %v5805, 0.0
    %v5870 = vmax.f32 %v5806, 0.0
    %v5871 = vmax.f32 %v5807, 0.0
    %v5872 = vmax.f32 %v5808, 0.0
    %v5873 = vmax.f32 %v5809, 0.0
    %v5874 = vmax.f32 %v5810, 0.0
    %v5875 = vmax.f32 %v5811, 0.0
    %v5876 = vmax.f32 %v5812, 0.0
    %v5877 = vmax.f32 %v5813, 0.0
    %v5878 = vmax.f32 %v5814, 0.0
    %v5879 = vmax.f32 %v5815, 0.0
    %v5880 = vmax.f32 %v5816, 0.0
    %v5881 = vmax.f32 %v5817, 0.0
    %v5882 = vmax.f32 %v5818, 0.0
    %v5883 = vmax.f32 %v5819, 0.0
    %v5884 = vmax.f32 %v5820, 0.0
    %v5885 = vmax.f32 %v5821, 0.0
    %v5886 = vmax.f32 %v5822, 0.0
    %v5887 = vmax.f32 %v5823, 0.0
    %v5888 = vmax.f32 %v5824, 0.0
    %v5889 = vmax.f32 %v5825, 0.0
    %v5890 = vmax.f32 %v5826, 0.0
    %v5891 = vmax.f32 %v5827, 0.0
    %v5892 = vmax.f32 %v5828, 0.0
    %v5893 = vmax.f32 %v5829, 0.0
    %v5894 = vmax.f32 %v5830, 0.0
    %v5895 = vmax.f32 %v5831, 0.0
    %v5896 = vmax.f32 %v5832, 0.0
    %v5897 = vmax.f32 %v5833, 0.0
    %v5898 = vmax.f32 %v5834, 0.0
    %v5899 = vmax.f32 %v5835, 0.0
    %v5900 = vmax.f32 %v5836, 0.0
    %v5901 = vmax.f32 %v5837, 0.0
    %v5902 = vmax.f32 %v5838, 0.0
    %v5903 = vmax.f32 %v5839, 0.0
    %v5904 = vpack.c.bf16 %v5841, %v5840
    %v5905 = vpack.c.bf16 %v5843, %v5842
    %v5906 = vpack.c.bf16 %v5845, %v5844
    %v5907 = vpack.c.bf16 %v5847, %v5846
    %v5908 = vpack.c.bf16 %v5849, %v5848
    %v5909 = vpack.c.bf16 %v5851, %v5850
    %v5910 = vpack.c.bf16 %v5853, %v5852
    %v5911 = vpack.c.bf16 %v5855, %v5854
    %v5912 = vpack.c.bf16 %v5857, %v5856
    %v5913 = vpack.c.bf16 %v5859, %v5858
    %v5914 = vpack.c.bf16 %v5861, %v5860
    %v5915 = vpack.c.bf16 %v5863, %v5862
    %v5916 = vpack.c.bf16 %v5865, %v5864
    %v5917 = vpack.c.bf16 %v5867, %v5866
    %v5918 = vpack.c.bf16 %v5869, %v5868
    %v5919 = vpack.c.bf16 %v5871, %v5870
    %v5920 = vpack.c.bf16 %v5873, %v5872
    %v5921 = vpack.c.bf16 %v5875, %v5874
    %v5922 = vpack.c.bf16 %v5877, %v5876
    %v5923 = vpack.c.bf16 %v5879, %v5878
    %v5924 = vpack.c.bf16 %v5881, %v5880
    %v5925 = vpack.c.bf16 %v5883, %v5882
    %v5926 = vpack.c.bf16 %v5885, %v5884
    %v5927 = vpack.c.bf16 %v5887, %v5886
    %v5928 = vpack.c.bf16 %v5889, %v5888
    %v5929 = vpack.c.bf16 %v5891, %v5890
    %v5930 = vpack.c.bf16 %v5893, %v5892
    %v5931 = vpack.c.bf16 %v5895, %v5894
    %v5932 = vpack.c.bf16 %v5897, %v5896
    %v5933 = vpack.c.bf16 %v5899, %v5898
    %v5934 = vpack.c.bf16 %v5901, %v5900
    %v5935 = vpack.c.bf16 %v5903, %v5902
    %v5936 = vld [vmem:[#allocation10] sm:$0xff]
    %v5937 = vld [vmem:[#allocation10 + $0x8] sm:$0xff]
    %v5938 = vld [vmem:[#allocation10 + $0x10] sm:$0xff]
    %v5939 = vld [vmem:[#allocation10 + $0x18] sm:$0xff]
    %v5940 = vld [vmem:[#allocation10 + $0x20] sm:$0xff]
    %v5941 = vld [vmem:[#allocation10 + $0x28] sm:$0xff]
    %v5942 = vld [vmem:[#allocation10 + $0x30] sm:$0xff]
    %v5943 = vld [vmem:[#allocation10 + $0x38] sm:$0xff]
    %v5944 = vld [vmem:[#allocation10 + $0x40] sm:$0xff]
    %v5945 = vld [vmem:[#allocation10 + $0x48] sm:$0xff]
    %v5946 = vld [vmem:[#allocation10 + $0x50] sm:$0xff]
    %v5947 = vld [vmem:[#allocation10 + $0x58] sm:$0xff]
    %v5948 = vld [vmem:[#allocation10 + $0x60] sm:$0xff]
    %v5949 = vld [vmem:[#allocation10 + $0x68] sm:$0xff]
    %v5950 = vld [vmem:[#allocation10 + $0x70] sm:$0xff]
    %v5951 = vld [vmem:[#allocation10 + $0x78] sm:$0xff]
    %v5952 = vld [vmem:[#allocation10 + $0x80] sm:$0xff]
    %v5953 = vld [vmem:[#allocation10 + $0x88] sm:$0xff]
    %v5954 = vld [vmem:[#allocation10 + $0x90] sm:$0xff]
    %v5955 = vld [vmem:[#allocation10 + $0x98] sm:$0xff]
    %v5956 = vld [vmem:[#allocation10 + $0xa0] sm:$0xff]
    %v5957 = vld [vmem:[#allocation10 + $0xa8] sm:$0xff]
    %v5958 = vld [vmem:[#allocation10 + $0xb0] sm:$0xff]
    %v5959 = vld [vmem:[#allocation10 + $0xb8] sm:$0xff]
    %v5960 = vld [vmem:[#allocation10 + $0xc0] sm:$0xff]
    %v5961 = vld [vmem:[#allocation10 + $0xc8] sm:$0xff]
    %v5962 = vld [vmem:[#allocation10 + $0xd0] sm:$0xff]
    %v5963 = vld [vmem:[#allocation10 + $0xd8] sm:$0xff]
    %v5964 = vld [vmem:[#allocation10 + $0xe0] sm:$0xff]
    %v5965 = vld [vmem:[#allocation10 + $0xe8] sm:$0xff]
    %v5966 = vld [vmem:[#allocation10 + $0xf0] sm:$0xff]
    %v5967 = vld [vmem:[#allocation10 + $0xf8] sm:$0xff]
    %v6000 = vunpack.c.l.b16 %v5936
    %v6001 = vunpack.c.h.b16 %v5936
    %v6002 = vunpack.c.l.b16 %v5937
    %v6003 = vunpack.c.h.b16 %v5937
    %v6004 = vunpack.c.l.b16 %v5938
    %v6005 = vunpack.c.h.b16 %v5938
    %v6006 = vunpack.c.l.b16 %v5939
    %v6007 = vunpack.c.h.b16 %v5939
    %v6008 = vunpack.c.l.b16 %v5940
    %v6009 = vunpack.c.h.b16 %v5940
    %v6010 = vunpack.c.l.b16 %v5941
    %v6011 = vunpack.c.h.b16 %v5941
    %v6012 = vunpack.c.l.b16 %v5942
    %v6013 = vunpack.c.h.b16 %v5942
    %v6014 = vunpack.c.l.b16 %v5943
    %v6015 = vunpack.c.h.b16 %v5943
    %v6016 = vunpack.c.l.b16 %v5944
    %v6017 = vunpack.c.h.b16 %v5944
    %v6018 = vunpack.c.l.b16 %v5945
    %v6019 = vunpack.c.h.b16 %v5945
    %v6020 = vunpack.c.l.b16 %v5946
    %v6021 = vunpack.c.h.b16 %v5946
    %v6022 = vunpack.c.l.b16 %v5947
    %v6023 = vunpack.c.h.b16 %v5947
    %v6024 = vunpack.c.l.b16 %v5948
    %v6025 = vunpack.c.h.b16 %v5948
    %v6026 = vunpack.c.l.b16 %v5949
    %v6027 = vunpack.c.h.b16 %v5949
    %v6028 = vunpack.c.l.b16 %v5950
    %v6029 = vunpack.c.h.b16 %v5950
    %v6030 = vunpack.c.l.b16 %v5951
    %v6031 = vunpack.c.h.b16 %v5951
    %v6032 = vunpack.c.l.b16 %v5952
    %v6033 = vunpack.c.h.b16 %v5952
    %v6034 = vunpack.c.l.b16 %v5953
    %v6035 = vunpack.c.h.b16 %v5953
    %v6036 = vunpack.c.l.b16 %v5954
    %v6037 = vunpack.c.h.b16 %v5954
    %v6038 = vunpack.c.l.b16 %v5955
    %v6039 = vunpack.c.h.b16 %v5955
    %v6040 = vunpack.c.l.b16 %v5956
    %v6041 = vunpack.c.h.b16 %v5956
    %v6042 = vunpack.c.l.b16 %v5957
    %v6043 = vunpack.c.h.b16 %v5957
    %v6044 = vunpack.c.l.b16 %v5958
    %v6045 = vunpack.c.h.b16 %v5958
    %v6046 = vunpack.c.l.b16 %v5959
    %v6047 = vunpack.c.h.b16 %v5959
    %v6048 = vunpack.c.l.b16 %v5960
    %v6049 = vunpack.c.h.b16 %v5960
    %v6050 = vunpack.c.l.b16 %v5961
    %v6051 = vunpack.c.h.b16 %v5961
    %v6052 = vunpack.c.l.b16 %v5962
    %v6053 = vunpack.c.h.b16 %v5962
    %v6054 = vunpack.c.l.b16 %v5963
    %v6055 = vunpack.c.h.b16 %v5963
    %v6056 = vunpack.c.l.b16 %v5964
    %v6057 = vunpack.c.h.b16 %v5964
    %v6058 = vunpack.c.l.b16 %v5965
    %v6059 = vunpack.c.h.b16 %v5965
    %v6060 = vunpack.c.l.b16 %v5966
    %v6061 = vunpack.c.h.b16 %v5966
    %v6062 = vunpack.c.l.b16 %v5967
    %v6063 = vunpack.c.h.b16 %v5967
    %v6064 = vpack.c.b16 %v6004, %v6000
    %v6065 = vpack.c.b16 %v6005, %v6001
    %v6066 = vpack.c.b16 %v6006, %v6002
    %v6067 = vpack.c.b16 %v6007, %v6003
    %v6068 = vpack.c.b16 %v6012, %v6008
    %v6069 = vpack.c.b16 %v6013, %v6009
    %v6070 = vpack.c.b16 %v6014, %v6010
    %v6071 = vpack.c.b16 %v6015, %v6011
    %v6072 = vpack.c.b16 %v6020, %v6016
    %v6073 = vpack.c.b16 %v6021, %v6017
    %v6074 = vpack.c.b16 %v6022, %v6018
    %v6075 = vpack.c.b16 %v6023, %v6019
    %v6076 = vpack.c.b16 %v6028, %v6024
    %v6077 = vpack.c.b16 %v6029, %v6025
    %v6078 = vpack.c.b16 %v6030, %v6026
    %v6079 = vpack.c.b16 %v6031, %v6027
    %v6080 = vpack.c.b16 %v6036, %v6032
    %v6081 = vpack.c.b16 %v6037, %v6033
    %v6082 = vpack.c.b16 %v6038, %v6034
    %v6083 = vpack.c.b16 %v6039, %v6035
    %v6084 = vpack.c.b16 %v6044, %v6040
    %v6085 = vpack.c.b16 %v6045, %v6041
    %v6086 = vpack.c.b16 %v6046, %v6042
    %v6087 = vpack.c.b16 %v6047, %v6043
    %v6088 = vpack.c.b16 %v6052, %v6048
    %v6089 = vpack.c.b16 %v6053, %v6049
    %v6090 = vpack.c.b16 %v6054, %v6050
    %v6091 = vpack.c.b16 %v6055, %v6051
    %v6092 = vpack.c.b16 %v6060, %v6056
    %v6093 = vpack.c.b16 %v6061, %v6057
    %v6094 = vpack.c.b16 %v6062, %v6058
    %v6095 = vpack.c.b16 %v6063, %v6059
    %6128 = vmatprep.subr.bf16.mxu0 %v6065
    %6129 = vmatpush1.bf16.msra.mxu0 %v6064
    %6130 = vmatprep.subr.bf16.mxu0 %v6069
    %6131 = vmatpush1.bf16.msra.mxu0 %v6068
    %6132 = vmatprep.subr.bf16.mxu0 %v6073
    %6133 = vmatpush1.bf16.msra.mxu0 %v6072
    %6134 = vmatprep.subr.bf16.mxu0 %v6077
    %6135 = vmatpush1.bf16.msra.mxu0 %v6076
    %6136 = vmatprep.subr.bf16.mxu0 %v6081
    %6137 = vmatpush1.bf16.msra.mxu0 %v6080
    %6138 = vmatprep.subr.bf16.mxu0 %v6085
    %6139 = vmatpush1.bf16.msra.mxu0 %v6084
    %6140 = vmatprep.subr.bf16.mxu0 %v6089
    %6141 = vmatpush1.bf16.msra.mxu0 %v6088
    %6142 = vmatprep.subr.bf16.mxu0 %v6093
    %6143 = vmatpush1.bf16.msra.mxu0 %v6092
    %6144 = vmatprep.subr.bf16.mxu0 0
    %6145 = vmatpush1.bf16.msra.mxu0 0
    %6146 = vmatprep.subr.bf16.mxu0 0
    %6147 = vmatpush1.bf16.msra.mxu0 0
    %6148 = vmatprep.subr.bf16.mxu0 0
    %6149 = vmatpush1.bf16.msra.mxu0 0
    %6150 = vmatprep.subr.bf16.mxu0 0
    %6151 = vmatpush1.bf16.msra.mxu0 0
    %6152 = vmatprep.subr.bf16.mxu0 0
    %6153 = vmatpush1.bf16.msra.mxu0 0
    %6154 = vmatprep.subr.bf16.mxu0 0
    %6155 = vmatpush1.bf16.msra.mxu0 0
    %6156 = vmatprep.subr.bf16.mxu0 0
    %6157 = vmatpush1.bf16.msra.mxu0 0
    %6158 = vmatprep.subr.bf16.mxu0 0
    %6159 = vmatpush1.bf16.msra.mxu0 0
    %6160 = vmatprep.mubr.bf16.mxu0 0
    %6161 = vmatmul.mubr.bf16.gmra.mrb[0].mxu0 %v5904
    %v6162 = vpop.f32.mrb[0].mxu0
    %v6163 = vadd.f32 0.0, %v6162
    %v6164 = vpop.f32.mrb[0].mxu0
    %v6165 = vadd.f32 0.0, %v6164
    %v6166 = vpop.f32.mrb[0].mxu0
    %v6167 = vadd.f32 0.0, %v6166
    %v6168 = vpop.f32.mrb[0].mxu0
    %v6169 = vadd.f32 0.0, %v6168
    %6170 = vmatprep.mubr.bf16.mxu0 0
    %6171 = vmatmul.mubr.bf16.gmra.mrb[0].mxu0 %v5905
    %v6172 = vpop.f32.mrb[0].mxu0
    %v6173 = vadd.f32 0.0, %v6172
    %v6174 = vpop.f32.mrb[0].mxu0
    %v6175 = vadd.f32 0.0, %v6174
    %v6176 = vpop.f32.mrb[0].mxu0
    %v6177 = vadd.f32 0.0, %v6176
    %v6178 = vpop.f32.mrb[0].mxu0
    %v6179 = vadd.f32 0.0, %v6178
    %6180 = vmatprep.mubr.bf16.mxu0 0
    %6181 = vmatmul.mubr.bf16.gmra.mrb[0].mxu0 %v5906
    %v6182 = vpop.f32.mrb[0].mxu0
    %v6183 = vadd.f32 0.0, %v6182
    %v6184 = vpop.f32.mrb[0].mxu0
    %v6185 = vadd.f32 0.0, %v6184
    %v6186 = vpop.f32.mrb[0].mxu0
    %v6187 = vadd.f32 0.0, %v6186
    %v6188 = vpop.f32.mrb[0].mxu0
    %v6189 = vadd.f32 0.0, %v6188
    %6190 = vmatprep.mubr.bf16.mxu0 0
    %6191 = vmatmul.mubr.bf16.gmra.mrb[0].mxu0 %v5907
    %v6192 = vpop.f32.mrb[0].mxu0
    %v6193 = vadd.f32 0.0, %v6192
    %v6194 = vpop.f32.mrb[0].mxu0
    %v6195 = vadd.f32 0.0, %v6194
    %v6196 = vpop.f32.mrb[0].mxu0
    %v6197 = vadd.f32 0.0, %v6196
    %v6198 = vpop.f32.mrb[0].mxu0
    %v6199 = vadd.f32 0.0, %v6198
    %6200 = vmatprep.mubr.bf16.mxu0 0
    %6201 = vmatmul.mubr.bf16.gmra.mrb[0].mxu0 %v5908
    %v6202 = vpop.f32.mrb[0].mxu0
    %v6203 = vadd.f32 0.0, %v6202
    %v6204 = vpop.f32.mrb[0].mxu0
    %v6205 = vadd.f32 0.0, %v6204
    %v6206 = vpop.f32.mrb[0].mxu0
    %v6207 = vadd.f32 0.0, %v6206
    %v6208 = vpop.f32.mrb[0].mxu0
    %v6209 = vadd.f32 0.0, %v6208
    %6210 = vmatprep.mubr.bf16.mxu0 0
    %6211 = vmatmul.mubr.bf16.gmra.mrb[0].mxu0 %v5909
    %v6212 = vpop.f32.mrb[0].mxu0
    %v6213 = vadd.f32 0.0, %v6212
    %v6214 = vpop.f32.mrb[0].mxu0
    %v6215 = vadd.f32 0.0, %v6214
    %v6216 = vpop.f32.mrb[0].mxu0
    %v6217 = vadd.f32 0.0, %v6216
    %v6218 = vpop.f32.mrb[0].mxu0
    %v6219 = vadd.f32 0.0, %v6218
    %6220 = vmatprep.mubr.bf16.mxu0 0
    %6221 = vmatmul.mubr.bf16.gmra.mrb[0].mxu0 %v5910
    %v6222 = vpop.f32.mrb[0].mxu0
    %v6223 = vadd.f32 0.0, %v6222
    %v6224 = vpop.f32.mrb[0].mxu0
    %v6225 = vadd.f32 0.0, %v6224
    %v6226 = vpop.f32.mrb[0].mxu0
    %v6227 = vadd.f32 0.0, %v6226
    %v6228 = vpop.f32.mrb[0].mxu0
    %v6229 = vadd.f32 0.0, %v6228
    %6230 = vmatprep.mubr.bf16.mxu0 0
    %6231 = vmatmul.mubr.bf16.gmra.mrb[0].mxu0 %v5911
    %v6232 = vpop.f32.mrb[0].mxu0
    %v6233 = vadd.f32 0.0, %v6232
    %v6234 = vpop.f32.mrb[0].mxu0
    %v6235 = vadd.f32 0.0, %v6234
    %v6236 = vpop.f32.mrb[0].mxu0
    %v6237 = vadd.f32 0.0, %v6236
    %v6238 = vpop.f32.mrb[0].mxu0
    %v6239 = vadd.f32 0.0, %v6238
    %6240 = vmatprep.mubr.bf16.mxu0 0
    %6241 = vmatmul.mubr.bf16.gmra.mrb[0].mxu0 %v5912
    %v6242 = vpop.f32.mrb[0].mxu0
    %v6243 = vadd.f32 0.0, %v6242
    %v6244 = vpop.f32.mrb[0].mxu0
    %v6245 = vadd.f32 0.0, %v6244
    %v6246 = vpop.f32.mrb[0].mxu0
    %v6247 = vadd.f32 0.0, %v6246
    %v6248 = vpop.f32.mrb[0].mxu0
    %v6249 = vadd.f32 0.0, %v6248
    %6250 = vmatprep.mubr.bf16.mxu0 0
    %6251 = vmatmul.mubr.bf16.gmra.mrb[0].mxu0 %v5913
    %v6252 = vpop.f32.mrb[0].mxu0
    %v6253 = vadd.f32 0.0, %v6252
    %v6254 = vpop.f32.mrb[0].mxu0
    %v6255 = vadd.f32 0.0, %v6254
    %v6256 = vpop.f32.mrb[0].mxu0
    %v6257 = vadd.f32 0.0, %v6256
    %v6258 = vpop.f32.mrb[0].mxu0
    %v6259 = vadd.f32 0.0, %v6258
    %6260 = vmatprep.mubr.bf16.mxu0 0
    %6261 = vmatmul.mubr.bf16.gmra.mrb[0].mxu0 %v5914
    %v6262 = vpop.f32.mrb[0].mxu0
    %v6263 = vadd.f32 0.0, %v6262
    %v6264 = vpop.f32.mrb[0].mxu0
    %v6265 = vadd.f32 0.0, %v6264
    %v6266 = vpop.f32.mrb[0].mxu0
    %v6267 = vadd.f32 0.0, %v6266
    %v6268 = vpop.f32.mrb[0].mxu0
    %v6269 = vadd.f32 0.0, %v6268
    %6270 = vmatprep.mubr.bf16.mxu0 0
    %6271 = vmatmul.mubr.bf16.gmra.mrb[0].mxu0 %v5915
    %v6272 = vpop.f32.mrb[0].mxu0
    %v6273 = vadd.f32 0.0, %v6272
    %v6274 = vpop.f32.mrb[0].mxu0
    %v6275 = vadd.f32 0.0, %v6274
    %v6276 = vpop.f32.mrb[0].mxu0
    %v6277 = vadd.f32 0.0, %v6276
    %v6278 = vpop.f32.mrb[0].mxu0
    %v6279 = vadd.f32 0.0, %v6278
    %6280 = vmatprep.mubr.bf16.mxu0 0
    %6281 = vmatmul.mubr.bf16.gmra.mrb[0].mxu0 %v5916
    %v6282 = vpop.f32.mrb[0].mxu0
    %v6283 = vadd.f32 0.0, %v6282
    %v6284 = vpop.f32.mrb[0].mxu0
    %v6285 = vadd.f32 0.0, %v6284
    %v6286 = vpop.f32.mrb[0].mxu0
    %v6287 = vadd.f32 0.0, %v6286
    %v6288 = vpop.f32.mrb[0].mxu0
    %v6289 = vadd.f32 0.0, %v6288
    %6290 = vmatprep.mubr.bf16.mxu0 0
    %6291 = vmatmul.mubr.bf16.gmra.mrb[0].mxu0 %v5917
    %v6292 = vpop.f32.mrb[0].mxu0
    %v6293 = vadd.f32 0.0, %v6292
    %v6294 = vpop.f32.mrb[0].mxu0
    %v6295 = vadd.f32 0.0, %v6294
    %v6296 = vpop.f32.mrb[0].mxu0
    %v6297 = vadd.f32 0.0, %v6296
    %v6298 = vpop.f32.mrb[0].mxu0
    %v6299 = vadd.f32 0.0, %v6298
    %6300 = vmatprep.mubr.bf16.mxu0 0
    %6301 = vmatmul.mubr.bf16.gmra.mrb[0].mxu0 %v5918
    %v6302 = vpop.f32.mrb[0].mxu0
    %v6303 = vadd.f32 0.0, %v6302
    %v6304 = vpop.f32.mrb[0].mxu0
    %v6305 = vadd.f32 0.0, %v6304
    %v6306 = vpop.f32.mrb[0].mxu0
    %v6307 = vadd.f32 0.0, %v6306
    %v6308 = vpop.f32.mrb[0].mxu0
    %v6309 = vadd.f32 0.0, %v6308
    %6310 = vmatprep.mubr.bf16.mxu0 0
    %6311 = vmatmul.mubr.bf16.gmra.mrb[0].mxu0 %v5919
    %v6312 = vpop.f32.mrb[0].mxu0
    %v6313 = vadd.f32 0.0, %v6312
    %v6314 = vpop.f32.mrb[0].mxu0
    %v6315 = vadd.f32 0.0, %v6314
    %v6316 = vpop.f32.mrb[0].mxu0
    %v6317 = vadd.f32 0.0, %v6316
    %v6318 = vpop.f32.mrb[0].mxu0
    %v6319 = vadd.f32 0.0, %v6318
    %6320 = vmatprep.mubr.bf16.mxu0 0
    %6321 = vmatmul.mubr.bf16.gmra.mrb[0].mxu0 %v5920
    %v6322 = vpop.f32.mrb[0].mxu0
    %v6323 = vadd.f32 0.0, %v6322
    %v6324 = vpop.f32.mrb[0].mxu0
    %v6325 = vadd.f32 0.0, %v6324
    %v6326 = vpop.f32.mrb[0].mxu0
    %v6327 = vadd.f32 0.0, %v6326
    %v6328 = vpop.f32.mrb[0].mxu0
    %v6329 = vadd.f32 0.0, %v6328
    %6330 = vmatprep.mubr.bf16.mxu0 0
    %6331 = vmatmul.mubr.bf16.gmra.mrb[0].mxu0 %v5921
    %v6332 = vpop.f32.mrb[0].mxu0
    %v6333 = vadd.f32 0.0, %v6332
    %v6334 = vpop.f32.mrb[0].mxu0
    %v6335 = vadd.f32 0.0, %v6334
    %v6336 = vpop.f32.mrb[0].mxu0
    %v6337 = vadd.f32 0.0, %v6336
    %v6338 = vpop.f32.mrb[0].mxu0
    %v6339 = vadd.f32 0.0, %v6338
    %6340 = vmatprep.mubr.bf16.mxu0 0
    %6341 = vmatmul.mubr.bf16.gmra.mrb[0].mxu0 %v5922
    %v6342 = vpop.f32.mrb[0].mxu0
    %v6343 = vadd.f32 0.0, %v6342
    %v6344 = vpop.f32.mrb[0].mxu0
    %v6345 = vadd.f32 0.0, %v6344
    %v6346 = vpop.f32.mrb[0].mxu0
    %v6347 = vadd.f32 0.0, %v6346
    %v6348 = vpop.f32.mrb[0].mxu0
    %v6349 = vadd.f32 0.0, %v6348
    %6350 = vmatprep.mubr.bf16.mxu0 0
    %6351 = vmatmul.mubr.bf16.gmra.mrb[0].mxu0 %v5923
    %v6352 = vpop.f32.mrb[0].mxu0
    %v6353 = vadd.f32 0.0, %v6352
    %v6354 = vpop.f32.mrb[0].mxu0
    %v6355 = vadd.f32 0.0, %v6354
    %v6356 = vpop.f32.mrb[0].mxu0
    %v6357 = vadd.f32 0.0, %v6356
    %v6358 = vpop.f32.mrb[0].mxu0
    %v6359 = vadd.f32 0.0, %v6358
    %6360 = vmatprep.mubr.bf16.mxu0 0
    %6361 = vmatmul.mubr.bf16.gmra.mrb[0].mxu0 %v5924
    %v6362 = vpop.f32.mrb[0].mxu0
    %v6363 = vadd.f32 0.0, %v6362
    %v6364 = vpop.f32.mrb[0].mxu0
    %v6365 = vadd.f32 0.0, %v6364
    %v6366 = vpop.f32.mrb[0].mxu0
    %v6367 = vadd.f32 0.0, %v6366
    %v6368 = vpop.f32.mrb[0].mxu0
    %v6369 = vadd.f32 0.0, %v6368
    %6370 = vmatprep.mubr.bf16.mxu0 0
    %6371 = vmatmul.mubr.bf16.gmra.mrb[0].mxu0 %v5925
    %v6372 = vpop.f32.mrb[0].mxu0
    %v6373 = vadd.f32 0.0, %v6372
    %v6374 = vpop.f32.mrb[0].mxu0
    %v6375 = vadd.f32 0.0, %v6374
    %v6376 = vpop.f32.mrb[0].mxu0
    %v6377 = vadd.f32 0.0, %v6376
    %v6378 = vpop.f32.mrb[0].mxu0
    %v6379 = vadd.f32 0.0, %v6378
    %6380 = vmatprep.mubr.bf16.mxu0 0
    %6381 = vmatmul.mubr.bf16.gmra.mrb[0].mxu0 %v5926
    %v6382 = vpop.f32.mrb[0].mxu0
    %v6383 = vadd.f32 0.0, %v6382
    %v6384 = vpop.f32.mrb[0].mxu0
    %v6385 = vadd.f32 0.0, %v6384
    %v6386 = vpop.f32.mrb[0].mxu0
    %v6387 = vadd.f32 0.0, %v6386
    %v6388 = vpop.f32.mrb[0].mxu0
    %v6389 = vadd.f32 0.0, %v6388
    %6390 = vmatprep.mubr.bf16.mxu0 0
    %6391 = vmatmul.mubr.bf16.gmra.mrb[0].mxu0 %v5927
    %v6392 = vpop.f32.mrb[0].mxu0
    %v6393 = vadd.f32 0.0, %v6392
    %v6394 = vpop.f32.mrb[0].mxu0
    %v6395 = vadd.f32 0.0, %v6394
    %v6396 = vpop.f32.mrb[0].mxu0
    %v6397 = vadd.f32 0.0, %v6396
    %v6398 = vpop.f32.mrb[0].mxu0
    %v6399 = vadd.f32 0.0, %v6398
    %6400 = vmatprep.mubr.bf16.mxu0 0
    %6401 = vmatmul.mubr.bf16.gmra.mrb[0].mxu0 %v5928
    %v6402 = vpop.f32.mrb[0].mxu0
    %v6403 = vadd.f32 0.0, %v6402
    %v6404 = vpop.f32.mrb[0].mxu0
    %v6405 = vadd.f32 0.0, %v6404
    %v6406 = vpop.f32.mrb[0].mxu0
    %v6407 = vadd.f32 0.0, %v6406
    %v6408 = vpop.f32.mrb[0].mxu0
    %v6409 = vadd.f32 0.0, %v6408
    %6410 = vmatprep.mubr.bf16.mxu0 0
    %6411 = vmatmul.mubr.bf16.gmra.mrb[0].mxu0 %v5929
    %v6412 = vpop.f32.mrb[0].mxu0
    %v6413 = vadd.f32 0.0, %v6412
    %v6414 = vpop.f32.mrb[0].mxu0
    %v6415 = vadd.f32 0.0, %v6414
    %v6416 = vpop.f32.mrb[0].mxu0
    %v6417 = vadd.f32 0.0, %v6416
    %v6418 = vpop.f32.mrb[0].mxu0
    %v6419 = vadd.f32 0.0, %v6418
    %6420 = vmatprep.mubr.bf16.mxu0 0
    %6421 = vmatmul.mubr.bf16.gmra.mrb[0].mxu0 %v5930
    %v6422 = vpop.f32.mrb[0].mxu0
    %v6423 = vadd.f32 0.0, %v6422
    %v6424 = vpop.f32.mrb[0].mxu0
    %v6425 = vadd.f32 0.0, %v6424
    %v6426 = vpop.f32.mrb[0].mxu0
    %v6427 = vadd.f32 0.0, %v6426
    %v6428 = vpop.f32.mrb[0].mxu0
    %v6429 = vadd.f32 0.0, %v6428
    %6430 = vmatprep.mubr.bf16.mxu0 0
    %6431 = vmatmul.mubr.bf16.gmra.mrb[0].mxu0 %v5931
    %v6432 = vpop.f32.mrb[0].mxu0
    %v6433 = vadd.f32 0.0, %v6432
    %v6434 = vpop.f32.mrb[0].mxu0
    %v6435 = vadd.f32 0.0, %v6434
    %v6436 = vpop.f32.mrb[0].mxu0
    %v6437 = vadd.f32 0.0, %v6436
    %v6438 = vpop.f32.mrb[0].mxu0
    %v6439 = vadd.f32 0.0, %v6438
    %6440 = vmatprep.mubr.bf16.mxu0 0
    %6441 = vmatmul.mubr.bf16.gmra.mrb[0].mxu0 %v5932
    %v6442 = vpop.f32.mrb[0].mxu0
    %v6443 = vadd.f32 0.0, %v6442
    %v6444 = vpop.f32.mrb[0].mxu0
    %v6445 = vadd.f32 0.0, %v6444
    %v6446 = vpop.f32.mrb[0].mxu0
    %v6447 = vadd.f32 0.0, %v6446
    %v6448 = vpop.f32.mrb[0].mxu0
    %v6449 = vadd.f32 0.0, %v6448
    %6450 = vmatprep.mubr.bf16.mxu0 0
    %6451 = vmatmul.mubr.bf16.gmra.mrb[0].mxu0 %v5933
    %v6452 = vpop.f32.mrb[0].mxu0
    %v6453 = vadd.f32 0.0, %v6452
    %v6454 = vpop.f32.mrb[0].mxu0
    %v6455 = vadd.f32 0.0, %v6454
    %v6456 = vpop.f32.mrb[0].mxu0
    %v6457 = vadd.f32 0.0, %v6456
    %v6458 = vpop.f32.mrb[0].mxu0
    %v6459 = vadd.f32 0.0, %v6458
    %6460 = vmatprep.mubr.bf16.mxu0 0
    %6461 = vmatmul.mubr.bf16.gmra.mrb[0].mxu0 %v5934
    %v6462 = vpop.f32.mrb[0].mxu0
    %v6463 = vadd.f32 0.0, %v6462
    %v6464 = vpop.f32.mrb[0].mxu0
    %v6465 = vadd.f32 0.0, %v6464
    %v6466 = vpop.f32.mrb[0].mxu0
    %v6467 = vadd.f32 0.0, %v6466
    %v6468 = vpop.f32.mrb[0].mxu0
    %v6469 = vadd.f32 0.0, %v6468
    %6470 = vmatprep.mubr.bf16.mxu0 0
    %6471 = vmatmul.mubr.bf16.gmra.mrb[0].mxu0 %v5935
    %v6472 = vpop.f32.mrb[0].mxu0
    %v6473 = vadd.f32 0.0, %v6472
    %v6474 = vpop.f32.mrb[0].mxu0
    %v6475 = vadd.f32 0.0, %v6474
    %v6476 = vpop.f32.mrb[0].mxu0
    %v6477 = vadd.f32 0.0, %v6476
    %v6478 = vpop.f32.mrb[0].mxu0
    %v6479 = vadd.f32 0.0, %v6478
    %6480 = vdwg.mxu0
    %6481 = vmatprep.subr.bf16.mxu0 %v6067
    %6482 = vmatpush1.bf16.msra.mxu0 %v6066
    %6483 = vmatprep.subr.bf16.mxu0 %v6071
    %6484 = vmatpush1.bf16.msra.mxu0 %v6070
    %6485 = vmatprep.subr.bf16.mxu0 %v6075
    %6486 = vmatpush1.bf16.msra.mxu0 %v6074
    %6487 = vmatprep.subr.bf16.mxu0 %v6079
    %6488 = vmatpush1.bf16.msra.mxu0 %v6078
    %6489 = vmatprep.subr.bf16.mxu0 %v6083
    %6490 = vmatpush1.bf16.msra.mxu0 %v6082
    %6491 = vmatprep.subr.bf16.mxu0 %v6087
    %6492 = vmatpush1.bf16.msra.mxu0 %v6086
    %6493 = vmatprep.subr.bf16.mxu0 %v6091
    %6494 = vmatpush1.bf16.msra.mxu0 %v6090
    %6495 = vmatprep.subr.bf16.mxu0 %v6095
    %6496 = vmatpush1.bf16.msra.mxu0 %v6094
    %6497 = vmatprep.subr.bf16.mxu0 0
    %6498 = vmatpush1.bf16.msra.mxu0 0
    %6499 = vmatprep.subr.bf16.mxu0 0
    %6500 = vmatpush1.bf16.msra.mxu0 0
    %6501 = vmatprep.subr.bf16.mxu0 0
    %6502 = vmatpush1.bf16.msra.mxu0 0
    %6503 = vmatprep.subr.bf16.mxu0 0
    %6504 = vmatpush1.bf16.msra.mxu0 0
    %6505 = vmatprep.subr.bf16.mxu0 0
    %6506 = vmatpush1.bf16.msra.mxu0 0
    %6507 = vmatprep.subr.bf16.mxu0 0
    %6508 = vmatpush1.bf16.msra.mxu0 0
    %6509 = vmatprep.subr.bf16.mxu0 0
    %6510 = vmatpush1.bf16.msra.mxu0 0
    %6511 = vmatprep.subr.bf16.mxu0 0
    %6512 = vmatpush1.bf16.msra.mxu0 0
    %6513 = vmatprep.mubr.bf16.mxu0 0
    %6514 = vmatmul.mubr.bf16.gmra.mrb[0].mxu0 %v5904
    %v6515 = vpop.f32.mrb[0].mxu0
    %v6516 = vadd.f32 0.0, %v6515
    %v6517 = vpop.f32.mrb[0].mxu0
    %v6518 = vadd.f32 0.0, %v6517
    %v6519 = vpop.f32.mrb[0].mxu0
    %v6520 = vadd.f32 0.0, %v6519
    %v6521 = vpop.f32.mrb[0].mxu0
    %v6522 = vadd.f32 0.0, %v6521
    %6523 = vmatprep.mubr.bf16.mxu0 0
    %6524 = vmatmul.mubr.bf16.gmra.mrb[0].mxu0 %v5905
    %v6525 = vpop.f32.mrb[0].mxu0
    %v6526 = vadd.f32 0.0, %v6525
    %v6527 = vpop.f32.mrb[0].mxu0
    %v6528 = vadd.f32 0.0, %v6527
    %v6529 = vpop.f32.mrb[0].mxu0
    %v6530 = vadd.f32 0.0, %v6529
    %v6531 = vpop.f32.mrb[0].mxu0
    %v6532 = vadd.f32 0.0, %v6531
    %6533 = vmatprep.mubr.bf16.mxu0 0
    %6534 = vmatmul.mubr.bf16.gmra.mrb[0].mxu0 %v5906
    %v6535 = vpop.f32.mrb[0].mxu0
    %v6536 = vadd.f32 0.0, %v6535
    %v6537 = vpop.f32.mrb[0].mxu0
    %v6538 = vadd.f32 0.0, %v6537
    %v6539 = vpop.f32.mrb[0].mxu0
    %v6540 = vadd.f32 0.0, %v6539
    %v6541 = vpop.f32.mrb[0].mxu0
    %v6542 = vadd.f32 0.0, %v6541
    %6543 = vmatprep.mubr.bf16.mxu0 0
    %6544 = vmatmul.mubr.bf16.gmra.mrb[0].mxu0 %v5907
    %v6545 = vpop.f32.mrb[0].mxu0
    %v6546 = vadd.f32 0.0, %v6545
    %v6547 = vpop.f32.mrb[0].mxu0
    %v6548 = vadd.f32 0.0, %v6547
    %v6549 = vpop.f32.mrb[0].mxu0
    %v6550 = vadd.f32 0.0, %v6549
    %v6551 = vpop.f32.mrb[0].mxu0
    %v6552 = vadd.f32 0.0, %v6551
    %6553 = vmatprep.mubr.bf16.mxu0 0
    %6554 = vmatmul.mubr.bf16.gmra.mrb[0].mxu0 %v5908
    %v6555 = vpop.f32.mrb[0].mxu0
    %v6556 = vadd.f32 0.0, %v6555
    %v6557 = vpop.f32.mrb[0].mxu0
    %v6558 = vadd.f32 0.0, %v6557
    %v6559 = vpop.f32.mrb[0].mxu0
    %v6560 = vadd.f32 0.0, %v6559
    %v6561 = vpop.f32.mrb[0].mxu0
    %v6562 = vadd.f32 0.0, %v6561
    %6563 = vmatprep.mubr.bf16.mxu0 0
    %6564 = vmatmul.mubr.bf16.gmra.mrb[0].mxu0 %v5909
    %v6565 = vpop.f32.mrb[0].mxu0
    %v6566 = vadd.f32 0.0, %v6565
    %v6567 = vpop.f32.mrb[0].mxu0
    %v6568 = vadd.f32 0.0, %v6567
    %v6569 = vpop.f32.mrb[0].mxu0
    %v6570 = vadd.f32 0.0, %v6569
    %v6571 = vpop.f32.mrb[0].mxu0
    %v6572 = vadd.f32 0.0, %v6571
    %6573 = vmatprep.mubr.bf16.mxu0 0
    %6574 = vmatmul.mubr.bf16.gmra.mrb[0].mxu0 %v5910
    %v6575 = vpop.f32.mrb[0].mxu0
    %v6576 = vadd.f32 0.0, %v6575
    %v6577 = vpop.f32.mrb[0].mxu0
    %v6578 = vadd.f32 0.0, %v6577
    %v6579 = vpop.f32.mrb[0].mxu0
    %v6580 = vadd.f32 0.0, %v6579
    %v6581 = vpop.f32.mrb[0].mxu0
    %v6582 = vadd.f32 0.0, %v6581
    %6583 = vmatprep.mubr.bf16.mxu0 0
    %6584 = vmatmul.mubr.bf16.gmra.mrb[0].mxu0 %v5911
    %v6585 = vpop.f32.mrb[0].mxu0
    %v6586 = vadd.f32 0.0, %v6585
    %v6587 = vpop.f32.mrb[0].mxu0
    %v6588 = vadd.f32 0.0, %v6587
    %v6589 = vpop.f32.mrb[0].mxu0
    %v6590 = vadd.f32 0.0, %v6589
    %v6591 = vpop.f32.mrb[0].mxu0
    %v6592 = vadd.f32 0.0, %v6591
    %6593 = vmatprep.mubr.bf16.mxu0 0
    %6594 = vmatmul.mubr.bf16.gmra.mrb[0].mxu0 %v5912
    %v6595 = vpop.f32.mrb[0].mxu0
    %v6596 = vadd.f32 0.0, %v6595
    %v6597 = vpop.f32.mrb[0].mxu0
    %v6598 = vadd.f32 0.0, %v6597
    %v6599 = vpop.f32.mrb[0].mxu0
    %v6600 = vadd.f32 0.0, %v6599
    %v6601 = vpop.f32.mrb[0].mxu0
    %v6602 = vadd.f32 0.0, %v6601
    %6603 = vmatprep.mubr.bf16.mxu0 0
    %6604 = vmatmul.mubr.bf16.gmra.mrb[0].mxu0 %v5913
    %v6605 = vpop.f32.mrb[0].mxu0
    %v6606 = vadd.f32 0.0, %v6605
    %v6607 = vpop.f32.mrb[0].mxu0
    %v6608 = vadd.f32 0.0, %v6607
    %v6609 = vpop.f32.mrb[0].mxu0
    %v6610 = vadd.f32 0.0, %v6609
    %v6611 = vpop.f32.mrb[0].mxu0
    %v6612 = vadd.f32 0.0, %v6611
    %6613 = vmatprep.mubr.bf16.mxu0 0
    %6614 = vmatmul.mubr.bf16.gmra.mrb[0].mxu0 %v5914
    %v6615 = vpop.f32.mrb[0].mxu0
    %v6616 = vadd.f32 0.0, %v6615
    %v6617 = vpop.f32.mrb[0].mxu0
    %v6618 = vadd.f32 0.0, %v6617
    %v6619 = vpop.f32.mrb[0].mxu0
    %v6620 = vadd.f32 0.0, %v6619
    %v6621 = vpop.f32.mrb[0].mxu0
    %v6622 = vadd.f32 0.0, %v6621
    %6623 = vmatprep.mubr.bf16.mxu0 0
    %6624 = vmatmul.mubr.bf16.gmra.mrb[0].mxu0 %v5915
    %v6625 = vpop.f32.mrb[0].mxu0
    %v6626 = vadd.f32 0.0, %v6625
    %v6627 = vpop.f32.mrb[0].mxu0
    %v6628 = vadd.f32 0.0, %v6627
    %v6629 = vpop.f32.mrb[0].mxu0
    %v6630 = vadd.f32 0.0, %v6629
    %v6631 = vpop.f32.mrb[0].mxu0
    %v6632 = vadd.f32 0.0, %v6631
    %6633 = vmatprep.mubr.bf16.mxu0 0
    %6634 = vmatmul.mubr.bf16.gmra.mrb[0].mxu0 %v5916
    %v6635 = vpop.f32.mrb[0].mxu0
    %v6636 = vadd.f32 0.0, %v6635
    %v6637 = vpop.f32.mrb[0].mxu0
    %v6638 = vadd.f32 0.0, %v6637
    %v6639 = vpop.f32.mrb[0].mxu0
    %v6640 = vadd.f32 0.0, %v6639
    %v6641 = vpop.f32.mrb[0].mxu0
    %v6642 = vadd.f32 0.0, %v6641
    %6643 = vmatprep.mubr.bf16.mxu0 0
    %6644 = vmatmul.mubr.bf16.gmra.mrb[0].mxu0 %v5917
    %v6645 = vpop.f32.mrb[0].mxu0
    %v6646 = vadd.f32 0.0, %v6645
    %v6647 = vpop.f32.mrb[0].mxu0
    %v6648 = vadd.f32 0.0, %v6647
    %v6649 = vpop.f32.mrb[0].mxu0
    %v6650 = vadd.f32 0.0, %v6649
    %v6651 = vpop.f32.mrb[0].mxu0
    %v6652 = vadd.f32 0.0, %v6651
    %6653 = vmatprep.mubr.bf16.mxu0 0
    %6654 = vmatmul.mubr.bf16.gmra.mrb[0].mxu0 %v5918
    %v6655 = vpop.f32.mrb[0].mxu0
    %v6656 = vadd.f32 0.0, %v6655
    %v6657 = vpop.f32.mrb[0].mxu0
    %v6658 = vadd.f32 0.0, %v6657
    %v6659 = vpop.f32.mrb[0].mxu0
    %v6660 = vadd.f32 0.0, %v6659
    %v6661 = vpop.f32.mrb[0].mxu0
    %v6662 = vadd.f32 0.0, %v6661
    %6663 = vmatprep.mubr.bf16.mxu0 0
    %6664 = vmatmul.mubr.bf16.gmra.mrb[0].mxu0 %v5919
    %v6665 = vpop.f32.mrb[0].mxu0
    %v6666 = vadd.f32 0.0, %v6665
    %v6667 = vpop.f32.mrb[0].mxu0
    %v6668 = vadd.f32 0.0, %v6667
    %v6669 = vpop.f32.mrb[0].mxu0
    %v6670 = vadd.f32 0.0, %v6669
    %v6671 = vpop.f32.mrb[0].mxu0
    %v6672 = vadd.f32 0.0, %v6671
    %6673 = vmatprep.mubr.bf16.mxu0 0
    %6674 = vmatmul.mubr.bf16.gmra.mrb[0].mxu0 %v5920
    %v6675 = vpop.f32.mrb[0].mxu0
    %v6676 = vadd.f32 0.0, %v6675
    %v6677 = vpop.f32.mrb[0].mxu0
    %v6678 = vadd.f32 0.0, %v6677
    %v6679 = vpop.f32.mrb[0].mxu0
    %v6680 = vadd.f32 0.0, %v6679
    %v6681 = vpop.f32.mrb[0].mxu0
    %v6682 = vadd.f32 0.0, %v6681
    %6683 = vmatprep.mubr.bf16.mxu0 0
    %6684 = vmatmul.mubr.bf16.gmra.mrb[0].mxu0 %v5921
    %v6685 = vpop.f32.mrb[0].mxu0
    %v6686 = vadd.f32 0.0, %v6685
    %v6687 = vpop.f32.mrb[0].mxu0
    %v6688 = vadd.f32 0.0, %v6687
    %v6689 = vpop.f32.mrb[0].mxu0
    %v6690 = vadd.f32 0.0, %v6689
    %v6691 = vpop.f32.mrb[0].mxu0
    %v6692 = vadd.f32 0.0, %v6691
    %6693 = vmatprep.mubr.bf16.mxu0 0
    %6694 = vmatmul.mubr.bf16.gmra.mrb[0].mxu0 %v5922
    %v6695 = vpop.f32.mrb[0].mxu0
    %v6696 = vadd.f32 0.0, %v6695
    %v6697 = vpop.f32.mrb[0].mxu0
    %v6698 = vadd.f32 0.0, %v6697
    %v6699 = vpop.f32.mrb[0].mxu0
    %v6700 = vadd.f32 0.0, %v6699
    %v6701 = vpop.f32.mrb[0].mxu0
    %v6702 = vadd.f32 0.0, %v6701
    %6703 = vmatprep.mubr.bf16.mxu0 0
    %6704 = vmatmul.mubr.bf16.gmra.mrb[0].mxu0 %v5923
    %v6705 = vpop.f32.mrb[0].mxu0
    %v6706 = vadd.f32 0.0, %v6705
    %v6707 = vpop.f32.mrb[0].mxu0
    %v6708 = vadd.f32 0.0, %v6707
    %v6709 = vpop.f32.mrb[0].mxu0
    %v6710 = vadd.f32 0.0, %v6709
    %v6711 = vpop.f32.mrb[0].mxu0
    %v6712 = vadd.f32 0.0, %v6711
    %6713 = vmatprep.mubr.bf16.mxu0 0
    %6714 = vmatmul.mubr.bf16.gmra.mrb[0].mxu0 %v5924
    %v6715 = vpop.f32.mrb[0].mxu0
    %v6716 = vadd.f32 0.0, %v6715
    %v6717 = vpop.f32.mrb[0].mxu0
    %v6718 = vadd.f32 0.0, %v6717
    %v6719 = vpop.f32.mrb[0].mxu0
    %v6720 = vadd.f32 0.0, %v6719
    %v6721 = vpop.f32.mrb[0].mxu0
    %v6722 = vadd.f32 0.0, %v6721
    %6723 = vmatprep.mubr.bf16.mxu0 0
    %6724 = vmatmul.mubr.bf16.gmra.mrb[0].mxu0 %v5925
    %v6725 = vpop.f32.mrb[0].mxu0
    %v6726 = vadd.f32 0.0, %v6725
    %v6727 = vpop.f32.mrb[0].mxu0
    %v6728 = vadd.f32 0.0, %v6727
    %v6729 = vpop.f32.mrb[0].mxu0
    %v6730 = vadd.f32 0.0, %v6729
    %v6731 = vpop.f32.mrb[0].mxu0
    %v6732 = vadd.f32 0.0, %v6731
    %6733 = vmatprep.mubr.bf16.mxu0 0
    %6734 = vmatmul.mubr.bf16.gmra.mrb[0].mxu0 %v5926
    %v6735 = vpop.f32.mrb[0].mxu0
    %v6736 = vadd.f32 0.0, %v6735
    %v6737 = vpop.f32.mrb[0].mxu0
    %v6738 = vadd.f32 0.0, %v6737
    %v6739 = vpop.f32.mrb[0].mxu0
    %v6740 = vadd.f32 0.0, %v6739
    %v6741 = vpop.f32.mrb[0].mxu0
    %v6742 = vadd.f32 0.0, %v6741
    %6743 = vmatprep.mubr.bf16.mxu0 0
    %6744 = vmatmul.mubr.bf16.gmra.mrb[0].mxu0 %v5927
    %v6745 = vpop.f32.mrb[0].mxu0
    %v6746 = vadd.f32 0.0, %v6745
    %v6747 = vpop.f32.mrb[0].mxu0
    %v6748 = vadd.f32 0.0, %v6747
    %v6749 = vpop.f32.mrb[0].mxu0
    %v6750 = vadd.f32 0.0, %v6749
    %v6751 = vpop.f32.mrb[0].mxu0
    %v6752 = vadd.f32 0.0, %v6751
    %6753 = vmatprep.mubr.bf16.mxu0 0
    %6754 = vmatmul.mubr.bf16.gmra.mrb[0].mxu0 %v5928
    %v6755 = vpop.f32.mrb[0].mxu0
    %v6756 = vadd.f32 0.0, %v6755
    %v6757 = vpop.f32.mrb[0].mxu0
    %v6758 = vadd.f32 0.0, %v6757
    %v6759 = vpop.f32.mrb[0].mxu0
    %v6760 = vadd.f32 0.0, %v6759
    %v6761 = vpop.f32.mrb[0].mxu0
    %v6762 = vadd.f32 0.0, %v6761
    %6763 = vmatprep.mubr.bf16.mxu0 0
    %6764 = vmatmul.mubr.bf16.gmra.mrb[0].mxu0 %v5929
    %v6765 = vpop.f32.mrb[0].mxu0
    %v6766 = vadd.f32 0.0, %v6765
    %v6767 = vpop.f32.mrb[0].mxu0
    %v6768 = vadd.f32 0.0, %v6767
    %v6769 = vpop.f32.mrb[0].mxu0
    %v6770 = vadd.f32 0.0, %v6769
    %v6771 = vpop.f32.mrb[0].mxu0
    %v6772 = vadd.f32 0.0, %v6771
    %6773 = vmatprep.mubr.bf16.mxu0 0
    %6774 = vmatmul.mubr.bf16.gmra.mrb[0].mxu0 %v5930
    %v6775 = vpop.f32.mrb[0].mxu0
    %v6776 = vadd.f32 0.0, %v6775
    %v6777 = vpop.f32.mrb[0].mxu0
    %v6778 = vadd.f32 0.0, %v6777
    %v6779 = vpop.f32.mrb[0].mxu0
    %v6780 = vadd.f32 0.0, %v6779
    %v6781 = vpop.f32.mrb[0].mxu0
    %v6782 = vadd.f32 0.0, %v6781
    %6783 = vmatprep.mubr.bf16.mxu0 0
    %6784 = vmatmul.mubr.bf16.gmra.mrb[0].mxu0 %v5931
    %v6785 = vpop.f32.mrb[0].mxu0
    %v6786 = vadd.f32 0.0, %v6785
    %v6787 = vpop.f32.mrb[0].mxu0
    %v6788 = vadd.f32 0.0, %v6787
    %v6789 = vpop.f32.mrb[0].mxu0
    %v6790 = vadd.f32 0.0, %v6789
    %v6791 = vpop.f32.mrb[0].mxu0
    %v6792 = vadd.f32 0.0, %v6791
    %6793 = vmatprep.mubr.bf16.mxu0 0
    %6794 = vmatmul.mubr.bf16.gmra.mrb[0].mxu0 %v5932
    %v6795 = vpop.f32.mrb[0].mxu0
    %v6796 = vadd.f32 0.0, %v6795
    %v6797 = vpop.f32.mrb[0].mxu0
    %v6798 = vadd.f32 0.0, %v6797
    %v6799 = vpop.f32.mrb[0].mxu0
    %v6800 = vadd.f32 0.0, %v6799
    %v6801 = vpop.f32.mrb[0].mxu0
    %v6802 = vadd.f32 0.0, %v6801
    %6803 = vmatprep.mubr.bf16.mxu0 0
    %6804 = vmatmul.mubr.bf16.gmra.mrb[0].mxu0 %v5933
    %v6805 = vpop.f32.mrb[0].mxu0
    %v6806 = vadd.f32 0.0, %v6805
    %v6807 = vpop.f32.mrb[0].mxu0
    %v6808 = vadd.f32 0.0, %v6807
    %v6809 = vpop.f32.mrb[0].mxu0
    %v6810 = vadd.f32 0.0, %v6809
    %v6811 = vpop.f32.mrb[0].mxu0
    %v6812 = vadd.f32 0.0, %v6811
    %6813 = vmatprep.mubr.bf16.mxu0 0
    %6814 = vmatmul.mubr.bf16.gmra.mrb[0].mxu0 %v5934
    %v6815 = vpop.f32.mrb[0].mxu0
    %v6816 = vadd.f32 0.0, %v6815
    %v6817 = vpop.f32.mrb[0].mxu0
    %v6818 = vadd.f32 0.0, %v6817
    %v6819 = vpop.f32.mrb[0].mxu0
    %v6820 = vadd.f32 0.0, %v6819
    %v6821 = vpop.f32.mrb[0].mxu0
    %v6822 = vadd.f32 0.0, %v6821
    %6823 = vmatprep.mubr.bf16.mxu0 0
    %6824 = vmatmul.mubr.bf16.gmra.mrb[0].mxu0 %v5935
    %v6825 = vpop.f32.mrb[0].mxu0
    %v6826 = vadd.f32 0.0, %v6825
    %v6827 = vpop.f32.mrb[0].mxu0
    %v6828 = vadd.f32 0.0, %v6827
    %v6829 = vpop.f32.mrb[0].mxu0
    %v6830 = vadd.f32 0.0, %v6829
    %v6831 = vpop.f32.mrb[0].mxu0
    %v6832 = vadd.f32 0.0, %v6831
    %6833 = vdwg.mxu0
    %v6834 = vld [vmem:[%s8] sm:$0xf]
    %v6835 = vld [vmem:[%s9] sm:$0xf]
    %v6836 = vadd.f32 %v6163, %v6167
    %v6837 = vadd.f32 %v6836, %v6173
    %v6838 = vadd.f32 %v6837, %v6177
    %v6839 = vadd.f32 %v6838, %v6183
    %v6840 = vadd.f32 %v6839, %v6187
    %v6841 = vadd.f32 %v6840, %v6193
    %v6842 = vadd.f32 %v6841, %v6197
    %v6843 = vadd.f32 %v6842, %v6203
    %v6844 = vadd.f32 %v6843, %v6207
    %v6845 = vadd.f32 %v6844, %v6213
    %v6846 = vadd.f32 %v6845, %v6217
    %v6847 = vadd.f32 %v6846, %v6223
    %v6848 = vadd.f32 %v6847, %v6227
    %v6849 = vadd.f32 %v6848, %v6233
    %v6850 = vadd.f32 %v6849, %v6237
    %v6851 = vadd.f32 %v6850, %v6243
    %v6852 = vadd.f32 %v6851, %v6247
    %v6853 = vadd.f32 %v6852, %v6253
    %v6854 = vadd.f32 %v6853, %v6257
    %v6855 = vadd.f32 %v6854, %v6263
    %v6856 = vadd.f32 %v6855, %v6267
    %v6857 = vadd.f32 %v6856, %v6273
    %v6858 = vadd.f32 %v6857, %v6277
    %v6859 = vadd.f32 %v6858, %v6283
    %v6860 = vadd.f32 %v6859, %v6287
    %v6861 = vadd.f32 %v6860, %v6293
    %v6862 = vadd.f32 %v6861, %v6297
    %v6863 = vadd.f32 %v6862, %v6303
    %v6864 = vadd.f32 %v6863, %v6307
    %v6865 = vadd.f32 %v6864, %v6313
    %v6866 = vadd.f32 %v6865, %v6317
    %v6867 = vadd.f32 %v6866, %v6323
    %v6868 = vadd.f32 %v6867, %v6327
    %v6869 = vadd.f32 %v6868, %v6333
    %v6870 = vadd.f32 %v6869, %v6337
    %v6871 = vadd.f32 %v6870, %v6343
    %v6872 = vadd.f32 %v6871, %v6347
    %v6873 = vadd.f32 %v6872, %v6353
    %v6874 = vadd.f32 %v6873, %v6357
    %v6875 = vadd.f32 %v6874, %v6363
    %v6876 = vadd.f32 %v6875, %v6367
    %v6877 = vadd.f32 %v6876, %v6373
    %v6878 = vadd.f32 %v6877, %v6377
    %v6879 = vadd.f32 %v6878, %v6383
    %v6880 = vadd.f32 %v6879, %v6387
    %v6881 = vadd.f32 %v6880, %v6393
    %v6882 = vadd.f32 %v6881, %v6397
    %v6883 = vadd.f32 %v6882, %v6403
    %v6884 = vadd.f32 %v6883, %v6407
    %v6885 = vadd.f32 %v6884, %v6413
    %v6886 = vadd.f32 %v6885, %v6417
    %v6887 = vadd.f32 %v6886, %v6423
    %v6888 = vadd.f32 %v6887, %v6427
    %v6889 = vadd.f32 %v6888, %v6433
    %v6890 = vadd.f32 %v6889, %v6437
    %v6891 = vadd.f32 %v6890, %v6443
    %v6892 = vadd.f32 %v6891, %v6447
    %v6893 = vadd.f32 %v6892, %v6453
    %v6894 = vadd.f32 %v6893, %v6457
    %v6895 = vadd.f32 %v6894, %v6463
    %v6896 = vadd.f32 %v6895, %v6467
    %v6897 = vadd.f32 %v6896, %v6473
    %v6898 = vadd.f32 %v6897, %v6477
    %v6899 = vrot.slane %v6898, 4
    %v6900 = vadd.f32 %v6898, %v6899
    %v6901 = vrot.slane %v6900, 2
    %v6902 = vadd.f32 %v6900, %v6901
    %v6903 = vrot.slane %v6902, 1
    %v6904 = vadd.f32 %v6902, %v6903
    %v6905 = vadd.f32 %v6165, %v6169
    %v6906 = vadd.f32 %v6905, %v6175
    %v6907 = vadd.f32 %v6906, %v6179
    %v6908 = vadd.f32 %v6907, %v6185
    %v6909 = vadd.f32 %v6908, %v6189
    %v6910 = vadd.f32 %v6909, %v6195
    %v6911 = vadd.f32 %v6910, %v6199
    %v6912 = vadd.f32 %v6911, %v6205
    %v6913 = vadd.f32 %v6912, %v6209
    %v6914 = vadd.f32 %v6913, %v6215
    %v6915 = vadd.f32 %v6914, %v6219
    %v6916 = vadd.f32 %v6915, %v6225
    %v6917 = vadd.f32 %v6916, %v6229
    %v6918 = vadd.f32 %v6917, %v6235
    %v6919 = vadd.f32 %v6918, %v6239
    %v6920 = vadd.f32 %v6919, %v6245
    %v6921 = vadd.f32 %v6920, %v6249
    %v6922 = vadd.f32 %v6921, %v6255
    %v6923 = vadd.f32 %v6922, %v6259
    %v6924 = vadd.f32 %v6923, %v6265
    %v6925 = vadd.f32 %v6924, %v6269
    %v6926 = vadd.f32 %v6925, %v6275
    %v6927 = vadd.f32 %v6926, %v6279
    %v6928 = vadd.f32 %v6927, %v6285
    %v6929 = vadd.f32 %v6928, %v6289
    %v6930 = vadd.f32 %v6929, %v6295
    %v6931 = vadd.f32 %v6930, %v6299
    %v6932 = vadd.f32 %v6931, %v6305
    %v6933 = vadd.f32 %v6932, %v6309
    %v6934 = vadd.f32 %v6933, %v6315
    %v6935 = vadd.f32 %v6934, %v6319
    %v6936 = vadd.f32 %v6935, %v6325
    %v6937 = vadd.f32 %v6936, %v6329
    %v6938 = vadd.f32 %v6937, %v6335
    %v6939 = vadd.f32 %v6938, %v6339
    %v6940 = vadd.f32 %v6939, %v6345
    %v6941 = vadd.f32 %v6940, %v6349
    %v6942 = vadd.f32 %v6941, %v6355
    %v6943 = vadd.f32 %v6942, %v6359
    %v6944 = vadd.f32 %v6943, %v6365
    %v6945 = vadd.f32 %v6944, %v6369
    %v6946 = vadd.f32 %v6945, %v6375
    %v6947 = vadd.f32 %v6946, %v6379
    %v6948 = vadd.f32 %v6947, %v6385
    %v6949 = vadd.f32 %v6948, %v6389
    %v6950 = vadd.f32 %v6949, %v6395
    %v6951 = vadd.f32 %v6950, %v6399
    %v6952 = vadd.f32 %v6951, %v6405
    %v6953 = vadd.f32 %v6952, %v6409
    %v6954 = vadd.f32 %v6953, %v6415
    %v6955 = vadd.f32 %v6954, %v6419
    %v6956 = vadd.f32 %v6955, %v6425
    %v6957 = vadd.f32 %v6956, %v6429
    %v6958 = vadd.f32 %v6957, %v6435
    %v6959 = vadd.f32 %v6958, %v6439
    %v6960 = vadd.f32 %v6959, %v6445
    %v6961 = vadd.f32 %v6960, %v6449
    %v6962 = vadd.f32 %v6961, %v6455
    %v6963 = vadd.f32 %v6962, %v6459
    %v6964 = vadd.f32 %v6963, %v6465
    %v6965 = vadd.f32 %v6964, %v6469
    %v6966 = vadd.f32 %v6965, %v6475
    %v6967 = vadd.f32 %v6966, %v6479
    %v6968 = vrot.slane %v6967, 4
    %v6969 = vadd.f32 %v6967, %v6968
    %v6970 = vrot.slane %v6969, 2
    %v6971 = vadd.f32 %v6969, %v6970
    %v6972 = vrot.slane %v6971, 1
    %v6973 = vadd.f32 %v6971, %v6972
    %v6974 = vadd.f32 %v6516, %v6520
    %v6975 = vadd.f32 %v6974, %v6526
    %v6976 = vadd.f32 %v6975, %v6530
    %v6977 = vadd.f32 %v6976, %v6536
    %v6978 = vadd.f32 %v6977, %v6540
    %v6979 = vadd.f32 %v6978, %v6546
    %v6980 = vadd.f32 %v6979, %v6550
    %v6981 = vadd.f32 %v6980, %v6556
    %v6982 = vadd.f32 %v6981, %v6560
    %v6983 = vadd.f32 %v6982, %v6566
    %v6984 = vadd.f32 %v6983, %v6570
    %v6985 = vadd.f32 %v6984, %v6576
    %v6986 = vadd.f32 %v6985, %v6580
    %v6987 = vadd.f32 %v6986, %v6586
    %v6988 = vadd.f32 %v6987, %v6590
    %v6989 = vadd.f32 %v6988, %v6596
    %v6990 = vadd.f32 %v6989, %v6600
    %v6991 = vadd.f32 %v6990, %v6606
    %v6992 = vadd.f32 %v6991, %v6610
    %v6993 = vadd.f32 %v6992, %v6616
    %v6994 = vadd.f32 %v6993, %v6620
    %v6995 = vadd.f32 %v6994, %v6626
    %v6996 = vadd.f32 %v6995, %v6630
    %v6997 = vadd.f32 %v6996, %v6636
    %v6998 = vadd.f32 %v6997, %v6640
    %v6999 = vadd.f32 %v6998, %v6646
    %v7000 = vadd.f32 %v6999, %v6650
    %v7001 = vadd.f32 %v7000, %v6656
    %v7002 = vadd.f32 %v7001, %v6660
    %v7003 = vadd.f32 %v7002, %v6666
    %v7004 = vadd.f32 %v7003, %v6670
    %v7005 = vadd.f32 %v7004, %v6676
    %v7006 = vadd.f32 %v7005, %v6680
    %v7007 = vadd.f32 %v7006, %v6686
    %v7008 = vadd.f32 %v7007, %v6690
    %v7009 = vadd.f32 %v7008, %v6696
    %v7010 = vadd.f32 %v7009, %v6700
    %v7011 = vadd.f32 %v7010, %v6706
    %v7012 = vadd.f32 %v7011, %v6710
    %v7013 = vadd.f32 %v7012, %v6716
    %v7014 = vadd.f32 %v7013, %v6720
    %v7015 = vadd.f32 %v7014, %v6726
    %v7016 = vadd.f32 %v7015, %v6730
    %v7017 = vadd.f32 %v7016, %v6736
    %v7018 = vadd.f32 %v7017, %v6740
    %v7019 = vadd.f32 %v7018, %v6746
    %v7020 = vadd.f32 %v7019, %v6750
    %v7021 = vadd.f32 %v7020, %v6756
    %v7022 = vadd.f32 %v7021, %v6760
    %v7023 = vadd.f32 %v7022, %v6766
    %v7024 = vadd.f32 %v7023, %v6770
    %v7025 = vadd.f32 %v7024, %v6776
    %v7026 = vadd.f32 %v7025, %v6780
    %v7027 = vadd.f32 %v7026, %v6786
    %v7028 = vadd.f32 %v7027, %v6790
    %v7029 = vadd.f32 %v7028, %v6796
    %v7030 = vadd.f32 %v7029, %v6800
    %v7031 = vadd.f32 %v7030, %v6806
    %v7032 = vadd.f32 %v7031, %v6810
    %v7033 = vadd.f32 %v7032, %v6816
    %v7034 = vadd.f32 %v7033, %v6820
    %v7035 = vadd.f32 %v7034, %v6826
    %v7036 = vadd.f32 %v7035, %v6830
    %v7037 = vrot.slane %v7036, 4
    %v7038 = vadd.f32 %v7036, %v7037
    %v7039 = vrot.slane %v7038, 2
    %v7040 = vadd.f32 %v7038, %v7039
    %v7041 = vrot.slane %v7040, 1
    %v7042 = vadd.f32 %v7040, %v7041
    %v7043 = vadd.f32 %v6518, %v6522
    %v7044 = vadd.f32 %v7043, %v6528
    %v7045 = vadd.f32 %v7044, %v6532
    %v7046 = vadd.f32 %v7045, %v6538
    %v7047 = vadd.f32 %v7046, %v6542
    %v7048 = vadd.f32 %v7047, %v6548
    %v7049 = vadd.f32 %v7048, %v6552
    %v7050 = vadd.f32 %v7049, %v6558
    %v7051 = vadd.f32 %v7050, %v6562
    %v7052 = vadd.f32 %v7051, %v6568
    %v7053 = vadd.f32 %v7052, %v6572
    %v7054 = vadd.f32 %v7053, %v6578
    %v7055 = vadd.f32 %v7054, %v6582
    %v7056 = vadd.f32 %v7055, %v6588
    %v7057 = vadd.f32 %v7056, %v6592
    %v7058 = vadd.f32 %v7057, %v6598
    %v7059 = vadd.f32 %v7058, %v6602
    %v7060 = vadd.f32 %v7059, %v6608
    %v7061 = vadd.f32 %v7060, %v6612
    %v7062 = vadd.f32 %v7061, %v6618
    %v7063 = vadd.f32 %v7062, %v6622
    %v7064 = vadd.f32 %v7063, %v6628
    %v7065 = vadd.f32 %v7064, %v6632
    %v7066 = vadd.f32 %v7065, %v6638
    %v7067 = vadd.f32 %v7066, %v6642
    %v7068 = vadd.f32 %v7067, %v6648
    %v7069 = vadd.f32 %v7068, %v6652
    %v7070 = vadd.f32 %v7069, %v6658
    %v7071 = vadd.f32 %v7070, %v6662
    %v7072 = vadd.f32 %v7071, %v6668
    %v7073 = vadd.f32 %v7072, %v6672
    %v7074 = vadd.f32 %v7073, %v6678
    %v7075 = vadd.f32 %v7074, %v6682
    %v7076 = vadd.f32 %v7075, %v6688
    %v7077 = vadd.f32 %v7076, %v6692
    %v7078 = vadd.f32 %v7077, %v6698
    %v7079 = vadd.f32 %v7078, %v6702
    %v7080 = vadd.f32 %v7079, %v6708
    %v7081 = vadd.f32 %v7080, %v6712
    %v7082 = vadd.f32 %v7081, %v6718
    %v7083 = vadd.f32 %v7082, %v6722
    %v7084 = vadd.f32 %v7083, %v6728
    %v7085 = vadd.f32 %v7084, %v6732
    %v7086 = vadd.f32 %v7085, %v6738
    %v7087 = vadd.f32 %v7086, %v6742
    %v7088 = vadd.f32 %v7087, %v6748
    %v7089 = vadd.f32 %v7088, %v6752
    %v7090 = vadd.f32 %v7089, %v6758
    %v7091 = vadd.f32 %v7090, %v6762
    %v7092 = vadd.f32 %v7091, %v6768
    %v7093 = vadd.f32 %v7092, %v6772
    %v7094 = vadd.f32 %v7093, %v6778
    %v7095 = vadd.f32 %v7094, %v6782
    %v7096 = vadd.f32 %v7095, %v6788
    %v7097 = vadd.f32 %v7096, %v6792
    %v7098 = vadd.f32 %v7097, %v6798
    %v7099 = vadd.f32 %v7098, %v6802
    %v7100 = vadd.f32 %v7099, %v6808
    %v7101 = vadd.f32 %v7100, %v6812
    %v7102 = vadd.f32 %v7101, %v6818
    %v7103 = vadd.f32 %v7102, %v6822
    %v7104 = vadd.f32 %v7103, %v6828
    %v7105 = vadd.f32 %v7104, %v6832
    %v7106 = vrot.slane %v7105, 4
    %v7107 = vadd.f32 %v7105, %v7106
    %v7108 = vrot.slane %v7107, 2
    %v7109 = vadd.f32 %v7107, %v7108
    %v7110 = vrot.slane %v7109, 1
    %v7111 = vadd.f32 %v7109, %v7110
    %v7112 = vmul.f32 %v6904, %v1381
    %v7113 = vmul.f32 %v6973, %v1381
    %v7114 = vmul.f32 %v7042, %v1381
    %v7115 = vmul.f32 %v7111, %v1381
    %v7116 = vsub.f32 %v6163, %v7112
    %v7117 = vsub.f32 %v6165, %v7113
    %v7118 = vsub.f32 %v6516, %v7114
    %v7119 = vsub.f32 %v6518, %v7115
    %v7120 = vsub.f32 %v6167, %v7112
    %v7121 = vsub.f32 %v6169, %v7113
    %v7122 = vsub.f32 %v6520, %v7114
    %v7123 = vsub.f32 %v6522, %v7115
    %v7124 = vsub.f32 %v6173, %v7112
    %v7125 = vsub.f32 %v6175, %v7113
    %v7126 = vsub.f32 %v6526, %v7114
    %v7127 = vsub.f32 %v6528, %v7115
    %v7128 = vsub.f32 %v6177, %v7112
    %v7129 = vsub.f32 %v6179, %v7113
    %v7130 = vsub.f32 %v6530, %v7114
    %v7131 = vsub.f32 %v6532, %v7115
    %v7132 = vsub.f32 %v6183, %v7112
    %v7133 = vsub.f32 %v6185, %v7113
    %v7134 = vsub.f32 %v6536, %v7114
    %v7135 = vsub.f32 %v6538, %v7115
    %v7136 = vsub.f32 %v6187, %v7112
    %v7137 = vsub.f32 %v6189, %v7113
    %v7138 = vsub.f32 %v6540, %v7114
    %v7139 = vsub.f32 %v6542, %v7115
    %v7140 = vsub.f32 %v6193, %v7112
    %v7141 = vsub.f32 %v6195, %v7113
    %v7142 = vsub.f32 %v6546, %v7114
    %v7143 = vsub.f32 %v6548, %v7115
    %v7144 = vsub.f32 %v6197, %v7112
    %v7145 = vsub.f32 %v6199, %v7113
    %v7146 = vsub.f32 %v6550, %v7114
    %v7147 = vsub.f32 %v6552, %v7115
    %v7148 = vsub.f32 %v6203, %v7112
    %v7149 = vsub.f32 %v6205, %v7113
    %v7150 = vsub.f32 %v6556, %v7114
    %v7151 = vsub.f32 %v6558, %v7115
    %v7152 = vsub.f32 %v6207, %v7112
    %v7153 = vsub.f32 %v6209, %v7113
    %v7154 = vsub.f32 %v6560, %v7114
    %v7155 = vsub.f32 %v6562, %v7115
    %v7156 = vsub.f32 %v6213, %v7112
    %v7157 = vsub.f32 %v6215, %v7113
    %v7158 = vsub.f32 %v6566, %v7114
    %v7159 = vsub.f32 %v6568, %v7115
    %v7160 = vsub.f32 %v6217, %v7112
    %v7161 = vsub.f32 %v6219, %v7113
    %v7162 = vsub.f32 %v6570, %v7114
    %v7163 = vsub.f32 %v6572, %v7115
    %v7164 = vsub.f32 %v6223, %v7112
    %v7165 = vsub.f32 %v6225, %v7113
    %v7166 = vsub.f32 %v6576, %v7114
    %v7167 = vsub.f32 %v6578, %v7115
    %v7168 = vsub.f32 %v6227, %v7112
    %v7169 = vsub.f32 %v6229, %v7113
    %v7170 = vsub.f32 %v6580, %v7114
    %v7171 = vsub.f32 %v6582, %v7115
    %v7172 = vsub.f32 %v6233, %v7112
    %v7173 = vsub.f32 %v6235, %v7113
    %v7174 = vsub.f32 %v6586, %v7114
    %v7175 = vsub.f32 %v6588, %v7115
    %v7176 = vsub.f32 %v6237, %v7112
    %v7177 = vsub.f32 %v6239, %v7113
    %v7178 = vsub.f32 %v6590, %v7114
    %v7179 = vsub.f32 %v6592, %v7115
    %v7180 = vsub.f32 %v6243, %v7112
    %v7181 = vsub.f32 %v6245, %v7113
    %v7182 = vsub.f32 %v6596, %v7114
    %v7183 = vsub.f32 %v6598, %v7115
    %v7184 = vsub.f32 %v6247, %v7112
    %v7185 = vsub.f32 %v6249, %v7113
    %v7186 = vsub.f32 %v6600, %v7114
    %v7187 = vsub.f32 %v6602, %v7115
    %v7188 = vsub.f32 %v6253, %v7112
    %v7189 = vsub.f32 %v6255, %v7113
    %v7190 = vsub.f32 %v6606, %v7114
    %v7191 = vsub.f32 %v6608, %v7115
    %v7192 = vsub.f32 %v6257, %v7112
    %v7193 = vsub.f32 %v6259, %v7113
    %v7194 = vsub.f32 %v6610, %v7114
    %v7195 = vsub.f32 %v6612, %v7115
    %v7196 = vsub.f32 %v6263, %v7112
    %v7197 = vsub.f32 %v6265, %v7113
    %v7198 = vsub.f32 %v6616, %v7114
    %v7199 = vsub.f32 %v6618, %v7115
    %v7200 = vsub.f32 %v6267, %v7112
    %v7201 = vsub.f32 %v6269, %v7113
    %v7202 = vsub.f32 %v6620, %v7114
    %v7203 = vsub.f32 %v6622, %v7115
    %v7204 = vsub.f32 %v6273, %v7112
    %v7205 = vsub.f32 %v6275, %v7113
    %v7206 = vsub.f32 %v6626, %v7114
    %v7207 = vsub.f32 %v6628, %v7115
    %v7208 = vsub.f32 %v6277, %v7112
    %v7209 = vsub.f32 %v6279, %v7113
    %v7210 = vsub.f32 %v6630, %v7114
    %v7211 = vsub.f32 %v6632, %v7115
    %v7212 = vsub.f32 %v6283, %v7112
    %v7213 = vsub.f32 %v6285, %v7113
    %v7214 = vsub.f32 %v6636, %v7114
    %v7215 = vsub.f32 %v6638, %v7115
    %v7216 = vsub.f32 %v6287, %v7112
    %v7217 = vsub.f32 %v6289, %v7113
    %v7218 = vsub.f32 %v6640, %v7114
    %v7219 = vsub.f32 %v6642, %v7115
    %v7220 = vsub.f32 %v6293, %v7112
    %v7221 = vsub.f32 %v6295, %v7113
    %v7222 = vsub.f32 %v6646, %v7114
    %v7223 = vsub.f32 %v6648, %v7115
    %v7224 = vsub.f32 %v6297, %v7112
    %v7225 = vsub.f32 %v6299, %v7113
    %v7226 = vsub.f32 %v6650, %v7114
    %v7227 = vsub.f32 %v6652, %v7115
    %v7228 = vsub.f32 %v6303, %v7112
    %v7229 = vsub.f32 %v6305, %v7113
    %v7230 = vsub.f32 %v6656, %v7114
    %v7231 = vsub.f32 %v6658, %v7115
    %v7232 = vsub.f32 %v6307, %v7112
    %v7233 = vsub.f32 %v6309, %v7113
    %v7234 = vsub.f32 %v6660, %v7114
    %v7235 = vsub.f32 %v6662, %v7115
    %v7236 = vsub.f32 %v6313, %v7112
    %v7237 = vsub.f32 %v6315, %v7113
    %v7238 = vsub.f32 %v6666, %v7114
    %v7239 = vsub.f32 %v6668, %v7115
    %v7240 = vsub.f32 %v6317, %v7112
    %v7241 = vsub.f32 %v6319, %v7113
    %v7242 = vsub.f32 %v6670, %v7114
    %v7243 = vsub.f32 %v6672, %v7115
    %v7244 = vsub.f32 %v6323, %v7112
    %v7245 = vsub.f32 %v6325, %v7113
    %v7246 = vsub.f32 %v6676, %v7114
    %v7247 = vsub.f32 %v6678, %v7115
    %v7248 = vsub.f32 %v6327, %v7112
    %v7249 = vsub.f32 %v6329, %v7113
    %v7250 = vsub.f32 %v6680, %v7114
    %v7251 = vsub.f32 %v6682, %v7115
    %v7252 = vsub.f32 %v6333, %v7112
    %v7253 = vsub.f32 %v6335, %v7113
    %v7254 = vsub.f32 %v6686, %v7114
    %v7255 = vsub.f32 %v6688, %v7115
    %v7256 = vsub.f32 %v6337, %v7112
    %v7257 = vsub.f32 %v6339, %v7113
    %v7258 = vsub.f32 %v6690, %v7114
    %v7259 = vsub.f32 %v6692, %v7115
    %v7260 = vsub.f32 %v6343, %v7112
    %v7261 = vsub.f32 %v6345, %v7113
    %v7262 = vsub.f32 %v6696, %v7114
    %v7263 = vsub.f32 %v6698, %v7115
    %v7264 = vsub.f32 %v6347, %v7112
    %v7265 = vsub.f32 %v6349, %v7113
    %v7266 = vsub.f32 %v6700, %v7114
    %v7267 = vsub.f32 %v6702, %v7115
    %v7268 = vsub.f32 %v6353, %v7112
    %v7269 = vsub.f32 %v6355, %v7113
    %v7270 = vsub.f32 %v6706, %v7114
    %v7271 = vsub.f32 %v6708, %v7115
    %v7272 = vsub.f32 %v6357, %v7112
    %v7273 = vsub.f32 %v6359, %v7113
    %v7274 = vsub.f32 %v6710, %v7114
    %v7275 = vsub.f32 %v6712, %v7115
    %v7276 = vsub.f32 %v6363, %v7112
    %v7277 = vsub.f32 %v6365, %v7113
    %v7278 = vsub.f32 %v6716, %v7114
    %v7279 = vsub.f32 %v6718, %v7115
    %v7280 = vsub.f32 %v6367, %v7112
    %v7281 = vsub.f32 %v6369, %v7113
    %v7282 = vsub.f32 %v6720, %v7114
    %v7283 = vsub.f32 %v6722, %v7115
    %v7284 = vsub.f32 %v6373, %v7112
    %v7285 = vsub.f32 %v6375, %v7113
    %v7286 = vsub.f32 %v6726, %v7114
    %v7287 = vsub.f32 %v6728, %v7115
    %v7288 = vsub.f32 %v6377, %v7112
    %v7289 = vsub.f32 %v6379, %v7113
    %v7290 = vsub.f32 %v6730, %v7114
    %v7291 = vsub.f32 %v6732, %v7115
    %v7292 = vsub.f32 %v6383, %v7112
    %v7293 = vsub.f32 %v6385, %v7113
    %v7294 = vsub.f32 %v6736, %v7114
    %v7295 = vsub.f32 %v6738, %v7115
    %v7296 = vsub.f32 %v6387, %v7112
    %v7297 = vsub.f32 %v6389, %v7113
    %v7298 = vsub.f32 %v6740, %v7114
    %v7299 = vsub.f32 %v6742, %v7115
    %v7300 = vsub.f32 %v6393, %v7112
    %v7301 = vsub.f32 %v6395, %v7113
    %v7302 = vsub.f32 %v6746, %v7114
    %v7303 = vsub.f32 %v6748, %v7115
    %v7304 = vsub.f32 %v6397, %v7112
    %v7305 = vsub.f32 %v6399, %v7113
    %v7306 = vsub.f32 %v6750, %v7114
    %v7307 = vsub.f32 %v6752, %v7115
    %v7308 = vsub.f32 %v6403, %v7112
    %v7309 = vsub.f32 %v6405, %v7113
    %v7310 = vsub.f32 %v6756, %v7114
    %v7311 = vsub.f32 %v6758, %v7115
    %v7312 = vsub.f32 %v6407, %v7112
    %v7313 = vsub.f32 %v6409, %v7113
    %v7314 = vsub.f32 %v6760, %v7114
    %v7315 = vsub.f32 %v6762, %v7115
    %v7316 = vsub.f32 %v6413, %v7112
    %v7317 = vsub.f32 %v6415, %v7113
    %v7318 = vsub.f32 %v6766, %v7114
    %v7319 = vsub.f32 %v6768, %v7115
    %v7320 = vsub.f32 %v6417, %v7112
    %v7321 = vsub.f32 %v6419, %v7113
    %v7322 = vsub.f32 %v6770, %v7114
    %v7323 = vsub.f32 %v6772, %v7115
    %v7324 = vsub.f32 %v6423, %v7112
    %v7325 = vsub.f32 %v6425, %v7113
    %v7326 = vsub.f32 %v6776, %v7114
    %v7327 = vsub.f32 %v6778, %v7115
    %v7328 = vsub.f32 %v6427, %v7112
    %v7329 = vsub.f32 %v6429, %v7113
    %v7330 = vsub.f32 %v6780, %v7114
    %v7331 = vsub.f32 %v6782, %v7115
    %v7332 = vsub.f32 %v6433, %v7112
    %v7333 = vsub.f32 %v6435, %v7113
    %v7334 = vsub.f32 %v6786, %v7114
    %v7335 = vsub.f32 %v6788, %v7115
    %v7336 = vsub.f32 %v6437, %v7112
    %v7337 = vsub.f32 %v6439, %v7113
    %v7338 = vsub.f32 %v6790, %v7114
    %v7339 = vsub.f32 %v6792, %v7115
    %v7340 = vsub.f32 %v6443, %v7112
    %v7341 = vsub.f32 %v6445, %v7113
    %v7342 = vsub.f32 %v6796, %v7114
    %v7343 = vsub.f32 %v6798, %v7115
    %v7344 = vsub.f32 %v6447, %v7112
    %v7345 = vsub.f32 %v6449, %v7113
    %v7346 = vsub.f32 %v6800, %v7114
    %v7347 = vsub.f32 %v6802, %v7115
    %v7348 = vsub.f32 %v6453, %v7112
    %v7349 = vsub.f32 %v6455, %v7113
    %v7350 = vsub.f32 %v6806, %v7114
    %v7351 = vsub.f32 %v6808, %v7115
    %v7352 = vsub.f32 %v6457, %v7112
    %v7353 = vsub.f32 %v6459, %v7113
    %v7354 = vsub.f32 %v6810, %v7114
    %v7355 = vsub.f32 %v6812, %v7115
    %v7356 = vsub.f32 %v6463, %v7112
    %v7357 = vsub.f32 %v6465, %v7113
    %v7358 = vsub.f32 %v6816, %v7114
    %v7359 = vsub.f32 %v6818, %v7115
    %v7360 = vsub.f32 %v6467, %v7112
    %v7361 = vsub.f32 %v6469, %v7113
    %v7362 = vsub.f32 %v6820, %v7114
    %v7363 = vsub.f32 %v6822, %v7115
    %v7364 = vsub.f32 %v6473, %v7112
    %v7365 = vsub.f32 %v6475, %v7113
    %v7366 = vsub.f32 %v6826, %v7114
    %v7367 = vsub.f32 %v6828, %v7115
    %v7368 = vsub.f32 %v6477, %v7112
    %v7369 = vsub.f32 %v6479, %v7113
    %v7370 = vsub.f32 %v6830, %v7114
    %v7371 = vsub.f32 %v6832, %v7115
    %v7372 = vmul.f32 %v7116, %v7116
    %v7373 = vmul.f32 %v7117, %v7117
    %v7374 = vmul.f32 %v7118, %v7118
    %v7375 = vmul.f32 %v7119, %v7119
    %v7376 = vmul.f32 %v7120, %v7120
    %v7377 = vmul.f32 %v7121, %v7121
    %v7378 = vmul.f32 %v7122, %v7122
    %v7379 = vmul.f32 %v7123, %v7123
    %v7380 = vmul.f32 %v7124, %v7124
    %v7381 = vmul.f32 %v7125, %v7125
    %v7382 = vmul.f32 %v7126, %v7126
    %v7383 = vmul.f32 %v7127, %v7127
    %v7384 = vmul.f32 %v7128, %v7128
    %v7385 = vmul.f32 %v7129, %v7129
    %v7386 = vmul.f32 %v7130, %v7130
    %v7387 = vmul.f32 %v7131, %v7131
    %v7388 = vmul.f32 %v7132, %v7132
    %v7389 = vmul.f32 %v7133, %v7133
    %v7390 = vmul.f32 %v7134, %v7134
    %v7391 = vmul.f32 %v7135, %v7135
    %v7392 = vmul.f32 %v7136, %v7136
    %v7393 = vmul.f32 %v7137, %v7137
    %v7394 = vmul.f32 %v7138, %v7138
    %v7395 = vmul.f32 %v7139, %v7139
    %v7396 = vmul.f32 %v7140, %v7140
    %v7397 = vmul.f32 %v7141, %v7141
    %v7398 = vmul.f32 %v7142, %v7142
    %v7399 = vmul.f32 %v7143, %v7143
    %v7400 = vmul.f32 %v7144, %v7144
    %v7401 = vmul.f32 %v7145, %v7145
    %v7402 = vmul.f32 %v7146, %v7146
    %v7403 = vmul.f32 %v7147, %v7147
    %v7404 = vmul.f32 %v7148, %v7148
    %v7405 = vmul.f32 %v7149, %v7149
    %v7406 = vmul.f32 %v7150, %v7150
    %v7407 = vmul.f32 %v7151, %v7151
    %v7408 = vmul.f32 %v7152, %v7152
    %v7409 = vmul.f32 %v7153, %v7153
    %v7410 = vmul.f32 %v7154, %v7154
    %v7411 = vmul.f32 %v7155, %v7155
    %v7412 = vmul.f32 %v7156, %v7156
    %v7413 = vmul.f32 %v7157, %v7157
    %v7414 = vmul.f32 %v7158, %v7158
    %v7415 = vmul.f32 %v7159, %v7159
    %v7416 = vmul.f32 %v7160, %v7160
    %v7417 = vmul.f32 %v7161, %v7161
    %v7418 = vmul.f32 %v7162, %v7162
    %v7419 = vmul.f32 %v7163, %v7163
    %v7420 = vmul.f32 %v7164, %v7164
    %v7421 = vmul.f32 %v7165, %v7165
    %v7422 = vmul.f32 %v7166, %v7166
    %v7423 = vmul.f32 %v7167, %v7167
    %v7424 = vmul.f32 %v7168, %v7168
    %v7425 = vmul.f32 %v7169, %v7169
    %v7426 = vmul.f32 %v7170, %v7170
    %v7427 = vmul.f32 %v7171, %v7171
    %v7428 = vmul.f32 %v7172, %v7172
    %v7429 = vmul.f32 %v7173, %v7173
    %v7430 = vmul.f32 %v7174, %v7174
    %v7431 = vmul.f32 %v7175, %v7175
    %v7432 = vmul.f32 %v7176, %v7176
    %v7433 = vmul.f32 %v7177, %v7177
    %v7434 = vmul.f32 %v7178, %v7178
    %v7435 = vmul.f32 %v7179, %v7179
    %v7436 = vmul.f32 %v7180, %v7180
    %v7437 = vmul.f32 %v7181, %v7181
    %v7438 = vmul.f32 %v7182, %v7182
    %v7439 = vmul.f32 %v7183, %v7183
    %v7440 = vmul.f32 %v7184, %v7184
    %v7441 = vmul.f32 %v7185, %v7185
    %v7442 = vmul.f32 %v7186, %v7186
    %v7443 = vmul.f32 %v7187, %v7187
    %v7444 = vmul.f32 %v7188, %v7188
    %v7445 = vmul.f32 %v7189, %v7189
    %v7446 = vmul.f32 %v7190, %v7190
    %v7447 = vmul.f32 %v7191, %v7191
    %v7448 = vmul.f32 %v7192, %v7192
    %v7449 = vmul.f32 %v7193, %v7193
    %v7450 = vmul.f32 %v7194, %v7194
    %v7451 = vmul.f32 %v7195, %v7195
    %v7452 = vmul.f32 %v7196, %v7196
    %v7453 = vmul.f32 %v7197, %v7197
    %v7454 = vmul.f32 %v7198, %v7198
    %v7455 = vmul.f32 %v7199, %v7199
    %v7456 = vmul.f32 %v7200, %v7200
    %v7457 = vmul.f32 %v7201, %v7201
    %v7458 = vmul.f32 %v7202, %v7202
    %v7459 = vmul.f32 %v7203, %v7203
    %v7460 = vmul.f32 %v7204, %v7204
    %v7461 = vmul.f32 %v7205, %v7205
    %v7462 = vmul.f32 %v7206, %v7206
    %v7463 = vmul.f32 %v7207, %v7207
    %v7464 = vmul.f32 %v7208, %v7208
    %v7465 = vmul.f32 %v7209, %v7209
    %v7466 = vmul.f32 %v7210, %v7210
    %v7467 = vmul.f32 %v7211, %v7211
    %v7468 = vmul.f32 %v7212, %v7212
    %v7469 = vmul.f32 %v7213, %v7213
    %v7470 = vmul.f32 %v7214, %v7214
    %v7471 = vmul.f32 %v7215, %v7215
    %v7472 = vmul.f32 %v7216, %v7216
    %v7473 = vmul.f32 %v7217, %v7217
    %v7474 = vmul.f32 %v7218, %v7218
    %v7475 = vmul.f32 %v7219, %v7219
    %v7476 = vmul.f32 %v7220, %v7220
    %v7477 = vmul.f32 %v7221, %v7221
    %v7478 = vmul.f32 %v7222, %v7222
    %v7479 = vmul.f32 %v7223, %v7223
    %v7480 = vmul.f32 %v7224, %v7224
    %v7481 = vmul.f32 %v7225, %v7225
    %v7482 = vmul.f32 %v7226, %v7226
    %v7483 = vmul.f32 %v7227, %v7227
    %v7484 = vmul.f32 %v7228, %v7228
    %v7485 = vmul.f32 %v7229, %v7229
    %v7486 = vmul.f32 %v7230, %v7230
    %v7487 = vmul.f32 %v7231, %v7231
    %v7488 = vmul.f32 %v7232, %v7232
    %v7489 = vmul.f32 %v7233, %v7233
    %v7490 = vmul.f32 %v7234, %v7234
    %v7491 = vmul.f32 %v7235, %v7235
    %v7492 = vmul.f32 %v7236, %v7236
    %v7493 = vmul.f32 %v7237, %v7237
    %v7494 = vmul.f32 %v7238, %v7238
    %v7495 = vmul.f32 %v7239, %v7239
    %v7496 = vmul.f32 %v7240, %v7240
    %v7497 = vmul.f32 %v7241, %v7241
    %v7498 = vmul.f32 %v7242, %v7242
    %v7499 = vmul.f32 %v7243, %v7243
    %v7500 = vmul.f32 %v7244, %v7244
    %v7501 = vmul.f32 %v7245, %v7245
    %v7502 = vmul.f32 %v7246, %v7246
    %v7503 = vmul.f32 %v7247, %v7247
    %v7504 = vmul.f32 %v7248, %v7248
    %v7505 = vmul.f32 %v7249, %v7249
    %v7506 = vmul.f32 %v7250, %v7250
    %v7507 = vmul.f32 %v7251, %v7251
    %v7508 = vmul.f32 %v7252, %v7252
    %v7509 = vmul.f32 %v7253, %v7253
    %v7510 = vmul.f32 %v7254, %v7254
    %v7511 = vmul.f32 %v7255, %v7255
    %v7512 = vmul.f32 %v7256, %v7256
    %v7513 = vmul.f32 %v7257, %v7257
    %v7514 = vmul.f32 %v7258, %v7258
    %v7515 = vmul.f32 %v7259, %v7259
    %v7516 = vmul.f32 %v7260, %v7260
    %v7517 = vmul.f32 %v7261, %v7261
    %v7518 = vmul.f32 %v7262, %v7262
    %v7519 = vmul.f32 %v7263, %v7263
    %v7520 = vmul.f32 %v7264, %v7264
    %v7521 = vmul.f32 %v7265, %v7265
    %v7522 = vmul.f32 %v7266, %v7266
    %v7523 = vmul.f32 %v7267, %v7267
    %v7524 = vmul.f32 %v7268, %v7268
    %v7525 = vmul.f32 %v7269, %v7269
    %v7526 = vmul.f32 %v7270, %v7270
    %v7527 = vmul.f32 %v7271, %v7271
    %v7528 = vmul.f32 %v7272, %v7272
    %v7529 = vmul.f32 %v7273, %v7273
    %v7530 = vmul.f32 %v7274, %v7274
    %v7531 = vmul.f32 %v7275, %v7275
    %v7532 = vmul.f32 %v7276, %v7276
    %v7533 = vmul.f32 %v7277, %v7277
    %v7534 = vmul.f32 %v7278, %v7278
    %v7535 = vmul.f32 %v7279, %v7279
    %v7536 = vmul.f32 %v7280, %v7280
    %v7537 = vmul.f32 %v7281, %v7281
    %v7538 = vmul.f32 %v7282, %v7282
    %v7539 = vmul.f32 %v7283, %v7283
    %v7540 = vmul.f32 %v7284, %v7284
    %v7541 = vmul.f32 %v7285, %v7285
    %v7542 = vmul.f32 %v7286, %v7286
    %v7543 = vmul.f32 %v7287, %v7287
    %v7544 = vmul.f32 %v7288, %v7288
    %v7545 = vmul.f32 %v7289, %v7289
    %v7546 = vmul.f32 %v7290, %v7290
    %v7547 = vmul.f32 %v7291, %v7291
    %v7548 = vmul.f32 %v7292, %v7292
    %v7549 = vmul.f32 %v7293, %v7293
    %v7550 = vmul.f32 %v7294, %v7294
    %v7551 = vmul.f32 %v7295, %v7295
    %v7552 = vmul.f32 %v7296, %v7296
    %v7553 = vmul.f32 %v7297, %v7297
    %v7554 = vmul.f32 %v7298, %v7298
    %v7555 = vmul.f32 %v7299, %v7299
    %v7556 = vmul.f32 %v7300, %v7300
    %v7557 = vmul.f32 %v7301, %v7301
    %v7558 = vmul.f32 %v7302, %v7302
    %v7559 = vmul.f32 %v7303, %v7303
    %v7560 = vmul.f32 %v7304, %v7304
    %v7561 = vmul.f32 %v7305, %v7305
    %v7562 = vmul.f32 %v7306, %v7306
    %v7563 = vmul.f32 %v7307, %v7307
    %v7564 = vmul.f32 %v7308, %v7308
    %v7565 = vmul.f32 %v7309, %v7309
    %v7566 = vmul.f32 %v7310, %v7310
    %v7567 = vmul.f32 %v7311, %v7311
    %v7568 = vmul.f32 %v7312, %v7312
    %v7569 = vmul.f32 %v7313, %v7313
    %v7570 = vmul.f32 %v7314, %v7314
    %v7571 = vmul.f32 %v7315, %v7315
    %v7572 = vmul.f32 %v7316, %v7316
    %v7573 = vmul.f32 %v7317, %v7317
    %v7574 = vmul.f32 %v7318, %v7318
    %v7575 = vmul.f32 %v7319, %v7319
    %v7576 = vmul.f32 %v7320, %v7320
    %v7577 = vmul.f32 %v7321, %v7321
    %v7578 = vmul.f32 %v7322, %v7322
    %v7579 = vmul.f32 %v7323, %v7323
    %v7580 = vmul.f32 %v7324, %v7324
    %v7581 = vmul.f32 %v7325, %v7325
    %v7582 = vmul.f32 %v7326, %v7326
    %v7583 = vmul.f32 %v7327, %v7327
    %v7584 = vmul.f32 %v7328, %v7328
    %v7585 = vmul.f32 %v7329, %v7329
    %v7586 = vmul.f32 %v7330, %v7330
    %v7587 = vmul.f32 %v7331, %v7331
    %v7588 = vmul.f32 %v7332, %v7332
    %v7589 = vmul.f32 %v7333, %v7333
    %v7590 = vmul.f32 %v7334, %v7334
    %v7591 = vmul.f32 %v7335, %v7335
    %v7592 = vmul.f32 %v7336, %v7336
    %v7593 = vmul.f32 %v7337, %v7337
    %v7594 = vmul.f32 %v7338, %v7338
    %v7595 = vmul.f32 %v7339, %v7339
    %v7596 = vmul.f32 %v7340, %v7340
    %v7597 = vmul.f32 %v7341, %v7341
    %v7598 = vmul.f32 %v7342, %v7342
    %v7599 = vmul.f32 %v7343, %v7343
    %v7600 = vmul.f32 %v7344, %v7344
    %v7601 = vmul.f32 %v7345, %v7345
    %v7602 = vmul.f32 %v7346, %v7346
    %v7603 = vmul.f32 %v7347, %v7347
    %v7604 = vmul.f32 %v7348, %v7348
    %v7605 = vmul.f32 %v7349, %v7349
    %v7606 = vmul.f32 %v7350, %v7350
    %v7607 = vmul.f32 %v7351, %v7351
    %v7608 = vmul.f32 %v7352, %v7352
    %v7609 = vmul.f32 %v7353, %v7353
    %v7610 = vmul.f32 %v7354, %v7354
    %v7611 = vmul.f32 %v7355, %v7355
    %v7612 = vmul.f32 %v7356, %v7356
    %v7613 = vmul.f32 %v7357, %v7357
    %v7614 = vmul.f32 %v7358, %v7358
    %v7615 = vmul.f32 %v7359, %v7359
    %v7616 = vmul.f32 %v7360, %v7360
    %v7617 = vmul.f32 %v7361, %v7361
    %v7618 = vmul.f32 %v7362, %v7362
    %v7619 = vmul.f32 %v7363, %v7363
    %v7620 = vmul.f32 %v7364, %v7364
    %v7621 = vmul.f32 %v7365, %v7365
    %v7622 = vmul.f32 %v7366, %v7366
    %v7623 = vmul.f32 %v7367, %v7367
    %v7624 = vmul.f32 %v7368, %v7368
    %v7625 = vmul.f32 %v7369, %v7369
    %v7626 = vmul.f32 %v7370, %v7370
    %v7627 = vmul.f32 %v7371, %v7371
    %v7628 = vadd.f32 %v7372, %v7376
    %v7629 = vadd.f32 %v7628, %v7380
    %v7630 = vadd.f32 %v7629, %v7384
    %v7631 = vadd.f32 %v7630, %v7388
    %v7632 = vadd.f32 %v7631, %v7392
    %v7633 = vadd.f32 %v7632, %v7396
    %v7634 = vadd.f32 %v7633, %v7400
    %v7635 = vadd.f32 %v7634, %v7404
    %v7636 = vadd.f32 %v7635, %v7408
    %v7637 = vadd.f32 %v7636, %v7412
    %v7638 = vadd.f32 %v7637, %v7416
    %v7639 = vadd.f32 %v7638, %v7420
    %v7640 = vadd.f32 %v7639, %v7424
    %v7641 = vadd.f32 %v7640, %v7428
    %v7642 = vadd.f32 %v7641, %v7432
    %v7643 = vadd.f32 %v7642, %v7436
    %v7644 = vadd.f32 %v7643, %v7440
    %v7645 = vadd.f32 %v7644, %v7444
    %v7646 = vadd.f32 %v7645, %v7448
    %v7647 = vadd.f32 %v7646, %v7452
    %v7648 = vadd.f32 %v7647, %v7456
    %v7649 = vadd.f32 %v7648, %v7460
    %v7650 = vadd.f32 %v7649, %v7464
    %v7651 = vadd.f32 %v7650, %v7468
    %v7652 = vadd.f32 %v7651, %v7472
    %v7653 = vadd.f32 %v7652, %v7476
    %v7654 = vadd.f32 %v7653, %v7480
    %v7655 = vadd.f32 %v7654, %v7484
    %v7656 = vadd.f32 %v7655, %v7488
    %v7657 = vadd.f32 %v7656, %v7492
    %v7658 = vadd.f32 %v7657, %v7496
    %v7659 = vadd.f32 %v7658, %v7500
    %v7660 = vadd.f32 %v7659, %v7504
    %v7661 = vadd.f32 %v7660, %v7508
    %v7662 = vadd.f32 %v7661, %v7512
    %v7663 = vadd.f32 %v7662, %v7516
    %v7664 = vadd.f32 %v7663, %v7520
    %v7665 = vadd.f32 %v7664, %v7524
    %v7666 = vadd.f32 %v7665, %v7528
    %v7667 = vadd.f32 %v7666, %v7532
    %v7668 = vadd.f32 %v7667, %v7536
    %v7669 = vadd.f32 %v7668, %v7540
    %v7670 = vadd.f32 %v7669, %v7544
    %v7671 = vadd.f32 %v7670, %v7548
    %v7672 = vadd.f32 %v7671, %v7552
    %v7673 = vadd.f32 %v7672, %v7556
    %v7674 = vadd.f32 %v7673, %v7560
    %v7675 = vadd.f32 %v7674, %v7564
    %v7676 = vadd.f32 %v7675, %v7568
    %v7677 = vadd.f32 %v7676, %v7572
    %v7678 = vadd.f32 %v7677, %v7576
    %v7679 = vadd.f32 %v7678, %v7580
    %v7680 = vadd.f32 %v7679, %v7584
    %v7681 = vadd.f32 %v7680, %v7588
    %v7682 = vadd.f32 %v7681, %v7592
    %v7683 = vadd.f32 %v7682, %v7596
    %v7684 = vadd.f32 %v7683, %v7600
    %v7685 = vadd.f32 %v7684, %v7604
    %v7686 = vadd.f32 %v7685, %v7608
    %v7687 = vadd.f32 %v7686, %v7612
    %v7688 = vadd.f32 %v7687, %v7616
    %v7689 = vadd.f32 %v7688, %v7620
    %v7690 = vadd.f32 %v7689, %v7624
    %v7691 = vrot.slane %v7690, 4
    %v7692 = vadd.f32 %v7690, %v7691
    %v7693 = vrot.slane %v7692, 2
    %v7694 = vadd.f32 %v7692, %v7693
    %v7695 = vrot.slane %v7694, 1
    %v7696 = vadd.f32 %v7694, %v7695
    %v7697 = vadd.f32 %v7373, %v7377
    %v7698 = vadd.f32 %v7697, %v7381
    %v7699 = vadd.f32 %v7698, %v7385
    %v7700 = vadd.f32 %v7699, %v7389
    %v7701 = vadd.f32 %v7700, %v7393
    %v7702 = vadd.f32 %v7701, %v7397
    %v7703 = vadd.f32 %v7702, %v7401
    %v7704 = vadd.f32 %v7703, %v7405
    %v7705 = vadd.f32 %v7704, %v7409
    %v7706 = vadd.f32 %v7705, %v7413
    %v7707 = vadd.f32 %v7706, %v7417
    %v7708 = vadd.f32 %v7707, %v7421
    %v7709 = vadd.f32 %v7708, %v7425
    %v7710 = vadd.f32 %v7709, %v7429
    %v7711 = vadd.f32 %v7710, %v7433
    %v7712 = vadd.f32 %v7711, %v7437
    %v7713 = vadd.f32 %v7712, %v7441
    %v7714 = vadd.f32 %v7713, %v7445
    %v7715 = vadd.f32 %v7714, %v7449
    %v7716 = vadd.f32 %v7715, %v7453
    %v7717 = vadd.f32 %v7716, %v7457
    %v7718 = vadd.f32 %v7717, %v7461
    %v7719 = vadd.f32 %v7718, %v7465
    %v7720 = vadd.f32 %v7719, %v7469
    %v7721 = vadd.f32 %v7720, %v7473
    %v7722 = vadd.f32 %v7721, %v7477
    %v7723 = vadd.f32 %v7722, %v7481
    %v7724 = vadd.f32 %v7723, %v7485
    %v7725 = vadd.f32 %v7724, %v7489
    %v7726 = vadd.f32 %v7725, %v7493
    %v7727 = vadd.f32 %v7726, %v7497
    %v7728 = vadd.f32 %v7727, %v7501
    %v7729 = vadd.f32 %v7728, %v7505
    %v7730 = vadd.f32 %v7729, %v7509
    %v7731 = vadd.f32 %v7730, %v7513
    %v7732 = vadd.f32 %v7731, %v7517
    %v7733 = vadd.f32 %v7732, %v7521
    %v7734 = vadd.f32 %v7733, %v7525
    %v7735 = vadd.f32 %v7734, %v7529
    %v7736 = vadd.f32 %v7735, %v7533
    %v7737 = vadd.f32 %v7736, %v7537
    %v7738 = vadd.f32 %v7737, %v7541
    %v7739 = vadd.f32 %v7738, %v7545
    %v7740 = vadd.f32 %v7739, %v7549
    %v7741 = vadd.f32 %v7740, %v7553
    %v7742 = vadd.f32 %v7741, %v7557
    %v7743 = vadd.f32 %v7742, %v7561
    %v7744 = vadd.f32 %v7743, %v7565
    %v7745 = vadd.f32 %v7744, %v7569
    %v7746 = vadd.f32 %v7745, %v7573
    %v7747 = vadd.f32 %v7746, %v7577
    %v7748 = vadd.f32 %v7747, %v7581
    %v7749 = vadd.f32 %v7748, %v7585
    %v7750 = vadd.f32 %v7749, %v7589
    %v7751 = vadd.f32 %v7750, %v7593
    %v7752 = vadd.f32 %v7751, %v7597
    %v7753 = vadd.f32 %v7752, %v7601
    %v7754 = vadd.f32 %v7753, %v7605
    %v7755 = vadd.f32 %v7754, %v7609
    %v7756 = vadd.f32 %v7755, %v7613
    %v7757 = vadd.f32 %v7756, %v7617
    %v7758 = vadd.f32 %v7757, %v7621
    %v7759 = vadd.f32 %v7758, %v7625
    %v7760 = vrot.slane %v7759, 4
    %v7761 = vadd.f32 %v7759, %v7760
    %v7762 = vrot.slane %v7761, 2
    %v7763 = vadd.f32 %v7761, %v7762
    %v7764 = vrot.slane %v7763, 1
    %v7765 = vadd.f32 %v7763, %v7764
    %v7766 = vadd.f32 %v7374, %v7378
    %v7767 = vadd.f32 %v7766, %v7382
    %v7768 = vadd.f32 %v7767, %v7386
    %v7769 = vadd.f32 %v7768, %v7390
    %v7770 = vadd.f32 %v7769, %v7394
    %v7771 = vadd.f32 %v7770, %v7398
    %v7772 = vadd.f32 %v7771, %v7402
    %v7773 = vadd.f32 %v7772, %v7406
    %v7774 = vadd.f32 %v7773, %v7410
    %v7775 = vadd.f32 %v7774, %v7414
    %v7776 = vadd.f32 %v7775, %v7418
    %v7777 = vadd.f32 %v7776, %v7422
    %v7778 = vadd.f32 %v7777, %v7426
    %v7779 = vadd.f32 %v7778, %v7430
    %v7780 = vadd.f32 %v7779, %v7434
    %v7781 = vadd.f32 %v7780, %v7438
    %v7782 = vadd.f32 %v7781, %v7442
    %v7783 = vadd.f32 %v7782, %v7446
    %v7784 = vadd.f32 %v7783, %v7450
    %v7785 = vadd.f32 %v7784, %v7454
    %v7786 = vadd.f32 %v7785, %v7458
    %v7787 = vadd.f32 %v7786, %v7462
    %v7788 = vadd.f32 %v7787, %v7466
    %v7789 = vadd.f32 %v7788, %v7470
    %v7790 = vadd.f32 %v7789, %v7474
    %v7791 = vadd.f32 %v7790, %v7478
    %v7792 = vadd.f32 %v7791, %v7482
    %v7793 = vadd.f32 %v7792, %v7486
    %v7794 = vadd.f32 %v7793, %v7490
    %v7795 = vadd.f32 %v7794, %v7494
    %v7796 = vadd.f32 %v7795, %v7498
    %v7797 = vadd.f32 %v7796, %v7502
    %v7798 = vadd.f32 %v7797, %v7506
    %v7799 = vadd.f32 %v7798, %v7510
    %v7800 = vadd.f32 %v7799, %v7514
    %v7801 = vadd.f32 %v7800, %v7518
    %v7802 = vadd.f32 %v7801, %v7522
    %v7803 = vadd.f32 %v7802, %v7526
    %v7804 = vadd.f32 %v7803, %v7530
    %v7805 = vadd.f32 %v7804, %v7534
    %v7806 = vadd.f32 %v7805, %v7538
    %v7807 = vadd.f32 %v7806, %v7542
    %v7808 = vadd.f32 %v7807, %v7546
    %v7809 = vadd.f32 %v7808, %v7550
    %v7810 = vadd.f32 %v7809, %v7554
    %v7811 = vadd.f32 %v7810, %v7558
    %v7812 = vadd.f32 %v7811, %v7562
    %v7813 = vadd.f32 %v7812, %v7566
    %v7814 = vadd.f32 %v7813, %v7570
    %v7815 = vadd.f32 %v7814, %v7574
    %v7816 = vadd.f32 %v7815, %v7578
    %v7817 = vadd.f32 %v7816, %v7582
    %v7818 = vadd.f32 %v7817, %v7586
    %v7819 = vadd.f32 %v7818, %v7590
    %v7820 = vadd.f32 %v7819, %v7594
    %v7821 = vadd.f32 %v7820, %v7598
    %v7822 = vadd.f32 %v7821, %v7602
    %v7823 = vadd.f32 %v7822, %v7606
    %v7824 = vadd.f32 %v7823, %v7610
    %v7825 = vadd.f32 %v7824, %v7614
    %v7826 = vadd.f32 %v7825, %v7618
    %v7827 = vadd.f32 %v7826, %v7622
    %v7828 = vadd.f32 %v7827, %v7626
    %v7829 = vrot.slane %v7828, 4
    %v7830 = vadd.f32 %v7828, %v7829
    %v7831 = vrot.slane %v7830, 2
    %v7832 = vadd.f32 %v7830, %v7831
    %v7833 = vrot.slane %v7832, 1
    %v7834 = vadd.f32 %v7832, %v7833
    %v7835 = vadd.f32 %v7375, %v7379
    %v7836 = vadd.f32 %v7835, %v7383
    %v7837 = vadd.f32 %v7836, %v7387
    %v7838 = vadd.f32 %v7837, %v7391
    %v7839 = vadd.f32 %v7838, %v7395
    %v7840 = vadd.f32 %v7839, %v7399
    %v7841 = vadd.f32 %v7840, %v7403
    %v7842 = vadd.f32 %v7841, %v7407
    %v7843 = vadd.f32 %v7842, %v7411
    %v7844 = vadd.f32 %v7843, %v7415
    %v7845 = vadd.f32 %v7844, %v7419
    %v7846 = vadd.f32 %v7845, %v7423
    %v7847 = vadd.f32 %v7846, %v7427
    %v7848 = vadd.f32 %v7847, %v7431
    %v7849 = vadd.f32 %v7848, %v7435
    %v7850 = vadd.f32 %v7849, %v7439
    %v7851 = vadd.f32 %v7850, %v7443
    %v7852 = vadd.f32 %v7851, %v7447
    %v7853 = vadd.f32 %v7852, %v7451
    %v7854 = vadd.f32 %v7853, %v7455
    %v7855 = vadd.f32 %v7854, %v7459
    %v7856 = vadd.f32 %v7855, %v7463
    %v7857 = vadd.f32 %v7856, %v7467
    %v7858 = vadd.f32 %v7857, %v7471
    %v7859 = vadd.f32 %v7858, %v7475
    %v7860 = vadd.f32 %v7859, %v7479
    %v7861 = vadd.f32 %v7860, %v7483
    %v7862 = vadd.f32 %v7861, %v7487
    %v7863 = vadd.f32 %v7862, %v7491
    %v7864 = vadd.f32 %v7863, %v7495
    %v7865 = vadd.f32 %v7864, %v7499
    %v7866 = vadd.f32 %v7865, %v7503
    %v7867 = vadd.f32 %v7866, %v7507
    %v7868 = vadd.f32 %v7867, %v7511
    %v7869 = vadd.f32 %v7868, %v7515
    %v7870 = vadd.f32 %v7869, %v7519
    %v7871 = vadd.f32 %v7870, %v7523
    %v7872 = vadd.f32 %v7871, %v7527
    %v7873 = vadd.f32 %v7872, %v7531
    %v7874 = vadd.f32 %v7873, %v7535
    %v7875 = vadd.f32 %v7874, %v7539
    %v7876 = vadd.f32 %v7875, %v7543
    %v7877 = vadd.f32 %v7876, %v7547
    %v7878 = vadd.f32 %v7877, %v7551
    %v7879 = vadd.f32 %v7878, %v7555
    %v7880 = vadd.f32 %v7879, %v7559
    %v7881 = vadd.f32 %v7880, %v7563
    %v7882 = vadd.f32 %v7881, %v7567
    %v7883 = vadd.f32 %v7882, %v7571
    %v7884 = vadd.f32 %v7883, %v7575
    %v7885 = vadd.f32 %v7884, %v7579
    %v7886 = vadd.f32 %v7885, %v7583
    %v7887 = vadd.f32 %v7886, %v7587
    %v7888 = vadd.f32 %v7887, %v7591
    %v7889 = vadd.f32 %v7888, %v7595
    %v7890 = vadd.f32 %v7889, %v7599
    %v7891 = vadd.f32 %v7890, %v7603
    %v7892 = vadd.f32 %v7891, %v7607
    %v7893 = vadd.f32 %v7892, %v7611
    %v7894 = vadd.f32 %v7893, %v7615
    %v7895 = vadd.f32 %v7894, %v7619
    %v7896 = vadd.f32 %v7895, %v7623
    %v7897 = vadd.f32 %v7896, %v7627
    %v7898 = vrot.slane %v7897, 4
    %v7899 = vadd.f32 %v7897, %v7898
    %v7900 = vrot.slane %v7899, 2
    %v7901 = vadd.f32 %v7899, %v7900
    %v7902 = vrot.slane %v7901, 1
    %v7903 = vadd.f32 %v7901, %v7902
    %v7904 = vmul.f32 %v7696, %v1381
    %v7905 = vmul.f32 %v7765, %v1381
    %v7906 = vmul.f32 %v7834, %v1381
    %v7907 = vmul.f32 %v7903, %v1381
    %v7908 = vadd.f32 %v7904, 1e-05
    %v7909 = vadd.f32 %v7905, 1e-05
    %v7910 = vadd.f32 %v7906, 1e-05
    %v7911 = vadd.f32 %v7907, 1e-05
    %v7912 = vrsqrt.pop %v7908
    %v7913 = vrsqrt.pop %v7909
    %v7914 = vrsqrt.pop %v7910
    %v7915 = vrsqrt.pop %v7911
    %v7920 = vcombine.low %v7912, %v7913
    %v7921 = vcombine.low %v7914, %v7915
    %v7923 = vunpack.c.l.s4 1966171168
    %v7924 = vunpack.c.0.s8 %v7923
    %v7925 = vlaneseq
    %v7926 = vshrl.u32 %v7925, 7
    %v7927 = vsub.s32 %v7924, %v7926
    %v7928 = vrot.slane %v7920, %v7927
    %v7930 = vunpack.c.l.s4 1966171168
    %v7931 = vunpack.c.0.s8 %v7930
    %v7932 = vlaneseq
    %v7933 = vshrl.u32 %v7932, 7
    %v7934 = vsub.s32 %v7931, %v7933
    %v7935 = vrot.slane %v7921, %v7934
    %v7936 = vcombine.low %v7928, %v7935
    %v7938 = vunpack.c.l.s4 1966171168
    %v7939 = vunpack.c.0.s8 %v7938
    %v7940 = vlaneseq
    %v7941 = vshrl.u32 %v7940, 7
    %v7942 = vsub.s32 %v7939, %v7941
    %v7943 = vrot.slane %v7936, %v7942
    %v7945 = vmul.f32 %v6834, %v7943
    %v7947 = vlaneseq
    %v7948 = vshrl.u32 %v7947, 7
    %v7949 = vsub.s32 0, %v7948
    %v7950 = vrot.slane %v7945, %v7949
    %v7951 = vlaneseq
    %v7952 = vshrl.u32 %v7951, 7
    %v7953 = vsub.s32 1, %v7952
    %v7954 = vrot.slane %v7945, %v7953
    %v7955 = vlaneseq
    %v7956 = vshrl.u32 %v7955, 7
    %v7957 = vsub.s32 2, %v7956
    %v7958 = vrot.slane %v7945, %v7957
    %v7959 = vlaneseq
    %v7960 = vshrl.u32 %v7959, 7
    %v7961 = vsub.s32 3, %v7960
    %v7962 = vrot.slane %v7945, %v7961
    %v7967 = vmul.f32 %v7112, %v7950
    %v7968 = vmul.f32 %v7113, %v7954
    %v7969 = vmul.f32 %v7114, %v7958
    %v7970 = vmul.f32 %v7115, %v7962
    %v7975 = vcombine.low %v7967, %v7968
    %v7976 = vcombine.low %v7969, %v7970
    %v7978 = vunpack.c.l.s4 1966171168
    %v7979 = vunpack.c.0.s8 %v7978
    %v7980 = vlaneseq
    %v7981 = vshrl.u32 %v7980, 7
    %v7982 = vsub.s32 %v7979, %v7981
    %v7983 = vrot.slane %v7975, %v7982
    %v7985 = vunpack.c.l.s4 1966171168
    %v7986 = vunpack.c.0.s8 %v7985
    %v7987 = vlaneseq
    %v7988 = vshrl.u32 %v7987, 7
    %v7989 = vsub.s32 %v7986, %v7988
    %v7990 = vrot.slane %v7976, %v7989
    %v7991 = vcombine.low %v7983, %v7990
    %v7993 = vunpack.c.l.s4 1966171168
    %v7994 = vunpack.c.0.s8 %v7993
    %v7995 = vlaneseq
    %v7996 = vshrl.u32 %v7995, 7
    %v7997 = vsub.s32 %v7994, %v7996
    %v7998 = vrot.slane %v7991, %v7997
    %v8000 = vsub.f32 %v6835, %v7998
    %v8001 = vmul.f32 %v6163, %v7950
    %v8002 = vmul.f32 %v6165, %v7954
    %v8003 = vmul.f32 %v6516, %v7958
    %v8004 = vmul.f32 %v6518, %v7962
    %v8005 = vmul.f32 %v6167, %v7950
    %v8006 = vmul.f32 %v6169, %v7954
    %v8007 = vmul.f32 %v6520, %v7958
    %v8008 = vmul.f32 %v6522, %v7962
    %v8009 = vmul.f32 %v6173, %v7950
    %v8010 = vmul.f32 %v6175, %v7954
    %v8011 = vmul.f32 %v6526, %v7958
    %v8012 = vmul.f32 %v6528, %v7962
    %v8013 = vmul.f32 %v6177, %v7950
    %v8014 = vmul.f32 %v6179, %v7954
    %v8015 = vmul.f32 %v6530, %v7958
    %v8016 = vmul.f32 %v6532, %v7962
    %v8017 = vmul.f32 %v6183, %v7950
    %v8018 = vmul.f32 %v6185, %v7954
    %v8019 = vmul.f32 %v6536, %v7958
    %v8020 = vmul.f32 %v6538, %v7962
    %v8021 = vmul.f32 %v6187, %v7950
    %v8022 = vmul.f32 %v6189, %v7954
    %v8023 = vmul.f32 %v6540, %v7958
    %v8024 = vmul.f32 %v6542, %v7962
    %v8025 = vmul.f32 %v6193, %v7950
    %v8026 = vmul.f32 %v6195, %v7954
    %v8027 = vmul.f32 %v6546, %v7958
    %v8028 = vmul.f32 %v6548, %v7962
    %v8029 = vmul.f32 %v6197, %v7950
    %v8030 = vmul.f32 %v6199, %v7954
    %v8031 = vmul.f32 %v6550, %v7958
    %v8032 = vmul.f32 %v6552, %v7962
    %v8033 = vmul.f32 %v6203, %v7950
    %v8034 = vmul.f32 %v6205, %v7954
    %v8035 = vmul.f32 %v6556, %v7958
    %v8036 = vmul.f32 %v6558, %v7962
    %v8037 = vmul.f32 %v6207, %v7950
    %v8038 = vmul.f32 %v6209, %v7954
    %v8039 = vmul.f32 %v6560, %v7958
    %v8040 = vmul.f32 %v6562, %v7962
    %v8041 = vmul.f32 %v6213, %v7950
    %v8042 = vmul.f32 %v6215, %v7954
    %v8043 = vmul.f32 %v6566, %v7958
    %v8044 = vmul.f32 %v6568, %v7962
    %v8045 = vmul.f32 %v6217, %v7950
    %v8046 = vmul.f32 %v6219, %v7954
    %v8047 = vmul.f32 %v6570, %v7958
    %v8048 = vmul.f32 %v6572, %v7962
    %v8049 = vmul.f32 %v6223, %v7950
    %v8050 = vmul.f32 %v6225, %v7954
    %v8051 = vmul.f32 %v6576, %v7958
    %v8052 = vmul.f32 %v6578, %v7962
    %v8053 = vmul.f32 %v6227, %v7950
    %v8054 = vmul.f32 %v6229, %v7954
    %v8055 = vmul.f32 %v6580, %v7958
    %v8056 = vmul.f32 %v6582, %v7962
    %v8057 = vmul.f32 %v6233, %v7950
    %v8058 = vmul.f32 %v6235, %v7954
    %v8059 = vmul.f32 %v6586, %v7958
    %v8060 = vmul.f32 %v6588, %v7962
    %v8061 = vmul.f32 %v6237, %v7950
    %v8062 = vmul.f32 %v6239, %v7954
    %v8063 = vmul.f32 %v6590, %v7958
    %v8064 = vmul.f32 %v6592, %v7962
    %v8065 = vmul.f32 %v6243, %v7950
    %v8066 = vmul.f32 %v6245, %v7954
    %v8067 = vmul.f32 %v6596, %v7958
    %v8068 = vmul.f32 %v6598, %v7962
    %v8069 = vmul.f32 %v6247, %v7950
    %v8070 = vmul.f32 %v6249, %v7954
    %v8071 = vmul.f32 %v6600, %v7958
    %v8072 = vmul.f32 %v6602, %v7962
    %v8073 = vmul.f32 %v6253, %v7950
    %v8074 = vmul.f32 %v6255, %v7954
    %v8075 = vmul.f32 %v6606, %v7958
    %v8076 = vmul.f32 %v6608, %v7962
    %v8077 = vmul.f32 %v6257, %v7950
    %v8078 = vmul.f32 %v6259, %v7954
    %v8079 = vmul.f32 %v6610, %v7958
    %v8080 = vmul.f32 %v6612, %v7962
    %v8081 = vmul.f32 %v6263, %v7950
    %v8082 = vmul.f32 %v6265, %v7954
    %v8083 = vmul.f32 %v6616, %v7958
    %v8084 = vmul.f32 %v6618, %v7962
    %v8085 = vmul.f32 %v6267, %v7950
    %v8086 = vmul.f32 %v6269, %v7954
    %v8087 = vmul.f32 %v6620, %v7958
    %v8088 = vmul.f32 %v6622, %v7962
    %v8089 = vmul.f32 %v6273, %v7950
    %v8090 = vmul.f32 %v6275, %v7954
    %v8091 = vmul.f32 %v6626, %v7958
    %v8092 = vmul.f32 %v6628, %v7962
    %v8093 = vmul.f32 %v6277, %v7950
    %v8094 = vmul.f32 %v6279, %v7954
    %v8095 = vmul.f32 %v6630, %v7958
    %v8096 = vmul.f32 %v6632, %v7962
    %v8097 = vmul.f32 %v6283, %v7950
    %v8098 = vmul.f32 %v6285, %v7954
    %v8099 = vmul.f32 %v6636, %v7958
    %v8100 = vmul.f32 %v6638, %v7962
    %v8101 = vmul.f32 %v6287, %v7950
    %v8102 = vmul.f32 %v6289, %v7954
    %v8103 = vmul.f32 %v6640, %v7958
    %v8104 = vmul.f32 %v6642, %v7962
    %v8105 = vmul.f32 %v6293, %v7950
    %v8106 = vmul.f32 %v6295, %v7954
    %v8107 = vmul.f32 %v6646, %v7958
    %v8108 = vmul.f32 %v6648, %v7962
    %v8109 = vmul.f32 %v6297, %v7950
    %v8110 = vmul.f32 %v6299, %v7954
    %v8111 = vmul.f32 %v6650, %v7958
    %v8112 = vmul.f32 %v6652, %v7962
    %v8113 = vmul.f32 %v6303, %v7950
    %v8114 = vmul.f32 %v6305, %v7954
    %v8115 = vmul.f32 %v6656, %v7958
    %v8116 = vmul.f32 %v6658, %v7962
    %v8117 = vmul.f32 %v6307, %v7950
    %v8118 = vmul.f32 %v6309, %v7954
    %v8119 = vmul.f32 %v6660, %v7958
    %v8120 = vmul.f32 %v6662, %v7962
    %v8121 = vmul.f32 %v6313, %v7950
    %v8122 = vmul.f32 %v6315, %v7954
    %v8123 = vmul.f32 %v6666, %v7958
    %v8124 = vmul.f32 %v6668, %v7962
    %v8125 = vmul.f32 %v6317, %v7950
    %v8126 = vmul.f32 %v6319, %v7954
    %v8127 = vmul.f32 %v6670, %v7958
    %v8128 = vmul.f32 %v6672, %v7962
    %v8129 = vmul.f32 %v6323, %v7950
    %v8130 = vmul.f32 %v6325, %v7954
    %v8131 = vmul.f32 %v6676, %v7958
    %v8132 = vmul.f32 %v6678, %v7962
    %v8133 = vmul.f32 %v6327, %v7950
    %v8134 = vmul.f32 %v6329, %v7954
    %v8135 = vmul.f32 %v6680, %v7958
    %v8136 = vmul.f32 %v6682, %v7962
    %v8137 = vmul.f32 %v6333, %v7950
    %v8138 = vmul.f32 %v6335, %v7954
    %v8139 = vmul.f32 %v6686, %v7958
    %v8140 = vmul.f32 %v6688, %v7962
    %v8141 = vmul.f32 %v6337, %v7950
    %v8142 = vmul.f32 %v6339, %v7954
    %v8143 = vmul.f32 %v6690, %v7958
    %v8144 = vmul.f32 %v6692, %v7962
    %v8145 = vmul.f32 %v6343, %v7950
    %v8146 = vmul.f32 %v6345, %v7954
    %v8147 = vmul.f32 %v6696, %v7958
    %v8148 = vmul.f32 %v6698, %v7962
    %v8149 = vmul.f32 %v6347, %v7950
    %v8150 = vmul.f32 %v6349, %v7954
    %v8151 = vmul.f32 %v6700, %v7958
    %v8152 = vmul.f32 %v6702, %v7962
    %v8153 = vmul.f32 %v6353, %v7950
    %v8154 = vmul.f32 %v6355, %v7954
    %v8155 = vmul.f32 %v6706, %v7958
    %v8156 = vmul.f32 %v6708, %v7962
    %v8157 = vmul.f32 %v6357, %v7950
    %v8158 = vmul.f32 %v6359, %v7954
    %v8159 = vmul.f32 %v6710, %v7958
    %v8160 = vmul.f32 %v6712, %v7962
    %v8161 = vmul.f32 %v6363, %v7950
    %v8162 = vmul.f32 %v6365, %v7954
    %v8163 = vmul.f32 %v6716, %v7958
    %v8164 = vmul.f32 %v6718, %v7962
    %v8165 = vmul.f32 %v6367, %v7950
    %v8166 = vmul.f32 %v6369, %v7954
    %v8167 = vmul.f32 %v6720, %v7958
    %v8168 = vmul.f32 %v6722, %v7962
    %v8169 = vmul.f32 %v6373, %v7950
    %v8170 = vmul.f32 %v6375, %v7954
    %v8171 = vmul.f32 %v6726, %v7958
    %v8172 = vmul.f32 %v6728, %v7962
    %v8173 = vmul.f32 %v6377, %v7950
    %v8174 = vmul.f32 %v6379, %v7954
    %v8175 = vmul.f32 %v6730, %v7958
    %v8176 = vmul.f32 %v6732, %v7962
    %v8177 = vmul.f32 %v6383, %v7950
    %v8178 = vmul.f32 %v6385, %v7954
    %v8179 = vmul.f32 %v6736, %v7958
    %v8180 = vmul.f32 %v6738, %v7962
    %v8181 = vmul.f32 %v6387, %v7950
    %v8182 = vmul.f32 %v6389, %v7954
    %v8183 = vmul.f32 %v6740, %v7958
    %v8184 = vmul.f32 %v6742, %v7962
    %v8185 = vmul.f32 %v6393, %v7950
    %v8186 = vmul.f32 %v6395, %v7954
    %v8187 = vmul.f32 %v6746, %v7958
    %v8188 = vmul.f32 %v6748, %v7962
    %v8189 = vmul.f32 %v6397, %v7950
    %v8190 = vmul.f32 %v6399, %v7954
    %v8191 = vmul.f32 %v6750, %v7958
    %v8192 = vmul.f32 %v6752, %v7962
    %v8193 = vmul.f32 %v6403, %v7950
    %v8194 = vmul.f32 %v6405, %v7954
    %v8195 = vmul.f32 %v6756, %v7958
    %v8196 = vmul.f32 %v6758, %v7962
    %v8197 = vmul.f32 %v6407, %v7950
    %v8198 = vmul.f32 %v6409, %v7954
    %v8199 = vmul.f32 %v6760, %v7958
    %v8200 = vmul.f32 %v6762, %v7962
    %v8201 = vmul.f32 %v6413, %v7950
    %v8202 = vmul.f32 %v6415, %v7954
    %v8203 = vmul.f32 %v6766, %v7958
    %v8204 = vmul.f32 %v6768, %v7962
    %v8205 = vmul.f32 %v6417, %v7950
    %v8206 = vmul.f32 %v6419, %v7954
    %v8207 = vmul.f32 %v6770, %v7958
    %v8208 = vmul.f32 %v6772, %v7962
    %v8209 = vmul.f32 %v6423, %v7950
    %v8210 = vmul.f32 %v6425, %v7954
    %v8211 = vmul.f32 %v6776, %v7958
    %v8212 = vmul.f32 %v6778, %v7962
    %v8213 = vmul.f32 %v6427, %v7950
    %v8214 = vmul.f32 %v6429, %v7954
    %v8215 = vmul.f32 %v6780, %v7958
    %v8216 = vmul.f32 %v6782, %v7962
    %v8217 = vmul.f32 %v6433, %v7950
    %v8218 = vmul.f32 %v6435, %v7954
    %v8219 = vmul.f32 %v6786, %v7958
    %v8220 = vmul.f32 %v6788, %v7962
    %v8221 = vmul.f32 %v6437, %v7950
    %v8222 = vmul.f32 %v6439, %v7954
    %v8223 = vmul.f32 %v6790, %v7958
    %v8224 = vmul.f32 %v6792, %v7962
    %v8225 = vmul.f32 %v6443, %v7950
    %v8226 = vmul.f32 %v6445, %v7954
    %v8227 = vmul.f32 %v6796, %v7958
    %v8228 = vmul.f32 %v6798, %v7962
    %v8229 = vmul.f32 %v6447, %v7950
    %v8230 = vmul.f32 %v6449, %v7954
    %v8231 = vmul.f32 %v6800, %v7958
    %v8232 = vmul.f32 %v6802, %v7962
    %v8233 = vmul.f32 %v6453, %v7950
    %v8234 = vmul.f32 %v6455, %v7954
    %v8235 = vmul.f32 %v6806, %v7958
    %v8236 = vmul.f32 %v6808, %v7962
    %v8237 = vmul.f32 %v6457, %v7950
    %v8238 = vmul.f32 %v6459, %v7954
    %v8239 = vmul.f32 %v6810, %v7958
    %v8240 = vmul.f32 %v6812, %v7962
    %v8241 = vmul.f32 %v6463, %v7950
    %v8242 = vmul.f32 %v6465, %v7954
    %v8243 = vmul.f32 %v6816, %v7958
    %v8244 = vmul.f32 %v6818, %v7962
    %v8245 = vmul.f32 %v6467, %v7950
    %v8246 = vmul.f32 %v6469, %v7954
    %v8247 = vmul.f32 %v6820, %v7958
    %v8248 = vmul.f32 %v6822, %v7962
    %v8249 = vmul.f32 %v6473, %v7950
    %v8250 = vmul.f32 %v6475, %v7954
    %v8251 = vmul.f32 %v6826, %v7958
    %v8252 = vmul.f32 %v6828, %v7962
    %v8253 = vmul.f32 %v6477, %v7950
    %v8254 = vmul.f32 %v6479, %v7954
    %v8255 = vmul.f32 %v6830, %v7958
    %v8256 = vmul.f32 %v6832, %v7962
    %v8258 = vlaneseq
    %v8259 = vshrl.u32 %v8258, 7
    %v8260 = vsub.s32 0, %v8259
    %v8261 = vrot.slane %v8000, %v8260
    %v8262 = vlaneseq
    %v8263 = vshrl.u32 %v8262, 7
    %v8264 = vsub.s32 1, %v8263
    %v8265 = vrot.slane %v8000, %v8264
    %v8266 = vlaneseq
    %v8267 = vshrl.u32 %v8266, 7
    %v8268 = vsub.s32 2, %v8267
    %v8269 = vrot.slane %v8000, %v8268
    %v8270 = vlaneseq
    %v8271 = vshrl.u32 %v8270, 7
    %v8272 = vsub.s32 3, %v8271
    %v8273 = vrot.slane %v8000, %v8272
    %v8278 = vadd.f32 %v8001, %v8261
    %v8279 = vadd.f32 %v8002, %v8265
    %v8280 = vadd.f32 %v8003, %v8269
    %v8281 = vadd.f32 %v8004, %v8273
    %v8282 = vadd.f32 %v8005, %v8261
    %v8283 = vadd.f32 %v8006, %v8265
    %v8284 = vadd.f32 %v8007, %v8269
    %v8285 = vadd.f32 %v8008, %v8273
    %v8286 = vadd.f32 %v8009, %v8261
    %v8287 = vadd.f32 %v8010, %v8265
    %v8288 = vadd.f32 %v8011, %v8269
    %v8289 = vadd.f32 %v8012, %v8273
    %v8290 = vadd.f32 %v8013, %v8261
    %v8291 = vadd.f32 %v8014, %v8265
    %v8292 = vadd.f32 %v8015, %v8269
    %v8293 = vadd.f32 %v8016, %v8273
    %v8294 = vadd.f32 %v8017, %v8261
    %v8295 = vadd.f32 %v8018, %v8265
    %v8296 = vadd.f32 %v8019, %v8269
    %v8297 = vadd.f32 %v8020, %v8273
    %v8298 = vadd.f32 %v8021, %v8261
    %v8299 = vadd.f32 %v8022, %v8265
    %v8300 = vadd.f32 %v8023, %v8269
    %v8301 = vadd.f32 %v8024, %v8273
    %v8302 = vadd.f32 %v8025, %v8261
    %v8303 = vadd.f32 %v8026, %v8265
    %v8304 = vadd.f32 %v8027, %v8269
    %v8305 = vadd.f32 %v8028, %v8273
    %v8306 = vadd.f32 %v8029, %v8261
    %v8307 = vadd.f32 %v8030, %v8265
    %v8308 = vadd.f32 %v8031, %v8269
    %v8309 = vadd.f32 %v8032, %v8273
    %v8310 = vadd.f32 %v8033, %v8261
    %v8311 = vadd.f32 %v8034, %v8265
    %v8312 = vadd.f32 %v8035, %v8269
    %v8313 = vadd.f32 %v8036, %v8273
    %v8314 = vadd.f32 %v8037, %v8261
    %v8315 = vadd.f32 %v8038, %v8265
    %v8316 = vadd.f32 %v8039, %v8269
    %v8317 = vadd.f32 %v8040, %v8273
    %v8318 = vadd.f32 %v8041, %v8261
    %v8319 = vadd.f32 %v8042, %v8265
    %v8320 = vadd.f32 %v8043, %v8269
    %v8321 = vadd.f32 %v8044, %v8273
    %v8322 = vadd.f32 %v8045, %v8261
    %v8323 = vadd.f32 %v8046, %v8265
    %v8324 = vadd.f32 %v8047, %v8269
    %v8325 = vadd.f32 %v8048, %v8273
    %v8326 = vadd.f32 %v8049, %v8261
    %v8327 = vadd.f32 %v8050, %v8265
    %v8328 = vadd.f32 %v8051, %v8269
    %v8329 = vadd.f32 %v8052, %v8273
    %v8330 = vadd.f32 %v8053, %v8261
    %v8331 = vadd.f32 %v8054, %v8265
    %v8332 = vadd.f32 %v8055, %v8269
    %v8333 = vadd.f32 %v8056, %v8273
    %v8334 = vadd.f32 %v8057, %v8261
    %v8335 = vadd.f32 %v8058, %v8265
    %v8336 = vadd.f32 %v8059, %v8269
    %v8337 = vadd.f32 %v8060, %v8273
    %v8338 = vadd.f32 %v8061, %v8261
    %v8339 = vadd.f32 %v8062, %v8265
    %v8340 = vadd.f32 %v8063, %v8269
    %v8341 = vadd.f32 %v8064, %v8273
    %v8342 = vadd.f32 %v8065, %v8261
    %v8343 = vadd.f32 %v8066, %v8265
    %v8344 = vadd.f32 %v8067, %v8269
    %v8345 = vadd.f32 %v8068, %v8273
    %v8346 = vadd.f32 %v8069, %v8261
    %v8347 = vadd.f32 %v8070, %v8265
    %v8348 = vadd.f32 %v8071, %v8269
    %v8349 = vadd.f32 %v8072, %v8273
    %v8350 = vadd.f32 %v8073, %v8261
    %v8351 = vadd.f32 %v8074, %v8265
    %v8352 = vadd.f32 %v8075, %v8269
    %v8353 = vadd.f32 %v8076, %v8273
    %v8354 = vadd.f32 %v8077, %v8261
    %v8355 = vadd.f32 %v8078, %v8265
    %v8356 = vadd.f32 %v8079, %v8269
    %v8357 = vadd.f32 %v8080, %v8273
    %v8358 = vadd.f32 %v8081, %v8261
    %v8359 = vadd.f32 %v8082, %v8265
    %v8360 = vadd.f32 %v8083, %v8269
    %v8361 = vadd.f32 %v8084, %v8273
    %v8362 = vadd.f32 %v8085, %v8261
    %v8363 = vadd.f32 %v8086, %v8265
    %v8364 = vadd.f32 %v8087, %v8269
    %v8365 = vadd.f32 %v8088, %v8273
    %v8366 = vadd.f32 %v8089, %v8261
    %v8367 = vadd.f32 %v8090, %v8265
    %v8368 = vadd.f32 %v8091, %v8269
    %v8369 = vadd.f32 %v8092, %v8273
    %v8370 = vadd.f32 %v8093, %v8261
    %v8371 = vadd.f32 %v8094, %v8265
    %v8372 = vadd.f32 %v8095, %v8269
    %v8373 = vadd.f32 %v8096, %v8273
    %v8374 = vadd.f32 %v8097, %v8261
    %v8375 = vadd.f32 %v8098, %v8265
    %v8376 = vadd.f32 %v8099, %v8269
    %v8377 = vadd.f32 %v8100, %v8273
    %v8378 = vadd.f32 %v8101, %v8261
    %v8379 = vadd.f32 %v8102, %v8265
    %v8380 = vadd.f32 %v8103, %v8269
    %v8381 = vadd.f32 %v8104, %v8273
    %v8382 = vadd.f32 %v8105, %v8261
    %v8383 = vadd.f32 %v8106, %v8265
    %v8384 = vadd.f32 %v8107, %v8269
    %v8385 = vadd.f32 %v8108, %v8273
    %v8386 = vadd.f32 %v8109, %v8261
    %v8387 = vadd.f32 %v8110, %v8265
    %v8388 = vadd.f32 %v8111, %v8269
    %v8389 = vadd.f32 %v8112, %v8273
    %v8390 = vadd.f32 %v8113, %v8261
    %v8391 = vadd.f32 %v8114, %v8265
    %v8392 = vadd.f32 %v8115, %v8269
    %v8393 = vadd.f32 %v8116, %v8273
    %v8394 = vadd.f32 %v8117, %v8261
    %v8395 = vadd.f32 %v8118, %v8265
    %v8396 = vadd.f32 %v8119, %v8269
    %v8397 = vadd.f32 %v8120, %v8273
    %v8398 = vadd.f32 %v8121, %v8261
    %v8399 = vadd.f32 %v8122, %v8265
    %v8400 = vadd.f32 %v8123, %v8269
    %v8401 = vadd.f32 %v8124, %v8273
    %v8402 = vadd.f32 %v8125, %v8261
    %v8403 = vadd.f32 %v8126, %v8265
    %v8404 = vadd.f32 %v8127, %v8269
    %v8405 = vadd.f32 %v8128, %v8273
    %v8406 = vadd.f32 %v8129, %v8261
    %v8407 = vadd.f32 %v8130, %v8265
    %v8408 = vadd.f32 %v8131, %v8269
    %v8409 = vadd.f32 %v8132, %v8273
    %v8410 = vadd.f32 %v8133, %v8261
    %v8411 = vadd.f32 %v8134, %v8265
    %v8412 = vadd.f32 %v8135, %v8269
    %v8413 = vadd.f32 %v8136, %v8273
    %v8414 = vadd.f32 %v8137, %v8261
    %v8415 = vadd.f32 %v8138, %v8265
    %v8416 = vadd.f32 %v8139, %v8269
    %v8417 = vadd.f32 %v8140, %v8273
    %v8418 = vadd.f32 %v8141, %v8261
    %v8419 = vadd.f32 %v8142, %v8265
    %v8420 = vadd.f32 %v8143, %v8269
    %v8421 = vadd.f32 %v8144, %v8273
    %v8422 = vadd.f32 %v8145, %v8261
    %v8423 = vadd.f32 %v8146, %v8265
    %v8424 = vadd.f32 %v8147, %v8269
    %v8425 = vadd.f32 %v8148, %v8273
    %v8426 = vadd.f32 %v8149, %v8261
    %v8427 = vadd.f32 %v8150, %v8265
    %v8428 = vadd.f32 %v8151, %v8269
    %v8429 = vadd.f32 %v8152, %v8273
    %v8430 = vadd.f32 %v8153, %v8261
    %v8431 = vadd.f32 %v8154, %v8265
    %v8432 = vadd.f32 %v8155, %v8269
    %v8433 = vadd.f32 %v8156, %v8273
    %v8434 = vadd.f32 %v8157, %v8261
    %v8435 = vadd.f32 %v8158, %v8265
    %v8436 = vadd.f32 %v8159, %v8269
    %v8437 = vadd.f32 %v8160, %v8273
    %v8438 = vadd.f32 %v8161, %v8261
    %v8439 = vadd.f32 %v8162, %v8265
    %v8440 = vadd.f32 %v8163, %v8269
    %v8441 = vadd.f32 %v8164, %v8273
    %v8442 = vadd.f32 %v8165, %v8261
    %v8443 = vadd.f32 %v8166, %v8265
    %v8444 = vadd.f32 %v8167, %v8269
    %v8445 = vadd.f32 %v8168, %v8273
    %v8446 = vadd.f32 %v8169, %v8261
    %v8447 = vadd.f32 %v8170, %v8265
    %v8448 = vadd.f32 %v8171, %v8269
    %v8449 = vadd.f32 %v8172, %v8273
    %v8450 = vadd.f32 %v8173, %v8261
    %v8451 = vadd.f32 %v8174, %v8265
    %v8452 = vadd.f32 %v8175, %v8269
    %v8453 = vadd.f32 %v8176, %v8273
    %v8454 = vadd.f32 %v8177, %v8261
    %v8455 = vadd.f32 %v8178, %v8265
    %v8456 = vadd.f32 %v8179, %v8269
    %v8457 = vadd.f32 %v8180, %v8273
    %v8458 = vadd.f32 %v8181, %v8261
    %v8459 = vadd.f32 %v8182, %v8265
    %v8460 = vadd.f32 %v8183, %v8269
    %v8461 = vadd.f32 %v8184, %v8273
    %v8462 = vadd.f32 %v8185, %v8261
    %v8463 = vadd.f32 %v8186, %v8265
    %v8464 = vadd.f32 %v8187, %v8269
    %v8465 = vadd.f32 %v8188, %v8273
    %v8466 = vadd.f32 %v8189, %v8261
    %v8467 = vadd.f32 %v8190, %v8265
    %v8468 = vadd.f32 %v8191, %v8269
    %v8469 = vadd.f32 %v8192, %v8273
    %v8470 = vadd.f32 %v8193, %v8261
    %v8471 = vadd.f32 %v8194, %v8265
    %v8472 = vadd.f32 %v8195, %v8269
    %v8473 = vadd.f32 %v8196, %v8273
    %v8474 = vadd.f32 %v8197, %v8261
    %v8475 = vadd.f32 %v8198, %v8265
    %v8476 = vadd.f32 %v8199, %v8269
    %v8477 = vadd.f32 %v8200, %v8273
    %v8478 = vadd.f32 %v8201, %v8261
    %v8479 = vadd.f32 %v8202, %v8265
    %v8480 = vadd.f32 %v8203, %v8269
    %v8481 = vadd.f32 %v8204, %v8273
    %v8482 = vadd.f32 %v8205, %v8261
    %v8483 = vadd.f32 %v8206, %v8265
    %v8484 = vadd.f32 %v8207, %v8269
    %v8485 = vadd.f32 %v8208, %v8273
    %v8486 = vadd.f32 %v8209, %v8261
    %v8487 = vadd.f32 %v8210, %v8265
    %v8488 = vadd.f32 %v8211, %v8269
    %v8489 = vadd.f32 %v8212, %v8273
    %v8490 = vadd.f32 %v8213, %v8261
    %v8491 = vadd.f32 %v8214, %v8265
    %v8492 = vadd.f32 %v8215, %v8269
    %v8493 = vadd.f32 %v8216, %v8273
    %v8494 = vadd.f32 %v8217, %v8261
    %v8495 = vadd.f32 %v8218, %v8265
    %v8496 = vadd.f32 %v8219, %v8269
    %v8497 = vadd.f32 %v8220, %v8273
    %v8498 = vadd.f32 %v8221, %v8261
    %v8499 = vadd.f32 %v8222, %v8265
    %v8500 = vadd.f32 %v8223, %v8269
    %v8501 = vadd.f32 %v8224, %v8273
    %v8502 = vadd.f32 %v8225, %v8261
    %v8503 = vadd.f32 %v8226, %v8265
    %v8504 = vadd.f32 %v8227, %v8269
    %v8505 = vadd.f32 %v8228, %v8273
    %v8506 = vadd.f32 %v8229, %v8261
    %v8507 = vadd.f32 %v8230, %v8265
    %v8508 = vadd.f32 %v8231, %v8269
    %v8509 = vadd.f32 %v8232, %v8273
    %v8510 = vadd.f32 %v8233, %v8261
    %v8511 = vadd.f32 %v8234, %v8265
    %v8512 = vadd.f32 %v8235, %v8269
    %v8513 = vadd.f32 %v8236, %v8273
    %v8514 = vadd.f32 %v8237, %v8261
    %v8515 = vadd.f32 %v8238, %v8265
    %v8516 = vadd.f32 %v8239, %v8269
    %v8517 = vadd.f32 %v8240, %v8273
    %v8518 = vadd.f32 %v8241, %v8261
    %v8519 = vadd.f32 %v8242, %v8265
    %v8520 = vadd.f32 %v8243, %v8269
    %v8521 = vadd.f32 %v8244, %v8273
    %v8522 = vadd.f32 %v8245, %v8261
    %v8523 = vadd.f32 %v8246, %v8265
    %v8524 = vadd.f32 %v8247, %v8269
    %v8525 = vadd.f32 %v8248, %v8273
    %v8526 = vadd.f32 %v8249, %v8261
    %v8527 = vadd.f32 %v8250, %v8265
    %v8528 = vadd.f32 %v8251, %v8269
    %v8529 = vadd.f32 %v8252, %v8273
    %v8530 = vadd.f32 %v8253, %v8261
    %v8531 = vadd.f32 %v8254, %v8265
    %v8532 = vadd.f32 %v8255, %v8269
    %v8533 = vadd.f32 %v8256, %v8273
    %v8534 = vadd.f32 %v8278, %v92
    %v8535 = vadd.f32 %v8279, %v93
    %v8536 = vadd.f32 %v8280, %v94
    %v8537 = vadd.f32 %v8281, %v95
    %v8538 = vadd.f32 %v8282, %v96
    %v8539 = vadd.f32 %v8283, %v97
    %v8540 = vadd.f32 %v8284, %v98
    %v8541 = vadd.f32 %v8285, %v99
    %v8542 = vadd.f32 %v8286, %v100
    %v8543 = vadd.f32 %v8287, %v101
    %v8544 = vadd.f32 %v8288, %v102
    %v8545 = vadd.f32 %v8289, %v103
    %v8546 = vadd.f32 %v8290, %v104
    %v8547 = vadd.f32 %v8291, %v105
    %v8548 = vadd.f32 %v8292, %v106
    %v8549 = vadd.f32 %v8293, %v107
    %v8550 = vadd.f32 %v8294, %v108
    %v8551 = vadd.f32 %v8295, %v109
    %v8552 = vadd.f32 %v8296, %v110
    %v8553 = vadd.f32 %v8297, %v111
    %v8554 = vadd.f32 %v8298, %v112
    %v8555 = vadd.f32 %v8299, %v113
    %v8556 = vadd.f32 %v8300, %v114
    %v8557 = vadd.f32 %v8301, %v115
    %v8558 = vadd.f32 %v8302, %v116
    %v8559 = vadd.f32 %v8303, %v117
    %v8560 = vadd.f32 %v8304, %v118
    %v8561 = vadd.f32 %v8305, %v119
    %v8562 = vadd.f32 %v8306, %v120
    %v8563 = vadd.f32 %v8307, %v121
    %v8564 = vadd.f32 %v8308, %v122
    %v8565 = vadd.f32 %v8309, %v123
    %v8566 = vadd.f32 %v8310, %v124
    %v8567 = vadd.f32 %v8311, %v125
    %v8568 = vadd.f32 %v8312, %v126
    %v8569 = vadd.f32 %v8313, %v127
    %v8570 = vadd.f32 %v8314, %v128
    %v8571 = vadd.f32 %v8315, %v129
    %v8572 = vadd.f32 %v8316, %v130
    %v8573 = vadd.f32 %v8317, %v131
    %v8574 = vadd.f32 %v8318, %v132
    %v8575 = vadd.f32 %v8319, %v133
    %v8576 = vadd.f32 %v8320, %v134
    %v8577 = vadd.f32 %v8321, %v135
    %v8578 = vadd.f32 %v8322, %v136
    %v8579 = vadd.f32 %v8323, %v137
    %v8580 = vadd.f32 %v8324, %v138
    %v8581 = vadd.f32 %v8325, %v139
    %v8582 = vadd.f32 %v8326, %v140
    %v8583 = vadd.f32 %v8327, %v141
    %v8584 = vadd.f32 %v8328, %v142
    %v8585 = vadd.f32 %v8329, %v143
    %v8586 = vadd.f32 %v8330, %v144
    %v8587 = vadd.f32 %v8331, %v145
    %v8588 = vadd.f32 %v8332, %v146
    %v8589 = vadd.f32 %v8333, %v147
    %v8590 = vadd.f32 %v8334, %v148
    %v8591 = vadd.f32 %v8335, %v149
    %v8592 = vadd.f32 %v8336, %v150
    %v8593 = vadd.f32 %v8337, %v151
    %v8594 = vadd.f32 %v8338, %v152
    %v8595 = vadd.f32 %v8339, %v153
    %v8596 = vadd.f32 %v8340, %v154
    %v8597 = vadd.f32 %v8341, %v155
    %v8598 = vadd.f32 %v8342, %v156
    %v8599 = vadd.f32 %v8343, %v157
    %v8600 = vadd.f32 %v8344, %v158
    %v8601 = vadd.f32 %v8345, %v159
    %v8602 = vadd.f32 %v8346, %v160
    %v8603 = vadd.f32 %v8347, %v161
    %v8604 = vadd.f32 %v8348, %v162
    %v8605 = vadd.f32 %v8349, %v163
    %v8606 = vadd.f32 %v8350, %v164
    %v8607 = vadd.f32 %v8351, %v165
    %v8608 = vadd.f32 %v8352, %v166
    %v8609 = vadd.f32 %v8353, %v167
    %v8610 = vadd.f32 %v8354, %v168
    %v8611 = vadd.f32 %v8355, %v169
    %v8612 = vadd.f32 %v8356, %v170
    %v8613 = vadd.f32 %v8357, %v171
    %v8614 = vadd.f32 %v8358, %v172
    %v8615 = vadd.f32 %v8359, %v173
    %v8616 = vadd.f32 %v8360, %v174
    %v8617 = vadd.f32 %v8361, %v175
    %v8618 = vadd.f32 %v8362, %v176
    %v8619 = vadd.f32 %v8363, %v177
    %v8620 = vadd.f32 %v8364, %v178
    %v8621 = vadd.f32 %v8365, %v179
    %v8622 = vadd.f32 %v8366, %v180
    %v8623 = vadd.f32 %v8367, %v181
    %v8624 = vadd.f32 %v8368, %v182
    %v8625 = vadd.f32 %v8369, %v183
    %v8626 = vadd.f32 %v8370, %v184
    %v8627 = vadd.f32 %v8371, %v185
    %v8628 = vadd.f32 %v8372, %v186
    %v8629 = vadd.f32 %v8373, %v187
    %v8630 = vadd.f32 %v8374, %v188
    %v8631 = vadd.f32 %v8375, %v189
    %v8632 = vadd.f32 %v8376, %v190
    %v8633 = vadd.f32 %v8377, %v191
    %v8634 = vadd.f32 %v8378, %v192
    %v8635 = vadd.f32 %v8379, %v193
    %v8636 = vadd.f32 %v8380, %v194
    %v8637 = vadd.f32 %v8381, %v195
    %v8638 = vadd.f32 %v8382, %v196
    %v8639 = vadd.f32 %v8383, %v197
    %v8640 = vadd.f32 %v8384, %v198
    %v8641 = vadd.f32 %v8385, %v199
    %v8642 = vadd.f32 %v8386, %v200
    %v8643 = vadd.f32 %v8387, %v201
    %v8644 = vadd.f32 %v8388, %v202
    %v8645 = vadd.f32 %v8389, %v203
    %v8646 = vadd.f32 %v8390, %v204
    %v8647 = vadd.f32 %v8391, %v205
    %v8648 = vadd.f32 %v8392, %v206
    %v8649 = vadd.f32 %v8393, %v207
    %v8650 = vadd.f32 %v8394, %v208
    %v8651 = vadd.f32 %v8395, %v209
    %v8652 = vadd.f32 %v8396, %v210
    %v8653 = vadd.f32 %v8397, %v211
    %v8654 = vadd.f32 %v8398, %v212
    %v8655 = vadd.f32 %v8399, %v213
    %v8656 = vadd.f32 %v8400, %v214
    %v8657 = vadd.f32 %v8401, %v215
    %v8658 = vadd.f32 %v8402, %v216
    %v8659 = vadd.f32 %v8403, %v217
    %v8660 = vadd.f32 %v8404, %v218
    %v8661 = vadd.f32 %v8405, %v219
    %v8662 = vadd.f32 %v8406, %v220
    %v8663 = vadd.f32 %v8407, %v221
    %v8664 = vadd.f32 %v8408, %v222
    %v8665 = vadd.f32 %v8409, %v223
    %v8666 = vadd.f32 %v8410, %v224
    %v8667 = vadd.f32 %v8411, %v225
    %v8668 = vadd.f32 %v8412, %v226
    %v8669 = vadd.f32 %v8413, %v227
    %v8670 = vadd.f32 %v8414, %v228
    %v8671 = vadd.f32 %v8415, %v229
    %v8672 = vadd.f32 %v8416, %v230
    %v8673 = vadd.f32 %v8417, %v231
    %v8674 = vadd.f32 %v8418, %v232
    %v8675 = vadd.f32 %v8419, %v233
    %v8676 = vadd.f32 %v8420, %v234
    %v8677 = vadd.f32 %v8421, %v235
    %v8678 = vadd.f32 %v8422, %v236
    %v8679 = vadd.f32 %v8423, %v237
    %v8680 = vadd.f32 %v8424, %v238
    %v8681 = vadd.f32 %v8425, %v239
    %v8682 = vadd.f32 %v8426, %v240
    %v8683 = vadd.f32 %v8427, %v241
    %v8684 = vadd.f32 %v8428, %v242
    %v8685 = vadd.f32 %v8429, %v243
    %v8686 = vadd.f32 %v8430, %v244
    %v8687 = vadd.f32 %v8431, %v245
    %v8688 = vadd.f32 %v8432, %v246
    %v8689 = vadd.f32 %v8433, %v247
    %v8690 = vadd.f32 %v8434, %v248
    %v8691 = vadd.f32 %v8435, %v249
    %v8692 = vadd.f32 %v8436, %v250
    %v8693 = vadd.f32 %v8437, %v251
    %v8694 = vadd.f32 %v8438, %v252
    %v8695 = vadd.f32 %v8439, %v253
    %v8696 = vadd.f32 %v8440, %v254
    %v8697 = vadd.f32 %v8441, %v255
    %v8698 = vadd.f32 %v8442, %v256
    %v8699 = vadd.f32 %v8443, %v257
    %v8700 = vadd.f32 %v8444, %v258
    %v8701 = vadd.f32 %v8445, %v259
    %v8702 = vadd.f32 %v8446, %v260
    %v8703 = vadd.f32 %v8447, %v261
    %v8704 = vadd.f32 %v8448, %v262
    %v8705 = vadd.f32 %v8449, %v263
    %v8706 = vadd.f32 %v8450, %v264
    %v8707 = vadd.f32 %v8451, %v265
    %v8708 = vadd.f32 %v8452, %v266
    %v8709 = vadd.f32 %v8453, %v267
    %v8710 = vadd.f32 %v8454, %v268
    %v8711 = vadd.f32 %v8455, %v269
    %v8712 = vadd.f32 %v8456, %v270
    %v8713 = vadd.f32 %v8457, %v271
    %v8714 = vadd.f32 %v8458, %v272
    %v8715 = vadd.f32 %v8459, %v273
    %v8716 = vadd.f32 %v8460, %v274
    %v8717 = vadd.f32 %v8461, %v275
    %v8718 = vadd.f32 %v8462, %v276
    %v8719 = vadd.f32 %v8463, %v277
    %v8720 = vadd.f32 %v8464, %v278
    %v8721 = vadd.f32 %v8465, %v279
    %v8722 = vadd.f32 %v8466, %v280
    %v8723 = vadd.f32 %v8467, %v281
    %v8724 = vadd.f32 %v8468, %v282
    %v8725 = vadd.f32 %v8469, %v283
    %v8726 = vadd.f32 %v8470, %v284
    %v8727 = vadd.f32 %v8471, %v285
    %v8728 = vadd.f32 %v8472, %v286
    %v8729 = vadd.f32 %v8473, %v287
    %v8730 = vadd.f32 %v8474, %v288
    %v8731 = vadd.f32 %v8475, %v289
    %v8732 = vadd.f32 %v8476, %v290
    %v8733 = vadd.f32 %v8477, %v291
    %v8734 = vadd.f32 %v8478, %v292
    %v8735 = vadd.f32 %v8479, %v293
    %v8736 = vadd.f32 %v8480, %v294
    %v8737 = vadd.f32 %v8481, %v295
    %v8738 = vadd.f32 %v8482, %v296
    %v8739 = vadd.f32 %v8483, %v297
    %v8740 = vadd.f32 %v8484, %v298
    %v8741 = vadd.f32 %v8485, %v299
    %v8742 = vadd.f32 %v8486, %v300
    %v8743 = vadd.f32 %v8487, %v301
    %v8744 = vadd.f32 %v8488, %v302
    %v8745 = vadd.f32 %v8489, %v303
    %v8746 = vadd.f32 %v8490, %v304
    %v8747 = vadd.f32 %v8491, %v305
    %v8748 = vadd.f32 %v8492, %v306
    %v8749 = vadd.f32 %v8493, %v307
    %v8750 = vadd.f32 %v8494, %v308
    %v8751 = vadd.f32 %v8495, %v309
    %v8752 = vadd.f32 %v8496, %v310
    %v8753 = vadd.f32 %v8497, %v311
    %v8754 = vadd.f32 %v8498, %v312
    %v8755 = vadd.f32 %v8499, %v313
    %v8756 = vadd.f32 %v8500, %v314
    %v8757 = vadd.f32 %v8501, %v315
    %v8758 = vadd.f32 %v8502, %v316
    %v8759 = vadd.f32 %v8503, %v317
    %v8760 = vadd.f32 %v8504, %v318
    %v8761 = vadd.f32 %v8505, %v319
    %v8762 = vadd.f32 %v8506, %v320
    %v8763 = vadd.f32 %v8507, %v321
    %v8764 = vadd.f32 %v8508, %v322
    %v8765 = vadd.f32 %v8509, %v323
    %v8766 = vadd.f32 %v8510, %v324
    %v8767 = vadd.f32 %v8511, %v325
    %v8768 = vadd.f32 %v8512, %v326
    %v8769 = vadd.f32 %v8513, %v327
    %v8770 = vadd.f32 %v8514, %v328
    %v8771 = vadd.f32 %v8515, %v329
    %v8772 = vadd.f32 %v8516, %v330
    %v8773 = vadd.f32 %v8517, %v331
    %v8774 = vadd.f32 %v8518, %v332
    %v8775 = vadd.f32 %v8519, %v333
    %v8776 = vadd.f32 %v8520, %v334
    %v8777 = vadd.f32 %v8521, %v335
    %v8778 = vadd.f32 %v8522, %v336
    %v8779 = vadd.f32 %v8523, %v337
    %v8780 = vadd.f32 %v8524, %v338
    %v8781 = vadd.f32 %v8525, %v339
    %v8782 = vadd.f32 %v8526, %v340
    %v8783 = vadd.f32 %v8527, %v341
    %v8784 = vadd.f32 %v8528, %v342
    %v8785 = vadd.f32 %v8529, %v343
    %v8786 = vadd.f32 %v8530, %v344
    %v8787 = vadd.f32 %v8531, %v345
    %v8788 = vadd.f32 %v8532, %v346
    %v8789 = vadd.f32 %v8533, %v347
    %v8790 = vmax.f32 %v8534, 0.0
    %v8791 = vmax.f32 %v8535, 0.0
    %v8792 = vmax.f32 %v8536, 0.0
    %v8793 = vmax.f32 %v8537, 0.0
    %v8794 = vmax.f32 %v8538, 0.0
    %v8795 = vmax.f32 %v8539, 0.0
    %v8796 = vmax.f32 %v8540, 0.0
    %v8797 = vmax.f32 %v8541, 0.0
    %v8798 = vmax.f32 %v8542, 0.0
    %v8799 = vmax.f32 %v8543, 0.0
    %v8800 = vmax.f32 %v8544, 0.0
    %v8801 = vmax.f32 %v8545, 0.0
    %v8802 = vmax.f32 %v8546, 0.0
    %v8803 = vmax.f32 %v8547, 0.0
    %v8804 = vmax.f32 %v8548, 0.0
    %v8805 = vmax.f32 %v8549, 0.0
    %v8806 = vmax.f32 %v8550, 0.0
    %v8807 = vmax.f32 %v8551, 0.0
    %v8808 = vmax.f32 %v8552, 0.0
    %v8809 = vmax.f32 %v8553, 0.0
    %v8810 = vmax.f32 %v8554, 0.0
    %v8811 = vmax.f32 %v8555, 0.0
    %v8812 = vmax.f32 %v8556, 0.0
    %v8813 = vmax.f32 %v8557, 0.0
    %v8814 = vmax.f32 %v8558, 0.0
    %v8815 = vmax.f32 %v8559, 0.0
    %v8816 = vmax.f32 %v8560, 0.0
    %v8817 = vmax.f32 %v8561, 0.0
    %v8818 = vmax.f32 %v8562, 0.0
    %v8819 = vmax.f32 %v8563, 0.0
    %v8820 = vmax.f32 %v8564, 0.0
    %v8821 = vmax.f32 %v8565, 0.0
    %v8822 = vmax.f32 %v8566, 0.0
    %v8823 = vmax.f32 %v8567, 0.0
    %v8824 = vmax.f32 %v8568, 0.0
    %v8825 = vmax.f32 %v8569, 0.0
    %v8826 = vmax.f32 %v8570, 0.0
    %v8827 = vmax.f32 %v8571, 0.0
    %v8828 = vmax.f32 %v8572, 0.0
    %v8829 = vmax.f32 %v8573, 0.0
    %v8830 = vmax.f32 %v8574, 0.0
    %v8831 = vmax.f32 %v8575, 0.0
    %v8832 = vmax.f32 %v8576, 0.0
    %v8833 = vmax.f32 %v8577, 0.0
    %v8834 = vmax.f32 %v8578, 0.0
    %v8835 = vmax.f32 %v8579, 0.0
    %v8836 = vmax.f32 %v8580, 0.0
    %v8837 = vmax.f32 %v8581, 0.0
    %v8838 = vmax.f32 %v8582, 0.0
    %v8839 = vmax.f32 %v8583, 0.0
    %v8840 = vmax.f32 %v8584, 0.0
    %v8841 = vmax.f32 %v8585, 0.0
    %v8842 = vmax.f32 %v8586, 0.0
    %v8843 = vmax.f32 %v8587, 0.0
    %v8844 = vmax.f32 %v8588, 0.0
    %v8845 = vmax.f32 %v8589, 0.0
    %v8846 = vmax.f32 %v8590, 0.0
    %v8847 = vmax.f32 %v8591, 0.0
    %v8848 = vmax.f32 %v8592, 0.0
    %v8849 = vmax.f32 %v8593, 0.0
    %v8850 = vmax.f32 %v8594, 0.0
    %v8851 = vmax.f32 %v8595, 0.0
    %v8852 = vmax.f32 %v8596, 0.0
    %v8853 = vmax.f32 %v8597, 0.0
    %v8854 = vmax.f32 %v8598, 0.0
    %v8855 = vmax.f32 %v8599, 0.0
    %v8856 = vmax.f32 %v8600, 0.0
    %v8857 = vmax.f32 %v8601, 0.0
    %v8858 = vmax.f32 %v8602, 0.0
    %v8859 = vmax.f32 %v8603, 0.0
    %v8860 = vmax.f32 %v8604, 0.0
    %v8861 = vmax.f32 %v8605, 0.0
    %v8862 = vmax.f32 %v8606, 0.0
    %v8863 = vmax.f32 %v8607, 0.0
    %v8864 = vmax.f32 %v8608, 0.0
    %v8865 = vmax.f32 %v8609, 0.0
    %v8866 = vmax.f32 %v8610, 0.0
    %v8867 = vmax.f32 %v8611, 0.0
    %v8868 = vmax.f32 %v8612, 0.0
    %v8869 = vmax.f32 %v8613, 0.0
    %v8870 = vmax.f32 %v8614, 0.0
    %v8871 = vmax.f32 %v8615, 0.0
    %v8872 = vmax.f32 %v8616, 0.0
    %v8873 = vmax.f32 %v8617, 0.0
    %v8874 = vmax.f32 %v8618, 0.0
    %v8875 = vmax.f32 %v8619, 0.0
    %v8876 = vmax.f32 %v8620, 0.0
    %v8877 = vmax.f32 %v8621, 0.0
    %v8878 = vmax.f32 %v8622, 0.0
    %v8879 = vmax.f32 %v8623, 0.0
    %v8880 = vmax.f32 %v8624, 0.0
    %v8881 = vmax.f32 %v8625, 0.0
    %v8882 = vmax.f32 %v8626, 0.0
    %v8883 = vmax.f32 %v8627, 0.0
    %v8884 = vmax.f32 %v8628, 0.0
    %v8885 = vmax.f32 %v8629, 0.0
    %v8886 = vmax.f32 %v8630, 0.0
    %v8887 = vmax.f32 %v8631, 0.0
    %v8888 = vmax.f32 %v8632, 0.0
    %v8889 = vmax.f32 %v8633, 0.0
    %v8890 = vmax.f32 %v8634, 0.0
    %v8891 = vmax.f32 %v8635, 0.0
    %v8892 = vmax.f32 %v8636, 0.0
    %v8893 = vmax.f32 %v8637, 0.0
    %v8894 = vmax.f32 %v8638, 0.0
    %v8895 = vmax.f32 %v8639, 0.0
    %v8896 = vmax.f32 %v8640, 0.0
    %v8897 = vmax.f32 %v8641, 0.0
    %v8898 = vmax.f32 %v8642, 0.0
    %v8899 = vmax.f32 %v8643, 0.0
    %v8900 = vmax.f32 %v8644, 0.0
    %v8901 = vmax.f32 %v8645, 0.0
    %v8902 = vmax.f32 %v8646, 0.0
    %v8903 = vmax.f32 %v8647, 0.0
    %v8904 = vmax.f32 %v8648, 0.0
    %v8905 = vmax.f32 %v8649, 0.0
    %v8906 = vmax.f32 %v8650, 0.0
    %v8907 = vmax.f32 %v8651, 0.0
    %v8908 = vmax.f32 %v8652, 0.0
    %v8909 = vmax.f32 %v8653, 0.0
    %v8910 = vmax.f32 %v8654, 0.0
    %v8911 = vmax.f32 %v8655, 0.0
    %v8912 = vmax.f32 %v8656, 0.0
    %v8913 = vmax.f32 %v8657, 0.0
    %v8914 = vmax.f32 %v8658, 0.0
    %v8915 = vmax.f32 %v8659, 0.0
    %v8916 = vmax.f32 %v8660, 0.0
    %v8917 = vmax.f32 %v8661, 0.0
    %v8918 = vmax.f32 %v8662, 0.0
    %v8919 = vmax.f32 %v8663, 0.0
    %v8920 = vmax.f32 %v8664, 0.0
    %v8921 = vmax.f32 %v8665, 0.0
    %v8922 = vmax.f32 %v8666, 0.0
    %v8923 = vmax.f32 %v8667, 0.0
    %v8924 = vmax.f32 %v8668, 0.0
    %v8925 = vmax.f32 %v8669, 0.0
    %v8926 = vmax.f32 %v8670, 0.0
    %v8927 = vmax.f32 %v8671, 0.0
    %v8928 = vmax.f32 %v8672, 0.0
    %v8929 = vmax.f32 %v8673, 0.0
    %v8930 = vmax.f32 %v8674, 0.0
    %v8931 = vmax.f32 %v8675, 0.0
    %v8932 = vmax.f32 %v8676, 0.0
    %v8933 = vmax.f32 %v8677, 0.0
    %v8934 = vmax.f32 %v8678, 0.0
    %v8935 = vmax.f32 %v8679, 0.0
    %v8936 = vmax.f32 %v8680, 0.0
    %v8937 = vmax.f32 %v8681, 0.0
    %v8938 = vmax.f32 %v8682, 0.0
    %v8939 = vmax.f32 %v8683, 0.0
    %v8940 = vmax.f32 %v8684, 0.0
    %v8941 = vmax.f32 %v8685, 0.0
    %v8942 = vmax.f32 %v8686, 0.0
    %v8943 = vmax.f32 %v8687, 0.0
    %v8944 = vmax.f32 %v8688, 0.0
    %v8945 = vmax.f32 %v8689, 0.0
    %v8946 = vmax.f32 %v8690, 0.0
    %v8947 = vmax.f32 %v8691, 0.0
    %v8948 = vmax.f32 %v8692, 0.0
    %v8949 = vmax.f32 %v8693, 0.0
    %v8950 = vmax.f32 %v8694, 0.0
    %v8951 = vmax.f32 %v8695, 0.0
    %v8952 = vmax.f32 %v8696, 0.0
    %v8953 = vmax.f32 %v8697, 0.0
    %v8954 = vmax.f32 %v8698, 0.0
    %v8955 = vmax.f32 %v8699, 0.0
    %v8956 = vmax.f32 %v8700, 0.0
    %v8957 = vmax.f32 %v8701, 0.0
    %v8958 = vmax.f32 %v8702, 0.0
    %v8959 = vmax.f32 %v8703, 0.0
    %v8960 = vmax.f32 %v8704, 0.0
    %v8961 = vmax.f32 %v8705, 0.0
    %v8962 = vmax.f32 %v8706, 0.0
    %v8963 = vmax.f32 %v8707, 0.0
    %v8964 = vmax.f32 %v8708, 0.0
    %v8965 = vmax.f32 %v8709, 0.0
    %v8966 = vmax.f32 %v8710, 0.0
    %v8967 = vmax.f32 %v8711, 0.0
    %v8968 = vmax.f32 %v8712, 0.0
    %v8969 = vmax.f32 %v8713, 0.0
    %v8970 = vmax.f32 %v8714, 0.0
    %v8971 = vmax.f32 %v8715, 0.0
    %v8972 = vmax.f32 %v8716, 0.0
    %v8973 = vmax.f32 %v8717, 0.0
    %v8974 = vmax.f32 %v8718, 0.0
    %v8975 = vmax.f32 %v8719, 0.0
    %v8976 = vmax.f32 %v8720, 0.0
    %v8977 = vmax.f32 %v8721, 0.0
    %v8978 = vmax.f32 %v8722, 0.0
    %v8979 = vmax.f32 %v8723, 0.0
    %v8980 = vmax.f32 %v8724, 0.0
    %v8981 = vmax.f32 %v8725, 0.0
    %v8982 = vmax.f32 %v8726, 0.0
    %v8983 = vmax.f32 %v8727, 0.0
    %v8984 = vmax.f32 %v8728, 0.0
    %v8985 = vmax.f32 %v8729, 0.0
    %v8986 = vmax.f32 %v8730, 0.0
    %v8987 = vmax.f32 %v8731, 0.0
    %v8988 = vmax.f32 %v8732, 0.0
    %v8989 = vmax.f32 %v8733, 0.0
    %v8990 = vmax.f32 %v8734, 0.0
    %v8991 = vmax.f32 %v8735, 0.0
    %v8992 = vmax.f32 %v8736, 0.0
    %v8993 = vmax.f32 %v8737, 0.0
    %v8994 = vmax.f32 %v8738, 0.0
    %v8995 = vmax.f32 %v8739, 0.0
    %v8996 = vmax.f32 %v8740, 0.0
    %v8997 = vmax.f32 %v8741, 0.0
    %v8998 = vmax.f32 %v8742, 0.0
    %v8999 = vmax.f32 %v8743, 0.0
    %v9000 = vmax.f32 %v8744, 0.0
    %v9001 = vmax.f32 %v8745, 0.0
    %v9002 = vmax.f32 %v8746, 0.0
    %v9003 = vmax.f32 %v8747, 0.0
    %v9004 = vmax.f32 %v8748, 0.0
    %v9005 = vmax.f32 %v8749, 0.0
    %v9006 = vmax.f32 %v8750, 0.0
    %v9007 = vmax.f32 %v8751, 0.0
    %v9008 = vmax.f32 %v8752, 0.0
    %v9009 = vmax.f32 %v8753, 0.0
    %v9010 = vmax.f32 %v8754, 0.0
    %v9011 = vmax.f32 %v8755, 0.0
    %v9012 = vmax.f32 %v8756, 0.0
    %v9013 = vmax.f32 %v8757, 0.0
    %v9014 = vmax.f32 %v8758, 0.0
    %v9015 = vmax.f32 %v8759, 0.0
    %v9016 = vmax.f32 %v8760, 0.0
    %v9017 = vmax.f32 %v8761, 0.0
    %v9018 = vmax.f32 %v8762, 0.0
    %v9019 = vmax.f32 %v8763, 0.0
    %v9020 = vmax.f32 %v8764, 0.0
    %v9021 = vmax.f32 %v8765, 0.0
    %v9022 = vmax.f32 %v8766, 0.0
    %v9023 = vmax.f32 %v8767, 0.0
    %v9024 = vmax.f32 %v8768, 0.0
    %v9025 = vmax.f32 %v8769, 0.0
    %v9026 = vmax.f32 %v8770, 0.0
    %v9027 = vmax.f32 %v8771, 0.0
    %v9028 = vmax.f32 %v8772, 0.0
    %v9029 = vmax.f32 %v8773, 0.0
    %v9030 = vmax.f32 %v8774, 0.0
    %v9031 = vmax.f32 %v8775, 0.0
    %v9032 = vmax.f32 %v8776, 0.0
    %v9033 = vmax.f32 %v8777, 0.0
    %v9034 = vmax.f32 %v8778, 0.0
    %v9035 = vmax.f32 %v8779, 0.0
    %v9036 = vmax.f32 %v8780, 0.0
    %v9037 = vmax.f32 %v8781, 0.0
    %v9038 = vmax.f32 %v8782, 0.0
    %v9039 = vmax.f32 %v8783, 0.0
    %v9040 = vmax.f32 %v8784, 0.0
    %v9041 = vmax.f32 %v8785, 0.0
    %v9042 = vmax.f32 %v8786, 0.0
    %v9043 = vmax.f32 %v8787, 0.0
    %v9044 = vmax.f32 %v8788, 0.0
    %v9045 = vmax.f32 %v8789, 0.0
    %9046 = vst [vmem:[#allocation12] sm:$0xff] %v8790
    %9047 = vst [vmem:[#allocation12 + $0x8] sm:$0xff] %v8791
    %9048 = vst [vmem:[#allocation12 + $0x10] sm:$0xff] %v8792
    %9049 = vst [vmem:[#allocation12 + $0x18] sm:$0xff] %v8793
    %9050 = vst [vmem:[#allocation12 + $0x20] sm:$0xff] %v8794
    %9051 = vst [vmem:[#allocation12 + $0x28] sm:$0xff] %v8795
    %9052 = vst [vmem:[#allocation12 + $0x30] sm:$0xff] %v8796
    %9053 = vst [vmem:[#allocation12 + $0x38] sm:$0xff] %v8797
    %9054 = vst [vmem:[#allocation12 + $0x40] sm:$0xff] %v8798
    %9055 = vst [vmem:[#allocation12 + $0x48] sm:$0xff] %v8799
    %9056 = vst [vmem:[#allocation12 + $0x50] sm:$0xff] %v8800
    %9057 = vst [vmem:[#allocation12 + $0x58] sm:$0xff] %v8801
    %9058 = vst [vmem:[#allocation12 + $0x60] sm:$0xff] %v8802
    %9059 = vst [vmem:[#allocation12 + $0x68] sm:$0xff] %v8803
    %9060 = vst [vmem:[#allocation12 + $0x70] sm:$0xff] %v8804
    %9061 = vst [vmem:[#allocation12 + $0x78] sm:$0xff] %v8805
    %9062 = vst [vmem:[#allocation12 + $0x80] sm:$0xff] %v8806
    %9063 = vst [vmem:[#allocation12 + $0x88] sm:$0xff] %v8807
    %9064 = vst [vmem:[#allocation12 + $0x90] sm:$0xff] %v8808
    %9065 = vst [vmem:[#allocation12 + $0x98] sm:$0xff] %v8809
    %9066 = vst [vmem:[#allocation12 + $0xa0] sm:$0xff] %v8810
    %9067 = vst [vmem:[#allocation12 + $0xa8] sm:$0xff] %v8811
    %9068 = vst [vmem:[#allocation12 + $0xb0] sm:$0xff] %v8812
    %9069 = vst [vmem:[#allocation12 + $0xb8] sm:$0xff] %v8813
    %9070 = vst [vmem:[#allocation12 + $0xc0] sm:$0xff] %v8814
    %9071 = vst [vmem:[#allocation12 + $0xc8] sm:$0xff] %v8815
    %9072 = vst [vmem:[#allocation12 + $0xd0] sm:$0xff] %v8816
    %9073 = vst [vmem:[#allocation12 + $0xd8] sm:$0xff] %v8817
    %9074 = vst [vmem:[#allocation12 + $0xe0] sm:$0xff] %v8818
    %9075 = vst [vmem:[#allocation12 + $0xe8] sm:$0xff] %v8819
    %9076 = vst [vmem:[#allocation12 + $0xf0] sm:$0xff] %v8820
    %9077 = vst [vmem:[#allocation12 + $0xf8] sm:$0xff] %v8821
    %9078 = vst [vmem:[#allocation12 + $0x100] sm:$0xff] %v8822
    %9079 = vst [vmem:[#allocation12 + $0x108] sm:$0xff] %v8823
    %9080 = vst [vmem:[#allocation12 + $0x110] sm:$0xff] %v8824
    %9081 = vst [vmem:[#allocation12 + $0x118] sm:$0xff] %v8825
    %9082 = vst [vmem:[#allocation12 + $0x120] sm:$0xff] %v8826
    %9083 = vst [vmem:[#allocation12 + $0x128] sm:$0xff] %v8827
    %9084 = vst [vmem:[#allocation12 + $0x130] sm:$0xff] %v8828
    %9085 = vst [vmem:[#allocation12 + $0x138] sm:$0xff] %v8829
    %9086 = vst [vmem:[#allocation12 + $0x140] sm:$0xff] %v8830
    %9087 = vst [vmem:[#allocation12 + $0x148] sm:$0xff] %v8831
    %9088 = vst [vmem:[#allocation12 + $0x150] sm:$0xff] %v8832
    %9089 = vst [vmem:[#allocation12 + $0x158] sm:$0xff] %v8833
    %9090 = vst [vmem:[#allocation12 + $0x160] sm:$0xff] %v8834
    %9091 = vst [vmem:[#allocation12 + $0x168] sm:$0xff] %v8835
    %9092 = vst [vmem:[#allocation12 + $0x170] sm:$0xff] %v8836
    %9093 = vst [vmem:[#allocation12 + $0x178] sm:$0xff] %v8837
    %9094 = vst [vmem:[#allocation12 + $0x180] sm:$0xff] %v8838
    %9095 = vst [vmem:[#allocation12 + $0x188] sm:$0xff] %v8839
    %9096 = vst [vmem:[#allocation12 + $0x190] sm:$0xff] %v8840
    %9097 = vst [vmem:[#allocation12 + $0x198] sm:$0xff] %v8841
    %9098 = vst [vmem:[#allocation12 + $0x1a0] sm:$0xff] %v8842
    %9099 = vst [vmem:[#allocation12 + $0x1a8] sm:$0xff] %v8843
    %9100 = vst [vmem:[#allocation12 + $0x1b0] sm:$0xff] %v8844
    %9101 = vst [vmem:[#allocation12 + $0x1b8] sm:$0xff] %v8845
    %9102 = vst [vmem:[#allocation12 + $0x1c0] sm:$0xff] %v8846
    %9103 = vst [vmem:[#allocation12 + $0x1c8] sm:$0xff] %v8847
    %9104 = vst [vmem:[#allocation12 + $0x1d0] sm:$0xff] %v8848
    %9105 = vst [vmem:[#allocation12 + $0x1d8] sm:$0xff] %v8849
    %9106 = vst [vmem:[#allocation12 + $0x1e0] sm:$0xff] %v8850
    %9107 = vst [vmem:[#allocation12 + $0x1e8] sm:$0xff] %v8851
    %9108 = vst [vmem:[#allocation12 + $0x1f0] sm:$0xff] %v8852
    %9109 = vst [vmem:[#allocation12 + $0x1f8] sm:$0xff] %v8853
    %9110 = vst [vmem:[#allocation12 + $0x200] sm:$0xff] %v8854
    %9111 = vst [vmem:[#allocation12 + $0x208] sm:$0xff] %v8855
    %9112 = vst [vmem:[#allocation12 + $0x210] sm:$0xff] %v8856
    %9113 = vst [vmem:[#allocation12 + $0x218] sm:$0xff] %v8857
    %9114 = vst [vmem:[#allocation12 + $0x220] sm:$0xff] %v8858
    %9115 = vst [vmem:[#allocation12 + $0x228] sm:$0xff] %v8859
    %9116 = vst [vmem:[#allocation12 + $0x230] sm:$0xff] %v8860
    %9117 = vst [vmem:[#allocation12 + $0x238] sm:$0xff] %v8861
    %9118 = vst [vmem:[#allocation12 + $0x240] sm:$0xff] %v8862
    %9119 = vst [vmem:[#allocation12 + $0x248] sm:$0xff] %v8863
    %9120 = vst [vmem:[#allocation12 + $0x250] sm:$0xff] %v8864
    %9121 = vst [vmem:[#allocation12 + $0x258] sm:$0xff] %v8865
    %9122 = vst [vmem:[#allocation12 + $0x260] sm:$0xff] %v8866
    %9123 = vst [vmem:[#allocation12 + $0x268] sm:$0xff] %v8867
    %9124 = vst [vmem:[#allocation12 + $0x270] sm:$0xff] %v8868
    %9125 = vst [vmem:[#allocation12 + $0x278] sm:$0xff] %v8869
    %9126 = vst [vmem:[#allocation12 + $0x280] sm:$0xff] %v8870
    %9127 = vst [vmem:[#allocation12 + $0x288] sm:$0xff] %v8871
    %9128 = vst [vmem:[#allocation12 + $0x290] sm:$0xff] %v8872
    %9129 = vst [vmem:[#allocation12 + $0x298] sm:$0xff] %v8873
    %9130 = vst [vmem:[#allocation12 + $0x2a0] sm:$0xff] %v8874
    %9131 = vst [vmem:[#allocation12 + $0x2a8] sm:$0xff] %v8875
    %9132 = vst [vmem:[#allocation12 + $0x2b0] sm:$0xff] %v8876
    %9133 = vst [vmem:[#allocation12 + $0x2b8] sm:$0xff] %v8877
    %9134 = vst [vmem:[#allocation12 + $0x2c0] sm:$0xff] %v8878
    %9135 = vst [vmem:[#allocation12 + $0x2c8] sm:$0xff] %v8879
    %9136 = vst [vmem:[#allocation12 + $0x2d0] sm:$0xff] %v8880
    %9137 = vst [vmem:[#allocation12 + $0x2d8] sm:$0xff] %v8881
    %9138 = vst [vmem:[#allocation12 + $0x2e0] sm:$0xff] %v8882
    %9139 = vst [vmem:[#allocation12 + $0x2e8] sm:$0xff] %v8883
    %9140 = vst [vmem:[#allocation12 + $0x2f0] sm:$0xff] %v8884
    %9141 = vst [vmem:[#allocation12 + $0x2f8] sm:$0xff] %v8885
    %9142 = vst [vmem:[#allocation12 + $0x300] sm:$0xff] %v8886
    %9143 = vst [vmem:[#allocation12 + $0x308] sm:$0xff] %v8887
    %9144 = vst [vmem:[#allocation12 + $0x310] sm:$0xff] %v8888
    %9145 = vst [vmem:[#allocation12 + $0x318] sm:$0xff] %v8889
    %9146 = vst [vmem:[#allocation12 + $0x320] sm:$0xff] %v8890
    %9147 = vst [vmem:[#allocation12 + $0x328] sm:$0xff] %v8891
    %9148 = vst [vmem:[#allocation12 + $0x330] sm:$0xff] %v8892
    %9149 = vst [vmem:[#allocation12 + $0x338] sm:$0xff] %v8893
    %9150 = vst [vmem:[#allocation12 + $0x340] sm:$0xff] %v8894
    %9151 = vst [vmem:[#allocation12 + $0x348] sm:$0xff] %v8895
    %9152 = vst [vmem:[#allocation12 + $0x350] sm:$0xff] %v8896
    %9153 = vst [vmem:[#allocation12 + $0x358] sm:$0xff] %v8897
    %9154 = vst [vmem:[#allocation12 + $0x360] sm:$0xff] %v8898
    %9155 = vst [vmem:[#allocation12 + $0x368] sm:$0xff] %v8899
    %9156 = vst [vmem:[#allocation12 + $0x370] sm:$0xff] %v8900
    %9157 = vst [vmem:[#allocation12 + $0x378] sm:$0xff] %v8901
    %9158 = vst [vmem:[#allocation12 + $0x380] sm:$0xff] %v8902
    %9159 = vst [vmem:[#allocation12 + $0x388] sm:$0xff] %v8903
    %9160 = vst [vmem:[#allocation12 + $0x390] sm:$0xff] %v8904
    %9161 = vst [vmem:[#allocation12 + $0x398] sm:$0xff] %v8905
    %9162 = vst [vmem:[#allocation12 + $0x3a0] sm:$0xff] %v8906
    %9163 = vst [vmem:[#allocation12 + $0x3a8] sm:$0xff] %v8907
    %9164 = vst [vmem:[#allocation12 + $0x3b0] sm:$0xff] %v8908
    %9165 = vst [vmem:[#allocation12 + $0x3b8] sm:$0xff] %v8909
    %9166 = vst [vmem:[#allocation12 + $0x3c0] sm:$0xff] %v8910
    %9167 = vst [vmem:[#allocation12 + $0x3c8] sm:$0xff] %v8911
    %9168 = vst [vmem:[#allocation12 + $0x3d0] sm:$0xff] %v8912
    %9169 = vst [vmem:[#allocation12 + $0x3d8] sm:$0xff] %v8913
    %9170 = vst [vmem:[#allocation12 + $0x3e0] sm:$0xff] %v8914
    %9171 = vst [vmem:[#allocation12 + $0x3e8] sm:$0xff] %v8915
    %9172 = vst [vmem:[#allocation12 + $0x3f0] sm:$0xff] %v8916
    %9173 = vst [vmem:[#allocation12 + $0x3f8] sm:$0xff] %v8917
    %9174 = vst [vmem:[#allocation12 + $0x400] sm:$0xff] %v8918
    %9175 = vst [vmem:[#allocation12 + $0x408] sm:$0xff] %v8919
    %9176 = vst [vmem:[#allocation12 + $0x410] sm:$0xff] %v8920
    %9177 = vst [vmem:[#allocation12 + $0x418] sm:$0xff] %v8921
    %9178 = vst [vmem:[#allocation12 + $0x420] sm:$0xff] %v8922
    %9179 = vst [vmem:[#allocation12 + $0x428] sm:$0xff] %v8923
    %9180 = vst [vmem:[#allocation12 + $0x430] sm:$0xff] %v8924
    %9181 = vst [vmem:[#allocation12 + $0x438] sm:$0xff] %v8925
    %9182 = vst [vmem:[#allocation12 + $0x440] sm:$0xff] %v8926
    %9183 = vst [vmem:[#allocation12 + $0x448] sm:$0xff] %v8927
    %9184 = vst [vmem:[#allocation12 + $0x450] sm:$0xff] %v8928
    %9185 = vst [vmem:[#allocation12 + $0x458] sm:$0xff] %v8929
    %9186 = vst [vmem:[#allocation12 + $0x460] sm:$0xff] %v8930
    %9187 = vst [vmem:[#allocation12 + $0x468] sm:$0xff] %v8931
    %9188 = vst [vmem:[#allocation12 + $0x470] sm:$0xff] %v8932
    %9189 = vst [vmem:[#allocation12 + $0x478] sm:$0xff] %v8933
    %9190 = vst [vmem:[#allocation12 + $0x480] sm:$0xff] %v8934
    %9191 = vst [vmem:[#allocation12 + $0x488] sm:$0xff] %v8935
    %9192 = vst [vmem:[#allocation12 + $0x490] sm:$0xff] %v8936
    %9193 = vst [vmem:[#allocation12 + $0x498] sm:$0xff] %v8937
    %9194 = vst [vmem:[#allocation12 + $0x4a0] sm:$0xff] %v8938
    %9195 = vst [vmem:[#allocation12 + $0x4a8] sm:$0xff] %v8939
    %9196 = vst [vmem:[#allocation12 + $0x4b0] sm:$0xff] %v8940
    %9197 = vst [vmem:[#allocation12 + $0x4b8] sm:$0xff] %v8941
    %9198 = vst [vmem:[#allocation12 + $0x4c0] sm:$0xff] %v8942
    %9199 = vst [vmem:[#allocation12 + $0x4c8] sm:$0xff] %v8943
    %9200 = vst [vmem:[#allocation12 + $0x4d0] sm:$0xff] %v8944
    %9201 = vst [vmem:[#allocation12 + $0x4d8] sm:$0xff] %v8945
    %9202 = vst [vmem:[#allocation12 + $0x4e0] sm:$0xff] %v8946
    %9203 = vst [vmem:[#allocation12 + $0x4e8] sm:$0xff] %v8947
    %9204 = vst [vmem:[#allocation12 + $0x4f0] sm:$0xff] %v8948
    %9205 = vst [vmem:[#allocation12 + $0x4f8] sm:$0xff] %v8949
    %9206 = vst [vmem:[#allocation12 + $0x500] sm:$0xff] %v8950
    %9207 = vst [vmem:[#allocation12 + $0x508] sm:$0xff] %v8951
    %9208 = vst [vmem:[#allocation12 + $0x510] sm:$0xff] %v8952
    %9209 = vst [vmem:[#allocation12 + $0x518] sm:$0xff] %v8953
    %9210 = vst [vmem:[#allocation12 + $0x520] sm:$0xff] %v8954
    %9211 = vst [vmem:[#allocation12 + $0x528] sm:$0xff] %v8955
    %9212 = vst [vmem:[#allocation12 + $0x530] sm:$0xff] %v8956
    %9213 = vst [vmem:[#allocation12 + $0x538] sm:$0xff] %v8957
    %9214 = vst [vmem:[#allocation12 + $0x540] sm:$0xff] %v8958
    %9215 = vst [vmem:[#allocation12 + $0x548] sm:$0xff] %v8959
    %9216 = vst [vmem:[#allocation12 + $0x550] sm:$0xff] %v8960
    %9217 = vst [vmem:[#allocation12 + $0x558] sm:$0xff] %v8961
    %9218 = vst [vmem:[#allocation12 + $0x560] sm:$0xff] %v8962
    %9219 = vst [vmem:[#allocation12 + $0x568] sm:$0xff] %v8963
    %9220 = vst [vmem:[#allocation12 + $0x570] sm:$0xff] %v8964
    %9221 = vst [vmem:[#allocation12 + $0x578] sm:$0xff] %v8965
    %9222 = vst [vmem:[#allocation12 + $0x580] sm:$0xff] %v8966
    %9223 = vst [vmem:[#allocation12 + $0x588] sm:$0xff] %v8967
    %9224 = vst [vmem:[#allocation12 + $0x590] sm:$0xff] %v8968
    %9225 = vst [vmem:[#allocation12 + $0x598] sm:$0xff] %v8969
    %9226 = vst [vmem:[#allocation12 + $0x5a0] sm:$0xff] %v8970
    %9227 = vst [vmem:[#allocation12 + $0x5a8] sm:$0xff] %v8971
    %9228 = vst [vmem:[#allocation12 + $0x5b0] sm:$0xff] %v8972
    %9229 = vst [vmem:[#allocation12 + $0x5b8] sm:$0xff] %v8973
    %9230 = vst [vmem:[#allocation12 + $0x5c0] sm:$0xff] %v8974
    %9231 = vst [vmem:[#allocation12 + $0x5c8] sm:$0xff] %v8975
    %9232 = vst [vmem:[#allocation12 + $0x5d0] sm:$0xff] %v8976
    %9233 = vst [vmem:[#allocation12 + $0x5d8] sm:$0xff] %v8977
    %9234 = vst [vmem:[#allocation12 + $0x5e0] sm:$0xff] %v8978
    %9235 = vst [vmem:[#allocation12 + $0x5e8] sm:$0xff] %v8979
    %9236 = vst [vmem:[#allocation12 + $0x5f0] sm:$0xff] %v8980
    %9237 = vst [vmem:[#allocation12 + $0x5f8] sm:$0xff] %v8981
    %9238 = vst [vmem:[#allocation12 + $0x600] sm:$0xff] %v8982
    %9239 = vst [vmem:[#allocation12 + $0x608] sm:$0xff] %v8983
    %9240 = vst [vmem:[#allocation12 + $0x610] sm:$0xff] %v8984
    %9241 = vst [vmem:[#allocation12 + $0x618] sm:$0xff] %v8985
    %9242 = vst [vmem:[#allocation12 + $0x620] sm:$0xff] %v8986
    %9243 = vst [vmem:[#allocation12 + $0x628] sm:$0xff] %v8987
    %9244 = vst [vmem:[#allocation12 + $0x630] sm:$0xff] %v8988
    %9245 = vst [vmem:[#allocation12 + $0x638] sm:$0xff] %v8989
    %9246 = vst [vmem:[#allocation12 + $0x640] sm:$0xff] %v8990
    %9247 = vst [vmem:[#allocation12 + $0x648] sm:$0xff] %v8991
    %9248 = vst [vmem:[#allocation12 + $0x650] sm:$0xff] %v8992
    %9249 = vst [vmem:[#allocation12 + $0x658] sm:$0xff] %v8993
    %9250 = vst [vmem:[#allocation12 + $0x660] sm:$0xff] %v8994
    %9251 = vst [vmem:[#allocation12 + $0x668] sm:$0xff] %v8995
    %9252 = vst [vmem:[#allocation12 + $0x670] sm:$0xff] %v8996
    %9253 = vst [vmem:[#allocation12 + $0x678] sm:$0xff] %v8997
    %9254 = vst [vmem:[#allocation12 + $0x680] sm:$0xff] %v8998
    %9255 = vst [vmem:[#allocation12 + $0x688] sm:$0xff] %v8999
    %9256 = vst [vmem:[#allocation12 + $0x690] sm:$0xff] %v9000
    %9257 = vst [vmem:[#allocation12 + $0x698] sm:$0xff] %v9001
    %9258 = vst [vmem:[#allocation12 + $0x6a0] sm:$0xff] %v9002
    %9259 = vst [vmem:[#allocation12 + $0x6a8] sm:$0xff] %v9003
    %9260 = vst [vmem:[#allocation12 + $0x6b0] sm:$0xff] %v9004
    %9261 = vst [vmem:[#allocation12 + $0x6b8] sm:$0xff] %v9005
    %9262 = vst [vmem:[#allocation12 + $0x6c0] sm:$0xff] %v9006
    %9263 = vst [vmem:[#allocation12 + $0x6c8] sm:$0xff] %v9007
    %9264 = vst [vmem:[#allocation12 + $0x6d0] sm:$0xff] %v9008
    %9265 = vst [vmem:[#allocation12 + $0x6d8] sm:$0xff] %v9009
    %9266 = vst [vmem:[#allocation12 + $0x6e0] sm:$0xff] %v9010
    %9267 = vst [vmem:[#allocation12 + $0x6e8] sm:$0xff] %v9011
    %9268 = vst [vmem:[#allocation12 + $0x6f0] sm:$0xff] %v9012
    %9269 = vst [vmem:[#allocation12 + $0x6f8] sm:$0xff] %v9013
    %9270 = vst [vmem:[#allocation12 + $0x700] sm:$0xff] %v9014
    %9271 = vst [vmem:[#allocation12 + $0x708] sm:$0xff] %v9015
    %9272 = vst [vmem:[#allocation12 + $0x710] sm:$0xff] %v9016
    %9273 = vst [vmem:[#allocation12 + $0x718] sm:$0xff] %v9017
    %9274 = vst [vmem:[#allocation12 + $0x720] sm:$0xff] %v9018
    %9275 = vst [vmem:[#allocation12 + $0x728] sm:$0xff] %v9019
    %9276 = vst [vmem:[#allocation12 + $0x730] sm:$0xff] %v9020
    %9277 = vst [vmem:[#allocation12 + $0x738] sm:$0xff] %v9021
    %9278 = vst [vmem:[#allocation12 + $0x740] sm:$0xff] %v9022
    %9279 = vst [vmem:[#allocation12 + $0x748] sm:$0xff] %v9023
    %9280 = vst [vmem:[#allocation12 + $0x750] sm:$0xff] %v9024
    %9281 = vst [vmem:[#allocation12 + $0x758] sm:$0xff] %v9025
    %9282 = vst [vmem:[#allocation12 + $0x760] sm:$0xff] %v9026
    %9283 = vst [vmem:[#allocation12 + $0x768] sm:$0xff] %v9027
    %9284 = vst [vmem:[#allocation12 + $0x770] sm:$0xff] %v9028
    %9285 = vst [vmem:[#allocation12 + $0x778] sm:$0xff] %v9029
    %9286 = vst [vmem:[#allocation12 + $0x780] sm:$0xff] %v9030
    %9287 = vst [vmem:[#allocation12 + $0x788] sm:$0xff] %v9031
    %9288 = vst [vmem:[#allocation12 + $0x790] sm:$0xff] %v9032
    %9289 = vst [vmem:[#allocation12 + $0x798] sm:$0xff] %v9033
    %9290 = vst [vmem:[#allocation12 + $0x7a0] sm:$0xff] %v9034
    %9291 = vst [vmem:[#allocation12 + $0x7a8] sm:$0xff] %v9035
    %9292 = vst [vmem:[#allocation12 + $0x7b0] sm:$0xff] %v9036
    %9293 = vst [vmem:[#allocation12 + $0x7b8] sm:$0xff] %v9037
    %9294 = vst [vmem:[#allocation12 + $0x7c0] sm:$0xff] %v9038
    %9295 = vst [vmem:[#allocation12 + $0x7c8] sm:$0xff] %v9039
    %9296 = vst [vmem:[#allocation12 + $0x7d0] sm:$0xff] %v9040
    %9297 = vst [vmem:[#allocation12 + $0x7d8] sm:$0xff] %v9041
    %9298 = vst [vmem:[#allocation12 + $0x7e0] sm:$0xff] %v9042
    %9299 = vst [vmem:[#allocation12 + $0x7e8] sm:$0xff] %v9043
    %9300 = vst [vmem:[#allocation12 + $0x7f0] sm:$0xff] %v9044
    %9301 = vst [vmem:[#allocation12 + $0x7f8] sm:$0xff] %v9045
    // Predicated region
    $region58: #{tpu_custom_call.1} parent=1 // pred_check
      _
    $region59: #{tpu_custom_call.1} parent=1 // pred_check_branch
      %9303 = sbr.rel (0) target = $region61
    $region60: #{tpu_custom_call.1} parent=1 // pred_region
      %s9305 = ssub.s32 32768, 32768
      %9306 = vsyncadd [#allocation6], %s9305
      %s9307 = sshll.u32 [#allocation12], 4
      %s9308 = int_to_ptr.vmem [resolvable:$true] %s9307
      %9313 = dma.vmem_to_hbm [thread:$0]  %s9308, 32768, %s10, [#allocation6], 512, 512, 32
    $region61: #{tpu_custom_call.1} parent=1 // pred_fallthru
      _
    // Predicated region
    $region62: #{tpu_custom_call.1} parent=1 // pred_check
      _
    $region63: #{tpu_custom_call.1} parent=1 // pred_check_branch
      %9315 = sbr.rel (0) target = $region65
    $region64: #{tpu_custom_call.1} parent=1 // pred_region
      %9316 = dma.done [#allocation6], 32768
    $region65: #{tpu_custom_call.1} parent=1 // pred_fallthru
      _
    %9317 = vsyncpa [#allocation5], 1
    %9318 = vsyncpa [#allocation8], 1
    %9319 = vsyncpa [#allocation11], 1
    %9320 = vsyncpa [#allocation6], 1

</llo_original>
